<compile_context>
chip_gen: v7x
topology: tpu7x:2x2x1
jax: 0.10.0
libtpu: 0.0.40
codegen_flags: <defaults>
</compile_context>

<pallas_src>
import functools

import numpy as np

import jax
import jax.numpy as jnp
from jax.experimental import pallas as pl
from jax.experimental.pallas import tpu as pltpu

C = 64            # channel count fixed by the module (Conv2d(64, 64, 3, padding=1))
KK = 9            # 3x3 taps
EPS = 1e-5        # BatchNorm eps (PyTorch default)
NUM_STAGES = 4
CENTER_TAP = 4    # tap (dy=0, dx=0)
MARGIN = 128      # lane-aligned halo margin of the im2col staging buffer


# ----------------------------------------------------------------------------
# Host-side helpers: bilinear upsample operators in "padded flat" coordinates
# ----------------------------------------------------------------------------
def _bilinear_matrix_1d(s_out, s_in):
    """1-D bilinear resize matrix, half-pixel centers (align_corners=False),
    identical to F.interpolate(mode='bilinear') tap weights for upsampling."""
    m = np.zeros((s_out, s_in), np.float32)
    scale = s_in / s_out
    for i in range(s_out):
        src = (i + 0.5) * scale - 0.5
        i0 = int(np.floor(src))
        f = src - i0
        m[i, min(max(i0, 0), s_in - 1)] += 1.0 - f
        m[i, min(max(i0 + 1, 0), s_in - 1)] += f
    return m


def _upsample_operator(shape_in, shape_out):
    """(P_in, P_out) right-multiply operator: padded-flat -> padded-flat resize.

    Rows of input-halo positions are zero (halo garbage ignored) and columns of
    output-halo positions are zero (clean zero halo for the next conv)."""
    (hi, wi), (ho, wo) = shape_in, shape_out
    u = np.kron(_bilinear_matrix_1d(ho, hi), _bilinear_matrix_1d(wo, wi))
    idx_in = ((np.arange(hi) + 1)[:, None] * (wi + 2)
              + (np.arange(wi) + 1)[None, :]).reshape(-1)
    idx_out = ((np.arange(ho) + 1)[:, None] * (wo + 2)
               + (np.arange(wo) + 1)[None, :]).reshape(-1)
    upad = np.zeros(((ho + 2) * (wo + 2), (hi + 2) * (wi + 2)), np.float32)
    upad[np.ix_(idx_out, idx_in)] = u
    return upad.T                                   # (P_in, P_out)


# ----------------------------------------------------------------------------
# Fused decoder kernel (one batch element per grid step)
# ----------------------------------------------------------------------------
def _decoder_kernel(x0_ref, x1_ref, x2_ref, x3_ref, w_ref, b_ref,
                    u1_ref, u2_ref, u3_ref, o_ref, col_ref, *, shapes):
    """x*_ref : (1, C, (H+2)*(W+2)) bf16  zero-padded skip inputs (channels-major)
       w_ref  : (4, C, 9C)          bf16  K-stacked conv weights, BN scale folded
       b_ref  : (4, C, 1)           f32   folded conv-bias + BN shift
       u*_ref : (P_prev, P_next)    bf16  bilinear upsample operators
       o_ref  : (1, C, P_last)      bf16  padded-flat output of the last stage
       col_ref: (9C, buf_lanes)     bf16  im2col staging buffer (+ halo margin)
    """
    buf_lanes = col_ref.shape[1]
    # Zero the centre-tap rows once: their margin lanes supply the conv zero
    # halo for the lane-shifted tap copies.  Every other row is fully rewritten
    # inside the dot's read window at each stage (shapes are monotone, asserted
    # host-side, so lanes beyond the current window stay at these zeros).
    col_ref[pl.ds(CENTER_TAP * C, C), :] = jnp.zeros((C, buf_lanes), col_ref.dtype)

    def conv_bn_relu(act_bf16, stage):
        h, w = shapes[stage]
        wp = w + 2
        p = (h + 2) * wp
        # K-stacked im2col: centre tap holds the activation; the other 8 row
        # blocks are constant-lane-shifted copies of it (tap (dy,dx) == lane
        # shift dy*wp+dx in padded-flat layout; halo zeros come from MARGIN).
        col_ref[pl.ds(CENTER_TAP * C, C), pl.ds(MARGIN, p)] = act_bf16
        for dy in (-1, 0, 1):
            for dx in (-1, 0, 1):
                tap = (dy + 1) * 3 + (dx + 1)
                if tap == CENTER_TAP:
                    continue
                col_ref[pl.ds(tap * C, C), pl.ds(MARGIN, p)] = (
                    col_ref[pl.ds(CENTER_TAP * C, C),
                            pl.ds(MARGIN + dy * wp + dx, p)])
        patch = col_ref[:, pl.ds(MARGIN, p)]                   # (9C, p) bf16
        # Single MXU dot per stage, K = 576 (accumulation stays inside the MXU).
        y = jnp.dot(w_ref[stage], patch,
                    preferred_element_type=jnp.float32)        # (C, p) f32
        return jnp.maximum(y + b_ref[stage], 0.0)

    y = conv_bn_relu(x0_ref[0], 0)
    for stage, u_ref, x_ref in ((1, u1_ref, x1_ref),
                                (2, u2_ref, x2_ref),
                                (3, u3_ref, x3_ref)):
        up = jnp.dot(y.astype(jnp.bfloat16), u_ref[...],
                     preferred_element_type=jnp.float32)       # bilinear upsample
        act = (x_ref[0].astype(jnp.float32) + up).astype(jnp.bfloat16)  # skip add
        y = conv_bn_relu(act, stage)
    o_ref[0] = y.astype(o_ref.dtype)


# ----------------------------------------------------------------------------
# Parameter construction (deterministic, synthetic), pre-folded for the kernel
# ----------------------------------------------------------------------------
def make_params(key):
    """Returns (w_all, b_all):
       w_all : (4, C, 9C) bf16, w_all[s, cout, (ky*3+kx)*C + cin]
               = conv_w[cout, cin, ky, kx] * bn_scale[cout]
       b_all : (4, C, 1)  f32,  bn_scale*(conv_b - bn_mean) + bn_beta
    """
    w_stages, biases = [], []
    for _ in range(NUM_STAGES):
        key, k1, k2, k3, k4, k5, k6 = jax.random.split(key, 7)
        w = jax.random.normal(k1, (C, C, 3, 3), jnp.float32) * 0.05
        b_conv = jax.random.normal(k2, (C,), jnp.float32) * 0.05
        gamma = 1.0 + 0.1 * jax.random.normal(k3, (C,), jnp.float32)
        beta = 0.1 * jax.random.normal(k4, (C,), jnp.float32)
        mean = 0.1 * jax.random.normal(k5, (C,), jnp.float32)
        var = jnp.abs(jax.random.normal(k6, (C,), jnp.float32)) + 0.5

        scale = gamma / jnp.sqrt(var + EPS)
        w_scaled = w * scale[:, None, None, None]          # fold BN scale into W
        # (Cout, Cin, ky, kx) -> (Cout, ky, kx, Cin) -> (Cout, 9*Cin)   [K-stacked]
        w_stages.append(jnp.transpose(w_scaled, (0, 2, 3, 1)).reshape(C, KK * C))
        biases.append((scale * (b_conv - mean) + beta).reshape(C, 1))

    w_all = jnp.stack(w_stages, axis=0).astype(jnp.bfloat16)      # (4, C, 9C)
    b_all = jnp.stack(biases, axis=0)                             # (4, C, 1)
    return w_all, b_all


# ----------------------------------------------------------------------------
# Full decoder forward (inputs/outputs in NCHW, matching the PyTorch module)
# ----------------------------------------------------------------------------
@jax.jit
def decoder_forward(x0, x1, x2, x3, params):
    """input1 = [x0, x1, x2, x3] in NCHW (low -> high resolution); returns NCHW."""
    w_all, b_all = params
    xs = (x0, x1, x2, x3)
    n = x0.shape[0]
    for x in xs:
        assert x.shape[0] == n and x.shape[1] == C, x.shape
    shapes = tuple((int(x.shape[2]), int(x.shape[3])) for x in xs)
    pads = tuple((h + 2) * (w + 2) for h, w in shapes)

    # Stage sizes must be non-decreasing (shared staging-buffer invariant) and
    # widths must fit inside the lane-aligned halo margin.
    assert all(pads[i] <= pads[i + 1] for i in range(NUM_STAGES - 1)), shapes
    assert all(w + 3 <= MARGIN for _, w in shapes), shapes
    buf_lanes = MARGIN + max(p + w + 3 for (_, w), p in zip(shapes, pads))
    buf_lanes = -(-buf_lanes // 128) * 128          # round up to 128 lanes

    # NCHW f32 -> channels-major padded-flat bf16 (N, C, (H+2)*(W+2)); the 1-px
    # pad supplies the conv zero halo; bf16 halves the dominant HBM traffic.
    xp = [jnp.pad(x, ((0, 0), (0, 0), (1, 1), (1, 1)))
          .astype(jnp.bfloat16).reshape(n, C, p)
          for x, p in zip(xs, pads)]

    uts = [jnp.asarray(_upsample_operator(shapes[i - 1], shapes[i]),
                       dtype=jnp.bfloat16) for i in range(1, NUM_STAGES)]

    flops = n * sum(2 * KK * C * C * p for p in pads)
    flops += n * sum(2 * C * pads[i - 1] * pads[i] for i in range(1, NUM_STAGES))
    bytes_accessed = (2 * n * C * sum(pads) + 2 * n * C * pads[-1]
                      + 2 * NUM_STAGES * KK * C * C + 4 * NUM_STAGES * C
                      + 2 * sum(pads[i - 1] * pads[i]
                                for i in range(1, NUM_STAGES)))

    out_pad = pl.pallas_call(
        functools.partial(_decoder_kernel, shapes=shapes),
        out_shape=jax.ShapeDtypeStruct((n, C, pads[-1]), jnp.bfloat16),
        grid_spec=pltpu.PrefetchScalarGridSpec(
            num_scalar_prefetch=0,
            grid=(n,),
            in_specs=[
                pl.BlockSpec((1, C, pads[0]), lambda i: (i, 0, 0)),
                pl.BlockSpec((1, C, pads[1]), lambda i: (i, 0, 0)),
                pl.BlockSpec((1, C, pads[2]), lambda i: (i, 0, 0)),
                pl.BlockSpec((1, C, pads[3]), lambda i: (i, 0, 0)),
                pl.BlockSpec((NUM_STAGES, C, KK * C), lambda i: (0, 0, 0)),
                pl.BlockSpec((NUM_STAGES, C, 1), lambda i: (0, 0, 0)),
                pl.BlockSpec((pads[0], pads[1]), lambda i: (0, 0)),
                pl.BlockSpec((pads[1], pads[2]), lambda i: (0, 0)),
                pl.BlockSpec((pads[2], pads[3]), lambda i: (0, 0)),
            ],
            out_specs=pl.BlockSpec((1, C, pads[-1]), lambda i: (i, 0, 0)),
            scratch_shapes=[pltpu.VMEM((KK * C, buf_lanes), jnp.bfloat16)],
        ),
        compiler_params=pltpu.CompilerParams(
            dimension_semantics=("parallel",)),
        cost_estimate=pl.CostEstimate(flops=int(flops), transcendentals=0,
                                      bytes_accessed=int(bytes_accessed)),
    )(xp[0], xp[1], xp[2], xp[3], w_all, b_all, uts[0], uts[1], uts[2])

    h3, w3 = shapes[-1]
    out = out_pad.reshape(n, C, h3 + 2, w3 + 2)[:, :, 1:h3 + 1, 1:w3 + 1]
    return out.astype(jnp.float32)


# ----------------------------------------------------------------------------
if __name__ == "__main__":
    key = jax.random.PRNGKey(0)
    pkey, dkey = jax.random.split(key)

    params = make_params(pkey)

    N = 2
    sizes = [4, 8, 16, 32]          # feature-pyramid spatial sizes (low -> high)
    input1 = []
    for s in sizes:
        dkey, sub = jax.random.split(dkey)
        input1.append(0.5 * jax.random.normal(sub, (N, C, s, s), jnp.float32))

    out = decoder_forward(input1[0], input1[1], input1[2], input1[3], params)
    out = jax.block_until_ready(out)

    assert out.shape == (N, C, sizes[-1], sizes[-1]), out.shape
    assert bool(jnp.all(jnp.isfinite(out)))
    print("KERNEL_OK")
</pallas_src>

<mosaic_0001>
module attributes {stable_mosaic.version = 11 : i64} {
  func.func @_decoder_kernel(%arg0: i32, %arg1: memref<1x64x36xbf16, #tpu.memory_space<vmem>>, %arg2: memref<1x64x100xbf16, #tpu.memory_space<vmem>>, %arg3: memref<1x64x324xbf16, #tpu.memory_space<vmem>>, %arg4: memref<1x64x1156xbf16, #tpu.memory_space<vmem>>, %arg5: memref<4x64x576xbf16, #tpu.memory_space<vmem>>, %arg6: memref<4x64x1xf32, #tpu.memory_space<vmem>>, %arg7: memref<36x100xbf16, #tpu.memory_space<vmem>>, %arg8: memref<100x324xbf16, #tpu.memory_space<vmem>>, %arg9: memref<324x1156xbf16, #tpu.memory_space<vmem>>, %arg10: memref<1x64x1156xbf16, #tpu.memory_space<vmem>>, %arg11: memref<576x1408xbf16, #tpu.memory_space<vmem>>) attributes {dimension_semantics = [#tpu.dimension_semantics<parallel>], iteration_bounds = array<i64: 2>, scalar_prefetch = 0 : i64, scratch_operands = 1 : i64, tpu.core_type = #tpu.core_type<tc>, window_params = [{transform_indices = @transform_0, window_bounds = array<i64: 1, 64, 36>}, {transform_indices = @transform_1, window_bounds = array<i64: 1, 64, 100>}, {transform_indices = @transform_2, window_bounds = array<i64: 1, 64, 324>}, {transform_indices = @transform_3, window_bounds = array<i64: 1, 64, 1156>}, {pipeline_mode = #tpu.pipeline_mode<synchronous>, transform_indices = @transform_4, window_bounds = array<i64: 4, 64, 576>}, {pipeline_mode = #tpu.pipeline_mode<synchronous>, transform_indices = @transform_5, window_bounds = array<i64: 4, 64, 1>}, {pipeline_mode = #tpu.pipeline_mode<synchronous>, transform_indices = @transform_6, window_bounds = array<i64: 36, 100>}, {pipeline_mode = #tpu.pipeline_mode<synchronous>, transform_indices = @transform_7, window_bounds = array<i64: 100, 324>}, {pipeline_mode = #tpu.pipeline_mode<synchronous>, transform_indices = @transform_8, window_bounds = array<i64: 324, 1156>}, {transform_indices = @transform_9, window_bounds = array<i64: 1, 64, 1156>}]} {
    %cst = arith.constant 0.000000e+00 : bf16
    %0 = vector.broadcast %cst : bf16 to vector<64x1408xbf16>
    %c256 = arith.constant 256 : index
    %c0 = arith.constant 0 : index
    %1 = vector.load %arg11[%c256, %c0] : memref<576x1408xbf16, #tpu.memory_space<vmem>>, vector<64x1408xbf16>
    tpu.vector_store %arg11[%c256, %c0], %0 {strides = array<i32>} : memref<576x1408xbf16, #tpu.memory_space<vmem>>, vector<64x1408xbf16>,
    %c0_0 = arith.constant 0 : index
    %c0_1 = arith.constant 0 : index
    %c0_2 = arith.constant 0 : index
    %2 = vector.load %arg1[%c0_0, %c0_1, %c0_2] : memref<1x64x36xbf16, #tpu.memory_space<vmem>>, vector<1x64x36xbf16>
    %3 = vector.shape_cast %2 : vector<1x64x36xbf16> to vector<64x36xbf16>
    %c256_3 = arith.constant 256 : index
    %c128 = arith.constant 128 : index
    %4 = vector.load %arg11[%c256_3, %c128] : memref<576x1408xbf16, #tpu.memory_space<vmem>>, vector<64x36xbf16>
    tpu.vector_store %arg11[%c256_3, %c128], %3 {strides = array<i32>} : memref<576x1408xbf16, #tpu.memory_space<vmem>>, vector<64x36xbf16>,
    %c256_4 = arith.constant 256 : index
    %c121 = arith.constant 121 : index
    %5 = vector.load %arg11[%c256_4, %c121] : memref<576x1408xbf16, #tpu.memory_space<vmem>>, vector<64x36xbf16>
    %c0_5 = arith.constant 0 : index
    %c128_6 = arith.constant 128 : index
    %6 = vector.load %arg11[%c0_5, %c128_6] : memref<576x1408xbf16, #tpu.memory_space<vmem>>, vector<64x36xbf16>
    tpu.vector_store %arg11[%c0_5, %c128_6], %5 {strides = array<i32>} : memref<576x1408xbf16, #tpu.memory_space<vmem>>, vector<64x36xbf16>,
    %c256_7 = arith.constant 256 : index
    %c122 = arith.constant 122 : index
    %7 = vector.load %arg11[%c256_7, %c122] : memref<576x1408xbf16, #tpu.memory_space<vmem>>, vector<64x36xbf16>
    %c64 = arith.constant 64 : index
    %c128_8 = arith.constant 128 : index
    %8 = vector.load %arg11[%c64, %c128_8] : memref<576x1408xbf16, #tpu.memory_space<vmem>>, vector<64x36xbf16>
    tpu.vector_store %arg11[%c64, %c128_8], %7 {strides = array<i32>} : memref<576x1408xbf16, #tpu.memory_space<vmem>>, vector<64x36xbf16>,
    %c256_9 = arith.constant 256 : index
    %c123 = arith.constant 123 : index
    %9 = vector.load %arg11[%c256_9, %c123] : memref<576x1408xbf16, #tpu.memory_space<vmem>>, vector<64x36xbf16>
    %c128_10 = arith.constant 128 : index
    %c128_11 = arith.constant 128 : index
    %10 = vector.load %arg11[%c128_10, %c128_11] : memref<576x1408xbf16, #tpu.memory_space<vmem>>, vector<64x36xbf16>
    tpu.vector_store %arg11[%c128_10, %c128_11], %9 {strides = array<i32>} : memref<576x1408xbf16, #tpu.memory_space<vmem>>, vector<64x36xbf16>,
    %c256_12 = arith.constant 256 : index
    %c127 = arith.constant 127 : index
    %11 = vector.load %arg11[%c256_12, %c127] : memref<576x1408xbf16, #tpu.memory_space<vmem>>, vector<64x36xbf16>
    %c192 = arith.constant 192 : index
    %c128_13 = arith.constant 128 : index
    %12 = vector.load %arg11[%c192, %c128_13] : memref<576x1408xbf16, #tpu.memory_space<vmem>>, vector<64x36xbf16>
    tpu.vector_store %arg11[%c192, %c128_13], %11 {strides = array<i32>} : memref<576x1408xbf16, #tpu.memory_space<vmem>>, vector<64x36xbf16>,
    %c256_14 = arith.constant 256 : index
    %c129 = arith.constant 129 : index
    %13 = vector.load %arg11[%c256_14, %c129] : memref<576x1408xbf16, #tpu.memory_space<vmem>>, vector<64x36xbf16>
    %c320 = arith.constant 320 : index
    %c128_15 = arith.constant 128 : index
    %14 = vector.load %arg11[%c320, %c128_15] : memref<576x1408xbf16, #tpu.memory_space<vmem>>, vector<64x36xbf16>
    tpu.vector_store %arg11[%c320, %c128_15], %13 {strides = array<i32>} : memref<576x1408xbf16, #tpu.memory_space<vmem>>, vector<64x36xbf16>,
    %c256_16 = arith.constant 256 : index
    %c133 = arith.constant 133 : index
    %15 = vector.load %arg11[%c256_16, %c133] : memref<576x1408xbf16, #tpu.memory_space<vmem>>, vector<64x36xbf16>
    %c384 = arith.constant 384 : index
    %c128_17 = arith.constant 128 : index
    %16 = vector.load %arg11[%c384, %c128_17] : memref<576x1408xbf16, #tpu.memory_space<vmem>>, vector<64x36xbf16>
    tpu.vector_store %arg11[%c384, %c128_17], %15 {strides = array<i32>} : memref<576x1408xbf16, #tpu.memory_space<vmem>>, vector<64x36xbf16>,
    %c256_18 = arith.constant 256 : index
    %c134 = arith.constant 134 : index
    %17 = vector.load %arg11[%c256_18, %c134] : memref<576x1408xbf16, #tpu.memory_space<vmem>>, vector<64x36xbf16>
    %c448 = arith.constant 448 : index
    %c128_19 = arith.constant 128 : index
    %18 = vector.load %arg11[%c448, %c128_19] : memref<576x1408xbf16, #tpu.memory_space<vmem>>, vector<64x36xbf16>
    tpu.vector_store %arg11[%c448, %c128_19], %17 {strides = array<i32>} : memref<576x1408xbf16, #tpu.memory_space<vmem>>, vector<64x36xbf16>,
    %c256_20 = arith.constant 256 : index
    %c135 = arith.constant 135 : index
    %19 = vector.load %arg11[%c256_20, %c135] : memref<576x1408xbf16, #tpu.memory_space<vmem>>, vector<64x36xbf16>
    %c512 = arith.constant 512 : index
    %c128_21 = arith.constant 128 : index
    %20 = vector.load %arg11[%c512, %c128_21] : memref<576x1408xbf16, #tpu.memory_space<vmem>>, vector<64x36xbf16>
    tpu.vector_store %arg11[%c512, %c128_21], %19 {strides = array<i32>} : memref<576x1408xbf16, #tpu.memory_space<vmem>>, vector<64x36xbf16>,
    %c0_22 = arith.constant 0 : index
    %c128_23 = arith.constant 128 : index
    %21 = vector.load %arg11[%c0_22, %c128_23] : memref<576x1408xbf16, #tpu.memory_space<vmem>>, vector<576x36xbf16>
    %c0_24 = arith.constant 0 : index
    %c0_25 = arith.constant 0 : index
    %c0_26 = arith.constant 0 : index
    %22 = vector.load %arg5[%c0_24, %c0_25, %c0_26] : memref<4x64x576xbf16, #tpu.memory_space<vmem>>, vector<1x64x576xbf16>
    %23 = vector.shape_cast %22 : vector<1x64x576xbf16> to vector<64x576xbf16>
    %cst_27 = arith.constant dense<0.000000e+00> : vector<64x36xf32>
    %24 = tpu.matmul %23, %21, %cst_27 {dimension_numbers = #tpu.dot_dimension_numbers<[1], [0], [0], [1], [0, 0, 1, 1], [], []>} : vector<64x576xbf16>, vector<576x36xbf16>, vector<64x36xf32> -> vector<64x36xf32>
    %c0_28 = arith.constant 0 : index
    %c0_29 = arith.constant 0 : index
    %c0_30 = arith.constant 0 : index
    %25 = vector.load %arg6[%c0_28, %c0_29, %c0_30] : memref<4x64x1xf32, #tpu.memory_space<vmem>>, vector<1x64x1xf32>
    %26 = vector.shape_cast %25 : vector<1x64x1xf32> to vector<64x1xf32>
    %27 = vector.broadcast %26 : vector<64x1xf32> to vector<64x36xf32>
    %28 = arith.addf %24, %27 : vector<64x36xf32>
    %cst_31 = arith.constant 0.000000e+00 : f32
    %29 = vector.broadcast %cst_31 : f32 to vector<64x36xf32>
    %30 = arith.maximumf %28, %29 : vector<64x36xf32>
    %31 = arith.truncf %30 : vector<64x36xf32> to vector<64x36xbf16>
    %c0_32 = arith.constant 0 : index
    %c0_33 = arith.constant 0 : index
    %32 = vector.load %arg7[%c0_32, %c0_33] : memref<36x100xbf16, #tpu.memory_space<vmem>>, vector<36x100xbf16>
    %cst_34 = arith.constant dense<0.000000e+00> : vector<64x100xf32>
    %33 = tpu.matmul %31, %32, %cst_34 {dimension_numbers = #tpu.dot_dimension_numbers<[1], [0], [0], [1], [0, 0, 1, 1], [], []>} : vector<64x36xbf16>, vector<36x100xbf16>, vector<64x100xf32> -> vector<64x100xf32>
    %c0_35 = arith.constant 0 : index
    %c0_36 = arith.constant 0 : index
    %c0_37 = arith.constant 0 : index
    %34 = vector.load %arg2[%c0_35, %c0_36, %c0_37] : memref<1x64x100xbf16, #tpu.memory_space<vmem>>, vector<1x64x100xbf16>
    %35 = vector.shape_cast %34 : vector<1x64x100xbf16> to vector<64x100xbf16>
    %36 = arith.extf %35 : vector<64x100xbf16> to vector<64x100xf32>
    %37 = arith.addf %36, %33 : vector<64x100xf32>
    %38 = arith.truncf %37 : vector<64x100xf32> to vector<64x100xbf16>
    %c256_38 = arith.constant 256 : index
    %c128_39 = arith.constant 128 : index
    %39 = vector.load %arg11[%c256_38, %c128_39] : memref<576x1408xbf16, #tpu.memory_space<vmem>>, vector<64x100xbf16>
    tpu.vector_store %arg11[%c256_38, %c128_39], %38 {strides = array<i32>} : memref<576x1408xbf16, #tpu.memory_space<vmem>>, vector<64x100xbf16>,
    %c256_40 = arith.constant 256 : index
    %c117 = arith.constant 117 : index
    %40 = vector.load %arg11[%c256_40, %c117] : memref<576x1408xbf16, #tpu.memory_space<vmem>>, vector<64x100xbf16>
    %c0_41 = arith.constant 0 : index
    %c128_42 = arith.constant 128 : index
    %41 = vector.load %arg11[%c0_41, %c128_42] : memref<576x1408xbf16, #tpu.memory_space<vmem>>, vector<64x100xbf16>
    tpu.vector_store %arg11[%c0_41, %c128_42], %40 {strides = array<i32>} : memref<576x1408xbf16, #tpu.memory_space<vmem>>, vector<64x100xbf16>,
    %c256_43 = arith.constant 256 : index
    %c118 = arith.constant 118 : index
    %42 = vector.load %arg11[%c256_43, %c118] : memref<576x1408xbf16, #tpu.memory_space<vmem>>, vector<64x100xbf16>
    %c64_44 = arith.constant 64 : index
    %c128_45 = arith.constant 128 : index
    %43 = vector.load %arg11[%c64_44, %c128_45] : memref<576x1408xbf16, #tpu.memory_space<vmem>>, vector<64x100xbf16>
    tpu.vector_store %arg11[%c64_44, %c128_45], %42 {strides = array<i32>} : memref<576x1408xbf16, #tpu.memory_space<vmem>>, vector<64x100xbf16>,
    %c256_46 = arith.constant 256 : index
    %c119 = arith.constant 119 : index
    %44 = vector.load %arg11[%c256_46, %c119] : memref<576x1408xbf16, #tpu.memory_space<vmem>>, vector<64x100xbf16>
    %c128_47 = arith.constant 128 : index
    %c128_48 = arith.constant 128 : index
    %45 = vector.load %arg11[%c128_47, %c128_48] : memref<576x1408xbf16, #tpu.memory_space<vmem>>, vector<64x100xbf16>
    tpu.vector_store %arg11[%c128_47, %c128_48], %44 {strides = array<i32>} : memref<576x1408xbf16, #tpu.memory_space<vmem>>, vector<64x100xbf16>,
    %c256_49 = arith.constant 256 : index
    %c127_50 = arith.constant 127 : index
    %46 = vector.load %arg11[%c256_49, %c127_50] : memref<576x1408xbf16, #tpu.memory_space<vmem>>, vector<64x100xbf16>
    %c192_51 = arith.constant 192 : index
    %c128_52 = arith.constant 128 : index
    %47 = vector.load %arg11[%c192_51, %c128_52] : memref<576x1408xbf16, #tpu.memory_space<vmem>>, vector<64x100xbf16>
    tpu.vector_store %arg11[%c192_51, %c128_52], %46 {strides = array<i32>} : memref<576x1408xbf16, #tpu.memory_space<vmem>>, vector<64x100xbf16>,
    %c256_53 = arith.constant 256 : index
    %c129_54 = arith.constant 129 : index
    %48 = vector.load %arg11[%c256_53, %c129_54] : memref<576x1408xbf16, #tpu.memory_space<vmem>>, vector<64x100xbf16>
    %c320_55 = arith.constant 320 : index
    %c128_56 = arith.constant 128 : index
    %49 = vector.load %arg11[%c320_55, %c128_56] : memref<576x1408xbf16, #tpu.memory_space<vmem>>, vector<64x100xbf16>
    tpu.vector_store %arg11[%c320_55, %c128_56], %48 {strides = array<i32>} : memref<576x1408xbf16, #tpu.memory_space<vmem>>, vector<64x100xbf16>,
    %c256_57 = arith.constant 256 : index
    %c137 = arith.constant 137 : index
    %50 = vector.load %arg11[%c256_57, %c137] : memref<576x1408xbf16, #tpu.memory_space<vmem>>, vector<64x100xbf16>
    %c384_58 = arith.constant 384 : index
    %c128_59 = arith.constant 128 : index
    %51 = vector.load %arg11[%c384_58, %c128_59] : memref<576x1408xbf16, #tpu.memory_space<vmem>>, vector<64x100xbf16>
    tpu.vector_store %arg11[%c384_58, %c128_59], %50 {strides = array<i32>} : memref<576x1408xbf16, #tpu.memory_space<vmem>>, vector<64x100xbf16>,
    %c256_60 = arith.constant 256 : index
    %c138 = arith.constant 138 : index
    %52 = vector.load %arg11[%c256_60, %c138] : memref<576x1408xbf16, #tpu.memory_space<vmem>>, vector<64x100xbf16>
    %c448_61 = arith.constant 448 : index
    %c128_62 = arith.constant 128 : index
    %53 = vector.load %arg11[%c448_61, %c128_62] : memref<576x1408xbf16, #tpu.memory_space<vmem>>, vector<64x100xbf16>
    tpu.vector_store %arg11[%c448_61, %c128_62], %52 {strides = array<i32>} : memref<576x1408xbf16, #tpu.memory_space<vmem>>, vector<64x100xbf16>,
    %c256_63 = arith.constant 256 : index
    %c139 = arith.constant 139 : index
    %54 = vector.load %arg11[%c256_63, %c139] : memref<576x1408xbf16, #tpu.memory_space<vmem>>, vector<64x100xbf16>
    %c512_64 = arith.constant 512 : index
    %c128_65 = arith.constant 128 : index
    %55 = vector.load %arg11[%c512_64, %c128_65] : memref<576x1408xbf16, #tpu.memory_space<vmem>>, vector<64x100xbf16>
    tpu.vector_store %arg11[%c512_64, %c128_65], %54 {strides = array<i32>} : memref<576x1408xbf16, #tpu.memory_space<vmem>>, vector<64x100xbf16>,
    %c0_66 = arith.constant 0 : index
    %c128_67 = arith.constant 128 : index
    %56 = vector.load %arg11[%c0_66, %c128_67] : memref<576x1408xbf16, #tpu.memory_space<vmem>>, vector<576x100xbf16>
    %c1 = arith.constant 1 : index
    %c0_68 = arith.constant 0 : index
    %c0_69 = arith.constant 0 : index
    %57 = vector.load %arg5[%c1, %c0_68, %c0_69] : memref<4x64x576xbf16, #tpu.memory_space<vmem>>, vector<1x64x576xbf16>
    %58 = vector.shape_cast %57 : vector<1x64x576xbf16> to vector<64x576xbf16>
    %cst_70 = arith.constant dense<0.000000e+00> : vector<64x100xf32>
    %59 = tpu.matmul %58, %56, %cst_70 {dimension_numbers = #tpu.dot_dimension_numbers<[1], [0], [0], [1], [0, 0, 1, 1], [], []>} : vector<64x576xbf16>, vector<576x100xbf16>, vector<64x100xf32> -> vector<64x100xf32>
    %c1_71 = arith.constant 1 : index
    %c0_72 = arith.constant 0 : index
    %c0_73 = arith.constant 0 : index
    %60 = vector.load %arg6[%c1_71, %c0_72, %c0_73] : memref<4x64x1xf32, #tpu.memory_space<vmem>>, vector<1x64x1xf32>
    %61 = vector.shape_cast %60 : vector<1x64x1xf32> to vector<64x1xf32>
    %62 = vector.broadcast %61 : vector<64x1xf32> to vector<64x100xf32>
    %63 = arith.addf %59, %62 : vector<64x100xf32>
    %cst_74 = arith.constant 0.000000e+00 : f32
    %64 = vector.broadcast %cst_74 : f32 to vector<64x100xf32>
    %65 = arith.maximumf %63, %64 : vector<64x100xf32>
    %66 = arith.truncf %65 : vector<64x100xf32> to vector<64x100xbf16>
    %c0_75 = arith.constant 0 : index
    %c0_76 = arith.constant 0 : index
    %67 = vector.load %arg8[%c0_75, %c0_76] : memref<100x324xbf16, #tpu.memory_space<vmem>>, vector<100x324xbf16>
    %cst_77 = arith.constant dense<0.000000e+00> : vector<64x324xf32>
    %68 = tpu.matmul %66, %67, %cst_77 {dimension_numbers = #tpu.dot_dimension_numbers<[1], [0], [0], [1], [0, 0, 1, 1], [], []>} : vector<64x100xbf16>, vector<100x324xbf16>, vector<64x324xf32> -> vector<64x324xf32>
    %c0_78 = arith.constant 0 : index
    %c0_79 = arith.constant 0 : index
    %c0_80 = arith.constant 0 : index
    %69 = vector.load %arg3[%c0_78, %c0_79, %c0_80] : memref<1x64x324xbf16, #tpu.memory_space<vmem>>, vector<1x64x324xbf16>
    %70 = vector.shape_cast %69 : vector<1x64x324xbf16> to vector<64x324xbf16>
    %71 = arith.extf %70 : vector<64x324xbf16> to vector<64x324xf32>
    %72 = arith.addf %71, %68 : vector<64x324xf32>
    %73 = arith.truncf %72 : vector<64x324xf32> to vector<64x324xbf16>
    %c256_81 = arith.constant 256 : index
    %c128_82 = arith.constant 128 : index
    %74 = vector.load %arg11[%c256_81, %c128_82] : memref<576x1408xbf16, #tpu.memory_space<vmem>>, vector<64x324xbf16>
    tpu.vector_store %arg11[%c256_81, %c128_82], %73 {strides = array<i32>} : memref<576x1408xbf16, #tpu.memory_space<vmem>>, vector<64x324xbf16>,
    %c256_83 = arith.constant 256 : index
    %c109 = arith.constant 109 : index
    %75 = vector.load %arg11[%c256_83, %c109] : memref<576x1408xbf16, #tpu.memory_space<vmem>>, vector<64x324xbf16>
    %c0_84 = arith.constant 0 : index
    %c128_85 = arith.constant 128 : index
    %76 = vector.load %arg11[%c0_84, %c128_85] : memref<576x1408xbf16, #tpu.memory_space<vmem>>, vector<64x324xbf16>
    tpu.vector_store %arg11[%c0_84, %c128_85], %75 {strides = array<i32>} : memref<576x1408xbf16, #tpu.memory_space<vmem>>, vector<64x324xbf16>,
    %c256_86 = arith.constant 256 : index
    %c110 = arith.constant 110 : index
    %77 = vector.load %arg11[%c256_86, %c110] : memref<576x1408xbf16, #tpu.memory_space<vmem>>, vector<64x324xbf16>
    %c64_87 = arith.constant 64 : index
    %c128_88 = arith.constant 128 : index
    %78 = vector.load %arg11[%c64_87, %c128_88] : memref<576x1408xbf16, #tpu.memory_space<vmem>>, vector<64x324xbf16>
    tpu.vector_store %arg11[%c64_87, %c128_88], %77 {strides = array<i32>} : memref<576x1408xbf16, #tpu.memory_space<vmem>>, vector<64x324xbf16>,
    %c256_89 = arith.constant 256 : index
    %c111 = arith.constant 111 : index
    %79 = vector.load %arg11[%c256_89, %c111] : memref<576x1408xbf16, #tpu.memory_space<vmem>>, vector<64x324xbf16>
    %c128_90 = arith.constant 128 : index
    %c128_91 = arith.constant 128 : index
    %80 = vector.load %arg11[%c128_90, %c128_91] : memref<576x1408xbf16, #tpu.memory_space<vmem>>, vector<64x324xbf16>
    tpu.vector_store %arg11[%c128_90, %c128_91], %79 {strides = array<i32>} : memref<576x1408xbf16, #tpu.memory_space<vmem>>, vector<64x324xbf16>,
    %c256_92 = arith.constant 256 : index
    %c127_93 = arith.constant 127 : index
    %81 = vector.load %arg11[%c256_92, %c127_93] : memref<576x1408xbf16, #tpu.memory_space<vmem>>, vector<64x324xbf16>
    %c192_94 = arith.constant 192 : index
    %c128_95 = arith.constant 128 : index
    %82 = vector.load %arg11[%c192_94, %c128_95] : memref<576x1408xbf16, #tpu.memory_space<vmem>>, vector<64x324xbf16>
    tpu.vector_store %arg11[%c192_94, %c128_95], %81 {strides = array<i32>} : memref<576x1408xbf16, #tpu.memory_space<vmem>>, vector<64x324xbf16>,
    %c256_96 = arith.constant 256 : index
    %c129_97 = arith.constant 129 : index
    %83 = vector.load %arg11[%c256_96, %c129_97] : memref<576x1408xbf16, #tpu.memory_space<vmem>>, vector<64x324xbf16>
    %c320_98 = arith.constant 320 : index
    %c128_99 = arith.constant 128 : index
    %84 = vector.load %arg11[%c320_98, %c128_99] : memref<576x1408xbf16, #tpu.memory_space<vmem>>, vector<64x324xbf16>
    tpu.vector_store %arg11[%c320_98, %c128_99], %83 {strides = array<i32>} : memref<576x1408xbf16, #tpu.memory_space<vmem>>, vector<64x324xbf16>,
    %c256_100 = arith.constant 256 : index
    %c145 = arith.constant 145 : index
    %85 = vector.load %arg11[%c256_100, %c145] : memref<576x1408xbf16, #tpu.memory_space<vmem>>, vector<64x324xbf16>
    %c384_101 = arith.constant 384 : index
    %c128_102 = arith.constant 128 : index
    %86 = vector.load %arg11[%c384_101, %c128_102] : memref<576x1408xbf16, #tpu.memory_space<vmem>>, vector<64x324xbf16>
    tpu.vector_store %arg11[%c384_101, %c128_102], %85 {strides = array<i32>} : memref<576x1408xbf16, #tpu.memory_space<vmem>>, vector<64x324xbf16>,
    %c256_103 = arith.constant 256 : index
    %c146 = arith.constant 146 : index
    %87 = vector.load %arg11[%c256_103, %c146] : memref<576x1408xbf16, #tpu.memory_space<vmem>>, vector<64x324xbf16>
    %c448_104 = arith.constant 448 : index
    %c128_105 = arith.constant 128 : index
    %88 = vector.load %arg11[%c448_104, %c128_105] : memref<576x1408xbf16, #tpu.memory_space<vmem>>, vector<64x324xbf16>
    tpu.vector_store %arg11[%c448_104, %c128_105], %87 {strides = array<i32>} : memref<576x1408xbf16, #tpu.memory_space<vmem>>, vector<64x324xbf16>,
    %c256_106 = arith.constant 256 : index
    %c147 = arith.constant 147 : index
    %89 = vector.load %arg11[%c256_106, %c147] : memref<576x1408xbf16, #tpu.memory_space<vmem>>, vector<64x324xbf16>
    %c512_107 = arith.constant 512 : index
    %c128_108 = arith.constant 128 : index
    %90 = vector.load %arg11[%c512_107, %c128_108] : memref<576x1408xbf16, #tpu.memory_space<vmem>>, vector<64x324xbf16>
    tpu.vector_store %arg11[%c512_107, %c128_108], %89 {strides = array<i32>} : memref<576x1408xbf16, #tpu.memory_space<vmem>>, vector<64x324xbf16>,
    %c0_109 = arith.constant 0 : index
    %c128_110 = arith.constant 128 : index
    %91 = vector.load %arg11[%c0_109, %c128_110] : memref<576x1408xbf16, #tpu.memory_space<vmem>>, vector<576x324xbf16>
    %c2 = arith.constant 2 : index
    %c0_111 = arith.constant 0 : index
    %c0_112 = arith.constant 0 : index
    %92 = vector.load %arg5[%c2, %c0_111, %c0_112] : memref<4x64x576xbf16, #tpu.memory_space<vmem>>, vector<1x64x576xbf16>
    %93 = vector.shape_cast %92 : vector<1x64x576xbf16> to vector<64x576xbf16>
    %cst_113 = arith.constant dense<0.000000e+00> : vector<64x324xf32>
    %94 = tpu.matmul %93, %91, %cst_113 {dimension_numbers = #tpu.dot_dimension_numbers<[1], [0], [0], [1], [0, 0, 1, 1], [], []>} : vector<64x576xbf16>, vector<576x324xbf16>, vector<64x324xf32> -> vector<64x324xf32>
    %c2_114 = arith.constant 2 : index
    %c0_115 = arith.constant 0 : index
    %c0_116 = arith.constant 0 : index
    %95 = vector.load %arg6[%c2_114, %c0_115, %c0_116] : memref<4x64x1xf32, #tpu.memory_space<vmem>>, vector<1x64x1xf32>
    %96 = vector.shape_cast %95 : vector<1x64x1xf32> to vector<64x1xf32>
    %97 = vector.broadcast %96 : vector<64x1xf32> to vector<64x324xf32>
    %98 = arith.addf %94, %97 : vector<64x324xf32>
    %cst_117 = arith.constant 0.000000e+00 : f32
    %99 = vector.broadcast %cst_117 : f32 to vector<64x324xf32>
    %100 = arith.maximumf %98, %99 : vector<64x324xf32>
    %101 = arith.truncf %100 : vector<64x324xf32> to vector<64x324xbf16>
    %c0_118 = arith.constant 0 : index
    %c0_119 = arith.constant 0 : index
    %102 = vector.load %arg9[%c0_118, %c0_119] : memref<324x1156xbf16, #tpu.memory_space<vmem>>, vector<324x1156xbf16>
    %cst_120 = arith.constant dense<0.000000e+00> : vector<64x1156xf32>
    %103 = tpu.matmul %101, %102, %cst_120 {dimension_numbers = #tpu.dot_dimension_numbers<[1], [0], [0], [1], [0, 0, 1, 1], [], []>} : vector<64x324xbf16>, vector<324x1156xbf16>, vector<64x1156xf32> -> vector<64x1156xf32>
    %c0_121 = arith.constant 0 : index
    %c0_122 = arith.constant 0 : index
    %c0_123 = arith.constant 0 : index
    %104 = vector.load %arg4[%c0_121, %c0_122, %c0_123] : memref<1x64x1156xbf16, #tpu.memory_space<vmem>>, vector<1x64x1156xbf16>
    %105 = vector.shape_cast %104 : vector<1x64x1156xbf16> to vector<64x1156xbf16>
    %106 = arith.extf %105 : vector<64x1156xbf16> to vector<64x1156xf32>
    %107 = arith.addf %106, %103 : vector<64x1156xf32>
    %108 = arith.truncf %107 : vector<64x1156xf32> to vector<64x1156xbf16>
    %c256_124 = arith.constant 256 : index
    %c128_125 = arith.constant 128 : index
    %109 = vector.load %arg11[%c256_124, %c128_125] : memref<576x1408xbf16, #tpu.memory_space<vmem>>, vector<64x1156xbf16>
    tpu.vector_store %arg11[%c256_124, %c128_125], %108 {strides = array<i32>} : memref<576x1408xbf16, #tpu.memory_space<vmem>>, vector<64x1156xbf16>,
    %c256_126 = arith.constant 256 : index
    %c93 = arith.constant 93 : index
    %110 = vector.load %arg11[%c256_126, %c93] : memref<576x1408xbf16, #tpu.memory_space<vmem>>, vector<64x1156xbf16>
    %c0_127 = arith.constant 0 : index
    %c128_128 = arith.constant 128 : index
    %111 = vector.load %arg11[%c0_127, %c128_128] : memref<576x1408xbf16, #tpu.memory_space<vmem>>, vector<64x1156xbf16>
    tpu.vector_store %arg11[%c0_127, %c128_128], %110 {strides = array<i32>} : memref<576x1408xbf16, #tpu.memory_space<vmem>>, vector<64x1156xbf16>,
    %c256_129 = arith.constant 256 : index
    %c94 = arith.constant 94 : index
    %112 = vector.load %arg11[%c256_129, %c94] : memref<576x1408xbf16, #tpu.memory_space<vmem>>, vector<64x1156xbf16>
    %c64_130 = arith.constant 64 : index
    %c128_131 = arith.constant 128 : index
    %113 = vector.load %arg11[%c64_130, %c128_131] : memref<576x1408xbf16, #tpu.memory_space<vmem>>, vector<64x1156xbf16>
    tpu.vector_store %arg11[%c64_130, %c128_131], %112 {strides = array<i32>} : memref<576x1408xbf16, #tpu.memory_space<vmem>>, vector<64x1156xbf16>,
    %c256_132 = arith.constant 256 : index
    %c95 = arith.constant 95 : index
    %114 = vector.load %arg11[%c256_132, %c95] : memref<576x1408xbf16, #tpu.memory_space<vmem>>, vector<64x1156xbf16>
    %c128_133 = arith.constant 128 : index
    %c128_134 = arith.constant 128 : index
    %115 = vector.load %arg11[%c128_133, %c128_134] : memref<576x1408xbf16, #tpu.memory_space<vmem>>, vector<64x1156xbf16>
    tpu.vector_store %arg11[%c128_133, %c128_134], %114 {strides = array<i32>} : memref<576x1408xbf16, #tpu.memory_space<vmem>>, vector<64x1156xbf16>,
    %c256_135 = arith.constant 256 : index
    %c127_136 = arith.constant 127 : index
    %116 = vector.load %arg11[%c256_135, %c127_136] : memref<576x1408xbf16, #tpu.memory_space<vmem>>, vector<64x1156xbf16>
    %c192_137 = arith.constant 192 : index
    %c128_138 = arith.constant 128 : index
    %117 = vector.load %arg11[%c192_137, %c128_138] : memref<576x1408xbf16, #tpu.memory_space<vmem>>, vector<64x1156xbf16>
    tpu.vector_store %arg11[%c192_137, %c128_138], %116 {strides = array<i32>} : memref<576x1408xbf16, #tpu.memory_space<vmem>>, vector<64x1156xbf16>,
    %c256_139 = arith.constant 256 : index
    %c129_140 = arith.constant 129 : index
    %118 = vector.load %arg11[%c256_139, %c129_140] : memref<576x1408xbf16, #tpu.memory_space<vmem>>, vector<64x1156xbf16>
    %c320_141 = arith.constant 320 : index
    %c128_142 = arith.constant 128 : index
    %119 = vector.load %arg11[%c320_141, %c128_142] : memref<576x1408xbf16, #tpu.memory_space<vmem>>, vector<64x1156xbf16>
    tpu.vector_store %arg11[%c320_141, %c128_142], %118 {strides = array<i32>} : memref<576x1408xbf16, #tpu.memory_space<vmem>>, vector<64x1156xbf16>,
    %c256_143 = arith.constant 256 : index
    %c161 = arith.constant 161 : index
    %120 = vector.load %arg11[%c256_143, %c161] : memref<576x1408xbf16, #tpu.memory_space<vmem>>, vector<64x1156xbf16>
    %c384_144 = arith.constant 384 : index
    %c128_145 = arith.constant 128 : index
    %121 = vector.load %arg11[%c384_144, %c128_145] : memref<576x1408xbf16, #tpu.memory_space<vmem>>, vector<64x1156xbf16>
    tpu.vector_store %arg11[%c384_144, %c128_145], %120 {strides = array<i32>} : memref<576x1408xbf16, #tpu.memory_space<vmem>>, vector<64x1156xbf16>,
    %c256_146 = arith.constant 256 : index
    %c162 = arith.constant 162 : index
    %122 = vector.load %arg11[%c256_146, %c162] : memref<576x1408xbf16, #tpu.memory_space<vmem>>, vector<64x1156xbf16>
    %c448_147 = arith.constant 448 : index
    %c128_148 = arith.constant 128 : index
    %123 = vector.load %arg11[%c448_147, %c128_148] : memref<576x1408xbf16, #tpu.memory_space<vmem>>, vector<64x1156xbf16>
    tpu.vector_store %arg11[%c448_147, %c128_148], %122 {strides = array<i32>} : memref<576x1408xbf16, #tpu.memory_space<vmem>>, vector<64x1156xbf16>,
    %c256_149 = arith.constant 256 : index
    %c163 = arith.constant 163 : index
    %124 = vector.load %arg11[%c256_149, %c163] : memref<576x1408xbf16, #tpu.memory_space<vmem>>, vector<64x1156xbf16>
    %c512_150 = arith.constant 512 : index
    %c128_151 = arith.constant 128 : index
    %125 = vector.load %arg11[%c512_150, %c128_151] : memref<576x1408xbf16, #tpu.memory_space<vmem>>, vector<64x1156xbf16>
    tpu.vector_store %arg11[%c512_150, %c128_151], %124 {strides = array<i32>} : memref<576x1408xbf16, #tpu.memory_space<vmem>>, vector<64x1156xbf16>,
    %c0_152 = arith.constant 0 : index
    %c128_153 = arith.constant 128 : index
    %126 = vector.load %arg11[%c0_152, %c128_153] : memref<576x1408xbf16, #tpu.memory_space<vmem>>, vector<576x1156xbf16>
    %c3 = arith.constant 3 : index
    %c0_154 = arith.constant 0 : index
    %c0_155 = arith.constant 0 : index
    %127 = vector.load %arg5[%c3, %c0_154, %c0_155] : memref<4x64x576xbf16, #tpu.memory_space<vmem>>, vector<1x64x576xbf16>
    %128 = vector.shape_cast %127 : vector<1x64x576xbf16> to vector<64x576xbf16>
    %cst_156 = arith.constant dense<0.000000e+00> : vector<64x1156xf32>
    %129 = tpu.matmul %128, %126, %cst_156 {dimension_numbers = #tpu.dot_dimension_numbers<[1], [0], [0], [1], [0, 0, 1, 1], [], []>} : vector<64x576xbf16>, vector<576x1156xbf16>, vector<64x1156xf32> -> vector<64x1156xf32>
    %c3_157 = arith.constant 3 : index
    %c0_158 = arith.constant 0 : index
    %c0_159 = arith.constant 0 : index
    %130 = vector.load %arg6[%c3_157, %c0_158, %c0_159] : memref<4x64x1xf32, #tpu.memory_space<vmem>>, vector<1x64x1xf32>
    %131 = vector.shape_cast %130 : vector<1x64x1xf32> to vector<64x1xf32>
    %132 = vector.broadcast %131 : vector<64x1xf32> to vector<64x1156xf32>
    %133 = arith.addf %129, %132 : vector<64x1156xf32>
    %cst_160 = arith.constant 0.000000e+00 : f32
    %134 = vector.broadcast %cst_160 : f32 to vector<64x1156xf32>
    %135 = arith.maximumf %133, %134 : vector<64x1156xf32>
    %136 = arith.truncf %135 : vector<64x1156xf32> to vector<64x1156xbf16>
    %c0_161 = arith.constant 0 : index
    %c0_162 = arith.constant 0 : index
    %c0_163 = arith.constant 0 : index
    %137 = vector.load %arg10[%c0_161, %c0_162, %c0_163] : memref<1x64x1156xbf16, #tpu.memory_space<vmem>>, vector<1x64x1156xbf16>
    %138 = vector.shape_cast %137 : vector<1x64x1156xbf16> to vector<64x1156xbf16>
    %139 = vector.shape_cast %136 : vector<64x1156xbf16> to vector<1x64x1156xbf16>
    tpu.vector_store %arg10[%c0_161, %c0_162, %c0_163], %139 {strides = array<i32>} : memref<1x64x1156xbf16, #tpu.memory_space<vmem>>, vector<1x64x1156xbf16>,
    return
  }
  func.func @transform_0(%arg0: i32) -> (i32, i32, i32) {
    %c0_i32 = arith.constant 0 : i32
    %c0_i32_0 = arith.constant 0 : i32
    %c0_i32_1 = arith.constant 0 : i32
    return %arg0, %c0_i32, %c0_i32_0 : i32, i32, i32
  }
  func.func @transform_1(%arg0: i32) -> (i32, i32, i32) {
    %c0_i32 = arith.constant 0 : i32
    %c0_i32_0 = arith.constant 0 : i32
    %c0_i32_1 = arith.constant 0 : i32
    return %arg0, %c0_i32, %c0_i32_0 : i32, i32, i32
  }
  func.func @transform_2(%arg0: i32) -> (i32, i32, i32) {
    %c0_i32 = arith.constant 0 : i32
    %c0_i32_0 = arith.constant 0 : i32
    %c0_i32_1 = arith.constant 0 : i32
    return %arg0, %c0_i32, %c0_i32_0 : i32, i32, i32
  }
  func.func @transform_3(%arg0: i32) -> (i32, i32, i32) {
    %c0_i32 = arith.constant 0 : i32
    %c0_i32_0 = arith.constant 0 : i32
    %c0_i32_1 = arith.constant 0 : i32
    return %arg0, %c0_i32, %c0_i32_0 : i32, i32, i32
  }
  func.func @transform_4(%arg0: i32) -> (i32, i32, i32) {
    %c0_i32 = arith.constant 0 : i32
    %c0_i32_0 = arith.constant 0 : i32
    %c0_i32_1 = arith.constant 0 : i32
    %c0_i32_2 = arith.constant 0 : i32
    return %c0_i32, %c0_i32_0, %c0_i32_1 : i32, i32, i32
  }
  func.func @transform_5(%arg0: i32) -> (i32, i32, i32) {
    %c0_i32 = arith.constant 0 : i32
    %c0_i32_0 = arith.constant 0 : i32
    %c0_i32_1 = arith.constant 0 : i32
    %c0_i32_2 = arith.constant 0 : i32
    return %c0_i32, %c0_i32_0, %c0_i32_1 : i32, i32, i32
  }
  func.func @transform_6(%arg0: i32) -> (i32, i32) {
    %c0_i32 = arith.constant 0 : i32
    %c0_i32_0 = arith.constant 0 : i32
    %c0_i32_1 = arith.constant 0 : i32
    return %c0_i32, %c0_i32_0 : i32, i32
  }
  func.func @transform_7(%arg0: i32) -> (i32, i32) {
    %c0_i32 = arith.constant 0 : i32
    %c0_i32_0 = arith.constant 0 : i32
    %c0_i32_1 = arith.constant 0 : i32
    return %c0_i32, %c0_i32_0 : i32, i32
  }
  func.func @transform_8(%arg0: i32) -> (i32, i32) {
    %c0_i32 = arith.constant 0 : i32
    %c0_i32_0 = arith.constant 0 : i32
    %c0_i32_1 = arith.constant 0 : i32
    return %c0_i32, %c0_i32_0 : i32, i32
  }
  func.func @transform_9(%arg0: i32) -> (i32, i32, i32) {
    %c0_i32 = arith.constant 0 : i32
    %c0_i32_0 = arith.constant 0 : i32
    %c0_i32_1 = arith.constant 0 : i32
    return %arg0, %c0_i32, %c0_i32_0 : i32, i32, i32
  }
}

</mosaic_0001>

<llo_original>
// kernel: decoder_forward.1
$region0: #{decoder_forward.1}
  #allocation0 [shape = 'u32[]', space=smem, size = 0x4, offset = 0x4, fixed_abs, tag = 'smem constant byte address 0x4 - core index']
  #allocation1 [shape = 'u32[144,128]{1,0:T(1,128)}', space=vmem, size = 0x12000, scoped, tag = 'internal scratch']
  #allocation2 [shape = 'bf16[576,1408]{1,0:T(16,128)(2,1)}', space=vmem, size = 0x18c000, scoped, tag = 'scratch operand']
  %s0 = inlined_call_operand.vmem [shape: bf16[2,64,36], index: 0, kind: input, shape index: {}]
  %s1 = inlined_call_operand.vmem [shape: bf16[2,64,100], index: 1, kind: input, shape index: {}]
  %s2 = inlined_call_operand.vmem [shape: bf16[2,64,324], index: 2, kind: input, shape index: {}]
  %s3 = inlined_call_operand.vmem [shape: bf16[2,64,1156], index: 3, kind: input, shape index: {}]
  %s4 = inlined_call_operand.vmem [shape: bf16[4,64,576], index: 4, kind: input, shape index: {}]
  %s5 = inlined_call_operand.vmem [shape: f32[4,64,1], index: 5, kind: input, shape index: {}]
  %s6 = inlined_call_operand.vmem [shape: bf16[36,100], index: 6, kind: input, shape index: {}]
  %s7 = inlined_call_operand.vmem [shape: bf16[100,324], index: 7, kind: input, shape index: {}]
  %s8 = inlined_call_operand.vmem [shape: bf16[324,1156], index: 8, kind: input, shape index: {}]
  %s9 = inlined_call_operand.vmem [shape: bf16[2,64,1156], index: 9, kind: output, shape index: {}]
  %s10 = sld [smem:[#allocation0]]
  $region69: #{decoder_forward.1} parent=0
    _
  %s12 = ssub.s32 1, %s10
  %s13 = scalar_select 0, %s12, %s10
  loop: start=0, step=1, limit=4
  $region2: #{decoder_forward.1} parent=0 // loop_pre_header
    _
  $region3: #{decoder_forward.1} parent=0 // loop_header
    %s15 = sphi 0, %s19
    %p16 = scmp.ge.s32.totalorder %s15, 4
    %s25 = sphi 0, %s27
    %s28 = sphi 0, %s25
    %s29 = sphi 0, %s28
    %s45 = sphi 0, %s29
    %s51 = sphi 0, %s53
    %s54 = sphi 0, %s51
    %s55 = sphi 0, %s54
    %s71 = sphi 0, %s55
    %s77 = sphi 0, %s79
    %s80 = sphi 0, %s77
    %s81 = sphi 0, %s80
    %s97 = sphi 0, %s81
    %s103 = sphi 0, %s105
    %s106 = sphi 0, %s103
    %s107 = sphi 0, %s106
    %s123 = sphi 0, %s107
    %s127 = sphi 0, %s127
    %s129 = sphi 0, %s127
    %s130 = sphi 0, %s129
    %s144 = sphi 0, %s130
    %s148 = sphi 0, %s148
    %s150 = sphi 0, %s148
    %s151 = sphi 0, %s150
    %s165 = sphi 0, %s151
    %s169 = sphi 0, %s169
    %s171 = sphi 0, %s169
    %s172 = sphi 0, %s171
    %s186 = sphi 0, %s172
    %s190 = sphi 0, %s190
    %s192 = sphi 0, %s190
    %s193 = sphi 0, %s192
    %s207 = sphi 0, %s193
    %s211 = sphi 0, %s211
    %s213 = sphi 0, %s211
    %s214 = sphi 0, %s213
    %s228 = sphi 0, %s214
    %s234 = sphi 0, %s236
    %s237 = sphi 0, %s234
    %s238 = sphi 0, %s237
    %s254 = sphi 0, %s238
  $region4: #{decoder_forward.1} parent=0 // loop_header_branch
    %18 = sbr.rel (%p16) target = $region8
  $region5: #{decoder_forward.1} parent=0 // loop_body
    %s20 = ssub.s32 %s15, 1
    %s21 = ssub.s32 %s15, 2
    %s22 = sadd.s32 %s15, 1
    %s23 = ssub.s32 %s15, %s22
    %p24 = scmp.eq.s32.totalorder %s23, 0
    %s26 = sadd.s32 %s25, 1
    %s27 = scalar_select %p24, %s25, %s26
    %p30 = pneg %p24
    %p31 = scmp.eq.s32.totalorder %s15, 1
    %p32 = por %p30, %p31
    %p33 = scmp.ne.s32.totalorder %s25, %s28
    %p34 = scmp.eq.s32.totalorder %s15, 0
    %p35 = por %p33, %p34
    %p36 = scmp.ne.s32.totalorder %s25, %s28
    %p37 = scmp.eq.s32.totalorder %s20, 1
    %p38 = por %p36, %p37
    %p39 = scmp.ne.s32.totalorder %s28, %s29
    %p40 = scmp.eq.s32.totalorder %s20, 0
    %p41 = por %p39, %p40
    %p42 = scmp.ne.s32.totalorder %s28, %s29
    %p43 = scmp.eq.s32.totalorder %s21, 1
    %p44 = por %p42, %p43
    %p46 = scmp.ne.s32.totalorder %s29, %s45
    %p47 = scmp.eq.s32.totalorder %s21, 0
    %p48 = por %p46, %p47
    %s49 = ssub.s32 %s15, %s22
    %p50 = scmp.eq.s32.totalorder %s49, 0
    %s52 = sadd.s32 %s51, 1
    %s53 = scalar_select %p50, %s51, %s52
    %p56 = pneg %p50
    %p57 = scmp.eq.s32.totalorder %s15, 1
    %p58 = por %p56, %p57
    %p59 = scmp.ne.s32.totalorder %s51, %s54
    %p60 = scmp.eq.s32.totalorder %s15, 0
    %p61 = por %p59, %p60
    %p62 = scmp.ne.s32.totalorder %s51, %s54
    %p63 = scmp.eq.s32.totalorder %s20, 1
    %p64 = por %p62, %p63
    %p65 = scmp.ne.s32.totalorder %s54, %s55
    %p66 = scmp.eq.s32.totalorder %s20, 0
    %p67 = por %p65, %p66
    %p68 = scmp.ne.s32.totalorder %s54, %s55
    %p69 = scmp.eq.s32.totalorder %s21, 1
    %p70 = por %p68, %p69
    %p72 = scmp.ne.s32.totalorder %s55, %s71
    %p73 = scmp.eq.s32.totalorder %s21, 0
    %p74 = por %p72, %p73
    %s75 = ssub.s32 %s15, %s22
    %p76 = scmp.eq.s32.totalorder %s75, 0
    %s78 = sadd.s32 %s77, 1
    %s79 = scalar_select %p76, %s77, %s78
    %p82 = pneg %p76
    %p83 = scmp.eq.s32.totalorder %s15, 1
    %p84 = por %p82, %p83
    %p85 = scmp.ne.s32.totalorder %s77, %s80
    %p86 = scmp.eq.s32.totalorder %s15, 0
    %p87 = por %p85, %p86
    %p88 = scmp.ne.s32.totalorder %s77, %s80
    %p89 = scmp.eq.s32.totalorder %s20, 1
    %p90 = por %p88, %p89
    %p91 = scmp.ne.s32.totalorder %s80, %s81
    %p92 = scmp.eq.s32.totalorder %s20, 0
    %p93 = por %p91, %p92
    %p94 = scmp.ne.s32.totalorder %s80, %s81
    %p95 = scmp.eq.s32.totalorder %s21, 1
    %p96 = por %p94, %p95
    %p98 = scmp.ne.s32.totalorder %s81, %s97
    %p99 = scmp.eq.s32.totalorder %s21, 0
    %p100 = por %p98, %p99
    %s101 = ssub.s32 %s15, %s22
    %p102 = scmp.eq.s32.totalorder %s101, 0
    %s104 = sadd.s32 %s103, 1
    %s105 = scalar_select %p102, %s103, %s104
    %p108 = pneg %p102
    %p109 = scmp.eq.s32.totalorder %s15, 1
    %p110 = por %p108, %p109
    %p111 = scmp.ne.s32.totalorder %s103, %s106
    %p112 = scmp.eq.s32.totalorder %s15, 0
    %p113 = por %p111, %p112
    %p114 = scmp.ne.s32.totalorder %s103, %s106
    %p115 = scmp.eq.s32.totalorder %s20, 1
    %p116 = por %p114, %p115
    %p117 = scmp.ne.s32.totalorder %s106, %s107
    %p118 = scmp.eq.s32.totalorder %s20, 0
    %p119 = por %p117, %p118
    %p120 = scmp.ne.s32.totalorder %s106, %s107
    %p121 = scmp.eq.s32.totalorder %s21, 1
    %p122 = por %p120, %p121
    %p124 = scmp.ne.s32.totalorder %s107, %s123
    %p125 = scmp.eq.s32.totalorder %s21, 0
    %p126 = por %p124, %p125
    %s128 = sadd.s32 %s127, 1
    %p131 = scmp.eq.s32.totalorder %s15, 1
    %p132 = scmp.ne.s32.totalorder %s127, %s129
    %p133 = scmp.eq.s32.totalorder %s15, 0
    %p134 = por %p132, %p133
    %p135 = scmp.ne.s32.totalorder %s127, %s129
    %p136 = scmp.eq.s32.totalorder %s20, 1
    %p137 = por %p135, %p136
    %p138 = scmp.ne.s32.totalorder %s129, %s130
    %p139 = scmp.eq.s32.totalorder %s20, 0
    %p140 = por %p138, %p139
    %p141 = scmp.ne.s32.totalorder %s129, %s130
    %p142 = scmp.eq.s32.totalorder %s21, 1
    %p143 = por %p141, %p142
    %p145 = scmp.ne.s32.totalorder %s130, %s144
    %p146 = scmp.eq.s32.totalorder %s21, 0
    %p147 = por %p145, %p146
    %s149 = sadd.s32 %s148, 1
    %p152 = scmp.eq.s32.totalorder %s15, 1
    %p153 = scmp.ne.s32.totalorder %s148, %s150
    %p154 = scmp.eq.s32.totalorder %s15, 0
    %p155 = por %p153, %p154
    %p156 = scmp.ne.s32.totalorder %s148, %s150
    %p157 = scmp.eq.s32.totalorder %s20, 1
    %p158 = por %p156, %p157
    %p159 = scmp.ne.s32.totalorder %s150, %s151
    %p160 = scmp.eq.s32.totalorder %s20, 0
    %p161 = por %p159, %p160
    %p162 = scmp.ne.s32.totalorder %s150, %s151
    %p163 = scmp.eq.s32.totalorder %s21, 1
    %p164 = por %p162, %p163
    %p166 = scmp.ne.s32.totalorder %s151, %s165
    %p167 = scmp.eq.s32.totalorder %s21, 0
    %p168 = por %p166, %p167
    %s170 = sadd.s32 %s169, 1
    %p173 = scmp.eq.s32.totalorder %s15, 1
    %p174 = scmp.ne.s32.totalorder %s169, %s171
    %p175 = scmp.eq.s32.totalorder %s15, 0
    %p176 = por %p174, %p175
    %p177 = scmp.ne.s32.totalorder %s169, %s171
    %p178 = scmp.eq.s32.totalorder %s20, 1
    %p179 = por %p177, %p178
    %p180 = scmp.ne.s32.totalorder %s171, %s172
    %p181 = scmp.eq.s32.totalorder %s20, 0
    %p182 = por %p180, %p181
    %p183 = scmp.ne.s32.totalorder %s171, %s172
    %p184 = scmp.eq.s32.totalorder %s21, 1
    %p185 = por %p183, %p184
    %p187 = scmp.ne.s32.totalorder %s172, %s186
    %p188 = scmp.eq.s32.totalorder %s21, 0
    %p189 = por %p187, %p188
    %s191 = sadd.s32 %s190, 1
    %p194 = scmp.eq.s32.totalorder %s15, 1
    %p195 = scmp.ne.s32.totalorder %s190, %s192
    %p196 = scmp.eq.s32.totalorder %s15, 0
    %p197 = por %p195, %p196
    %p198 = scmp.ne.s32.totalorder %s190, %s192
    %p199 = scmp.eq.s32.totalorder %s20, 1
    %p200 = por %p198, %p199
    %p201 = scmp.ne.s32.totalorder %s192, %s193
    %p202 = scmp.eq.s32.totalorder %s20, 0
    %p203 = por %p201, %p202
    %p204 = scmp.ne.s32.totalorder %s192, %s193
    %p205 = scmp.eq.s32.totalorder %s21, 1
    %p206 = por %p204, %p205
    %p208 = scmp.ne.s32.totalorder %s193, %s207
    %p209 = scmp.eq.s32.totalorder %s21, 0
    %p210 = por %p208, %p209
    %s212 = sadd.s32 %s211, 1
    %p215 = scmp.eq.s32.totalorder %s15, 1
    %p216 = scmp.ne.s32.totalorder %s211, %s213
    %p217 = scmp.eq.s32.totalorder %s15, 0
    %p218 = por %p216, %p217
    %p219 = scmp.ne.s32.totalorder %s211, %s213
    %p220 = scmp.eq.s32.totalorder %s20, 1
    %p221 = por %p219, %p220
    %p222 = scmp.ne.s32.totalorder %s213, %s214
    %p223 = scmp.eq.s32.totalorder %s20, 0
    %p224 = por %p222, %p223
    %p225 = scmp.ne.s32.totalorder %s213, %s214
    %p226 = scmp.eq.s32.totalorder %s21, 1
    %p227 = por %p225, %p226
    %p229 = scmp.ne.s32.totalorder %s214, %s228
    %p230 = scmp.eq.s32.totalorder %s21, 0
    %p231 = por %p229, %p230
    %s232 = ssub.s32 %s15, %s22
    %p233 = scmp.eq.s32.totalorder %s232, 0
    %s235 = sadd.s32 %s234, 1
    %s236 = scalar_select %p233, %s234, %s235
    %p239 = pneg %p233
    %p240 = scmp.eq.s32.totalorder %s15, 1
    %p241 = por %p239, %p240
    %p242 = scmp.ne.s32.totalorder %s234, %s237
    %p243 = scmp.eq.s32.totalorder %s15, 0
    %p244 = por %p242, %p243
    %p245 = scmp.ne.s32.totalorder %s234, %s237
    %p246 = scmp.eq.s32.totalorder %s20, 1
    %p247 = por %p245, %p246
    %p248 = scmp.ne.s32.totalorder %s237, %s238
    %p249 = scmp.eq.s32.totalorder %s20, 0
    %p250 = por %p248, %p249
    %p251 = scmp.ne.s32.totalorder %s237, %s238
    %p252 = scmp.eq.s32.totalorder %s21, 1
    %p253 = por %p251, %p252
    %p255 = scmp.ne.s32.totalorder %s238, %s254
    %p256 = scmp.eq.s32.totalorder %s21, 0
    %p257 = por %p255, %p256
    %p258 = scmp.le.s32.totalorder 1, %s15
    %p259 = scmp.lt.s32.totalorder %s15, 3
    %p260 = pnand %p258, %p259
    %p261 = pneg %p260
    // Predicated region
    $region9: #{decoder_forward.1} parent=5 // pred_check
      _
    $region10: #{decoder_forward.1} parent=5 // pred_check_branch
      %263 = sbr.rel (%p260) target = $region12
    $region11: #{decoder_forward.1} parent=5 // pred_region
      %s264 = ssub.s32 %s15, 1
      // Predicated region
      $region13: #{decoder_forward.1} parent=11 // pred_check
        %p265 = pneg %p140
      $region14: #{decoder_forward.1} parent=11 // pred_check_branch
        %267 = sbr.rel (%p265) target = $region16
      $region15: #{decoder_forward.1} parent=11 // pred_region
        _
      $region16: #{decoder_forward.1} parent=11 // pred_fallthru
        _
      // Predicated region
      $region17: #{decoder_forward.1} parent=11 // pred_check
        %p268 = pneg %p161
      $region18: #{decoder_forward.1} parent=11 // pred_check_branch
        %270 = sbr.rel (%p268) target = $region20
      $region19: #{decoder_forward.1} parent=11 // pred_region
        _
      $region20: #{decoder_forward.1} parent=11 // pred_fallthru
        _
      // Predicated region
      $region21: #{decoder_forward.1} parent=11 // pred_check
        %p271 = pneg %p182
      $region22: #{decoder_forward.1} parent=11 // pred_check_branch
        %273 = sbr.rel (%p271) target = $region24
      $region23: #{decoder_forward.1} parent=11 // pred_region
        _
      $region24: #{decoder_forward.1} parent=11 // pred_fallthru
        _
      // Predicated region
      $region25: #{decoder_forward.1} parent=11 // pred_check
        %p274 = pneg %p203
      $region26: #{decoder_forward.1} parent=11 // pred_check_branch
        %276 = sbr.rel (%p274) target = $region28
      $region27: #{decoder_forward.1} parent=11 // pred_region
        _
      $region28: #{decoder_forward.1} parent=11 // pred_fallthru
        _
      // Predicated region
      $region29: #{decoder_forward.1} parent=11 // pred_check
        %p277 = pneg %p224
      $region30: #{decoder_forward.1} parent=11 // pred_check_branch
        %279 = sbr.rel (%p277) target = $region32
      $region31: #{decoder_forward.1} parent=11 // pred_region
        _
      $region32: #{decoder_forward.1} parent=11 // pred_fallthru
        _
    $region12: #{decoder_forward.1} parent=5 // pred_fallthru
      _
    %p280 = scmp.lt.s32.totalorder %s15, 2
    // Predicated region
    $region33: #{decoder_forward.1} parent=5 // pred_check
      %p281 = pneg %p280
    $region34: #{decoder_forward.1} parent=5 // pred_check_branch
      %283 = sbr.rel (%p281) target = $region36
    $region35: #{decoder_forward.1} parent=5 // pred_region
      // Predicated region
      $region37: #{decoder_forward.1} parent=35 // pred_check
        %p284 = pneg %p35
      $region38: #{decoder_forward.1} parent=35 // pred_check_branch
        %286 = sbr.rel (%p284) target = $region40
      $region39: #{decoder_forward.1} parent=35 // pred_region
        %p287 = scmp.lt.s32.totalorder %s15, 1
        %s288 = scalar_select %p287, %s15, 1
        %s289 = smul.addr %s288, 8
        %s290 = smul.addr %s289, 4
        %s291 = scalar_lea.vmem %s0, %s290
      $region40: #{decoder_forward.1} parent=35 // pred_fallthru
        _
      // Predicated region
      $region41: #{decoder_forward.1} parent=35 // pred_check
        %p292 = pneg %p61
      $region42: #{decoder_forward.1} parent=35 // pred_check_branch
        %294 = sbr.rel (%p292) target = $region44
      $region43: #{decoder_forward.1} parent=35 // pred_region
        %p295 = scmp.lt.s32.totalorder %s15, 1
        %s296 = scalar_select %p295, %s15, 1
        %s297 = smul.addr %s296, 8
        %s298 = smul.addr %s297, 4
        %s299 = scalar_lea.vmem %s1, %s298
      $region44: #{decoder_forward.1} parent=35 // pred_fallthru
        _
      // Predicated region
      $region45: #{decoder_forward.1} parent=35 // pred_check
        %p300 = pneg %p87
      $region46: #{decoder_forward.1} parent=35 // pred_check_branch
        %302 = sbr.rel (%p300) target = $region48
      $region47: #{decoder_forward.1} parent=35 // pred_region
        %p303 = scmp.lt.s32.totalorder %s15, 1
        %s304 = scalar_select %p303, %s15, 1
        %s305 = smul.addr %s304, 24
        %s306 = smul.addr %s305, 4
        %s307 = scalar_lea.vmem %s2, %s306
      $region48: #{decoder_forward.1} parent=35 // pred_fallthru
        _
      // Predicated region
      $region49: #{decoder_forward.1} parent=35 // pred_check
        %p308 = pneg %p113
      $region50: #{decoder_forward.1} parent=35 // pred_check_branch
        %310 = sbr.rel (%p308) target = $region52
      $region51: #{decoder_forward.1} parent=35 // pred_region
        %p311 = scmp.lt.s32.totalorder %s15, 1
        %s312 = scalar_select %p311, %s15, 1
        %s313 = smul.addr %s312, 80
        %s314 = smul.addr %s313, 4
        %s315 = scalar_lea.vmem %s3, %s314
      $region52: #{decoder_forward.1} parent=35 // pred_fallthru
        _
    $region36: #{decoder_forward.1} parent=5 // pred_fallthru
      _
    %p316 = scmp.le.s32.totalorder 1, %s15
    %p317 = scmp.lt.s32.totalorder %s15, 3
    %p318 = pnand %p316, %p317
    %p319 = pneg %p318
    // Predicated region
    $region53: #{decoder_forward.1} parent=5 // pred_check
      _
    $region54: #{decoder_forward.1} parent=5 // pred_check_branch
      %321 = sbr.rel (%p318) target = $region56
    $region55: #{decoder_forward.1} parent=5 // pred_region
      %s322 = ssub.s32 %s15, 1
      %p323 = scmp.lt.s32.totalorder %s20, 1
      %s324 = scalar_select %p323, %s20, 1
      %s325 = smul.addr %s324, 8
      %s326 = smul.addr %s325, 4
      %s327 = scalar_lea.vmem %s0, %s326
      %p328 = pneg %p41
      %p329 = pneg %p38
      %p330 = scmp.lt.s32.totalorder %s20, 1
      %s331 = scalar_select %p330, %s20, 1
      %s332 = smul.addr %s331, 8
      %s333 = smul.addr %s332, 4
      %s334 = scalar_lea.vmem %s1, %s333
      %p335 = pneg %p67
      %p336 = pneg %p64
      %p337 = scmp.lt.s32.totalorder %s20, 1
      %s338 = scalar_select %p337, %s20, 1
      %s339 = smul.addr %s338, 24
      %s340 = smul.addr %s339, 4
      %s341 = scalar_lea.vmem %s2, %s340
      %p342 = pneg %p93
      %p343 = pneg %p90
      %p344 = scmp.lt.s32.totalorder %s20, 1
      %s345 = scalar_select %p344, %s20, 1
      %s346 = smul.addr %s345, 80
      %s347 = smul.addr %s346, 4
      %s348 = scalar_lea.vmem %s3, %s347
      %p349 = pneg %p119
      %p350 = pneg %p116
      %p351 = pneg %p140
      %p352 = pneg %p137
      %p353 = pneg %p161
      %p354 = pneg %p158
      %p355 = pneg %p182
      %p356 = pneg %p179
      %p357 = pneg %p203
      %p358 = pneg %p200
      %p359 = pneg %p224
      %p360 = pneg %p221
      %p361 = pneg %p250
      %p362 = pneg %p247
      %p363 = scmp.lt.s32.totalorder %s20, 1
      %s364 = scalar_select %p363, %s20, 1
      %s365 = smul.addr %s364, 80
      %s366 = smul.addr %s365, 4
      %s367 = scalar_lea.vmem %s9, %s366
      %p368 = scmp.lt.s32.totalorder %s20, 1
      %s369 = scalar_select %p368, %s20, 1
      %s370 = smul.addr %s369, 8
      %s371 = smul.addr %s370, 4
      %s372 = scalar_lea.vmem %s0, %s371
      %p373 = scmp.lt.s32.totalorder %s20, 1
      %s374 = scalar_select %p373, %s20, 1
      %s375 = smul.addr %s374, 8
      %s376 = smul.addr %s375, 4
      %s377 = scalar_lea.vmem %s1, %s376
      %p378 = scmp.lt.s32.totalorder %s20, 1
      %s379 = scalar_select %p378, %s20, 1
      %s380 = smul.addr %s379, 24
      %s381 = smul.addr %s380, 4
      %s382 = scalar_lea.vmem %s2, %s381
      %p383 = scmp.lt.s32.totalorder %s20, 1
      %s384 = scalar_select %p383, %s20, 1
      %s385 = smul.addr %s384, 80
      %s386 = smul.addr %s385, 4
      %s387 = scalar_lea.vmem %s3, %s386
      %p388 = scmp.lt.s32.totalorder %s20, 1
      %s389 = scalar_select %p388, %s20, 1
      %s390 = smul.addr %s389, 80
      %s391 = smul.addr %s390, 4
      %s392 = scalar_lea.vmem %s9, %s391
      %394 = vst [vmem:[#allocation2 + $0x580] sm:$0xff] 0
      %395 = vst [vmem:[#allocation2 + $0x588] sm:$0xff] 0
      %396 = vst [vmem:[#allocation2 + $0x590] sm:$0xff] 0
      %397 = vst [vmem:[#allocation2 + $0x598] sm:$0xff] 0
      %398 = vst [vmem:[#allocation2 + $0x5a0] sm:$0xff] 0
      %399 = vst [vmem:[#allocation2 + $0x5a8] sm:$0xff] 0
      %400 = vst [vmem:[#allocation2 + $0x5b0] sm:$0xff] 0
      %401 = vst [vmem:[#allocation2 + $0x5b8] sm:$0xff] 0
      %402 = vst [vmem:[#allocation2 + $0x5c0] sm:$0xff] 0
      %403 = vst [vmem:[#allocation2 + $0x5c8] sm:$0xff] 0
      %404 = vst [vmem:[#allocation2 + $0x5d0] sm:$0xff] 0
      %405 = vst [vmem:[#allocation2 + $0x5d8] sm:$0xff] 0
      %406 = vst [vmem:[#allocation2 + $0x5e0] sm:$0xff] 0
      %407 = vst [vmem:[#allocation2 + $0x5e8] sm:$0xff] 0
      %408 = vst [vmem:[#allocation2 + $0x5f0] sm:$0xff] 0
      %409 = vst [vmem:[#allocation2 + $0x5f8] sm:$0xff] 0
      %410 = vst [vmem:[#allocation2 + $0x600] sm:$0xff] 0
      %411 = vst [vmem:[#allocation2 + $0x608] sm:$0xff] 0
      %412 = vst [vmem:[#allocation2 + $0x610] sm:$0xff] 0
      %413 = vst [vmem:[#allocation2 + $0x618] sm:$0xff] 0
      %414 = vst [vmem:[#allocation2 + $0x620] sm:$0xff] 0
      %415 = vst [vmem:[#allocation2 + $0x628] sm:$0xff] 0
      %416 = vst [vmem:[#allocation2 + $0x630] sm:$0xff] 0
      %417 = vst [vmem:[#allocation2 + $0x638] sm:$0xff] 0
      %418 = vst [vmem:[#allocation2 + $0x640] sm:$0xff] 0
      %419 = vst [vmem:[#allocation2 + $0x648] sm:$0xff] 0
      %420 = vst [vmem:[#allocation2 + $0x650] sm:$0xff] 0
      %421 = vst [vmem:[#allocation2 + $0x658] sm:$0xff] 0
      %422 = vst [vmem:[#allocation2 + $0x660] sm:$0xff] 0
      %423 = vst [vmem:[#allocation2 + $0x668] sm:$0xff] 0
      %424 = vst [vmem:[#allocation2 + $0x670] sm:$0xff] 0
      %425 = vst [vmem:[#allocation2 + $0x678] sm:$0xff] 0
      %426 = vst [vmem:[#allocation2 + $0x680] sm:$0xff] 0
      %427 = vst [vmem:[#allocation2 + $0x688] sm:$0xff] 0
      %428 = vst [vmem:[#allocation2 + $0x690] sm:$0xff] 0
      %429 = vst [vmem:[#allocation2 + $0x698] sm:$0xff] 0
      %430 = vst [vmem:[#allocation2 + $0x6a0] sm:$0xff] 0
      %431 = vst [vmem:[#allocation2 + $0x6a8] sm:$0xff] 0
      %432 = vst [vmem:[#allocation2 + $0x6b0] sm:$0xff] 0
      %433 = vst [vmem:[#allocation2 + $0x6b8] sm:$0xff] 0
      %434 = vst [vmem:[#allocation2 + $0x6c0] sm:$0xff] 0
      %435 = vst [vmem:[#allocation2 + $0x6c8] sm:$0xff] 0
      %436 = vst [vmem:[#allocation2 + $0x6d0] sm:$0xff] 0
      %437 = vst [vmem:[#allocation2 + $0x6d8] sm:$0xff] 0
      %v438 = vld [vmem:[%s372] sm:$0xf]
      %v439 = vld [vmem:[%s372 + $0x4] sm:$0xf]
      %v440 = vld [vmem:[%s372 + $0x8] sm:$0xf]
      %v441 = vld [vmem:[%s372 + $0xc] sm:$0xf]
      %v442 = vld [vmem:[%s372 + $0x10] sm:$0xf]
      %v443 = vld [vmem:[%s372 + $0x14] sm:$0xf]
      %v444 = vld [vmem:[%s372 + $0x18] sm:$0xf]
      %v445 = vld [vmem:[%s372 + $0x1c] sm:$0xf]
      %v454 = vunpack.c.l.b16 %v438
      %v455 = vunpack.c.l.b16 %v439
      %v456 = vunpack.c.l.b16 %v440
      %v457 = vunpack.c.l.b16 %v441
      %v458 = vunpack.c.l.b16 %v442
      %v459 = vunpack.c.l.b16 %v443
      %v460 = vunpack.c.l.b16 %v444
      %v461 = vunpack.c.l.b16 %v445
      %v462 = vpack.c.b16 %v455, %v454
      %v463 = vpack.c.b16 %v457, %v456
      %v464 = vpack.c.b16 %v459, %v458
      %v465 = vpack.c.b16 %v461, %v460
      %vm470 = vcmask 293888
      %471 = vst.msk [vmem:[#allocation2 + $0x588] sm:$0xff] %vm470, %v462
      %472 = vst.msk [vmem:[#allocation2 + $0x5e0] sm:$0xff] %vm470, %v463
      %473 = vst.msk [vmem:[#allocation2 + $0x638] sm:$0xff] %vm470, %v464
      %474 = vst.msk [vmem:[#allocation2 + $0x690] sm:$0xff] %vm470, %v465
      %v475 = vld [vmem:[#allocation2 + $0x580] sm:$0xff]
      %v476 = vld [vmem:[#allocation2 + $0x588] sm:$0xff]
      %v477 = vld [vmem:[#allocation2 + $0x5d8] sm:$0xff]
      %v478 = vld [vmem:[#allocation2 + $0x5e0] sm:$0xff]
      %v479 = vld [vmem:[#allocation2 + $0x630] sm:$0xff]
      %v480 = vld [vmem:[#allocation2 + $0x638] sm:$0xff]
      %v481 = vld [vmem:[#allocation2 + $0x688] sm:$0xff]
      %v482 = vld [vmem:[#allocation2 + $0x690] sm:$0xff]
      %491 = vrot.lane.b32.xlu0 %v475, 7
      %v492 = vpop.permute.xlu0 %491
      %493 = vrot.lane.b32.xlu0 %v476, 7
      %v494 = vpop.permute.xlu0 %493
      %495 = vrot.lane.b32.xlu0 %v477, 7
      %v496 = vpop.permute.xlu0 %495
      %497 = vrot.lane.b32.xlu0 %v478, 7
      %v498 = vpop.permute.xlu0 %497
      %499 = vrot.lane.b32.xlu0 %v479, 7
      %v500 = vpop.permute.xlu0 %499
      %501 = vrot.lane.b32.xlu0 %v480, 7
      %v502 = vpop.permute.xlu0 %501
      %503 = vrot.lane.b32.xlu0 %v481, 7
      %v504 = vpop.permute.xlu0 %503
      %505 = vrot.lane.b32.xlu0 %v482, 7
      %v506 = vpop.permute.xlu0 %505
      %vm507 = vcmask 56320
      %v508 = vsel %vm507, %v492, %v494
      %v509 = vsel %vm507, %v496, %v498
      %v510 = vsel %vm507, %v500, %v502
      %v511 = vsel %vm507, %v504, %v506
      %516 = vst.msk [vmem:[#allocation2 + $0x8] sm:$0xff] %vm470, %v508
      %517 = vst.msk [vmem:[#allocation2 + $0x60] sm:$0xff] %vm470, %v509
      %518 = vst.msk [vmem:[#allocation2 + $0xb8] sm:$0xff] %vm470, %v510
      %519 = vst.msk [vmem:[#allocation2 + $0x110] sm:$0xff] %vm470, %v511
      %v520 = vld [vmem:[#allocation2 + $0x580] sm:$0xff]
      %v521 = vld [vmem:[#allocation2 + $0x588] sm:$0xff]
      %v522 = vld [vmem:[#allocation2 + $0x5d8] sm:$0xff]
      %v523 = vld [vmem:[#allocation2 + $0x5e0] sm:$0xff]
      %v524 = vld [vmem:[#allocation2 + $0x630] sm:$0xff]
      %v525 = vld [vmem:[#allocation2 + $0x638] sm:$0xff]
      %v526 = vld [vmem:[#allocation2 + $0x688] sm:$0xff]
      %v527 = vld [vmem:[#allocation2 + $0x690] sm:$0xff]
      %536 = vrot.lane.b32.xlu0 %v520, 6
      %v537 = vpop.permute.xlu0 %536
      %538 = vrot.lane.b32.xlu0 %v521, 6
      %v539 = vpop.permute.xlu0 %538
      %540 = vrot.lane.b32.xlu0 %v522, 6
      %v541 = vpop.permute.xlu0 %540
      %542 = vrot.lane.b32.xlu0 %v523, 6
      %v543 = vpop.permute.xlu0 %542
      %544 = vrot.lane.b32.xlu0 %v524, 6
      %v545 = vpop.permute.xlu0 %544
      %546 = vrot.lane.b32.xlu0 %v525, 6
      %v547 = vpop.permute.xlu0 %546
      %548 = vrot.lane.b32.xlu0 %v526, 6
      %v549 = vpop.permute.xlu0 %548
      %550 = vrot.lane.b32.xlu0 %v527, 6
      %v551 = vpop.permute.xlu0 %550
      %vm552 = vcmask 48128
      %v553 = vsel %vm552, %v537, %v539
      %v554 = vsel %vm552, %v541, %v543
      %v555 = vsel %vm552, %v545, %v547
      %v556 = vsel %vm552, %v549, %v551
      %561 = vst.msk [vmem:[#allocation2 + $0x168] sm:$0xff] %vm470, %v553
      %562 = vst.msk [vmem:[#allocation2 + $0x1c0] sm:$0xff] %vm470, %v554
      %563 = vst.msk [vmem:[#allocation2 + $0x218] sm:$0xff] %vm470, %v555
      %564 = vst.msk [vmem:[#allocation2 + $0x270] sm:$0xff] %vm470, %v556
      %v565 = vld [vmem:[#allocation2 + $0x580] sm:$0xff]
      %v566 = vld [vmem:[#allocation2 + $0x588] sm:$0xff]
      %v567 = vld [vmem:[#allocation2 + $0x5d8] sm:$0xff]
      %v568 = vld [vmem:[#allocation2 + $0x5e0] sm:$0xff]
      %v569 = vld [vmem:[#allocation2 + $0x630] sm:$0xff]
      %v570 = vld [vmem:[#allocation2 + $0x638] sm:$0xff]
      %v571 = vld [vmem:[#allocation2 + $0x688] sm:$0xff]
      %v572 = vld [vmem:[#allocation2 + $0x690] sm:$0xff]
      %581 = vrot.lane.b32.xlu0 %v565, 5
      %v582 = vpop.permute.xlu0 %581
      %583 = vrot.lane.b32.xlu0 %v566, 5
      %v584 = vpop.permute.xlu0 %583
      %585 = vrot.lane.b32.xlu0 %v567, 5
      %v586 = vpop.permute.xlu0 %585
      %587 = vrot.lane.b32.xlu0 %v568, 5
      %v588 = vpop.permute.xlu0 %587
      %589 = vrot.lane.b32.xlu0 %v569, 5
      %v590 = vpop.permute.xlu0 %589
      %591 = vrot.lane.b32.xlu0 %v570, 5
      %v592 = vpop.permute.xlu0 %591
      %593 = vrot.lane.b32.xlu0 %v571, 5
      %v594 = vpop.permute.xlu0 %593
      %595 = vrot.lane.b32.xlu0 %v572, 5
      %v596 = vpop.permute.xlu0 %595
      %vm597 = vcmask 39936
      %v598 = vsel %vm597, %v582, %v584
      %v599 = vsel %vm597, %v586, %v588
      %v600 = vsel %vm597, %v590, %v592
      %v601 = vsel %vm597, %v594, %v596
      %606 = vst.msk [vmem:[#allocation2 + $0x2c8] sm:$0xff] %vm470, %v598
      %607 = vst.msk [vmem:[#allocation2 + $0x320] sm:$0xff] %vm470, %v599
      %608 = vst.msk [vmem:[#allocation2 + $0x378] sm:$0xff] %vm470, %v600
      %609 = vst.msk [vmem:[#allocation2 + $0x3d0] sm:$0xff] %vm470, %v601
      %v610 = vld [vmem:[#allocation2 + $0x580] sm:$0xff]
      %v611 = vld [vmem:[#allocation2 + $0x588] sm:$0xff]
      %v612 = vld [vmem:[#allocation2 + $0x5d8] sm:$0xff]
      %v613 = vld [vmem:[#allocation2 + $0x5e0] sm:$0xff]
      %v614 = vld [vmem:[#allocation2 + $0x630] sm:$0xff]
      %v615 = vld [vmem:[#allocation2 + $0x638] sm:$0xff]
      %v616 = vld [vmem:[#allocation2 + $0x688] sm:$0xff]
      %v617 = vld [vmem:[#allocation2 + $0x690] sm:$0xff]
      %626 = vrot.lane.b32.xlu0 %v610, 1
      %v627 = vpop.permute.xlu0 %626
      %628 = vrot.lane.b32.xlu0 %v611, 1
      %v629 = vpop.permute.xlu0 %628
      %630 = vrot.lane.b32.xlu0 %v612, 1
      %v631 = vpop.permute.xlu0 %630
      %632 = vrot.lane.b32.xlu0 %v613, 1
      %v633 = vpop.permute.xlu0 %632
      %634 = vrot.lane.b32.xlu0 %v614, 1
      %v635 = vpop.permute.xlu0 %634
      %636 = vrot.lane.b32.xlu0 %v615, 1
      %v637 = vpop.permute.xlu0 %636
      %638 = vrot.lane.b32.xlu0 %v616, 1
      %v639 = vpop.permute.xlu0 %638
      %640 = vrot.lane.b32.xlu0 %v617, 1
      %v641 = vpop.permute.xlu0 %640
      %vm642 = vcmask 7168
      %v643 = vsel %vm642, %v627, %v629
      %v644 = vsel %vm642, %v631, %v633
      %v645 = vsel %vm642, %v635, %v637
      %v646 = vsel %vm642, %v639, %v641
      %651 = vst.msk [vmem:[#allocation2 + $0x428] sm:$0xff] %vm470, %v643
      %652 = vst.msk [vmem:[#allocation2 + $0x480] sm:$0xff] %vm470, %v644
      %653 = vst.msk [vmem:[#allocation2 + $0x4d8] sm:$0xff] %vm470, %v645
      %654 = vst.msk [vmem:[#allocation2 + $0x530] sm:$0xff] %vm470, %v646
      %v655 = vld [vmem:[#allocation2 + $0x588] sm:$0xff]
      %v656 = vld [vmem:[#allocation2 + $0x5e0] sm:$0xff]
      %v657 = vld [vmem:[#allocation2 + $0x638] sm:$0xff]
      %v658 = vld [vmem:[#allocation2 + $0x690] sm:$0xff]
      %663 = vrot.lane.b32.xlu0 %v655, 127
      %v664 = vpop.permute.xlu0 %663
      %665 = vrot.lane.b32.xlu0 %v656, 127
      %v666 = vpop.permute.xlu0 %665
      %667 = vrot.lane.b32.xlu0 %v657, 127
      %v668 = vpop.permute.xlu0 %667
      %669 = vrot.lane.b32.xlu0 %v658, 127
      %v670 = vpop.permute.xlu0 %669
      %675 = vst.msk [vmem:[#allocation2 + $0x6e8] sm:$0xff] %vm470, %v664
      %676 = vst.msk [vmem:[#allocation2 + $0x740] sm:$0xff] %vm470, %v666
      %677 = vst.msk [vmem:[#allocation2 + $0x798] sm:$0xff] %vm470, %v668
      %678 = vst.msk [vmem:[#allocation2 + $0x7f0] sm:$0xff] %vm470, %v670
      %v679 = vld [vmem:[#allocation2 + $0x588] sm:$0xff]
      %v680 = vld [vmem:[#allocation2 + $0x5e0] sm:$0xff]
      %v681 = vld [vmem:[#allocation2 + $0x638] sm:$0xff]
      %v682 = vld [vmem:[#allocation2 + $0x690] sm:$0xff]
      %687 = vrot.lane.b32.xlu0 %v679, 123
      %v688 = vpop.permute.xlu0 %687
      %689 = vrot.lane.b32.xlu0 %v680, 123
      %v690 = vpop.permute.xlu0 %689
      %691 = vrot.lane.b32.xlu0 %v681, 123
      %v692 = vpop.permute.xlu0 %691
      %693 = vrot.lane.b32.xlu0 %v682, 123
      %v694 = vpop.permute.xlu0 %693
      %699 = vst.msk [vmem:[#allocation2 + $0x848] sm:$0xff] %vm470, %v688
      %700 = vst.msk [vmem:[#allocation2 + $0x8a0] sm:$0xff] %vm470, %v690
      %701 = vst.msk [vmem:[#allocation2 + $0x8f8] sm:$0xff] %vm470, %v692
      %702 = vst.msk [vmem:[#allocation2 + $0x950] sm:$0xff] %vm470, %v694
      %v703 = vld [vmem:[#allocation2 + $0x588] sm:$0xff]
      %v704 = vld [vmem:[#allocation2 + $0x5e0] sm:$0xff]
      %v705 = vld [vmem:[#allocation2 + $0x638] sm:$0xff]
      %v706 = vld [vmem:[#allocation2 + $0x690] sm:$0xff]
      %711 = vrot.lane.b32.xlu0 %v703, 122
      %v712 = vpop.permute.xlu0 %711
      %713 = vrot.lane.b32.xlu0 %v704, 122
      %v714 = vpop.permute.xlu0 %713
      %715 = vrot.lane.b32.xlu0 %v705, 122
      %v716 = vpop.permute.xlu0 %715
      %717 = vrot.lane.b32.xlu0 %v706, 122
      %v718 = vpop.permute.xlu0 %717
      %723 = vst.msk [vmem:[#allocation2 + $0x9a8] sm:$0xff] %vm470, %v712
      %724 = vst.msk [vmem:[#allocation2 + $0xa00] sm:$0xff] %vm470, %v714
      %725 = vst.msk [vmem:[#allocation2 + $0xa58] sm:$0xff] %vm470, %v716
      %726 = vst.msk [vmem:[#allocation2 + $0xab0] sm:$0xff] %vm470, %v718
      %v727 = vld [vmem:[#allocation2 + $0x588] sm:$0xff]
      %v728 = vld [vmem:[#allocation2 + $0x5e0] sm:$0xff]
      %v729 = vld [vmem:[#allocation2 + $0x638] sm:$0xff]
      %v730 = vld [vmem:[#allocation2 + $0x690] sm:$0xff]
      %735 = vrot.lane.b32.xlu0 %v727, 121
      %v736 = vpop.permute.xlu0 %735
      %737 = vrot.lane.b32.xlu0 %v728, 121
      %v738 = vpop.permute.xlu0 %737
      %739 = vrot.lane.b32.xlu0 %v729, 121
      %v740 = vpop.permute.xlu0 %739
      %741 = vrot.lane.b32.xlu0 %v730, 121
      %v742 = vpop.permute.xlu0 %741
      %747 = vst.msk [vmem:[#allocation2 + $0xb08] sm:$0xff] %vm470, %v736
      %748 = vst.msk [vmem:[#allocation2 + $0xb60] sm:$0xff] %vm470, %v738
      %749 = vst.msk [vmem:[#allocation2 + $0xbb8] sm:$0xff] %vm470, %v740
      %750 = vst.msk [vmem:[#allocation2 + $0xc10] sm:$0xff] %vm470, %v742
      %v751 = vld [vmem:[#allocation2 + $0x8] sm:$0xff]
      %v752 = vld [vmem:[#allocation2 + $0x60] sm:$0xff]
      %v753 = vld [vmem:[#allocation2 + $0xb8] sm:$0xff]
      %v754 = vld [vmem:[#allocation2 + $0x110] sm:$0xff]
      %v755 = vld [vmem:[#allocation2 + $0x168] sm:$0xff]
      %v756 = vld [vmem:[#allocation2 + $0x1c0] sm:$0xff]
      %v757 = vld [vmem:[#allocation2 + $0x218] sm:$0xff]
      %v758 = vld [vmem:[#allocation2 + $0x270] sm:$0xff]
      %v759 = vld [vmem:[#allocation2 + $0x2c8] sm:$0xff]
      %v760 = vld [vmem:[#allocation2 + $0x320] sm:$0xff]
      %v761 = vld [vmem:[#allocation2 + $0x378] sm:$0xff]
      %v762 = vld [vmem:[#allocation2 + $0x3d0] sm:$0xff]
      %v763 = vld [vmem:[#allocation2 + $0x428] sm:$0xff]
      %v764 = vld [vmem:[#allocation2 + $0x480] sm:$0xff]
      %v765 = vld [vmem:[#allocation2 + $0x4d8] sm:$0xff]
      %v766 = vld [vmem:[#allocation2 + $0x530] sm:$0xff]
      %v767 = vld [vmem:[#allocation2 + $0x588] sm:$0xff]
      %v768 = vld [vmem:[#allocation2 + $0x5e0] sm:$0xff]
      %v769 = vld [vmem:[#allocation2 + $0x638] sm:$0xff]
      %v770 = vld [vmem:[#allocation2 + $0x690] sm:$0xff]
      %v771 = vld [vmem:[#allocation2 + $0x6e8] sm:$0xff]
      %v772 = vld [vmem:[#allocation2 + $0x740] sm:$0xff]
      %v773 = vld [vmem:[#allocation2 + $0x798] sm:$0xff]
      %v774 = vld [vmem:[#allocation2 + $0x7f0] sm:$0xff]
      %v775 = vld [vmem:[#allocation2 + $0x848] sm:$0xff]
      %v776 = vld [vmem:[#allocation2 + $0x8a0] sm:$0xff]
      %v777 = vld [vmem:[#allocation2 + $0x8f8] sm:$0xff]
      %v778 = vld [vmem:[#allocation2 + $0x950] sm:$0xff]
      %v779 = vld [vmem:[#allocation2 + $0x9a8] sm:$0xff]
      %v780 = vld [vmem:[#allocation2 + $0xa00] sm:$0xff]
      %v781 = vld [vmem:[#allocation2 + $0xa58] sm:$0xff]
      %v782 = vld [vmem:[#allocation2 + $0xab0] sm:$0xff]
      %v783 = vld [vmem:[#allocation2 + $0xb08] sm:$0xff]
      %v784 = vld [vmem:[#allocation2 + $0xb60] sm:$0xff]
      %v785 = vld [vmem:[#allocation2 + $0xbb8] sm:$0xff]
      %v786 = vld [vmem:[#allocation2 + $0xc10] sm:$0xff]
      %v787 = vld [vmem:[%s4] sm:$0xff]
      %v788 = vld [vmem:[%s4 + $0x8] sm:$0xff]
      %v789 = vld [vmem:[%s4 + $0x10] sm:$0xf]
      %v790 = vld [vmem:[%s4 + $0x14] sm:$0xff]
      %v791 = vld [vmem:[%s4 + $0x1c] sm:$0xff]
      %v792 = vld [vmem:[%s4 + $0x24] sm:$0xf]
      %v793 = vld [vmem:[%s4 + $0x28] sm:$0xff]
      %v794 = vld [vmem:[%s4 + $0x30] sm:$0xff]
      %v795 = vld [vmem:[%s4 + $0x38] sm:$0xf]
      %v796 = vld [vmem:[%s4 + $0x3c] sm:$0xff]
      %v797 = vld [vmem:[%s4 + $0x44] sm:$0xff]
      %v798 = vld [vmem:[%s4 + $0x4c] sm:$0xf]
      %v799 = vld [vmem:[%s4 + $0x50] sm:$0xff]
      %v800 = vld [vmem:[%s4 + $0x58] sm:$0xff]
      %v801 = vld [vmem:[%s4 + $0x60] sm:$0xf]
      %v802 = vld [vmem:[%s4 + $0x64] sm:$0xff]
      %v803 = vld [vmem:[%s4 + $0x6c] sm:$0xff]
      %v804 = vld [vmem:[%s4 + $0x74] sm:$0xf]
      %v805 = vld [vmem:[%s4 + $0x78] sm:$0xff]
      %v806 = vld [vmem:[%s4 + $0x80] sm:$0xff]
      %v807 = vld [vmem:[%s4 + $0x88] sm:$0xf]
      %v808 = vld [vmem:[%s4 + $0x8c] sm:$0xff]
      %v809 = vld [vmem:[%s4 + $0x94] sm:$0xff]
      %v810 = vld [vmem:[%s4 + $0x9c] sm:$0xf]
      %v811 = vld [vmem:[%s5] sm:$0xff]
      %v812 = vld [vmem:[%s5 + $0x8] sm:$0xff]
      %v813 = vld [vmem:[%s5 + $0x10] sm:$0xff]
      %v814 = vld [vmem:[%s5 + $0x18] sm:$0xff]
      %v815 = vld [vmem:[%s5 + $0x20] sm:$0xff]
      %v816 = vld [vmem:[%s5 + $0x28] sm:$0xff]
      %v817 = vld [vmem:[%s5 + $0x30] sm:$0xff]
      %v818 = vld [vmem:[%s5 + $0x38] sm:$0xff]
      %820 = vset.pattern.permute.xlu0 0
      %821 = vperm.xlu0 %820, %v811
      %v822 = vpop.permute.xlu0 %821
      %825 = vset.pattern.permute.xlu0 0
      %826 = vperm.xlu0 %825, %v812
      %v827 = vpop.permute.xlu0 %826
      %830 = vset.pattern.permute.xlu0 0
      %831 = vperm.xlu0 %830, %v813
      %v832 = vpop.permute.xlu0 %831
      %835 = vset.pattern.permute.xlu0 0
      %836 = vperm.xlu0 %835, %v814
      %v837 = vpop.permute.xlu0 %836
      %840 = vset.pattern.permute.xlu0 0
      %841 = vperm.xlu0 %840, %v815
      %v842 = vpop.permute.xlu0 %841
      %845 = vset.pattern.permute.xlu0 0
      %846 = vperm.xlu0 %845, %v816
      %v847 = vpop.permute.xlu0 %846
      %850 = vset.pattern.permute.xlu0 0
      %851 = vperm.xlu0 %850, %v817
      %v852 = vpop.permute.xlu0 %851
      %855 = vset.pattern.permute.xlu0 0
      %856 = vperm.xlu0 %855, %v818
      %v857 = vpop.permute.xlu0 %856
      %v883 = vunpack.c.l.b16 %v787
      %v884 = vunpack.c.h.b16 %v787
      %v885 = vunpack.c.l.b16 %v788
      %v886 = vunpack.c.h.b16 %v788
      %v887 = vunpack.c.l.b16 %v789
      %v888 = vunpack.c.l.b16 %v790
      %v889 = vunpack.c.h.b16 %v790
      %v890 = vunpack.c.l.b16 %v791
      %v891 = vunpack.c.h.b16 %v791
      %v892 = vunpack.c.l.b16 %v792
      %v893 = vunpack.c.l.b16 %v793
      %v894 = vunpack.c.h.b16 %v793
      %v895 = vunpack.c.l.b16 %v794
      %v896 = vunpack.c.h.b16 %v794
      %v897 = vunpack.c.l.b16 %v795
      %v898 = vunpack.c.l.b16 %v796
      %v899 = vunpack.c.h.b16 %v796
      %v900 = vunpack.c.l.b16 %v797
      %v901 = vunpack.c.h.b16 %v797
      %v902 = vunpack.c.l.b16 %v798
      %v903 = vunpack.c.l.b16 %v799
      %v904 = vunpack.c.h.b16 %v799
      %v905 = vunpack.c.l.b16 %v800
      %v906 = vunpack.c.h.b16 %v800
      %v907 = vunpack.c.l.b16 %v801
      %v908 = vunpack.c.l.b16 %v802
      %v909 = vunpack.c.h.b16 %v802
      %v910 = vunpack.c.l.b16 %v803
      %v911 = vunpack.c.h.b16 %v803
      %v912 = vunpack.c.l.b16 %v804
      %v913 = vunpack.c.l.b16 %v805
      %v914 = vunpack.c.h.b16 %v805
      %v915 = vunpack.c.l.b16 %v806
      %v916 = vunpack.c.h.b16 %v806
      %v917 = vunpack.c.l.b16 %v807
      %v918 = vunpack.c.l.b16 %v808
      %v919 = vunpack.c.h.b16 %v808
      %v920 = vunpack.c.l.b16 %v809
      %v921 = vunpack.c.h.b16 %v809
      %v922 = vunpack.c.l.b16 %v810
      %v923 = vpack.c.b16 %v888, %v883
      %v924 = vpack.c.b16 %v889, %v884
      %v925 = vpack.c.b16 %v890, %v885
      %v926 = vpack.c.b16 %v891, %v886
      %v927 = vpack.c.b16 %v892, %v887
      %v928 = vpack.c.b16 %v898, %v893
      %v929 = vpack.c.b16 %v899, %v894
      %v930 = vpack.c.b16 %v900, %v895
      %v931 = vpack.c.b16 %v901, %v896
      %v932 = vpack.c.b16 %v902, %v897
      %v933 = vpack.c.b16 %v908, %v903
      %v934 = vpack.c.b16 %v909, %v904
      %v935 = vpack.c.b16 %v910, %v905
      %v936 = vpack.c.b16 %v911, %v906
      %v937 = vpack.c.b16 %v912, %v907
      %v938 = vpack.c.b16 %v918, %v913
      %v939 = vpack.c.b16 %v919, %v914
      %v940 = vpack.c.b16 %v920, %v915
      %v941 = vpack.c.b16 %v921, %v916
      %v942 = vpack.c.b16 %v922, %v917
      %vm959 = vcmask 523264
      %v961 = vsel %vm959, %v927, 0
      %v964 = vsel %vm959, %v932, 0
      %v967 = vsel %vm959, %v937, 0
      %v970 = vsel %vm959, %v942, 0
      %972 = vmatprep.subr.bf16.mxu0 0
      %973 = vmatpush1.bf16.msra.mxu0 %v751
      %974 = vmatprep.subr.bf16.mxu0 0
      %975 = vmatpush1.bf16.msra.mxu0 %v752
      %976 = vmatprep.subr.bf16.mxu0 0
      %977 = vmatpush1.bf16.msra.mxu0 %v753
      %978 = vmatprep.subr.bf16.mxu0 0
      %979 = vmatpush1.bf16.msra.mxu0 %v754
      %980 = vmatprep.subr.bf16.mxu0 0
      %981 = vmatpush1.bf16.msra.mxu0 %v755
      %982 = vmatprep.subr.bf16.mxu0 0
      %983 = vmatpush1.bf16.msra.mxu0 %v756
      %984 = vmatprep.subr.bf16.mxu0 0
      %985 = vmatpush1.bf16.msra.mxu0 %v757
      %986 = vmatprep.subr.bf16.mxu0 0
      %987 = vmatpush1.bf16.msra.mxu0 %v758
      %988 = vmatprep.subr.bf16.mxu0 0
      %989 = vmatpush1.bf16.msra.mxu0 %v759
      %990 = vmatprep.subr.bf16.mxu0 0
      %991 = vmatpush1.bf16.msra.mxu0 %v760
      %992 = vmatprep.subr.bf16.mxu0 0
      %993 = vmatpush1.bf16.msra.mxu0 %v761
      %994 = vmatprep.subr.bf16.mxu0 0
      %995 = vmatpush1.bf16.msra.mxu0 %v762
      %996 = vmatprep.subr.bf16.mxu0 0
      %997 = vmatpush1.bf16.msra.mxu0 %v763
      %998 = vmatprep.subr.bf16.mxu0 0
      %999 = vmatpush1.bf16.msra.mxu0 %v764
      %1000 = vmatprep.subr.bf16.mxu0 0
      %1001 = vmatpush1.bf16.msra.mxu0 %v765
      %1002 = vmatprep.subr.bf16.mxu0 0
      %1003 = vmatpush1.bf16.msra.mxu0 %v766
      %1004 = vmatprep.mubr.bf16.mxu0 %v924
      %1005 = vmatmul.mubr.bf16.gmra.mrb[0].mxu0 %v923
      %v1006 = vpop.f32.mrb[0].mxu0
      %v1007 = vadd.f32 %v822, %v1006
      %v1008 = vpop.f32.mrb[0].mxu0
      %v1009 = vpop.f32.mrb[0].mxu0
      %v1010 = vadd.f32 %v827, %v1009
      %v1011 = vpop.f32.mrb[0].mxu0
      %1012 = vmatprep.mubr.bf16.mxu0 %v929
      %1013 = vmatmul.mubr.bf16.gmra.mrb[0].mxu0 %v928
      %v1014 = vpop.f32.mrb[0].mxu0
      %v1015 = vadd.f32 %v832, %v1014
      %v1016 = vpop.f32.mrb[0].mxu0
      %v1017 = vpop.f32.mrb[0].mxu0
      %v1018 = vadd.f32 %v837, %v1017
      %v1019 = vpop.f32.mrb[0].mxu0
      %1020 = vmatprep.mubr.bf16.mxu0 %v934
      %1021 = vmatmul.mubr.bf16.gmra.mrb[0].mxu0 %v933
      %v1022 = vpop.f32.mrb[0].mxu0
      %v1023 = vadd.f32 %v842, %v1022
      %v1024 = vpop.f32.mrb[0].mxu0
      %v1025 = vpop.f32.mrb[0].mxu0
      %v1026 = vadd.f32 %v847, %v1025
      %v1027 = vpop.f32.mrb[0].mxu0
      %1028 = vmatprep.mubr.bf16.mxu0 %v939
      %1029 = vmatmul.mubr.bf16.gmra.mrb[0].mxu0 %v938
      %v1030 = vpop.f32.mrb[0].mxu0
      %v1031 = vadd.f32 %v852, %v1030
      %v1032 = vpop.f32.mrb[0].mxu0
      %v1033 = vpop.f32.mrb[0].mxu0
      %v1034 = vadd.f32 %v857, %v1033
      %v1035 = vpop.f32.mrb[0].mxu0
      %1036 = vdwg.mxu0
      %1037 = vmatprep.subr.bf16.mxu0 0
      %1038 = vmatpush1.bf16.msra.mxu0 %v767
      %1039 = vmatprep.subr.bf16.mxu0 0
      %1040 = vmatpush1.bf16.msra.mxu0 %v768
      %1041 = vmatprep.subr.bf16.mxu0 0
      %1042 = vmatpush1.bf16.msra.mxu0 %v769
      %1043 = vmatprep.subr.bf16.mxu0 0
      %1044 = vmatpush1.bf16.msra.mxu0 %v770
      %1045 = vmatprep.subr.bf16.mxu0 0
      %1046 = vmatpush1.bf16.msra.mxu0 %v771
      %1047 = vmatprep.subr.bf16.mxu0 0
      %1048 = vmatpush1.bf16.msra.mxu0 %v772
      %1049 = vmatprep.subr.bf16.mxu0 0
      %1050 = vmatpush1.bf16.msra.mxu0 %v773
      %1051 = vmatprep.subr.bf16.mxu0 0
      %1052 = vmatpush1.bf16.msra.mxu0 %v774
      %1053 = vmatprep.subr.bf16.mxu0 0
      %1054 = vmatpush1.bf16.msra.mxu0 %v775
      %1055 = vmatprep.subr.bf16.mxu0 0
      %1056 = vmatpush1.bf16.msra.mxu0 %v776
      %1057 = vmatprep.subr.bf16.mxu0 0
      %1058 = vmatpush1.bf16.msra.mxu0 %v777
      %1059 = vmatprep.subr.bf16.mxu0 0
      %1060 = vmatpush1.bf16.msra.mxu0 %v778
      %1061 = vmatprep.subr.bf16.mxu0 0
      %1062 = vmatpush1.bf16.msra.mxu0 %v779
      %1063 = vmatprep.subr.bf16.mxu0 0
      %1064 = vmatpush1.bf16.msra.mxu0 %v780
      %1065 = vmatprep.subr.bf16.mxu0 0
      %1066 = vmatpush1.bf16.msra.mxu0 %v781
      %1067 = vmatprep.subr.bf16.mxu0 0
      %1068 = vmatpush1.bf16.msra.mxu0 %v782
      %1069 = vmatprep.mubr.bf16.mxu0 %v926
      %1070 = vmatmul.mubr.bf16.gmra.mrb[0].mxu0 %v925
      %v1071 = vpop.f32.mrb[0].mxu0
      %v1072 = vadd.f32 %v1007, %v1071
      %v1073 = vpop.f32.mrb[0].mxu0
      %v1074 = vpop.f32.mrb[0].mxu0
      %v1075 = vadd.f32 %v1010, %v1074
      %v1076 = vpop.f32.mrb[0].mxu0
      %1077 = vmatprep.mubr.bf16.mxu0 %v931
      %1078 = vmatmul.mubr.bf16.gmra.mrb[0].mxu0 %v930
      %v1079 = vpop.f32.mrb[0].mxu0
      %v1080 = vadd.f32 %v1015, %v1079
      %v1081 = vpop.f32.mrb[0].mxu0
      %v1082 = vpop.f32.mrb[0].mxu0
      %v1083 = vadd.f32 %v1018, %v1082
      %v1084 = vpop.f32.mrb[0].mxu0
      %1085 = vmatprep.mubr.bf16.mxu0 %v936
      %1086 = vmatmul.mubr.bf16.gmra.mrb[0].mxu0 %v935
      %v1087 = vpop.f32.mrb[0].mxu0
      %v1088 = vadd.f32 %v1023, %v1087
      %v1089 = vpop.f32.mrb[0].mxu0
      %v1090 = vpop.f32.mrb[0].mxu0
      %v1091 = vadd.f32 %v1026, %v1090
      %v1092 = vpop.f32.mrb[0].mxu0
      %1093 = vmatprep.mubr.bf16.mxu0 %v941
      %1094 = vmatmul.mubr.bf16.gmra.mrb[0].mxu0 %v940
      %v1095 = vpop.f32.mrb[0].mxu0
      %v1096 = vadd.f32 %v1031, %v1095
      %v1097 = vpop.f32.mrb[0].mxu0
      %v1098 = vpop.f32.mrb[0].mxu0
      %v1099 = vadd.f32 %v1034, %v1098
      %v1100 = vpop.f32.mrb[0].mxu0
      %1101 = vdwg.mxu0
      %1102 = vmatprep.subr.bf16.mxu0 0
      %1103 = vmatpush1.bf16.msra.mxu0 %v783
      %1104 = vmatprep.subr.bf16.mxu0 0
      %1105 = vmatpush1.bf16.msra.mxu0 %v784
      %1106 = vmatprep.subr.bf16.mxu0 0
      %1107 = vmatpush1.bf16.msra.mxu0 %v785
      %1108 = vmatprep.subr.bf16.mxu0 0
      %1109 = vmatpush1.bf16.msra.mxu0 %v786
      %1110 = vmatprep.subr.bf16.mxu0 0
      %1111 = vmatpush1.bf16.msra.mxu0 0
      %1112 = vmatprep.subr.bf16.mxu0 0
      %1113 = vmatpush1.bf16.msra.mxu0 0
      %1114 = vmatprep.subr.bf16.mxu0 0
      %1115 = vmatpush1.bf16.msra.mxu0 0
      %1116 = vmatprep.subr.bf16.mxu0 0
      %1117 = vmatpush1.bf16.msra.mxu0 0
      %1118 = vmatprep.subr.bf16.mxu0 0
      %1119 = vmatpush1.bf16.msra.mxu0 0
      %1120 = vmatprep.subr.bf16.mxu0 0
      %1121 = vmatpush1.bf16.msra.mxu0 0
      %1122 = vmatprep.subr.bf16.mxu0 0
      %1123 = vmatpush1.bf16.msra.mxu0 0
      %1124 = vmatprep.subr.bf16.mxu0 0
      %1125 = vmatpush1.bf16.msra.mxu0 0
      %1126 = vmatprep.subr.bf16.mxu0 0
      %1127 = vmatpush1.bf16.msra.mxu0 0
      %1128 = vmatprep.subr.bf16.mxu0 0
      %1129 = vmatpush1.bf16.msra.mxu0 0
      %1130 = vmatprep.subr.bf16.mxu0 0
      %1131 = vmatpush1.bf16.msra.mxu0 0
      %1132 = vmatprep.subr.bf16.mxu0 0
      %1133 = vmatpush1.bf16.msra.mxu0 0
      %1134 = vmatprep.mubr.bf16.mxu0 0
      %1135 = vmatmul.mubr.bf16.gmra.mrb[0].mxu0 %v961
      %v1136 = vpop.f32.mrb[0].mxu0
      %v1137 = vadd.f32 %v1072, %v1136
      %v1138 = vpop.f32.mrb[0].mxu0
      %v1139 = vpop.f32.mrb[0].mxu0
      %v1140 = vadd.f32 %v1075, %v1139
      %v1141 = vpop.f32.mrb[0].mxu0
      %1142 = vmatprep.mubr.bf16.mxu0 0
      %1143 = vmatmul.mubr.bf16.gmra.mrb[0].mxu0 %v964
      %v1144 = vpop.f32.mrb[0].mxu0
      %v1145 = vadd.f32 %v1080, %v1144
      %v1146 = vpop.f32.mrb[0].mxu0
      %v1147 = vpop.f32.mrb[0].mxu0
      %v1148 = vadd.f32 %v1083, %v1147
      %v1149 = vpop.f32.mrb[0].mxu0
      %1150 = vmatprep.mubr.bf16.mxu0 0
      %1151 = vmatmul.mubr.bf16.gmra.mrb[0].mxu0 %v967
      %v1152 = vpop.f32.mrb[0].mxu0
      %v1153 = vadd.f32 %v1088, %v1152
      %v1154 = vpop.f32.mrb[0].mxu0
      %v1155 = vpop.f32.mrb[0].mxu0
      %v1156 = vadd.f32 %v1091, %v1155
      %v1157 = vpop.f32.mrb[0].mxu0
      %1158 = vmatprep.mubr.bf16.mxu0 0
      %1159 = vmatmul.mubr.bf16.gmra.mrb[0].mxu0 %v970
      %v1160 = vpop.f32.mrb[0].mxu0
      %v1161 = vadd.f32 %v1096, %v1160
      %v1162 = vpop.f32.mrb[0].mxu0
      %v1163 = vpop.f32.mrb[0].mxu0
      %v1164 = vadd.f32 %v1099, %v1163
      %v1165 = vpop.f32.mrb[0].mxu0
      %1166 = vdwg.mxu0
      %v1167 = vmax.f32 %v1137, 0.0
      %v1168 = vmax.f32 %v1140, 0.0
      %v1169 = vmax.f32 %v1145, 0.0
      %v1170 = vmax.f32 %v1148, 0.0
      %v1171 = vmax.f32 %v1153, 0.0
      %v1172 = vmax.f32 %v1156, 0.0
      %v1173 = vmax.f32 %v1161, 0.0
      %v1174 = vmax.f32 %v1164, 0.0
      %v1175 = vpack.c.bf16 %v1168, %v1167
      %v1176 = vpack.c.bf16 %v1170, %v1169
      %v1177 = vpack.c.bf16 %v1172, %v1171
      %v1178 = vpack.c.bf16 %v1174, %v1173
      %v1179 = vld [vmem:[%s6] sm:$0xf]
      %v1180 = vld [vmem:[%s6 + $0x4] sm:$0xf]
      %v1181 = vld [vmem:[%s6 + $0x8] sm:$0xf]
      %v1182 = vld [vmem:[%s6 + $0xc] sm:$0xf]
      %v1183 = vld [vmem:[%s6 + $0x10] sm:$0x3]
      %v1189 = vunpack.c.l.b16 %v1179
      %v1190 = vunpack.c.l.b16 %v1180
      %v1191 = vunpack.c.l.b16 %v1181
      %v1192 = vunpack.c.l.b16 %v1182
      %v1193 = vunpack.c.l.b16 %v1183
      %v1194 = vpack.c.b16 %v1190, %v1189
      %v1195 = vpack.c.b16 %v1192, %v1191
      %v1196 = vpack.c.b16 %v1193, %v1193
      %v1200 = vsel %vm470, %v1175, 0
      %v1203 = vsel %vm470, %v1176, 0
      %v1206 = vsel %vm470, %v1177, 0
      %v1209 = vsel %vm470, %v1178, 0
      %vm1211 = vcmask 1041408
      %v1213 = vsel %vm1211, %v1196, 0
      %1215 = vmatprep.subr.bf16.mxu0 0
      %1216 = vmatpush1.bf16.msra.mxu0 %v1194
      %1217 = vmatprep.subr.bf16.mxu0 0
      %1218 = vmatpush1.bf16.msra.mxu0 %v1195
      %1219 = vmatprep.subr.bf16.mxu0 0
      %1220 = vmatpush1.bf16.msra.mxu0 %v1213
      %1221 = vmatprep.subr.bf16.mxu0 0
      %1222 = vmatpush1.bf16.msra.mxu0 0
      %1223 = vmatprep.subr.bf16.mxu0 0
      %1224 = vmatpush1.bf16.msra.mxu0 0
      %1225 = vmatprep.subr.bf16.mxu0 0
      %1226 = vmatpush1.bf16.msra.mxu0 0
      %1227 = vmatprep.subr.bf16.mxu0 0
      %1228 = vmatpush1.bf16.msra.mxu0 0
      %1229 = vmatprep.subr.bf16.mxu0 0
      %1230 = vmatpush1.bf16.msra.mxu0 0
      %1231 = vmatprep.subr.bf16.mxu0 0
      %1232 = vmatpush1.bf16.msra.mxu0 0
      %1233 = vmatprep.subr.bf16.mxu0 0
      %1234 = vmatpush1.bf16.msra.mxu0 0
      %1235 = vmatprep.subr.bf16.mxu0 0
      %1236 = vmatpush1.bf16.msra.mxu0 0
      %1237 = vmatprep.subr.bf16.mxu0 0
      %1238 = vmatpush1.bf16.msra.mxu0 0
      %1239 = vmatprep.subr.bf16.mxu0 0
      %1240 = vmatpush1.bf16.msra.mxu0 0
      %1241 = vmatprep.subr.bf16.mxu0 0
      %1242 = vmatpush1.bf16.msra.mxu0 0
      %1243 = vmatprep.subr.bf16.mxu0 0
      %1244 = vmatpush1.bf16.msra.mxu0 0
      %1245 = vmatprep.subr.bf16.mxu0 0
      %1246 = vmatpush1.bf16.msra.mxu0 0
      %1247 = vmatprep.mubr.bf16.mxu0 0
      %1248 = vmatmul.mubr.bf16.gmra.mrb[0].mxu0 %v1200
      %v1249 = vpop.f32.mrb[0].mxu0
      %v1250 = vadd.f32 0.0, %v1249
      %v1251 = vpop.f32.mrb[0].mxu0
      %v1252 = vpop.f32.mrb[0].mxu0
      %v1253 = vadd.f32 0.0, %v1252
      %v1254 = vpop.f32.mrb[0].mxu0
      %1255 = vmatprep.mubr.bf16.mxu0 0
      %1256 = vmatmul.mubr.bf16.gmra.mrb[0].mxu0 %v1203
      %v1257 = vpop.f32.mrb[0].mxu0
      %v1258 = vadd.f32 0.0, %v1257
      %v1259 = vpop.f32.mrb[0].mxu0
      %v1260 = vpop.f32.mrb[0].mxu0
      %v1261 = vadd.f32 0.0, %v1260
      %v1262 = vpop.f32.mrb[0].mxu0
      %1263 = vmatprep.mubr.bf16.mxu0 0
      %1264 = vmatmul.mubr.bf16.gmra.mrb[0].mxu0 %v1206
      %v1265 = vpop.f32.mrb[0].mxu0
      %v1266 = vadd.f32 0.0, %v1265
      %v1267 = vpop.f32.mrb[0].mxu0
      %v1268 = vpop.f32.mrb[0].mxu0
      %v1269 = vadd.f32 0.0, %v1268
      %v1270 = vpop.f32.mrb[0].mxu0
      %1271 = vmatprep.mubr.bf16.mxu0 0
      %1272 = vmatmul.mubr.bf16.gmra.mrb[0].mxu0 %v1209
      %v1273 = vpop.f32.mrb[0].mxu0
      %v1274 = vadd.f32 0.0, %v1273
      %v1275 = vpop.f32.mrb[0].mxu0
      %v1276 = vpop.f32.mrb[0].mxu0
      %v1277 = vadd.f32 0.0, %v1276
      %v1278 = vpop.f32.mrb[0].mxu0
      %1279 = vdwg.mxu0
      %v1280 = vld [vmem:[%s377] sm:$0xf]
      %v1281 = vld [vmem:[%s377 + $0x4] sm:$0xf]
      %v1282 = vld [vmem:[%s377 + $0x8] sm:$0xf]
      %v1283 = vld [vmem:[%s377 + $0xc] sm:$0xf]
      %v1284 = vld [vmem:[%s377 + $0x10] sm:$0xf]
      %v1285 = vld [vmem:[%s377 + $0x14] sm:$0xf]
      %v1286 = vld [vmem:[%s377 + $0x18] sm:$0xf]
      %v1287 = vld [vmem:[%s377 + $0x1c] sm:$0xf]
      %v1288 = vunpack.c.l.bf16 %v1280
      %v1289 = vunpack.c.l.bf16 %v1281
      %v1290 = vunpack.c.l.bf16 %v1282
      %v1291 = vunpack.c.l.bf16 %v1283
      %v1292 = vunpack.c.l.bf16 %v1284
      %v1293 = vunpack.c.l.bf16 %v1285
      %v1294 = vunpack.c.l.bf16 %v1286
      %v1295 = vunpack.c.l.bf16 %v1287
      %v1296 = vadd.f32 %v1288, %v1250
      %v1297 = vadd.f32 %v1289, %v1253
      %v1298 = vadd.f32 %v1290, %v1258
      %v1299 = vadd.f32 %v1291, %v1261
      %v1300 = vadd.f32 %v1292, %v1266
      %v1301 = vadd.f32 %v1293, %v1269
      %v1302 = vadd.f32 %v1294, %v1274
      %v1303 = vadd.f32 %v1295, %v1277
      %v1304 = vpack.c.bf16 %v1297, %v1296
      %v1305 = vpack.c.bf16 %v1299, %v1298
      %v1306 = vpack.c.bf16 %v1301, %v1300
      %v1307 = vpack.c.bf16 %v1303, %v1302
      %vm1308 = vcmask 818176
      %1309 = vst.msk [vmem:[#allocation2 + $0x588] sm:$0xff] %vm1308, %v1304
      %1310 = vst.msk [vmem:[#allocation2 + $0x5e0] sm:$0xff] %vm1308, %v1305
      %1311 = vst.msk [vmem:[#allocation2 + $0x638] sm:$0xff] %vm1308, %v1306
      %1312 = vst.msk [vmem:[#allocation2 + $0x690] sm:$0xff] %vm1308, %v1307
      %v1313 = vld [vmem:[#allocation2 + $0x580] sm:$0xff]
      %v1314 = vld [vmem:[#allocation2 + $0x588] sm:$0xff]
      %v1315 = vld [vmem:[#allocation2 + $0x5d8] sm:$0xff]
      %v1316 = vld [vmem:[#allocation2 + $0x5e0] sm:$0xff]
      %v1317 = vld [vmem:[#allocation2 + $0x630] sm:$0xff]
      %v1318 = vld [vmem:[#allocation2 + $0x638] sm:$0xff]
      %v1319 = vld [vmem:[#allocation2 + $0x688] sm:$0xff]
      %v1320 = vld [vmem:[#allocation2 + $0x690] sm:$0xff]
      %1329 = vrot.lane.b32.xlu0 %v1313, 11
      %v1330 = vpop.permute.xlu0 %1329
      %1331 = vrot.lane.b32.xlu0 %v1314, 11
      %v1332 = vpop.permute.xlu0 %1331
      %1333 = vrot.lane.b32.xlu0 %v1315, 11
      %v1334 = vpop.permute.xlu0 %1333
      %1335 = vrot.lane.b32.xlu0 %v1316, 11
      %v1336 = vpop.permute.xlu0 %1335
      %1337 = vrot.lane.b32.xlu0 %v1317, 11
      %v1338 = vpop.permute.xlu0 %1337
      %1339 = vrot.lane.b32.xlu0 %v1318, 11
      %v1340 = vpop.permute.xlu0 %1339
      %1341 = vrot.lane.b32.xlu0 %v1319, 11
      %v1342 = vpop.permute.xlu0 %1341
      %1343 = vrot.lane.b32.xlu0 %v1320, 11
      %v1344 = vpop.permute.xlu0 %1343
      %vm1345 = vcmask 89088
      %v1346 = vsel %vm1345, %v1330, %v1332
      %v1347 = vsel %vm1345, %v1334, %v1336
      %v1348 = vsel %vm1345, %v1338, %v1340
      %v1349 = vsel %vm1345, %v1342, %v1344
      %1354 = vst.msk [vmem:[#allocation2 + $0x8] sm:$0xff] %vm1308, %v1346
      %1355 = vst.msk [vmem:[#allocation2 + $0x60] sm:$0xff] %vm1308, %v1347
      %1356 = vst.msk [vmem:[#allocation2 + $0xb8] sm:$0xff] %vm1308, %v1348
      %1357 = vst.msk [vmem:[#allocation2 + $0x110] sm:$0xff] %vm1308, %v1349
      %v1358 = vld [vmem:[#allocation2 + $0x580] sm:$0xff]
      %v1359 = vld [vmem:[#allocation2 + $0x588] sm:$0xff]
      %v1360 = vld [vmem:[#allocation2 + $0x5d8] sm:$0xff]
      %v1361 = vld [vmem:[#allocation2 + $0x5e0] sm:$0xff]
      %v1362 = vld [vmem:[#allocation2 + $0x630] sm:$0xff]
      %v1363 = vld [vmem:[#allocation2 + $0x638] sm:$0xff]
      %v1364 = vld [vmem:[#allocation2 + $0x688] sm:$0xff]
      %v1365 = vld [vmem:[#allocation2 + $0x690] sm:$0xff]
      %1374 = vrot.lane.b32.xlu0 %v1358, 10
      %v1375 = vpop.permute.xlu0 %1374
      %1376 = vrot.lane.b32.xlu0 %v1359, 10
      %v1377 = vpop.permute.xlu0 %1376
      %1378 = vrot.lane.b32.xlu0 %v1360, 10
      %v1379 = vpop.permute.xlu0 %1378
      %1380 = vrot.lane.b32.xlu0 %v1361, 10
      %v1381 = vpop.permute.xlu0 %1380
      %1382 = vrot.lane.b32.xlu0 %v1362, 10
      %v1383 = vpop.permute.xlu0 %1382
      %1384 = vrot.lane.b32.xlu0 %v1363, 10
      %v1385 = vpop.permute.xlu0 %1384
      %1386 = vrot.lane.b32.xlu0 %v1364, 10
      %v1387 = vpop.permute.xlu0 %1386
      %1388 = vrot.lane.b32.xlu0 %v1365, 10
      %v1389 = vpop.permute.xlu0 %1388
      %vm1390 = vcmask 80896
      %v1391 = vsel %vm1390, %v1375, %v1377
      %v1392 = vsel %vm1390, %v1379, %v1381
      %v1393 = vsel %vm1390, %v1383, %v1385
      %v1394 = vsel %vm1390, %v1387, %v1389
      %1399 = vst.msk [vmem:[#allocation2 + $0x168] sm:$0xff] %vm1308, %v1391
      %1400 = vst.msk [vmem:[#allocation2 + $0x1c0] sm:$0xff] %vm1308, %v1392
      %1401 = vst.msk [vmem:[#allocation2 + $0x218] sm:$0xff] %vm1308, %v1393
      %1402 = vst.msk [vmem:[#allocation2 + $0x270] sm:$0xff] %vm1308, %v1394
      %v1403 = vld [vmem:[#allocation2 + $0x580] sm:$0xff]
      %v1404 = vld [vmem:[#allocation2 + $0x588] sm:$0xff]
      %v1405 = vld [vmem:[#allocation2 + $0x5d8] sm:$0xff]
      %v1406 = vld [vmem:[#allocation2 + $0x5e0] sm:$0xff]
      %v1407 = vld [vmem:[#allocation2 + $0x630] sm:$0xff]
      %v1408 = vld [vmem:[#allocation2 + $0x638] sm:$0xff]
      %v1409 = vld [vmem:[#allocation2 + $0x688] sm:$0xff]
      %v1410 = vld [vmem:[#allocation2 + $0x690] sm:$0xff]
      %1419 = vrot.lane.b32.xlu0 %v1403, 9
      %v1420 = vpop.permute.xlu0 %1419
      %1421 = vrot.lane.b32.xlu0 %v1404, 9
      %v1422 = vpop.permute.xlu0 %1421
      %1423 = vrot.lane.b32.xlu0 %v1405, 9
      %v1424 = vpop.permute.xlu0 %1423
      %1425 = vrot.lane.b32.xlu0 %v1406, 9
      %v1426 = vpop.permute.xlu0 %1425
      %1427 = vrot.lane.b32.xlu0 %v1407, 9
      %v1428 = vpop.permute.xlu0 %1427
      %1429 = vrot.lane.b32.xlu0 %v1408, 9
      %v1430 = vpop.permute.xlu0 %1429
      %1431 = vrot.lane.b32.xlu0 %v1409, 9
      %v1432 = vpop.permute.xlu0 %1431
      %1433 = vrot.lane.b32.xlu0 %v1410, 9
      %v1434 = vpop.permute.xlu0 %1433
      %vm1435 = vcmask 72704
      %v1436 = vsel %vm1435, %v1420, %v1422
      %v1437 = vsel %vm1435, %v1424, %v1426
      %v1438 = vsel %vm1435, %v1428, %v1430
      %v1439 = vsel %vm1435, %v1432, %v1434
      %1444 = vst.msk [vmem:[#allocation2 + $0x2c8] sm:$0xff] %vm1308, %v1436
      %1445 = vst.msk [vmem:[#allocation2 + $0x320] sm:$0xff] %vm1308, %v1437
      %1446 = vst.msk [vmem:[#allocation2 + $0x378] sm:$0xff] %vm1308, %v1438
      %1447 = vst.msk [vmem:[#allocation2 + $0x3d0] sm:$0xff] %vm1308, %v1439
      %v1448 = vld [vmem:[#allocation2 + $0x580] sm:$0xff]
      %v1449 = vld [vmem:[#allocation2 + $0x588] sm:$0xff]
      %v1450 = vld [vmem:[#allocation2 + $0x5d8] sm:$0xff]
      %v1451 = vld [vmem:[#allocation2 + $0x5e0] sm:$0xff]
      %v1452 = vld [vmem:[#allocation2 + $0x630] sm:$0xff]
      %v1453 = vld [vmem:[#allocation2 + $0x638] sm:$0xff]
      %v1454 = vld [vmem:[#allocation2 + $0x688] sm:$0xff]
      %v1455 = vld [vmem:[#allocation2 + $0x690] sm:$0xff]
      %1464 = vrot.lane.b32.xlu0 %v1448, 1
      %v1465 = vpop.permute.xlu0 %1464
      %1466 = vrot.lane.b32.xlu0 %v1449, 1
      %v1467 = vpop.permute.xlu0 %1466
      %1468 = vrot.lane.b32.xlu0 %v1450, 1
      %v1469 = vpop.permute.xlu0 %1468
      %1470 = vrot.lane.b32.xlu0 %v1451, 1
      %v1471 = vpop.permute.xlu0 %1470
      %1472 = vrot.lane.b32.xlu0 %v1452, 1
      %v1473 = vpop.permute.xlu0 %1472
      %1474 = vrot.lane.b32.xlu0 %v1453, 1
      %v1475 = vpop.permute.xlu0 %1474
      %1476 = vrot.lane.b32.xlu0 %v1454, 1
      %v1477 = vpop.permute.xlu0 %1476
      %1478 = vrot.lane.b32.xlu0 %v1455, 1
      %v1479 = vpop.permute.xlu0 %1478
      %v1480 = vsel %vm642, %v1465, %v1467
      %v1481 = vsel %vm642, %v1469, %v1471
      %v1482 = vsel %vm642, %v1473, %v1475
      %v1483 = vsel %vm642, %v1477, %v1479
      %1488 = vst.msk [vmem:[#allocation2 + $0x428] sm:$0xff] %vm1308, %v1480
      %1489 = vst.msk [vmem:[#allocation2 + $0x480] sm:$0xff] %vm1308, %v1481
      %1490 = vst.msk [vmem:[#allocation2 + $0x4d8] sm:$0xff] %vm1308, %v1482
      %1491 = vst.msk [vmem:[#allocation2 + $0x530] sm:$0xff] %vm1308, %v1483
      %v1492 = vld [vmem:[#allocation2 + $0x588] sm:$0xff]
      %v1493 = vld [vmem:[#allocation2 + $0x5e0] sm:$0xff]
      %v1494 = vld [vmem:[#allocation2 + $0x638] sm:$0xff]
      %v1495 = vld [vmem:[#allocation2 + $0x690] sm:$0xff]
      %1500 = vrot.lane.b32.xlu0 %v1492, 127
      %v1501 = vpop.permute.xlu0 %1500
      %1502 = vrot.lane.b32.xlu0 %v1493, 127
      %v1503 = vpop.permute.xlu0 %1502
      %1504 = vrot.lane.b32.xlu0 %v1494, 127
      %v1505 = vpop.permute.xlu0 %1504
      %1506 = vrot.lane.b32.xlu0 %v1495, 127
      %v1507 = vpop.permute.xlu0 %1506
      %1512 = vst.msk [vmem:[#allocation2 + $0x6e8] sm:$0xff] %vm1308, %v1501
      %1513 = vst.msk [vmem:[#allocation2 + $0x740] sm:$0xff] %vm1308, %v1503
      %1514 = vst.msk [vmem:[#allocation2 + $0x798] sm:$0xff] %vm1308, %v1505
      %1515 = vst.msk [vmem:[#allocation2 + $0x7f0] sm:$0xff] %vm1308, %v1507
      %v1516 = vld [vmem:[#allocation2 + $0x588] sm:$0xff]
      %v1517 = vld [vmem:[#allocation2 + $0x5e0] sm:$0xff]
      %v1518 = vld [vmem:[#allocation2 + $0x638] sm:$0xff]
      %v1519 = vld [vmem:[#allocation2 + $0x690] sm:$0xff]
      %1524 = vrot.lane.b32.xlu0 %v1516, 119
      %v1525 = vpop.permute.xlu0 %1524
      %1526 = vrot.lane.b32.xlu0 %v1517, 119
      %v1527 = vpop.permute.xlu0 %1526
      %1528 = vrot.lane.b32.xlu0 %v1518, 119
      %v1529 = vpop.permute.xlu0 %1528
      %1530 = vrot.lane.b32.xlu0 %v1519, 119
      %v1531 = vpop.permute.xlu0 %1530
      %1536 = vst.msk [vmem:[#allocation2 + $0x848] sm:$0xff] %vm1308, %v1525
      %1537 = vst.msk [vmem:[#allocation2 + $0x8a0] sm:$0xff] %vm1308, %v1527
      %1538 = vst.msk [vmem:[#allocation2 + $0x8f8] sm:$0xff] %vm1308, %v1529
      %1539 = vst.msk [vmem:[#allocation2 + $0x950] sm:$0xff] %vm1308, %v1531
      %v1540 = vld [vmem:[#allocation2 + $0x588] sm:$0xff]
      %v1541 = vld [vmem:[#allocation2 + $0x5e0] sm:$0xff]
      %v1542 = vld [vmem:[#allocation2 + $0x638] sm:$0xff]
      %v1543 = vld [vmem:[#allocation2 + $0x690] sm:$0xff]
      %1548 = vrot.lane.b32.xlu0 %v1540, 118
      %v1549 = vpop.permute.xlu0 %1548
      %1550 = vrot.lane.b32.xlu0 %v1541, 118
      %v1551 = vpop.permute.xlu0 %1550
      %1552 = vrot.lane.b32.xlu0 %v1542, 118
      %v1553 = vpop.permute.xlu0 %1552
      %1554 = vrot.lane.b32.xlu0 %v1543, 118
      %v1555 = vpop.permute.xlu0 %1554
      %1560 = vst.msk [vmem:[#allocation2 + $0x9a8] sm:$0xff] %vm1308, %v1549
      %1561 = vst.msk [vmem:[#allocation2 + $0xa00] sm:$0xff] %vm1308, %v1551
      %1562 = vst.msk [vmem:[#allocation2 + $0xa58] sm:$0xff] %vm1308, %v1553
      %1563 = vst.msk [vmem:[#allocation2 + $0xab0] sm:$0xff] %vm1308, %v1555
      %v1564 = vld [vmem:[#allocation2 + $0x588] sm:$0xff]
      %v1565 = vld [vmem:[#allocation2 + $0x5e0] sm:$0xff]
      %v1566 = vld [vmem:[#allocation2 + $0x638] sm:$0xff]
      %v1567 = vld [vmem:[#allocation2 + $0x690] sm:$0xff]
      %1572 = vrot.lane.b32.xlu0 %v1564, 117
      %v1573 = vpop.permute.xlu0 %1572
      %1574 = vrot.lane.b32.xlu0 %v1565, 117
      %v1575 = vpop.permute.xlu0 %1574
      %1576 = vrot.lane.b32.xlu0 %v1566, 117
      %v1577 = vpop.permute.xlu0 %1576
      %1578 = vrot.lane.b32.xlu0 %v1567, 117
      %v1579 = vpop.permute.xlu0 %1578
      %1584 = vst.msk [vmem:[#allocation2 + $0xb08] sm:$0xff] %vm1308, %v1573
      %1585 = vst.msk [vmem:[#allocation2 + $0xb60] sm:$0xff] %vm1308, %v1575
      %1586 = vst.msk [vmem:[#allocation2 + $0xbb8] sm:$0xff] %vm1308, %v1577
      %1587 = vst.msk [vmem:[#allocation2 + $0xc10] sm:$0xff] %vm1308, %v1579
      %v1588 = vld [vmem:[#allocation2 + $0x8] sm:$0xff]
      %v1589 = vld [vmem:[#allocation2 + $0x60] sm:$0xff]
      %v1590 = vld [vmem:[#allocation2 + $0xb8] sm:$0xff]
      %v1591 = vld [vmem:[#allocation2 + $0x110] sm:$0xff]
      %v1592 = vld [vmem:[#allocation2 + $0x168] sm:$0xff]
      %v1593 = vld [vmem:[#allocation2 + $0x1c0] sm:$0xff]
      %v1594 = vld [vmem:[#allocation2 + $0x218] sm:$0xff]
      %v1595 = vld [vmem:[#allocation2 + $0x270] sm:$0xff]
      %v1596 = vld [vmem:[#allocation2 + $0x2c8] sm:$0xff]
      %v1597 = vld [vmem:[#allocation2 + $0x320] sm:$0xff]
      %v1598 = vld [vmem:[#allocation2 + $0x378] sm:$0xff]
      %v1599 = vld [vmem:[#allocation2 + $0x3d0] sm:$0xff]
      %v1600 = vld [vmem:[#allocation2 + $0x428] sm:$0xff]
      %v1601 = vld [vmem:[#allocation2 + $0x480] sm:$0xff]
      %v1602 = vld [vmem:[#allocation2 + $0x4d8] sm:$0xff]
      %v1603 = vld [vmem:[#allocation2 + $0x530] sm:$0xff]
      %v1604 = vld [vmem:[#allocation2 + $0x588] sm:$0xff]
      %v1605 = vld [vmem:[#allocation2 + $0x5e0] sm:$0xff]
      %v1606 = vld [vmem:[#allocation2 + $0x638] sm:$0xff]
      %v1607 = vld [vmem:[#allocation2 + $0x690] sm:$0xff]
      %v1608 = vld [vmem:[#allocation2 + $0x6e8] sm:$0xff]
      %v1609 = vld [vmem:[#allocation2 + $0x740] sm:$0xff]
      %v1610 = vld [vmem:[#allocation2 + $0x798] sm:$0xff]
      %v1611 = vld [vmem:[#allocation2 + $0x7f0] sm:$0xff]
      %v1612 = vld [vmem:[#allocation2 + $0x848] sm:$0xff]
      %v1613 = vld [vmem:[#allocation2 + $0x8a0] sm:$0xff]
      %v1614 = vld [vmem:[#allocation2 + $0x8f8] sm:$0xff]
      %v1615 = vld [vmem:[#allocation2 + $0x950] sm:$0xff]
      %v1616 = vld [vmem:[#allocation2 + $0x9a8] sm:$0xff]
      %v1617 = vld [vmem:[#allocation2 + $0xa00] sm:$0xff]
      %v1618 = vld [vmem:[#allocation2 + $0xa58] sm:$0xff]
      %v1619 = vld [vmem:[#allocation2 + $0xab0] sm:$0xff]
      %v1620 = vld [vmem:[#allocation2 + $0xb08] sm:$0xff]
      %v1621 = vld [vmem:[#allocation2 + $0xb60] sm:$0xff]
      %v1622 = vld [vmem:[#allocation2 + $0xbb8] sm:$0xff]
      %v1623 = vld [vmem:[#allocation2 + $0xc10] sm:$0xff]
      %s1624 = scalar_lea.vmem %s4, 160
      %v1625 = vld [vmem:[%s1624] sm:$0xff]
      %v1626 = vld [vmem:[%s1624 + $0x8] sm:$0xff]
      %v1627 = vld [vmem:[%s1624 + $0x10] sm:$0xf]
      %v1628 = vld [vmem:[%s1624 + $0x14] sm:$0xff]
      %v1629 = vld [vmem:[%s1624 + $0x1c] sm:$0xff]
      %v1630 = vld [vmem:[%s1624 + $0x24] sm:$0xf]
      %v1631 = vld [vmem:[%s1624 + $0x28] sm:$0xff]
      %v1632 = vld [vmem:[%s1624 + $0x30] sm:$0xff]
      %v1633 = vld [vmem:[%s1624 + $0x38] sm:$0xf]
      %v1634 = vld [vmem:[%s1624 + $0x3c] sm:$0xff]
      %v1635 = vld [vmem:[%s1624 + $0x44] sm:$0xff]
      %v1636 = vld [vmem:[%s1624 + $0x4c] sm:$0xf]
      %v1637 = vld [vmem:[%s1624 + $0x50] sm:$0xff]
      %v1638 = vld [vmem:[%s1624 + $0x58] sm:$0xff]
      %v1639 = vld [vmem:[%s1624 + $0x60] sm:$0xf]
      %v1640 = vld [vmem:[%s1624 + $0x64] sm:$0xff]
      %v1641 = vld [vmem:[%s1624 + $0x6c] sm:$0xff]
      %v1642 = vld [vmem:[%s1624 + $0x74] sm:$0xf]
      %v1643 = vld [vmem:[%s1624 + $0x78] sm:$0xff]
      %v1644 = vld [vmem:[%s1624 + $0x80] sm:$0xff]
      %v1645 = vld [vmem:[%s1624 + $0x88] sm:$0xf]
      %v1646 = vld [vmem:[%s1624 + $0x8c] sm:$0xff]
      %v1647 = vld [vmem:[%s1624 + $0x94] sm:$0xff]
      %v1648 = vld [vmem:[%s1624 + $0x9c] sm:$0xf]
      %s1649 = scalar_lea.vmem %s5, 64
      %v1650 = vld [vmem:[%s1649] sm:$0xff]
      %v1651 = vld [vmem:[%s1649 + $0x8] sm:$0xff]
      %v1652 = vld [vmem:[%s1649 + $0x10] sm:$0xff]
      %v1653 = vld [vmem:[%s1649 + $0x18] sm:$0xff]
      %v1654 = vld [vmem:[%s1649 + $0x20] sm:$0xff]
      %v1655 = vld [vmem:[%s1649 + $0x28] sm:$0xff]
      %v1656 = vld [vmem:[%s1649 + $0x30] sm:$0xff]
      %v1657 = vld [vmem:[%s1649 + $0x38] sm:$0xff]
      %1659 = vset.pattern.permute.xlu0 0
      %1660 = vperm.xlu0 %1659, %v1650
      %v1661 = vpop.permute.xlu0 %1660
      %1664 = vset.pattern.permute.xlu0 0
      %1665 = vperm.xlu0 %1664, %v1651
      %v1666 = vpop.permute.xlu0 %1665
      %1669 = vset.pattern.permute.xlu0 0
      %1670 = vperm.xlu0 %1669, %v1652
      %v1671 = vpop.permute.xlu0 %1670
      %1674 = vset.pattern.permute.xlu0 0
      %1675 = vperm.xlu0 %1674, %v1653
      %v1676 = vpop.permute.xlu0 %1675
      %1679 = vset.pattern.permute.xlu0 0
      %1680 = vperm.xlu0 %1679, %v1654
      %v1681 = vpop.permute.xlu0 %1680
      %1684 = vset.pattern.permute.xlu0 0
      %1685 = vperm.xlu0 %1684, %v1655
      %v1686 = vpop.permute.xlu0 %1685
      %1689 = vset.pattern.permute.xlu0 0
      %1690 = vperm.xlu0 %1689, %v1656
      %v1691 = vpop.permute.xlu0 %1690
      %1694 = vset.pattern.permute.xlu0 0
      %1695 = vperm.xlu0 %1694, %v1657
      %v1696 = vpop.permute.xlu0 %1695
      %v1722 = vunpack.c.l.b16 %v1625
      %v1723 = vunpack.c.h.b16 %v1625
      %v1724 = vunpack.c.l.b16 %v1626
      %v1725 = vunpack.c.h.b16 %v1626
      %v1726 = vunpack.c.l.b16 %v1627
      %v1727 = vunpack.c.l.b16 %v1628
      %v1728 = vunpack.c.h.b16 %v1628
      %v1729 = vunpack.c.l.b16 %v1629
      %v1730 = vunpack.c.h.b16 %v1629
      %v1731 = vunpack.c.l.b16 %v1630
      %v1732 = vunpack.c.l.b16 %v1631
      %v1733 = vunpack.c.h.b16 %v1631
      %v1734 = vunpack.c.l.b16 %v1632
      %v1735 = vunpack.c.h.b16 %v1632
      %v1736 = vunpack.c.l.b16 %v1633
      %v1737 = vunpack.c.l.b16 %v1634
      %v1738 = vunpack.c.h.b16 %v1634
      %v1739 = vunpack.c.l.b16 %v1635
      %v1740 = vunpack.c.h.b16 %v1635
      %v1741 = vunpack.c.l.b16 %v1636
      %v1742 = vunpack.c.l.b16 %v1637
      %v1743 = vunpack.c.h.b16 %v1637
      %v1744 = vunpack.c.l.b16 %v1638
      %v1745 = vunpack.c.h.b16 %v1638
      %v1746 = vunpack.c.l.b16 %v1639
      %v1747 = vunpack.c.l.b16 %v1640
      %v1748 = vunpack.c.h.b16 %v1640
      %v1749 = vunpack.c.l.b16 %v1641
      %v1750 = vunpack.c.h.b16 %v1641
      %v1751 = vunpack.c.l.b16 %v1642
      %v1752 = vunpack.c.l.b16 %v1643
      %v1753 = vunpack.c.h.b16 %v1643
      %v1754 = vunpack.c.l.b16 %v1644
      %v1755 = vunpack.c.h.b16 %v1644
      %v1756 = vunpack.c.l.b16 %v1645
      %v1757 = vunpack.c.l.b16 %v1646
      %v1758 = vunpack.c.h.b16 %v1646
      %v1759 = vunpack.c.l.b16 %v1647
      %v1760 = vunpack.c.h.b16 %v1647
      %v1761 = vunpack.c.l.b16 %v1648
      %v1762 = vpack.c.b16 %v1727, %v1722
      %v1763 = vpack.c.b16 %v1728, %v1723
      %v1764 = vpack.c.b16 %v1729, %v1724
      %v1765 = vpack.c.b16 %v1730, %v1725
      %v1766 = vpack.c.b16 %v1731, %v1726
      %v1767 = vpack.c.b16 %v1737, %v1732
      %v1768 = vpack.c.b16 %v1738, %v1733
      %v1769 = vpack.c.b16 %v1739, %v1734
      %v1770 = vpack.c.b16 %v1740, %v1735
      %v1771 = vpack.c.b16 %v1741, %v1736
      %v1772 = vpack.c.b16 %v1747, %v1742
      %v1773 = vpack.c.b16 %v1748, %v1743
      %v1774 = vpack.c.b16 %v1749, %v1744
      %v1775 = vpack.c.b16 %v1750, %v1745
      %v1776 = vpack.c.b16 %v1751, %v1746
      %v1777 = vpack.c.b16 %v1757, %v1752
      %v1778 = vpack.c.b16 %v1758, %v1753
      %v1779 = vpack.c.b16 %v1759, %v1754
      %v1780 = vpack.c.b16 %v1760, %v1755
      %v1781 = vpack.c.b16 %v1761, %v1756
      %v1799 = vsel %vm959, %v1766, 0
      %v1802 = vsel %vm959, %v1771, 0
      %v1805 = vsel %vm959, %v1776, 0
      %v1808 = vsel %vm959, %v1781, 0
      %1810 = vmatprep.subr.bf16.mxu0 0
      %1811 = vmatpush1.bf16.msra.mxu0 %v1588
      %1812 = vmatprep.subr.bf16.mxu0 0
      %1813 = vmatpush1.bf16.msra.mxu0 %v1589
      %1814 = vmatprep.subr.bf16.mxu0 0
      %1815 = vmatpush1.bf16.msra.mxu0 %v1590
      %1816 = vmatprep.subr.bf16.mxu0 0
      %1817 = vmatpush1.bf16.msra.mxu0 %v1591
      %1818 = vmatprep.subr.bf16.mxu0 0
      %1819 = vmatpush1.bf16.msra.mxu0 %v1592
      %1820 = vmatprep.subr.bf16.mxu0 0
      %1821 = vmatpush1.bf16.msra.mxu0 %v1593
      %1822 = vmatprep.subr.bf16.mxu0 0
      %1823 = vmatpush1.bf16.msra.mxu0 %v1594
      %1824 = vmatprep.subr.bf16.mxu0 0
      %1825 = vmatpush1.bf16.msra.mxu0 %v1595
      %1826 = vmatprep.subr.bf16.mxu0 0
      %1827 = vmatpush1.bf16.msra.mxu0 %v1596
      %1828 = vmatprep.subr.bf16.mxu0 0
      %1829 = vmatpush1.bf16.msra.mxu0 %v1597
      %1830 = vmatprep.subr.bf16.mxu0 0
      %1831 = vmatpush1.bf16.msra.mxu0 %v1598
      %1832 = vmatprep.subr.bf16.mxu0 0
      %1833 = vmatpush1.bf16.msra.mxu0 %v1599
      %1834 = vmatprep.subr.bf16.mxu0 0
      %1835 = vmatpush1.bf16.msra.mxu0 %v1600
      %1836 = vmatprep.subr.bf16.mxu0 0
      %1837 = vmatpush1.bf16.msra.mxu0 %v1601
      %1838 = vmatprep.subr.bf16.mxu0 0
      %1839 = vmatpush1.bf16.msra.mxu0 %v1602
      %1840 = vmatprep.subr.bf16.mxu0 0
      %1841 = vmatpush1.bf16.msra.mxu0 %v1603
      %1842 = vmatprep.mubr.bf16.mxu0 %v1763
      %1843 = vmatmul.mubr.bf16.gmra.mrb[0].mxu0 %v1762
      %v1844 = vpop.f32.mrb[0].mxu0
      %v1845 = vadd.f32 %v1661, %v1844
      %v1846 = vpop.f32.mrb[0].mxu0
      %v1847 = vpop.f32.mrb[0].mxu0
      %v1848 = vadd.f32 %v1666, %v1847
      %v1849 = vpop.f32.mrb[0].mxu0
      %1850 = vmatprep.mubr.bf16.mxu0 %v1768
      %1851 = vmatmul.mubr.bf16.gmra.mrb[0].mxu0 %v1767
      %v1852 = vpop.f32.mrb[0].mxu0
      %v1853 = vadd.f32 %v1671, %v1852
      %v1854 = vpop.f32.mrb[0].mxu0
      %v1855 = vpop.f32.mrb[0].mxu0
      %v1856 = vadd.f32 %v1676, %v1855
      %v1857 = vpop.f32.mrb[0].mxu0
      %1858 = vmatprep.mubr.bf16.mxu0 %v1773
      %1859 = vmatmul.mubr.bf16.gmra.mrb[0].mxu0 %v1772
      %v1860 = vpop.f32.mrb[0].mxu0
      %v1861 = vadd.f32 %v1681, %v1860
      %v1862 = vpop.f32.mrb[0].mxu0
      %v1863 = vpop.f32.mrb[0].mxu0
      %v1864 = vadd.f32 %v1686, %v1863
      %v1865 = vpop.f32.mrb[0].mxu0
      %1866 = vmatprep.mubr.bf16.mxu0 %v1778
      %1867 = vmatmul.mubr.bf16.gmra.mrb[0].mxu0 %v1777
      %v1868 = vpop.f32.mrb[0].mxu0
      %v1869 = vadd.f32 %v1691, %v1868
      %v1870 = vpop.f32.mrb[0].mxu0
      %v1871 = vpop.f32.mrb[0].mxu0
      %v1872 = vadd.f32 %v1696, %v1871
      %v1873 = vpop.f32.mrb[0].mxu0
      %1874 = vdwg.mxu0
      %1875 = vmatprep.subr.bf16.mxu0 0
      %1876 = vmatpush1.bf16.msra.mxu0 %v1604
      %1877 = vmatprep.subr.bf16.mxu0 0
      %1878 = vmatpush1.bf16.msra.mxu0 %v1605
      %1879 = vmatprep.subr.bf16.mxu0 0
      %1880 = vmatpush1.bf16.msra.mxu0 %v1606
      %1881 = vmatprep.subr.bf16.mxu0 0
      %1882 = vmatpush1.bf16.msra.mxu0 %v1607
      %1883 = vmatprep.subr.bf16.mxu0 0
      %1884 = vmatpush1.bf16.msra.mxu0 %v1608
      %1885 = vmatprep.subr.bf16.mxu0 0
      %1886 = vmatpush1.bf16.msra.mxu0 %v1609
      %1887 = vmatprep.subr.bf16.mxu0 0
      %1888 = vmatpush1.bf16.msra.mxu0 %v1610
      %1889 = vmatprep.subr.bf16.mxu0 0
      %1890 = vmatpush1.bf16.msra.mxu0 %v1611
      %1891 = vmatprep.subr.bf16.mxu0 0
      %1892 = vmatpush1.bf16.msra.mxu0 %v1612
      %1893 = vmatprep.subr.bf16.mxu0 0
      %1894 = vmatpush1.bf16.msra.mxu0 %v1613
      %1895 = vmatprep.subr.bf16.mxu0 0
      %1896 = vmatpush1.bf16.msra.mxu0 %v1614
      %1897 = vmatprep.subr.bf16.mxu0 0
      %1898 = vmatpush1.bf16.msra.mxu0 %v1615
      %1899 = vmatprep.subr.bf16.mxu0 0
      %1900 = vmatpush1.bf16.msra.mxu0 %v1616
      %1901 = vmatprep.subr.bf16.mxu0 0
      %1902 = vmatpush1.bf16.msra.mxu0 %v1617
      %1903 = vmatprep.subr.bf16.mxu0 0
      %1904 = vmatpush1.bf16.msra.mxu0 %v1618
      %1905 = vmatprep.subr.bf16.mxu0 0
      %1906 = vmatpush1.bf16.msra.mxu0 %v1619
      %1907 = vmatprep.mubr.bf16.mxu0 %v1765
      %1908 = vmatmul.mubr.bf16.gmra.mrb[0].mxu0 %v1764
      %v1909 = vpop.f32.mrb[0].mxu0
      %v1910 = vadd.f32 %v1845, %v1909
      %v1911 = vpop.f32.mrb[0].mxu0
      %v1912 = vpop.f32.mrb[0].mxu0
      %v1913 = vadd.f32 %v1848, %v1912
      %v1914 = vpop.f32.mrb[0].mxu0
      %1915 = vmatprep.mubr.bf16.mxu0 %v1770
      %1916 = vmatmul.mubr.bf16.gmra.mrb[0].mxu0 %v1769
      %v1917 = vpop.f32.mrb[0].mxu0
      %v1918 = vadd.f32 %v1853, %v1917
      %v1919 = vpop.f32.mrb[0].mxu0
      %v1920 = vpop.f32.mrb[0].mxu0
      %v1921 = vadd.f32 %v1856, %v1920
      %v1922 = vpop.f32.mrb[0].mxu0
      %1923 = vmatprep.mubr.bf16.mxu0 %v1775
      %1924 = vmatmul.mubr.bf16.gmra.mrb[0].mxu0 %v1774
      %v1925 = vpop.f32.mrb[0].mxu0
      %v1926 = vadd.f32 %v1861, %v1925
      %v1927 = vpop.f32.mrb[0].mxu0
      %v1928 = vpop.f32.mrb[0].mxu0
      %v1929 = vadd.f32 %v1864, %v1928
      %v1930 = vpop.f32.mrb[0].mxu0
      %1931 = vmatprep.mubr.bf16.mxu0 %v1780
      %1932 = vmatmul.mubr.bf16.gmra.mrb[0].mxu0 %v1779
      %v1933 = vpop.f32.mrb[0].mxu0
      %v1934 = vadd.f32 %v1869, %v1933
      %v1935 = vpop.f32.mrb[0].mxu0
      %v1936 = vpop.f32.mrb[0].mxu0
      %v1937 = vadd.f32 %v1872, %v1936
      %v1938 = vpop.f32.mrb[0].mxu0
      %1939 = vdwg.mxu0
      %1940 = vmatprep.subr.bf16.mxu0 0
      %1941 = vmatpush1.bf16.msra.mxu0 %v1620
      %1942 = vmatprep.subr.bf16.mxu0 0
      %1943 = vmatpush1.bf16.msra.mxu0 %v1621
      %1944 = vmatprep.subr.bf16.mxu0 0
      %1945 = vmatpush1.bf16.msra.mxu0 %v1622
      %1946 = vmatprep.subr.bf16.mxu0 0
      %1947 = vmatpush1.bf16.msra.mxu0 %v1623
      %1948 = vmatprep.subr.bf16.mxu0 0
      %1949 = vmatpush1.bf16.msra.mxu0 0
      %1950 = vmatprep.subr.bf16.mxu0 0
      %1951 = vmatpush1.bf16.msra.mxu0 0
      %1952 = vmatprep.subr.bf16.mxu0 0
      %1953 = vmatpush1.bf16.msra.mxu0 0
      %1954 = vmatprep.subr.bf16.mxu0 0
      %1955 = vmatpush1.bf16.msra.mxu0 0
      %1956 = vmatprep.subr.bf16.mxu0 0
      %1957 = vmatpush1.bf16.msra.mxu0 0
      %1958 = vmatprep.subr.bf16.mxu0 0
      %1959 = vmatpush1.bf16.msra.mxu0 0
      %1960 = vmatprep.subr.bf16.mxu0 0
      %1961 = vmatpush1.bf16.msra.mxu0 0
      %1962 = vmatprep.subr.bf16.mxu0 0
      %1963 = vmatpush1.bf16.msra.mxu0 0
      %1964 = vmatprep.subr.bf16.mxu0 0
      %1965 = vmatpush1.bf16.msra.mxu0 0
      %1966 = vmatprep.subr.bf16.mxu0 0
      %1967 = vmatpush1.bf16.msra.mxu0 0
      %1968 = vmatprep.subr.bf16.mxu0 0
      %1969 = vmatpush1.bf16.msra.mxu0 0
      %1970 = vmatprep.subr.bf16.mxu0 0
      %1971 = vmatpush1.bf16.msra.mxu0 0
      %1972 = vmatprep.mubr.bf16.mxu0 0
      %1973 = vmatmul.mubr.bf16.gmra.mrb[0].mxu0 %v1799
      %v1974 = vpop.f32.mrb[0].mxu0
      %v1975 = vadd.f32 %v1910, %v1974
      %v1976 = vpop.f32.mrb[0].mxu0
      %v1977 = vpop.f32.mrb[0].mxu0
      %v1978 = vadd.f32 %v1913, %v1977
      %v1979 = vpop.f32.mrb[0].mxu0
      %1980 = vmatprep.mubr.bf16.mxu0 0
      %1981 = vmatmul.mubr.bf16.gmra.mrb[0].mxu0 %v1802
      %v1982 = vpop.f32.mrb[0].mxu0
      %v1983 = vadd.f32 %v1918, %v1982
      %v1984 = vpop.f32.mrb[0].mxu0
      %v1985 = vpop.f32.mrb[0].mxu0
      %v1986 = vadd.f32 %v1921, %v1985
      %v1987 = vpop.f32.mrb[0].mxu0
      %1988 = vmatprep.mubr.bf16.mxu0 0
      %1989 = vmatmul.mubr.bf16.gmra.mrb[0].mxu0 %v1805
      %v1990 = vpop.f32.mrb[0].mxu0
      %v1991 = vadd.f32 %v1926, %v1990
      %v1992 = vpop.f32.mrb[0].mxu0
      %v1993 = vpop.f32.mrb[0].mxu0
      %v1994 = vadd.f32 %v1929, %v1993
      %v1995 = vpop.f32.mrb[0].mxu0
      %1996 = vmatprep.mubr.bf16.mxu0 0
      %1997 = vmatmul.mubr.bf16.gmra.mrb[0].mxu0 %v1808
      %v1998 = vpop.f32.mrb[0].mxu0
      %v1999 = vadd.f32 %v1934, %v1998
      %v2000 = vpop.f32.mrb[0].mxu0
      %v2001 = vpop.f32.mrb[0].mxu0
      %v2002 = vadd.f32 %v1937, %v2001
      %v2003 = vpop.f32.mrb[0].mxu0
      %2004 = vdwg.mxu0
      %v2005 = vmax.f32 %v1975, 0.0
      %v2006 = vmax.f32 %v1978, 0.0
      %v2007 = vmax.f32 %v1983, 0.0
      %v2008 = vmax.f32 %v1986, 0.0
      %v2009 = vmax.f32 %v1991, 0.0
      %v2010 = vmax.f32 %v1994, 0.0
      %v2011 = vmax.f32 %v1999, 0.0
      %v2012 = vmax.f32 %v2002, 0.0
      %v2013 = vpack.c.bf16 %v2006, %v2005
      %v2014 = vpack.c.bf16 %v2008, %v2007
      %v2015 = vpack.c.bf16 %v2010, %v2009
      %v2016 = vpack.c.bf16 %v2012, %v2011
      %v2017 = vld [vmem:[%s7] sm:$0xff]
      %v2018 = vld [vmem:[%s7 + $0x8] sm:$0xf]
      %v2019 = vld [vmem:[%s7 + $0xc] sm:$0xff]
      %v2020 = vld [vmem:[%s7 + $0x14] sm:$0xf]
      %v2021 = vld [vmem:[%s7 + $0x18] sm:$0xff]
      %v2022 = vld [vmem:[%s7 + $0x20] sm:$0xf]
      %v2023 = vld [vmem:[%s7 + $0x24] sm:$0xff]
      %v2024 = vld [vmem:[%s7 + $0x2c] sm:$0xf]
      %v2025 = vld [vmem:[%s7 + $0x30] sm:$0xff]
      %v2026 = vld [vmem:[%s7 + $0x38] sm:$0xf]
      %v2027 = vld [vmem:[%s7 + $0x3c] sm:$0xff]
      %v2028 = vld [vmem:[%s7 + $0x44] sm:$0xf]
      %v2029 = vld [vmem:[%s7 + $0x48] sm:$0xff]
      %v2030 = vld [vmem:[%s7 + $0x50] sm:$0xf]
      %v2031 = vld [vmem:[%s7 + $0x54] sm:$0xff]
      %v2032 = vld [vmem:[%s7 + $0x5c] sm:$0xf]
      %v2033 = vld [vmem:[%s7 + $0x60] sm:$0xff]
      %v2034 = vld [vmem:[%s7 + $0x68] sm:$0xf]
      %v2035 = vld [vmem:[%s7 + $0x6c] sm:$0xff]
      %v2036 = vld [vmem:[%s7 + $0x74] sm:$0xf]
      %v2037 = vld [vmem:[%s7 + $0x78] sm:$0xff]
      %v2038 = vld [vmem:[%s7 + $0x80] sm:$0xf]
      %v2039 = vld [vmem:[%s7 + $0x84] sm:$0xff]
      %v2040 = vld [vmem:[%s7 + $0x8c] sm:$0xf]
      %v2041 = vld [vmem:[%s7 + $0x90] sm:$0x33]
      %v2042 = vld [vmem:[%s7 + $0x98] sm:$0x3]
      %v2069 = vunpack.c.l.b16 %v2017
      %v2070 = vunpack.c.h.b16 %v2017
      %v2071 = vunpack.c.l.b16 %v2018
      %v2072 = vunpack.c.l.b16 %v2019
      %v2073 = vunpack.c.h.b16 %v2019
      %v2074 = vunpack.c.l.b16 %v2020
      %v2075 = vunpack.c.l.b16 %v2021
      %v2076 = vunpack.c.h.b16 %v2021
      %v2077 = vunpack.c.l.b16 %v2022
      %v2078 = vunpack.c.l.b16 %v2023
      %v2079 = vunpack.c.h.b16 %v2023
      %v2080 = vunpack.c.l.b16 %v2024
      %v2081 = vunpack.c.l.b16 %v2025
      %v2082 = vunpack.c.h.b16 %v2025
      %v2083 = vunpack.c.l.b16 %v2026
      %v2084 = vunpack.c.l.b16 %v2027
      %v2085 = vunpack.c.h.b16 %v2027
      %v2086 = vunpack.c.l.b16 %v2028
      %v2087 = vunpack.c.l.b16 %v2029
      %v2088 = vunpack.c.h.b16 %v2029
      %v2089 = vunpack.c.l.b16 %v2030
      %v2090 = vunpack.c.l.b16 %v2031
      %v2091 = vunpack.c.h.b16 %v2031
      %v2092 = vunpack.c.l.b16 %v2032
      %v2093 = vunpack.c.l.b16 %v2033
      %v2094 = vunpack.c.h.b16 %v2033
      %v2095 = vunpack.c.l.b16 %v2034
      %v2096 = vunpack.c.l.b16 %v2035
      %v2097 = vunpack.c.h.b16 %v2035
      %v2098 = vunpack.c.l.b16 %v2036
      %v2099 = vunpack.c.l.b16 %v2037
      %v2100 = vunpack.c.h.b16 %v2037
      %v2101 = vunpack.c.l.b16 %v2038
      %v2102 = vunpack.c.l.b16 %v2039
      %v2103 = vunpack.c.h.b16 %v2039
      %v2104 = vunpack.c.l.b16 %v2040
      %v2105 = vunpack.c.l.b16 %v2041
      %v2106 = vunpack.c.h.b16 %v2041
      %v2107 = vunpack.c.l.b16 %v2042
      %v2108 = vpack.c.b16 %v2072, %v2069
      %v2109 = vpack.c.b16 %v2073, %v2070
      %v2110 = vpack.c.b16 %v2074, %v2071
      %v2111 = vpack.c.b16 %v2078, %v2075
      %v2112 = vpack.c.b16 %v2079, %v2076
      %v2113 = vpack.c.b16 %v2080, %v2077
      %v2114 = vpack.c.b16 %v2084, %v2081
      %v2115 = vpack.c.b16 %v2085, %v2082
      %v2116 = vpack.c.b16 %v2086, %v2083
      %v2117 = vpack.c.b16 %v2090, %v2087
      %v2118 = vpack.c.b16 %v2091, %v2088
      %v2119 = vpack.c.b16 %v2092, %v2089
      %v2120 = vpack.c.b16 %v2096, %v2093
      %v2121 = vpack.c.b16 %v2097, %v2094
      %v2122 = vpack.c.b16 %v2098, %v2095
      %v2123 = vpack.c.b16 %v2102, %v2099
      %v2124 = vpack.c.b16 %v2103, %v2100
      %v2125 = vpack.c.b16 %v2104, %v2101
      %v2126 = vpack.c.b16 %v2105, %v2105
      %v2127 = vpack.c.b16 %v2106, %v2106
      %v2128 = vpack.c.b16 %v2107, %v2107
      %v2148 = vsel %vm1308, %v2013, 0
      %v2151 = vsel %vm1308, %v2014, 0
      %v2154 = vsel %vm1308, %v2015, 0
      %v2157 = vsel %vm1308, %v2016, 0
      %v2160 = vsel %vm1211, %v2126, 0
      %v2163 = vsel %vm1211, %v2127, 0
      %v2166 = vsel %vm1211, %v2128, 0
      %2168 = vmatprep.subr.bf16.mxu0 %v2109
      %2169 = vmatpush1.bf16.msra.mxu0 %v2108
      %2170 = vmatprep.subr.bf16.mxu0 %v2112
      %2171 = vmatpush1.bf16.msra.mxu0 %v2111
      %2172 = vmatprep.subr.bf16.mxu0 %v2115
      %2173 = vmatpush1.bf16.msra.mxu0 %v2114
      %2174 = vmatprep.subr.bf16.mxu0 %v2118
      %2175 = vmatpush1.bf16.msra.mxu0 %v2117
      %2176 = vmatprep.subr.bf16.mxu0 %v2121
      %2177 = vmatpush1.bf16.msra.mxu0 %v2120
      %2178 = vmatprep.subr.bf16.mxu0 %v2124
      %2179 = vmatpush1.bf16.msra.mxu0 %v2123
      %2180 = vmatprep.subr.bf16.mxu0 %v2163
      %2181 = vmatpush1.bf16.msra.mxu0 %v2160
      %2182 = vmatprep.subr.bf16.mxu0 0
      %2183 = vmatpush1.bf16.msra.mxu0 0
      %2184 = vmatprep.subr.bf16.mxu0 0
      %2185 = vmatpush1.bf16.msra.mxu0 0
      %2186 = vmatprep.subr.bf16.mxu0 0
      %2187 = vmatpush1.bf16.msra.mxu0 0
      %2188 = vmatprep.subr.bf16.mxu0 0
      %2189 = vmatpush1.bf16.msra.mxu0 0
      %2190 = vmatprep.subr.bf16.mxu0 0
      %2191 = vmatpush1.bf16.msra.mxu0 0
      %2192 = vmatprep.subr.bf16.mxu0 0
      %2193 = vmatpush1.bf16.msra.mxu0 0
      %2194 = vmatprep.subr.bf16.mxu0 0
      %2195 = vmatpush1.bf16.msra.mxu0 0
      %2196 = vmatprep.subr.bf16.mxu0 0
      %2197 = vmatpush1.bf16.msra.mxu0 0
      %2198 = vmatprep.subr.bf16.mxu0 0
      %2199 = vmatpush1.bf16.msra.mxu0 0
      %2200 = vmatprep.mubr.bf16.mxu0 0
      %2201 = vmatmul.mubr.bf16.gmra.mrb[0].mxu0 %v2148
      %v2202 = vpop.f32.mrb[0].mxu0
      %v2203 = vadd.f32 0.0, %v2202
      %v2204 = vpop.f32.mrb[0].mxu0
      %v2205 = vadd.f32 0.0, %v2204
      %v2206 = vpop.f32.mrb[0].mxu0
      %v2207 = vadd.f32 0.0, %v2206
      %v2208 = vpop.f32.mrb[0].mxu0
      %v2209 = vadd.f32 0.0, %v2208
      %2210 = vmatprep.mubr.bf16.mxu0 0
      %2211 = vmatmul.mubr.bf16.gmra.mrb[0].mxu0 %v2151
      %v2212 = vpop.f32.mrb[0].mxu0
      %v2213 = vadd.f32 0.0, %v2212
      %v2214 = vpop.f32.mrb[0].mxu0
      %v2215 = vadd.f32 0.0, %v2214
      %v2216 = vpop.f32.mrb[0].mxu0
      %v2217 = vadd.f32 0.0, %v2216
      %v2218 = vpop.f32.mrb[0].mxu0
      %v2219 = vadd.f32 0.0, %v2218
      %2220 = vmatprep.mubr.bf16.mxu0 0
      %2221 = vmatmul.mubr.bf16.gmra.mrb[0].mxu0 %v2154
      %v2222 = vpop.f32.mrb[0].mxu0
      %v2223 = vadd.f32 0.0, %v2222
      %v2224 = vpop.f32.mrb[0].mxu0
      %v2225 = vadd.f32 0.0, %v2224
      %v2226 = vpop.f32.mrb[0].mxu0
      %v2227 = vadd.f32 0.0, %v2226
      %v2228 = vpop.f32.mrb[0].mxu0
      %v2229 = vadd.f32 0.0, %v2228
      %2230 = vmatprep.mubr.bf16.mxu0 0
      %2231 = vmatmul.mubr.bf16.gmra.mrb[0].mxu0 %v2157
      %v2232 = vpop.f32.mrb[0].mxu0
      %v2233 = vadd.f32 0.0, %v2232
      %v2234 = vpop.f32.mrb[0].mxu0
      %v2235 = vadd.f32 0.0, %v2234
      %v2236 = vpop.f32.mrb[0].mxu0
      %v2237 = vadd.f32 0.0, %v2236
      %v2238 = vpop.f32.mrb[0].mxu0
      %v2239 = vadd.f32 0.0, %v2238
      %2240 = vdwg.mxu0
      %2241 = vmatprep.subr.bf16.mxu0 0
      %2242 = vmatpush1.bf16.msra.mxu0 %v2110
      %2243 = vmatprep.subr.bf16.mxu0 0
      %2244 = vmatpush1.bf16.msra.mxu0 %v2113
      %2245 = vmatprep.subr.bf16.mxu0 0
      %2246 = vmatpush1.bf16.msra.mxu0 %v2116
      %2247 = vmatprep.subr.bf16.mxu0 0
      %2248 = vmatpush1.bf16.msra.mxu0 %v2119
      %2249 = vmatprep.subr.bf16.mxu0 0
      %2250 = vmatpush1.bf16.msra.mxu0 %v2122
      %2251 = vmatprep.subr.bf16.mxu0 0
      %2252 = vmatpush1.bf16.msra.mxu0 %v2125
      %2253 = vmatprep.subr.bf16.mxu0 0
      %2254 = vmatpush1.bf16.msra.mxu0 %v2166
      %2255 = vmatprep.subr.bf16.mxu0 0
      %2256 = vmatpush1.bf16.msra.mxu0 0
      %2257 = vmatprep.subr.bf16.mxu0 0
      %2258 = vmatpush1.bf16.msra.mxu0 0
      %2259 = vmatprep.subr.bf16.mxu0 0
      %2260 = vmatpush1.bf16.msra.mxu0 0
      %2261 = vmatprep.subr.bf16.mxu0 0
      %2262 = vmatpush1.bf16.msra.mxu0 0
      %2263 = vmatprep.subr.bf16.mxu0 0
      %2264 = vmatpush1.bf16.msra.mxu0 0
      %2265 = vmatprep.subr.bf16.mxu0 0
      %2266 = vmatpush1.bf16.msra.mxu0 0
      %2267 = vmatprep.subr.bf16.mxu0 0
      %2268 = vmatpush1.bf16.msra.mxu0 0
      %2269 = vmatprep.subr.bf16.mxu0 0
      %2270 = vmatpush1.bf16.msra.mxu0 0
      %2271 = vmatprep.subr.bf16.mxu0 0
      %2272 = vmatpush1.bf16.msra.mxu0 0
      %2273 = vmatprep.mubr.bf16.mxu0 0
      %2274 = vmatmul.mubr.bf16.gmra.mrb[0].mxu0 %v2148
      %v2275 = vpop.f32.mrb[0].mxu0
      %v2276 = vadd.f32 0.0, %v2275
      %v2277 = vpop.f32.mrb[0].mxu0
      %v2278 = vpop.f32.mrb[0].mxu0
      %v2279 = vadd.f32 0.0, %v2278
      %v2280 = vpop.f32.mrb[0].mxu0
      %2281 = vmatprep.mubr.bf16.mxu0 0
      %2282 = vmatmul.mubr.bf16.gmra.mrb[0].mxu0 %v2151
      %v2283 = vpop.f32.mrb[0].mxu0
      %v2284 = vadd.f32 0.0, %v2283
      %v2285 = vpop.f32.mrb[0].mxu0
      %v2286 = vpop.f32.mrb[0].mxu0
      %v2287 = vadd.f32 0.0, %v2286
      %v2288 = vpop.f32.mrb[0].mxu0
      %2289 = vmatprep.mubr.bf16.mxu0 0
      %2290 = vmatmul.mubr.bf16.gmra.mrb[0].mxu0 %v2154
      %v2291 = vpop.f32.mrb[0].mxu0
      %v2292 = vadd.f32 0.0, %v2291
      %v2293 = vpop.f32.mrb[0].mxu0
      %v2294 = vpop.f32.mrb[0].mxu0
      %v2295 = vadd.f32 0.0, %v2294
      %v2296 = vpop.f32.mrb[0].mxu0
      %2297 = vmatprep.mubr.bf16.mxu0 0
      %2298 = vmatmul.mubr.bf16.gmra.mrb[0].mxu0 %v2157
      %v2299 = vpop.f32.mrb[0].mxu0
      %v2300 = vadd.f32 0.0, %v2299
      %v2301 = vpop.f32.mrb[0].mxu0
      %v2302 = vpop.f32.mrb[0].mxu0
      %v2303 = vadd.f32 0.0, %v2302
      %v2304 = vpop.f32.mrb[0].mxu0
      %2305 = vdwg.mxu0
      %v2306 = vld [vmem:[%s382] sm:$0xff]
      %v2307 = vld [vmem:[%s382 + $0x8] sm:$0xf]
      %v2308 = vld [vmem:[%s382 + $0xc] sm:$0xff]
      %v2309 = vld [vmem:[%s382 + $0x14] sm:$0xf]
      %v2310 = vld [vmem:[%s382 + $0x18] sm:$0xff]
      %v2311 = vld [vmem:[%s382 + $0x20] sm:$0xf]
      %v2312 = vld [vmem:[%s382 + $0x24] sm:$0xff]
      %v2313 = vld [vmem:[%s382 + $0x2c] sm:$0xf]
      %v2314 = vld [vmem:[%s382 + $0x30] sm:$0xff]
      %v2315 = vld [vmem:[%s382 + $0x38] sm:$0xf]
      %v2316 = vld [vmem:[%s382 + $0x3c] sm:$0xff]
      %v2317 = vld [vmem:[%s382 + $0x44] sm:$0xf]
      %v2318 = vld [vmem:[%s382 + $0x48] sm:$0xff]
      %v2319 = vld [vmem:[%s382 + $0x50] sm:$0xf]
      %v2320 = vld [vmem:[%s382 + $0x54] sm:$0xff]
      %v2321 = vld [vmem:[%s382 + $0x5c] sm:$0xf]
      %v2322 = vunpack.c.l.bf16 %v2306
      %v2323 = vunpack.c.h.bf16 %v2306
      %v2324 = vunpack.c.l.bf16 %v2307
      %v2325 = vunpack.c.l.bf16 %v2308
      %v2326 = vunpack.c.h.bf16 %v2308
      %v2327 = vunpack.c.l.bf16 %v2309
      %v2328 = vunpack.c.l.bf16 %v2310
      %v2329 = vunpack.c.h.bf16 %v2310
      %v2330 = vunpack.c.l.bf16 %v2311
      %v2331 = vunpack.c.l.bf16 %v2312
      %v2332 = vunpack.c.h.bf16 %v2312
      %v2333 = vunpack.c.l.bf16 %v2313
      %v2334 = vunpack.c.l.bf16 %v2314
      %v2335 = vunpack.c.h.bf16 %v2314
      %v2336 = vunpack.c.l.bf16 %v2315
      %v2337 = vunpack.c.l.bf16 %v2316
      %v2338 = vunpack.c.h.bf16 %v2316
      %v2339 = vunpack.c.l.bf16 %v2317
      %v2340 = vunpack.c.l.bf16 %v2318
      %v2341 = vunpack.c.h.bf16 %v2318
      %v2342 = vunpack.c.l.bf16 %v2319
      %v2343 = vunpack.c.l.bf16 %v2320
      %v2344 = vunpack.c.h.bf16 %v2320
      %v2345 = vunpack.c.l.bf16 %v2321
      %v2346 = vadd.f32 %v2322, %v2203
      %v2347 = vadd.f32 %v2323, %v2205
      %v2348 = vadd.f32 %v2324, %v2276
      %v2349 = vadd.f32 %v2325, %v2207
      %v2350 = vadd.f32 %v2326, %v2209
      %v2351 = vadd.f32 %v2327, %v2279
      %v2352 = vadd.f32 %v2328, %v2213
      %v2353 = vadd.f32 %v2329, %v2215
      %v2354 = vadd.f32 %v2330, %v2284
      %v2355 = vadd.f32 %v2331, %v2217
      %v2356 = vadd.f32 %v2332, %v2219
      %v2357 = vadd.f32 %v2333, %v2287
      %v2358 = vadd.f32 %v2334, %v2223
      %v2359 = vadd.f32 %v2335, %v2225
      %v2360 = vadd.f32 %v2336, %v2292
      %v2361 = vadd.f32 %v2337, %v2227
      %v2362 = vadd.f32 %v2338, %v2229
      %v2363 = vadd.f32 %v2339, %v2295
      %v2364 = vadd.f32 %v2340, %v2233
      %v2365 = vadd.f32 %v2341, %v2235
      %v2366 = vadd.f32 %v2342, %v2300
      %v2367 = vadd.f32 %v2343, %v2237
      %v2368 = vadd.f32 %v2344, %v2239
      %v2369 = vadd.f32 %v2345, %v2303
      %v2370 = vpack.c.bf16 %v2349, %v2346
      %v2371 = vpack.c.bf16 %v2350, %v2347
      %v2372 = vpack.c.bf16 %v2351, %v2348
      %v2373 = vpack.c.bf16 %v2355, %v2352
      %v2374 = vpack.c.bf16 %v2356, %v2353
      %v2375 = vpack.c.bf16 %v2357, %v2354
      %v2376 = vpack.c.bf16 %v2361, %v2358
      %v2377 = vpack.c.bf16 %v2362, %v2359
      %v2378 = vpack.c.bf16 %v2363, %v2360
      %v2379 = vpack.c.bf16 %v2367, %v2364
      %v2380 = vpack.c.bf16 %v2368, %v2365
      %v2381 = vpack.c.bf16 %v2369, %v2366
      %2382 = vst [vmem:[#allocation2 + $0x588] sm:$0xff] %v2370
      %2383 = vst [vmem:[#allocation2 + $0x590] sm:$0xff] %v2371
      %vm2384 = vcmask 556032
      %2385 = vst.msk [vmem:[#allocation2 + $0x598] sm:$0xff] %vm2384, %v2372
      %2386 = vst [vmem:[#allocation2 + $0x5e0] sm:$0xff] %v2373
      %2387 = vst [vmem:[#allocation2 + $0x5e8] sm:$0xff] %v2374
      %2388 = vst.msk [vmem:[#allocation2 + $0x5f0] sm:$0xff] %vm2384, %v2375
      %2389 = vst [vmem:[#allocation2 + $0x638] sm:$0xff] %v2376
      %2390 = vst [vmem:[#allocation2 + $0x640] sm:$0xff] %v2377
      %2391 = vst.msk [vmem:[#allocation2 + $0x648] sm:$0xff] %vm2384, %v2378
      %2392 = vst [vmem:[#allocation2 + $0x690] sm:$0xff] %v2379
      %2393 = vst [vmem:[#allocation2 + $0x698] sm:$0xff] %v2380
      %2394 = vst.msk [vmem:[#allocation2 + $0x6a0] sm:$0xff] %vm2384, %v2381
      %v2395 = vld [vmem:[#allocation2 + $0x580] sm:$0xff]
      %v2396 = vld [vmem:[#allocation2 + $0x588] sm:$0xff]
      %v2397 = vld [vmem:[#allocation2 + $0x590] sm:$0xff]
      %v2398 = vld [vmem:[#allocation2 + $0x598] sm:$0xff]
      %v2399 = vld [vmem:[#allocation2 + $0x5d8] sm:$0xff]
      %v2400 = vld [vmem:[#allocation2 + $0x5e0] sm:$0xff]
      %v2401 = vld [vmem:[#allocation2 + $0x5e8] sm:$0xff]
      %v2402 = vld [vmem:[#allocation2 + $0x5f0] sm:$0xff]
      %v2403 = vld [vmem:[#allocation2 + $0x630] sm:$0xff]
      %v2404 = vld [vmem:[#allocation2 + $0x638] sm:$0xff]
      %v2405 = vld [vmem:[#allocation2 + $0x640] sm:$0xff]
      %v2406 = vld [vmem:[#allocation2 + $0x648] sm:$0xff]
      %v2407 = vld [vmem:[#allocation2 + $0x688] sm:$0xff]
      %v2408 = vld [vmem:[#allocation2 + $0x690] sm:$0xff]
      %v2409 = vld [vmem:[#allocation2 + $0x698] sm:$0xff]
      %v2410 = vld [vmem:[#allocation2 + $0x6a0] sm:$0xff]
      %2427 = vrot.lane.b32.xlu0 %v2395, 19
      %v2428 = vpop.permute.xlu0 %2427
      %2429 = vrot.lane.b32.xlu0 %v2396, 19
      %v2430 = vpop.permute.xlu0 %2429
      %2431 = vrot.lane.b32.xlu0 %v2397, 19
      %v2432 = vpop.permute.xlu0 %2431
      %2433 = vrot.lane.b32.xlu0 %v2398, 19
      %v2434 = vpop.permute.xlu0 %2433
      %2435 = vrot.lane.b32.xlu0 %v2399, 19
      %v2436 = vpop.permute.xlu0 %2435
      %2437 = vrot.lane.b32.xlu0 %v2400, 19
      %v2438 = vpop.permute.xlu0 %2437
      %2439 = vrot.lane.b32.xlu0 %v2401, 19
      %v2440 = vpop.permute.xlu0 %2439
      %2441 = vrot.lane.b32.xlu0 %v2402, 19
      %v2442 = vpop.permute.xlu0 %2441
      %2443 = vrot.lane.b32.xlu0 %v2403, 19
      %v2444 = vpop.permute.xlu0 %2443
      %2445 = vrot.lane.b32.xlu0 %v2404, 19
      %v2446 = vpop.permute.xlu0 %2445
      %2447 = vrot.lane.b32.xlu0 %v2405, 19
      %v2448 = vpop.permute.xlu0 %2447
      %2449 = vrot.lane.b32.xlu0 %v2406, 19
      %v2450 = vpop.permute.xlu0 %2449
      %2451 = vrot.lane.b32.xlu0 %v2407, 19
      %v2452 = vpop.permute.xlu0 %2451
      %2453 = vrot.lane.b32.xlu0 %v2408, 19
      %v2454 = vpop.permute.xlu0 %2453
      %2455 = vrot.lane.b32.xlu0 %v2409, 19
      %v2456 = vpop.permute.xlu0 %2455
      %2457 = vrot.lane.b32.xlu0 %v2410, 19
      %v2458 = vpop.permute.xlu0 %2457
      %vm2459 = vcmask 154624
      %v2460 = vsel %vm2459, %v2428, %v2430
      %v2461 = vsel %vm2459, %v2430, %v2432
      %v2462 = vsel %vm2459, %v2432, %v2434
      %v2463 = vsel %vm2459, %v2436, %v2438
      %v2464 = vsel %vm2459, %v2438, %v2440
      %v2465 = vsel %vm2459, %v2440, %v2442
      %v2466 = vsel %vm2459, %v2444, %v2446
      %v2467 = vsel %vm2459, %v2446, %v2448
      %v2468 = vsel %vm2459, %v2448, %v2450
      %v2469 = vsel %vm2459, %v2452, %v2454
      %v2470 = vsel %vm2459, %v2454, %v2456
      %v2471 = vsel %vm2459, %v2456, %v2458
      %2484 = vst [vmem:[#allocation2 + $0x8] sm:$0xff] %v2460
      %2485 = vst [vmem:[#allocation2 + $0x10] sm:$0xff] %v2461
      %2486 = vst.msk [vmem:[#allocation2 + $0x18] sm:$0xff] %vm2384, %v2462
      %2487 = vst [vmem:[#allocation2 + $0x60] sm:$0xff] %v2463
      %2488 = vst [vmem:[#allocation2 + $0x68] sm:$0xff] %v2464
      %2489 = vst.msk [vmem:[#allocation2 + $0x70] sm:$0xff] %vm2384, %v2465
      %2490 = vst [vmem:[#allocation2 + $0xb8] sm:$0xff] %v2466
      %2491 = vst [vmem:[#allocation2 + $0xc0] sm:$0xff] %v2467
      %2492 = vst.msk [vmem:[#allocation2 + $0xc8] sm:$0xff] %vm2384, %v2468
      %2493 = vst [vmem:[#allocation2 + $0x110] sm:$0xff] %v2469
      %2494 = vst [vmem:[#allocation2 + $0x118] sm:$0xff] %v2470
      %2495 = vst.msk [vmem:[#allocation2 + $0x120] sm:$0xff] %vm2384, %v2471
      %v2496 = vld [vmem:[#allocation2 + $0x580] sm:$0xff]
      %v2497 = vld [vmem:[#allocation2 + $0x588] sm:$0xff]
      %v2498 = vld [vmem:[#allocation2 + $0x590] sm:$0xff]
      %v2499 = vld [vmem:[#allocation2 + $0x598] sm:$0xff]
      %v2500 = vld [vmem:[#allocation2 + $0x5d8] sm:$0xff]
      %v2501 = vld [vmem:[#allocation2 + $0x5e0] sm:$0xff]
      %v2502 = vld [vmem:[#allocation2 + $0x5e8] sm:$0xff]
      %v2503 = vld [vmem:[#allocation2 + $0x5f0] sm:$0xff]
      %v2504 = vld [vmem:[#allocation2 + $0x630] sm:$0xff]
      %v2505 = vld [vmem:[#allocation2 + $0x638] sm:$0xff]
      %v2506 = vld [vmem:[#allocation2 + $0x640] sm:$0xff]
      %v2507 = vld [vmem:[#allocation2 + $0x648] sm:$0xff]
      %v2508 = vld [vmem:[#allocation2 + $0x688] sm:$0xff]
      %v2509 = vld [vmem:[#allocation2 + $0x690] sm:$0xff]
      %v2510 = vld [vmem:[#allocation2 + $0x698] sm:$0xff]
      %v2511 = vld [vmem:[#allocation2 + $0x6a0] sm:$0xff]
      %2528 = vrot.lane.b32.xlu0 %v2496, 18
      %v2529 = vpop.permute.xlu0 %2528
      %2530 = vrot.lane.b32.xlu0 %v2497, 18
      %v2531 = vpop.permute.xlu0 %2530
      %2532 = vrot.lane.b32.xlu0 %v2498, 18
      %v2533 = vpop.permute.xlu0 %2532
      %2534 = vrot.lane.b32.xlu0 %v2499, 18
      %v2535 = vpop.permute.xlu0 %2534
      %2536 = vrot.lane.b32.xlu0 %v2500, 18
      %v2537 = vpop.permute.xlu0 %2536
      %2538 = vrot.lane.b32.xlu0 %v2501, 18
      %v2539 = vpop.permute.xlu0 %2538
      %2540 = vrot.lane.b32.xlu0 %v2502, 18
      %v2541 = vpop.permute.xlu0 %2540
      %2542 = vrot.lane.b32.xlu0 %v2503, 18
      %v2543 = vpop.permute.xlu0 %2542
      %2544 = vrot.lane.b32.xlu0 %v2504, 18
      %v2545 = vpop.permute.xlu0 %2544
      %2546 = vrot.lane.b32.xlu0 %v2505, 18
      %v2547 = vpop.permute.xlu0 %2546
      %2548 = vrot.lane.b32.xlu0 %v2506, 18
      %v2549 = vpop.permute.xlu0 %2548
      %2550 = vrot.lane.b32.xlu0 %v2507, 18
      %v2551 = vpop.permute.xlu0 %2550
      %2552 = vrot.lane.b32.xlu0 %v2508, 18
      %v2553 = vpop.permute.xlu0 %2552
      %2554 = vrot.lane.b32.xlu0 %v2509, 18
      %v2555 = vpop.permute.xlu0 %2554
      %2556 = vrot.lane.b32.xlu0 %v2510, 18
      %v2557 = vpop.permute.xlu0 %2556
      %2558 = vrot.lane.b32.xlu0 %v2511, 18
      %v2559 = vpop.permute.xlu0 %2558
      %vm2560 = vcmask 146432
      %v2561 = vsel %vm2560, %v2529, %v2531
      %v2562 = vsel %vm2560, %v2531, %v2533
      %v2563 = vsel %vm2560, %v2533, %v2535
      %v2564 = vsel %vm2560, %v2537, %v2539
      %v2565 = vsel %vm2560, %v2539, %v2541
      %v2566 = vsel %vm2560, %v2541, %v2543
      %v2567 = vsel %vm2560, %v2545, %v2547
      %v2568 = vsel %vm2560, %v2547, %v2549
      %v2569 = vsel %vm2560, %v2549, %v2551
      %v2570 = vsel %vm2560, %v2553, %v2555
      %v2571 = vsel %vm2560, %v2555, %v2557
      %v2572 = vsel %vm2560, %v2557, %v2559
      %2585 = vst [vmem:[#allocation2 + $0x168] sm:$0xff] %v2561
      %2586 = vst [vmem:[#allocation2 + $0x170] sm:$0xff] %v2562
      %2587 = vst.msk [vmem:[#allocation2 + $0x178] sm:$0xff] %vm2384, %v2563
      %2588 = vst [vmem:[#allocation2 + $0x1c0] sm:$0xff] %v2564
      %2589 = vst [vmem:[#allocation2 + $0x1c8] sm:$0xff] %v2565
      %2590 = vst.msk [vmem:[#allocation2 + $0x1d0] sm:$0xff] %vm2384, %v2566
      %2591 = vst [vmem:[#allocation2 + $0x218] sm:$0xff] %v2567
      %2592 = vst [vmem:[#allocation2 + $0x220] sm:$0xff] %v2568
      %2593 = vst.msk [vmem:[#allocation2 + $0x228] sm:$0xff] %vm2384, %v2569
      %2594 = vst [vmem:[#allocation2 + $0x270] sm:$0xff] %v2570
      %2595 = vst [vmem:[#allocation2 + $0x278] sm:$0xff] %v2571
      %2596 = vst.msk [vmem:[#allocation2 + $0x280] sm:$0xff] %vm2384, %v2572
      %v2597 = vld [vmem:[#allocation2 + $0x580] sm:$0xff]
      %v2598 = vld [vmem:[#allocation2 + $0x588] sm:$0xff]
      %v2599 = vld [vmem:[#allocation2 + $0x590] sm:$0xff]
      %v2600 = vld [vmem:[#allocation2 + $0x598] sm:$0xff]
      %v2601 = vld [vmem:[#allocation2 + $0x5d8] sm:$0xff]
      %v2602 = vld [vmem:[#allocation2 + $0x5e0] sm:$0xff]
      %v2603 = vld [vmem:[#allocation2 + $0x5e8] sm:$0xff]
      %v2604 = vld [vmem:[#allocation2 + $0x5f0] sm:$0xff]
      %v2605 = vld [vmem:[#allocation2 + $0x630] sm:$0xff]
      %v2606 = vld [vmem:[#allocation2 + $0x638] sm:$0xff]
      %v2607 = vld [vmem:[#allocation2 + $0x640] sm:$0xff]
      %v2608 = vld [vmem:[#allocation2 + $0x648] sm:$0xff]
      %v2609 = vld [vmem:[#allocation2 + $0x688] sm:$0xff]
      %v2610 = vld [vmem:[#allocation2 + $0x690] sm:$0xff]
      %v2611 = vld [vmem:[#allocation2 + $0x698] sm:$0xff]
      %v2612 = vld [vmem:[#allocation2 + $0x6a0] sm:$0xff]
      %2629 = vrot.lane.b32.xlu0 %v2597, 17
      %v2630 = vpop.permute.xlu0 %2629
      %2631 = vrot.lane.b32.xlu0 %v2598, 17
      %v2632 = vpop.permute.xlu0 %2631
      %2633 = vrot.lane.b32.xlu0 %v2599, 17
      %v2634 = vpop.permute.xlu0 %2633
      %2635 = vrot.lane.b32.xlu0 %v2600, 17
      %v2636 = vpop.permute.xlu0 %2635
      %2637 = vrot.lane.b32.xlu0 %v2601, 17
      %v2638 = vpop.permute.xlu0 %2637
      %2639 = vrot.lane.b32.xlu0 %v2602, 17
      %v2640 = vpop.permute.xlu0 %2639
      %2641 = vrot.lane.b32.xlu0 %v2603, 17
      %v2642 = vpop.permute.xlu0 %2641
      %2643 = vrot.lane.b32.xlu0 %v2604, 17
      %v2644 = vpop.permute.xlu0 %2643
      %2645 = vrot.lane.b32.xlu0 %v2605, 17
      %v2646 = vpop.permute.xlu0 %2645
      %2647 = vrot.lane.b32.xlu0 %v2606, 17
      %v2648 = vpop.permute.xlu0 %2647
      %2649 = vrot.lane.b32.xlu0 %v2607, 17
      %v2650 = vpop.permute.xlu0 %2649
      %2651 = vrot.lane.b32.xlu0 %v2608, 17
      %v2652 = vpop.permute.xlu0 %2651
      %2653 = vrot.lane.b32.xlu0 %v2609, 17
      %v2654 = vpop.permute.xlu0 %2653
      %2655 = vrot.lane.b32.xlu0 %v2610, 17
      %v2656 = vpop.permute.xlu0 %2655
      %2657 = vrot.lane.b32.xlu0 %v2611, 17
      %v2658 = vpop.permute.xlu0 %2657
      %2659 = vrot.lane.b32.xlu0 %v2612, 17
      %v2660 = vpop.permute.xlu0 %2659
      %vm2661 = vcmask 138240
      %v2662 = vsel %vm2661, %v2630, %v2632
      %v2663 = vsel %vm2661, %v2632, %v2634
      %v2664 = vsel %vm2661, %v2634, %v2636
      %v2665 = vsel %vm2661, %v2638, %v2640
      %v2666 = vsel %vm2661, %v2640, %v2642
      %v2667 = vsel %vm2661, %v2642, %v2644
      %v2668 = vsel %vm2661, %v2646, %v2648
      %v2669 = vsel %vm2661, %v2648, %v2650
      %v2670 = vsel %vm2661, %v2650, %v2652
      %v2671 = vsel %vm2661, %v2654, %v2656
      %v2672 = vsel %vm2661, %v2656, %v2658
      %v2673 = vsel %vm2661, %v2658, %v2660
      %2686 = vst [vmem:[#allocation2 + $0x2c8] sm:$0xff] %v2662
      %2687 = vst [vmem:[#allocation2 + $0x2d0] sm:$0xff] %v2663
      %2688 = vst.msk [vmem:[#allocation2 + $0x2d8] sm:$0xff] %vm2384, %v2664
      %2689 = vst [vmem:[#allocation2 + $0x320] sm:$0xff] %v2665
      %2690 = vst [vmem:[#allocation2 + $0x328] sm:$0xff] %v2666
      %2691 = vst.msk [vmem:[#allocation2 + $0x330] sm:$0xff] %vm2384, %v2667
      %2692 = vst [vmem:[#allocation2 + $0x378] sm:$0xff] %v2668
      %2693 = vst [vmem:[#allocation2 + $0x380] sm:$0xff] %v2669
      %2694 = vst.msk [vmem:[#allocation2 + $0x388] sm:$0xff] %vm2384, %v2670
      %2695 = vst [vmem:[#allocation2 + $0x3d0] sm:$0xff] %v2671
      %2696 = vst [vmem:[#allocation2 + $0x3d8] sm:$0xff] %v2672
      %2697 = vst.msk [vmem:[#allocation2 + $0x3e0] sm:$0xff] %vm2384, %v2673
      %v2698 = vld [vmem:[#allocation2 + $0x580] sm:$0xff]
      %v2699 = vld [vmem:[#allocation2 + $0x588] sm:$0xff]
      %v2700 = vld [vmem:[#allocation2 + $0x590] sm:$0xff]
      %v2701 = vld [vmem:[#allocation2 + $0x598] sm:$0xff]
      %v2702 = vld [vmem:[#allocation2 + $0x5d8] sm:$0xff]
      %v2703 = vld [vmem:[#allocation2 + $0x5e0] sm:$0xff]
      %v2704 = vld [vmem:[#allocation2 + $0x5e8] sm:$0xff]
      %v2705 = vld [vmem:[#allocation2 + $0x5f0] sm:$0xff]
      %v2706 = vld [vmem:[#allocation2 + $0x630] sm:$0xff]
      %v2707 = vld [vmem:[#allocation2 + $0x638] sm:$0xff]
      %v2708 = vld [vmem:[#allocation2 + $0x640] sm:$0xff]
      %v2709 = vld [vmem:[#allocation2 + $0x648] sm:$0xff]
      %v2710 = vld [vmem:[#allocation2 + $0x688] sm:$0xff]
      %v2711 = vld [vmem:[#allocation2 + $0x690] sm:$0xff]
      %v2712 = vld [vmem:[#allocation2 + $0x698] sm:$0xff]
      %v2713 = vld [vmem:[#allocation2 + $0x6a0] sm:$0xff]
      %2730 = vrot.lane.b32.xlu0 %v2698, 1
      %v2731 = vpop.permute.xlu0 %2730
      %2732 = vrot.lane.b32.xlu0 %v2699, 1
      %v2733 = vpop.permute.xlu0 %2732
      %2734 = vrot.lane.b32.xlu0 %v2700, 1
      %v2735 = vpop.permute.xlu0 %2734
      %2736 = vrot.lane.b32.xlu0 %v2701, 1
      %v2737 = vpop.permute.xlu0 %2736
      %2738 = vrot.lane.b32.xlu0 %v2702, 1
      %v2739 = vpop.permute.xlu0 %2738
      %2740 = vrot.lane.b32.xlu0 %v2703, 1
      %v2741 = vpop.permute.xlu0 %2740
      %2742 = vrot.lane.b32.xlu0 %v2704, 1
      %v2743 = vpop.permute.xlu0 %2742
      %2744 = vrot.lane.b32.xlu0 %v2705, 1
      %v2745 = vpop.permute.xlu0 %2744
      %2746 = vrot.lane.b32.xlu0 %v2706, 1
      %v2747 = vpop.permute.xlu0 %2746
      %2748 = vrot.lane.b32.xlu0 %v2707, 1
      %v2749 = vpop.permute.xlu0 %2748
      %2750 = vrot.lane.b32.xlu0 %v2708, 1
      %v2751 = vpop.permute.xlu0 %2750
      %2752 = vrot.lane.b32.xlu0 %v2709, 1
      %v2753 = vpop.permute.xlu0 %2752
      %2754 = vrot.lane.b32.xlu0 %v2710, 1
      %v2755 = vpop.permute.xlu0 %2754
      %2756 = vrot.lane.b32.xlu0 %v2711, 1
      %v2757 = vpop.permute.xlu0 %2756
      %2758 = vrot.lane.b32.xlu0 %v2712, 1
      %v2759 = vpop.permute.xlu0 %2758
      %2760 = vrot.lane.b32.xlu0 %v2713, 1
      %v2761 = vpop.permute.xlu0 %2760
      %v2762 = vsel %vm642, %v2731, %v2733
      %v2763 = vsel %vm642, %v2733, %v2735
      %v2764 = vsel %vm642, %v2735, %v2737
      %v2765 = vsel %vm642, %v2739, %v2741
      %v2766 = vsel %vm642, %v2741, %v2743
      %v2767 = vsel %vm642, %v2743, %v2745
      %v2768 = vsel %vm642, %v2747, %v2749
      %v2769 = vsel %vm642, %v2749, %v2751
      %v2770 = vsel %vm642, %v2751, %v2753
      %v2771 = vsel %vm642, %v2755, %v2757
      %v2772 = vsel %vm642, %v2757, %v2759
      %v2773 = vsel %vm642, %v2759, %v2761
      %2786 = vst [vmem:[#allocation2 + $0x428] sm:$0xff] %v2762
      %2787 = vst [vmem:[#allocation2 + $0x430] sm:$0xff] %v2763
      %2788 = vst.msk [vmem:[#allocation2 + $0x438] sm:$0xff] %vm2384, %v2764
      %2789 = vst [vmem:[#allocation2 + $0x480] sm:$0xff] %v2765
      %2790 = vst [vmem:[#allocation2 + $0x488] sm:$0xff] %v2766
      %2791 = vst.msk [vmem:[#allocation2 + $0x490] sm:$0xff] %vm2384, %v2767
      %2792 = vst [vmem:[#allocation2 + $0x4d8] sm:$0xff] %v2768
      %2793 = vst [vmem:[#allocation2 + $0x4e0] sm:$0xff] %v2769
      %2794 = vst.msk [vmem:[#allocation2 + $0x4e8] sm:$0xff] %vm2384, %v2770
      %2795 = vst [vmem:[#allocation2 + $0x530] sm:$0xff] %v2771
      %2796 = vst [vmem:[#allocation2 + $0x538] sm:$0xff] %v2772
      %2797 = vst.msk [vmem:[#allocation2 + $0x540] sm:$0xff] %vm2384, %v2773
      %v2798 = vld [vmem:[#allocation2 + $0x588] sm:$0xff]
      %v2799 = vld [vmem:[#allocation2 + $0x590] sm:$0xff]
      %v2800 = vld [vmem:[#allocation2 + $0x598] sm:$0xff]
      %v2801 = vld [vmem:[#allocation2 + $0x5e0] sm:$0xff]
      %v2802 = vld [vmem:[#allocation2 + $0x5e8] sm:$0xff]
      %v2803 = vld [vmem:[#allocation2 + $0x5f0] sm:$0xff]
      %v2804 = vld [vmem:[#allocation2 + $0x638] sm:$0xff]
      %v2805 = vld [vmem:[#allocation2 + $0x640] sm:$0xff]
      %v2806 = vld [vmem:[#allocation2 + $0x648] sm:$0xff]
      %v2807 = vld [vmem:[#allocation2 + $0x690] sm:$0xff]
      %v2808 = vld [vmem:[#allocation2 + $0x698] sm:$0xff]
      %v2809 = vld [vmem:[#allocation2 + $0x6a0] sm:$0xff]
      %2822 = vrot.lane.b32.xlu0 %v2798, 127
      %v2823 = vpop.permute.xlu0 %2822
      %2824 = vrot.lane.b32.xlu0 %v2799, 127
      %v2825 = vpop.permute.xlu0 %2824
      %2826 = vrot.lane.b32.xlu0 %v2800, 127
      %v2827 = vpop.permute.xlu0 %2826
      %2828 = vrot.lane.b32.xlu0 %v2801, 127
      %v2829 = vpop.permute.xlu0 %2828
      %2830 = vrot.lane.b32.xlu0 %v2802, 127
      %v2831 = vpop.permute.xlu0 %2830
      %2832 = vrot.lane.b32.xlu0 %v2803, 127
      %v2833 = vpop.permute.xlu0 %2832
      %2834 = vrot.lane.b32.xlu0 %v2804, 127
      %v2835 = vpop.permute.xlu0 %2834
      %2836 = vrot.lane.b32.xlu0 %v2805, 127
      %v2837 = vpop.permute.xlu0 %2836
      %2838 = vrot.lane.b32.xlu0 %v2806, 127
      %v2839 = vpop.permute.xlu0 %2838
      %2840 = vrot.lane.b32.xlu0 %v2807, 127
      %v2841 = vpop.permute.xlu0 %2840
      %2842 = vrot.lane.b32.xlu0 %v2808, 127
      %v2843 = vpop.permute.xlu0 %2842
      %2844 = vrot.lane.b32.xlu0 %v2809, 127
      %v2845 = vpop.permute.xlu0 %2844
      %vm2846 = vcmask 1039360
      %v2847 = vsel %vm2846, %v2823, %v2825
      %v2848 = vsel %vm2846, %v2825, %v2827
      %v2849 = vsel %vm2846, %v2829, %v2831
      %v2850 = vsel %vm2846, %v2831, %v2833
      %v2851 = vsel %vm2846, %v2835, %v2837
      %v2852 = vsel %vm2846, %v2837, %v2839
      %v2853 = vsel %vm2846, %v2841, %v2843
      %v2854 = vsel %vm2846, %v2843, %v2845
      %2867 = vst [vmem:[#allocation2 + $0x6e8] sm:$0xff] %v2847
      %2868 = vst [vmem:[#allocation2 + $0x6f0] sm:$0xff] %v2848
      %2869 = vst.msk [vmem:[#allocation2 + $0x6f8] sm:$0xff] %vm2384, %v2827
      %2870 = vst [vmem:[#allocation2 + $0x740] sm:$0xff] %v2849
      %2871 = vst [vmem:[#allocation2 + $0x748] sm:$0xff] %v2850
      %2872 = vst.msk [vmem:[#allocation2 + $0x750] sm:$0xff] %vm2384, %v2833
      %2873 = vst [vmem:[#allocation2 + $0x798] sm:$0xff] %v2851
      %2874 = vst [vmem:[#allocation2 + $0x7a0] sm:$0xff] %v2852
      %2875 = vst.msk [vmem:[#allocation2 + $0x7a8] sm:$0xff] %vm2384, %v2839
      %2876 = vst [vmem:[#allocation2 + $0x7f0] sm:$0xff] %v2853
      %2877 = vst [vmem:[#allocation2 + $0x7f8] sm:$0xff] %v2854
      %2878 = vst.msk [vmem:[#allocation2 + $0x800] sm:$0xff] %vm2384, %v2845
      %v2879 = vld [vmem:[#allocation2 + $0x588] sm:$0xff]
      %v2880 = vld [vmem:[#allocation2 + $0x590] sm:$0xff]
      %v2881 = vld [vmem:[#allocation2 + $0x598] sm:$0xff]
      %v2882 = vld [vmem:[#allocation2 + $0x5e0] sm:$0xff]
      %v2883 = vld [vmem:[#allocation2 + $0x5e8] sm:$0xff]
      %v2884 = vld [vmem:[#allocation2 + $0x5f0] sm:$0xff]
      %v2885 = vld [vmem:[#allocation2 + $0x638] sm:$0xff]
      %v2886 = vld [vmem:[#allocation2 + $0x640] sm:$0xff]
      %v2887 = vld [vmem:[#allocation2 + $0x648] sm:$0xff]
      %v2888 = vld [vmem:[#allocation2 + $0x690] sm:$0xff]
      %v2889 = vld [vmem:[#allocation2 + $0x698] sm:$0xff]
      %v2890 = vld [vmem:[#allocation2 + $0x6a0] sm:$0xff]
      %2903 = vrot.lane.b32.xlu0 %v2879, 111
      %v2904 = vpop.permute.xlu0 %2903
      %2905 = vrot.lane.b32.xlu0 %v2880, 111
      %v2906 = vpop.permute.xlu0 %2905
      %2907 = vrot.lane.b32.xlu0 %v2881, 111
      %v2908 = vpop.permute.xlu0 %2907
      %2909 = vrot.lane.b32.xlu0 %v2882, 111
      %v2910 = vpop.permute.xlu0 %2909
      %2911 = vrot.lane.b32.xlu0 %v2883, 111
      %v2912 = vpop.permute.xlu0 %2911
      %2913 = vrot.lane.b32.xlu0 %v2884, 111
      %v2914 = vpop.permute.xlu0 %2913
      %2915 = vrot.lane.b32.xlu0 %v2885, 111
      %v2916 = vpop.permute.xlu0 %2915
      %2917 = vrot.lane.b32.xlu0 %v2886, 111
      %v2918 = vpop.permute.xlu0 %2917
      %2919 = vrot.lane.b32.xlu0 %v2887, 111
      %v2920 = vpop.permute.xlu0 %2919
      %2921 = vrot.lane.b32.xlu0 %v2888, 111
      %v2922 = vpop.permute.xlu0 %2921
      %2923 = vrot.lane.b32.xlu0 %v2889, 111
      %v2924 = vpop.permute.xlu0 %2923
      %2925 = vrot.lane.b32.xlu0 %v2890, 111
      %v2926 = vpop.permute.xlu0 %2925
      %vm2927 = vcmask 908288
      %v2928 = vsel %vm2927, %v2904, %v2906
      %v2929 = vsel %vm2927, %v2906, %v2908
      %v2930 = vsel %vm2927, %v2910, %v2912
      %v2931 = vsel %vm2927, %v2912, %v2914
      %v2932 = vsel %vm2927, %v2916, %v2918
      %v2933 = vsel %vm2927, %v2918, %v2920
      %v2934 = vsel %vm2927, %v2922, %v2924
      %v2935 = vsel %vm2927, %v2924, %v2926
      %2948 = vst [vmem:[#allocation2 + $0x848] sm:$0xff] %v2928
      %2949 = vst [vmem:[#allocation2 + $0x850] sm:$0xff] %v2929
      %2950 = vst.msk [vmem:[#allocation2 + $0x858] sm:$0xff] %vm2384, %v2908
      %2951 = vst [vmem:[#allocation2 + $0x8a0] sm:$0xff] %v2930
      %2952 = vst [vmem:[#allocation2 + $0x8a8] sm:$0xff] %v2931
      %2953 = vst.msk [vmem:[#allocation2 + $0x8b0] sm:$0xff] %vm2384, %v2914
      %2954 = vst [vmem:[#allocation2 + $0x8f8] sm:$0xff] %v2932
      %2955 = vst [vmem:[#allocation2 + $0x900] sm:$0xff] %v2933
      %2956 = vst.msk [vmem:[#allocation2 + $0x908] sm:$0xff] %vm2384, %v2920
      %2957 = vst [vmem:[#allocation2 + $0x950] sm:$0xff] %v2934
      %2958 = vst [vmem:[#allocation2 + $0x958] sm:$0xff] %v2935
      %2959 = vst.msk [vmem:[#allocation2 + $0x960] sm:$0xff] %vm2384, %v2926
      %v2960 = vld [vmem:[#allocation2 + $0x588] sm:$0xff]
      %v2961 = vld [vmem:[#allocation2 + $0x590] sm:$0xff]
      %v2962 = vld [vmem:[#allocation2 + $0x598] sm:$0xff]
      %v2963 = vld [vmem:[#allocation2 + $0x5e0] sm:$0xff]
      %v2964 = vld [vmem:[#allocation2 + $0x5e8] sm:$0xff]
      %v2965 = vld [vmem:[#allocation2 + $0x5f0] sm:$0xff]
      %v2966 = vld [vmem:[#allocation2 + $0x638] sm:$0xff]
      %v2967 = vld [vmem:[#allocation2 + $0x640] sm:$0xff]
      %v2968 = vld [vmem:[#allocation2 + $0x648] sm:$0xff]
      %v2969 = vld [vmem:[#allocation2 + $0x690] sm:$0xff]
      %v2970 = vld [vmem:[#allocation2 + $0x698] sm:$0xff]
      %v2971 = vld [vmem:[#allocation2 + $0x6a0] sm:$0xff]
      %2984 = vrot.lane.b32.xlu0 %v2960, 110
      %v2985 = vpop.permute.xlu0 %2984
      %2986 = vrot.lane.b32.xlu0 %v2961, 110
      %v2987 = vpop.permute.xlu0 %2986
      %2988 = vrot.lane.b32.xlu0 %v2962, 110
      %v2989 = vpop.permute.xlu0 %2988
      %2990 = vrot.lane.b32.xlu0 %v2963, 110
      %v2991 = vpop.permute.xlu0 %2990
      %2992 = vrot.lane.b32.xlu0 %v2964, 110
      %v2993 = vpop.permute.xlu0 %2992
      %2994 = vrot.lane.b32.xlu0 %v2965, 110
      %v2995 = vpop.permute.xlu0 %2994
      %2996 = vrot.lane.b32.xlu0 %v2966, 110
      %v2997 = vpop.permute.xlu0 %2996
      %2998 = vrot.lane.b32.xlu0 %v2967, 110
      %v2999 = vpop.permute.xlu0 %2998
      %3000 = vrot.lane.b32.xlu0 %v2968, 110
      %v3001 = vpop.permute.xlu0 %3000
      %3002 = vrot.lane.b32.xlu0 %v2969, 110
      %v3003 = vpop.permute.xlu0 %3002
      %3004 = vrot.lane.b32.xlu0 %v2970, 110
      %v3005 = vpop.permute.xlu0 %3004
      %3006 = vrot.lane.b32.xlu0 %v2971, 110
      %v3007 = vpop.permute.xlu0 %3006
      %vm3008 = vcmask 900096
      %v3009 = vsel %vm3008, %v2985, %v2987
      %v3010 = vsel %vm3008, %v2987, %v2989
      %v3011 = vsel %vm3008, %v2991, %v2993
      %v3012 = vsel %vm3008, %v2993, %v2995
      %v3013 = vsel %vm3008, %v2997, %v2999
      %v3014 = vsel %vm3008, %v2999, %v3001
      %v3015 = vsel %vm3008, %v3003, %v3005
      %v3016 = vsel %vm3008, %v3005, %v3007
      %3029 = vst [vmem:[#allocation2 + $0x9a8] sm:$0xff] %v3009
      %3030 = vst [vmem:[#allocation2 + $0x9b0] sm:$0xff] %v3010
      %3031 = vst.msk [vmem:[#allocation2 + $0x9b8] sm:$0xff] %vm2384, %v2989
      %3032 = vst [vmem:[#allocation2 + $0xa00] sm:$0xff] %v3011
      %3033 = vst [vmem:[#allocation2 + $0xa08] sm:$0xff] %v3012
      %3034 = vst.msk [vmem:[#allocation2 + $0xa10] sm:$0xff] %vm2384, %v2995
      %3035 = vst [vmem:[#allocation2 + $0xa58] sm:$0xff] %v3013
      %3036 = vst [vmem:[#allocation2 + $0xa60] sm:$0xff] %v3014
      %3037 = vst.msk [vmem:[#allocation2 + $0xa68] sm:$0xff] %vm2384, %v3001
      %3038 = vst [vmem:[#allocation2 + $0xab0] sm:$0xff] %v3015
      %3039 = vst [vmem:[#allocation2 + $0xab8] sm:$0xff] %v3016
      %3040 = vst.msk [vmem:[#allocation2 + $0xac0] sm:$0xff] %vm2384, %v3007
      %v3041 = vld [vmem:[#allocation2 + $0x588] sm:$0xff]
      %v3042 = vld [vmem:[#allocation2 + $0x590] sm:$0xff]
      %v3043 = vld [vmem:[#allocation2 + $0x598] sm:$0xff]
      %v3044 = vld [vmem:[#allocation2 + $0x5e0] sm:$0xff]
      %v3045 = vld [vmem:[#allocation2 + $0x5e8] sm:$0xff]
      %v3046 = vld [vmem:[#allocation2 + $0x5f0] sm:$0xff]
      %v3047 = vld [vmem:[#allocation2 + $0x638] sm:$0xff]
      %v3048 = vld [vmem:[#allocation2 + $0x640] sm:$0xff]
      %v3049 = vld [vmem:[#allocation2 + $0x648] sm:$0xff]
      %v3050 = vld [vmem:[#allocation2 + $0x690] sm:$0xff]
      %v3051 = vld [vmem:[#allocation2 + $0x698] sm:$0xff]
      %v3052 = vld [vmem:[#allocation2 + $0x6a0] sm:$0xff]
      %3065 = vrot.lane.b32.xlu0 %v3041, 109
      %v3066 = vpop.permute.xlu0 %3065
      %3067 = vrot.lane.b32.xlu0 %v3042, 109
      %v3068 = vpop.permute.xlu0 %3067
      %3069 = vrot.lane.b32.xlu0 %v3043, 109
      %v3070 = vpop.permute.xlu0 %3069
      %3071 = vrot.lane.b32.xlu0 %v3044, 109
      %v3072 = vpop.permute.xlu0 %3071
      %3073 = vrot.lane.b32.xlu0 %v3045, 109
      %v3074 = vpop.permute.xlu0 %3073
      %3075 = vrot.lane.b32.xlu0 %v3046, 109
      %v3076 = vpop.permute.xlu0 %3075
      %3077 = vrot.lane.b32.xlu0 %v3047, 109
      %v3078 = vpop.permute.xlu0 %3077
      %3079 = vrot.lane.b32.xlu0 %v3048, 109
      %v3080 = vpop.permute.xlu0 %3079
      %3081 = vrot.lane.b32.xlu0 %v3049, 109
      %v3082 = vpop.permute.xlu0 %3081
      %3083 = vrot.lane.b32.xlu0 %v3050, 109
      %v3084 = vpop.permute.xlu0 %3083
      %3085 = vrot.lane.b32.xlu0 %v3051, 109
      %v3086 = vpop.permute.xlu0 %3085
      %3087 = vrot.lane.b32.xlu0 %v3052, 109
      %v3088 = vpop.permute.xlu0 %3087
      %vm3089 = vcmask 891904
      %v3090 = vsel %vm3089, %v3066, %v3068
      %v3091 = vsel %vm3089, %v3068, %v3070
      %v3092 = vsel %vm3089, %v3072, %v3074
      %v3093 = vsel %vm3089, %v3074, %v3076
      %v3094 = vsel %vm3089, %v3078, %v3080
      %v3095 = vsel %vm3089, %v3080, %v3082
      %v3096 = vsel %vm3089, %v3084, %v3086
      %v3097 = vsel %vm3089, %v3086, %v3088
      %3110 = vst [vmem:[#allocation2 + $0xb08] sm:$0xff] %v3090
      %3111 = vst [vmem:[#allocation2 + $0xb10] sm:$0xff] %v3091
      %3112 = vst.msk [vmem:[#allocation2 + $0xb18] sm:$0xff] %vm2384, %v3070
      %3113 = vst [vmem:[#allocation2 + $0xb60] sm:$0xff] %v3092
      %3114 = vst [vmem:[#allocation2 + $0xb68] sm:$0xff] %v3093
      %3115 = vst.msk [vmem:[#allocation2 + $0xb70] sm:$0xff] %vm2384, %v3076
      %3116 = vst [vmem:[#allocation2 + $0xbb8] sm:$0xff] %v3094
      %3117 = vst [vmem:[#allocation2 + $0xbc0] sm:$0xff] %v3095
      %3118 = vst.msk [vmem:[#allocation2 + $0xbc8] sm:$0xff] %vm2384, %v3082
      %3119 = vst [vmem:[#allocation2 + $0xc10] sm:$0xff] %v3096
      %3120 = vst [vmem:[#allocation2 + $0xc18] sm:$0xff] %v3097
      %3121 = vst.msk [vmem:[#allocation2 + $0xc20] sm:$0xff] %vm2384, %v3088
      %v3122 = vld [vmem:[#allocation2 + $0x8] sm:$0xff]
      %v3123 = vld [vmem:[#allocation2 + $0x10] sm:$0xff]
      %v3124 = vld [vmem:[#allocation2 + $0x18] sm:$0xff]
      %v3125 = vld [vmem:[#allocation2 + $0x60] sm:$0xff]
      %v3126 = vld [vmem:[#allocation2 + $0x68] sm:$0xff]
      %v3127 = vld [vmem:[#allocation2 + $0x70] sm:$0xff]
      %v3128 = vld [vmem:[#allocation2 + $0xb8] sm:$0xff]
      %v3129 = vld [vmem:[#allocation2 + $0xc0] sm:$0xff]
      %v3130 = vld [vmem:[#allocation2 + $0xc8] sm:$0xff]
      %v3131 = vld [vmem:[#allocation2 + $0x110] sm:$0xff]
      %v3132 = vld [vmem:[#allocation2 + $0x118] sm:$0xff]
      %v3133 = vld [vmem:[#allocation2 + $0x120] sm:$0xff]
      %v3134 = vld [vmem:[#allocation2 + $0x168] sm:$0xff]
      %v3135 = vld [vmem:[#allocation2 + $0x170] sm:$0xff]
      %v3136 = vld [vmem:[#allocation2 + $0x178] sm:$0xff]
      %v3137 = vld [vmem:[#allocation2 + $0x1c0] sm:$0xff]
      %v3138 = vld [vmem:[#allocation2 + $0x1c8] sm:$0xff]
      %v3139 = vld [vmem:[#allocation2 + $0x1d0] sm:$0xff]
      %v3140 = vld [vmem:[#allocation2 + $0x218] sm:$0xff]
      %v3141 = vld [vmem:[#allocation2 + $0x220] sm:$0xff]
      %v3142 = vld [vmem:[#allocation2 + $0x228] sm:$0xff]
      %v3143 = vld [vmem:[#allocation2 + $0x270] sm:$0xff]
      %v3144 = vld [vmem:[#allocation2 + $0x278] sm:$0xff]
      %v3145 = vld [vmem:[#allocation2 + $0x280] sm:$0xff]
      %v3146 = vld [vmem:[#allocation2 + $0x2c8] sm:$0xff]
      %v3147 = vld [vmem:[#allocation2 + $0x2d0] sm:$0xff]
      %v3148 = vld [vmem:[#allocation2 + $0x2d8] sm:$0xff]
      %v3149 = vld [vmem:[#allocation2 + $0x320] sm:$0xff]
      %v3150 = vld [vmem:[#allocation2 + $0x328] sm:$0xff]
      %v3151 = vld [vmem:[#allocation2 + $0x330] sm:$0xff]
      %v3152 = vld [vmem:[#allocation2 + $0x378] sm:$0xff]
      %v3153 = vld [vmem:[#allocation2 + $0x380] sm:$0xff]
      %v3154 = vld [vmem:[#allocation2 + $0x388] sm:$0xff]
      %v3155 = vld [vmem:[#allocation2 + $0x3d0] sm:$0xff]
      %v3156 = vld [vmem:[#allocation2 + $0x3d8] sm:$0xff]
      %v3157 = vld [vmem:[#allocation2 + $0x3e0] sm:$0xff]
      %v3158 = vld [vmem:[#allocation2 + $0x428] sm:$0xff]
      %v3159 = vld [vmem:[#allocation2 + $0x430] sm:$0xff]
      %v3160 = vld [vmem:[#allocation2 + $0x438] sm:$0xff]
      %v3161 = vld [vmem:[#allocation2 + $0x480] sm:$0xff]
      %v3162 = vld [vmem:[#allocation2 + $0x488] sm:$0xff]
      %v3163 = vld [vmem:[#allocation2 + $0x490] sm:$0xff]
      %v3164 = vld [vmem:[#allocation2 + $0x4d8] sm:$0xff]
      %v3165 = vld [vmem:[#allocation2 + $0x4e0] sm:$0xff]
      %v3166 = vld [vmem:[#allocation2 + $0x4e8] sm:$0xff]
      %v3167 = vld [vmem:[#allocation2 + $0x530] sm:$0xff]
      %v3168 = vld [vmem:[#allocation2 + $0x538] sm:$0xff]
      %v3169 = vld [vmem:[#allocation2 + $0x540] sm:$0xff]
      %v3170 = vld [vmem:[#allocation2 + $0x588] sm:$0xff]
      %v3171 = vld [vmem:[#allocation2 + $0x590] sm:$0xff]
      %v3172 = vld [vmem:[#allocation2 + $0x598] sm:$0xff]
      %v3173 = vld [vmem:[#allocation2 + $0x5e0] sm:$0xff]
      %v3174 = vld [vmem:[#allocation2 + $0x5e8] sm:$0xff]
      %v3175 = vld [vmem:[#allocation2 + $0x5f0] sm:$0xff]
      %v3176 = vld [vmem:[#allocation2 + $0x638] sm:$0xff]
      %v3177 = vld [vmem:[#allocation2 + $0x640] sm:$0xff]
      %v3178 = vld [vmem:[#allocation2 + $0x648] sm:$0xff]
      %v3179 = vld [vmem:[#allocation2 + $0x690] sm:$0xff]
      %v3180 = vld [vmem:[#allocation2 + $0x698] sm:$0xff]
      %v3181 = vld [vmem:[#allocation2 + $0x6a0] sm:$0xff]
      %v3182 = vld [vmem:[#allocation2 + $0x6e8] sm:$0xff]
      %v3183 = vld [vmem:[#allocation2 + $0x6f0] sm:$0xff]
      %v3184 = vld [vmem:[#allocation2 + $0x6f8] sm:$0xff]
      %v3185 = vld [vmem:[#allocation2 + $0x740] sm:$0xff]
      %v3186 = vld [vmem:[#allocation2 + $0x748] sm:$0xff]
      %v3187 = vld [vmem:[#allocation2 + $0x750] sm:$0xff]
      %v3188 = vld [vmem:[#allocation2 + $0x798] sm:$0xff]
      %v3189 = vld [vmem:[#allocation2 + $0x7a0] sm:$0xff]
      %v3190 = vld [vmem:[#allocation2 + $0x7a8] sm:$0xff]
      %v3191 = vld [vmem:[#allocation2 + $0x7f0] sm:$0xff]
      %v3192 = vld [vmem:[#allocation2 + $0x7f8] sm:$0xff]
      %v3193 = vld [vmem:[#allocation2 + $0x800] sm:$0xff]
      %v3194 = vld [vmem:[#allocation2 + $0x848] sm:$0xff]
      %v3195 = vld [vmem:[#allocation2 + $0x850] sm:$0xff]
      %v3196 = vld [vmem:[#allocation2 + $0x858] sm:$0xff]
      %v3197 = vld [vmem:[#allocation2 + $0x8a0] sm:$0xff]
      %v3198 = vld [vmem:[#allocation2 + $0x8a8] sm:$0xff]
      %v3199 = vld [vmem:[#allocation2 + $0x8b0] sm:$0xff]
      %v3200 = vld [vmem:[#allocation2 + $0x8f8] sm:$0xff]
      %v3201 = vld [vmem:[#allocation2 + $0x900] sm:$0xff]
      %v3202 = vld [vmem:[#allocation2 + $0x908] sm:$0xff]
      %v3203 = vld [vmem:[#allocation2 + $0x950] sm:$0xff]
      %v3204 = vld [vmem:[#allocation2 + $0x958] sm:$0xff]
      %v3205 = vld [vmem:[#allocation2 + $0x960] sm:$0xff]
      %v3206 = vld [vmem:[#allocation2 + $0x9a8] sm:$0xff]
      %v3207 = vld [vmem:[#allocation2 + $0x9b0] sm:$0xff]
      %v3208 = vld [vmem:[#allocation2 + $0x9b8] sm:$0xff]
      %v3209 = vld [vmem:[#allocation2 + $0xa00] sm:$0xff]
      %v3210 = vld [vmem:[#allocation2 + $0xa08] sm:$0xff]
      %v3211 = vld [vmem:[#allocation2 + $0xa10] sm:$0xff]
      %v3212 = vld [vmem:[#allocation2 + $0xa58] sm:$0xff]
      %v3213 = vld [vmem:[#allocation2 + $0xa60] sm:$0xff]
      %v3214 = vld [vmem:[#allocation2 + $0xa68] sm:$0xff]
      %v3215 = vld [vmem:[#allocation2 + $0xab0] sm:$0xff]
      %v3216 = vld [vmem:[#allocation2 + $0xab8] sm:$0xff]
      %v3217 = vld [vmem:[#allocation2 + $0xac0] sm:$0xff]
      %v3218 = vld [vmem:[#allocation2 + $0xb08] sm:$0xff]
      %v3219 = vld [vmem:[#allocation2 + $0xb10] sm:$0xff]
      %v3220 = vld [vmem:[#allocation2 + $0xb18] sm:$0xff]
      %v3221 = vld [vmem:[#allocation2 + $0xb60] sm:$0xff]
      %v3222 = vld [vmem:[#allocation2 + $0xb68] sm:$0xff]
      %v3223 = vld [vmem:[#allocation2 + $0xb70] sm:$0xff]
      %v3224 = vld [vmem:[#allocation2 + $0xbb8] sm:$0xff]
      %v3225 = vld [vmem:[#allocation2 + $0xbc0] sm:$0xff]
      %v3226 = vld [vmem:[#allocation2 + $0xbc8] sm:$0xff]
      %v3227 = vld [vmem:[#allocation2 + $0xc10] sm:$0xff]
      %v3228 = vld [vmem:[#allocation2 + $0xc18] sm:$0xff]
      %v3229 = vld [vmem:[#allocation2 + $0xc20] sm:$0xff]
      %s3230 = scalar_lea.vmem %s4, 320
      %v3231 = vld [vmem:[%s3230] sm:$0xff]
      %v3232 = vld [vmem:[%s3230 + $0x8] sm:$0xff]
      %v3233 = vld [vmem:[%s3230 + $0x10] sm:$0xf]
      %v3234 = vld [vmem:[%s3230 + $0x14] sm:$0xff]
      %v3235 = vld [vmem:[%s3230 + $0x1c] sm:$0xff]
      %v3236 = vld [vmem:[%s3230 + $0x24] sm:$0xf]
      %v3237 = vld [vmem:[%s3230 + $0x28] sm:$0xff]
      %v3238 = vld [vmem:[%s3230 + $0x30] sm:$0xff]
      %v3239 = vld [vmem:[%s3230 + $0x38] sm:$0xf]
      %v3240 = vld [vmem:[%s3230 + $0x3c] sm:$0xff]
      %v3241 = vld [vmem:[%s3230 + $0x44] sm:$0xff]
      %v3242 = vld [vmem:[%s3230 + $0x4c] sm:$0xf]
      %v3243 = vld [vmem:[%s3230 + $0x50] sm:$0xff]
      %v3244 = vld [vmem:[%s3230 + $0x58] sm:$0xff]
      %v3245 = vld [vmem:[%s3230 + $0x60] sm:$0xf]
      %v3246 = vld [vmem:[%s3230 + $0x64] sm:$0xff]
      %v3247 = vld [vmem:[%s3230 + $0x6c] sm:$0xff]
      %v3248 = vld [vmem:[%s3230 + $0x74] sm:$0xf]
      %v3249 = vld [vmem:[%s3230 + $0x78] sm:$0xff]
      %v3250 = vld [vmem:[%s3230 + $0x80] sm:$0xff]
      %v3251 = vld [vmem:[%s3230 + $0x88] sm:$0xf]
      %v3252 = vld [vmem:[%s3230 + $0x8c] sm:$0xff]
      %v3253 = vld [vmem:[%s3230 + $0x94] sm:$0xff]
      %v3254 = vld [vmem:[%s3230 + $0x9c] sm:$0xf]
      %s3255 = scalar_lea.vmem %s5, 128
      %v3256 = vld [vmem:[%s3255] sm:$0xff]
      %v3257 = vld [vmem:[%s3255 + $0x8] sm:$0xff]
      %v3258 = vld [vmem:[%s3255 + $0x10] sm:$0xff]
      %v3259 = vld [vmem:[%s3255 + $0x18] sm:$0xff]
      %v3260 = vld [vmem:[%s3255 + $0x20] sm:$0xff]
      %v3261 = vld [vmem:[%s3255 + $0x28] sm:$0xff]
      %v3262 = vld [vmem:[%s3255 + $0x30] sm:$0xff]
      %v3263 = vld [vmem:[%s3255 + $0x38] sm:$0xff]
      %3265 = vset.pattern.permute.xlu0 0
      %3266 = vperm.xlu0 %3265, %v3256
      %v3267 = vpop.permute.xlu0 %3266
      %3270 = vset.pattern.permute.xlu0 0
      %3271 = vperm.xlu0 %3270, %v3257
      %v3272 = vpop.permute.xlu0 %3271
      %3275 = vset.pattern.permute.xlu0 0
      %3276 = vperm.xlu0 %3275, %v3258
      %v3277 = vpop.permute.xlu0 %3276
      %3280 = vset.pattern.permute.xlu0 0
      %3281 = vperm.xlu0 %3280, %v3259
      %v3282 = vpop.permute.xlu0 %3281
      %3285 = vset.pattern.permute.xlu0 0
      %3286 = vperm.xlu0 %3285, %v3260
      %v3287 = vpop.permute.xlu0 %3286
      %3290 = vset.pattern.permute.xlu0 0
      %3291 = vperm.xlu0 %3290, %v3261
      %v3292 = vpop.permute.xlu0 %3291
      %3295 = vset.pattern.permute.xlu0 0
      %3296 = vperm.xlu0 %3295, %v3262
      %v3297 = vpop.permute.xlu0 %3296
      %3300 = vset.pattern.permute.xlu0 0
      %3301 = vperm.xlu0 %3300, %v3263
      %v3302 = vpop.permute.xlu0 %3301
      %v3328 = vunpack.c.l.b16 %v3231
      %v3329 = vunpack.c.h.b16 %v3231
      %v3330 = vunpack.c.l.b16 %v3232
      %v3331 = vunpack.c.h.b16 %v3232
      %v3332 = vunpack.c.l.b16 %v3233
      %v3333 = vunpack.c.l.b16 %v3234
      %v3334 = vunpack.c.h.b16 %v3234
      %v3335 = vunpack.c.l.b16 %v3235
      %v3336 = vunpack.c.h.b16 %v3235
      %v3337 = vunpack.c.l.b16 %v3236
      %v3338 = vunpack.c.l.b16 %v3237
      %v3339 = vunpack.c.h.b16 %v3237
      %v3340 = vunpack.c.l.b16 %v3238
      %v3341 = vunpack.c.h.b16 %v3238
      %v3342 = vunpack.c.l.b16 %v3239
      %v3343 = vunpack.c.l.b16 %v3240
      %v3344 = vunpack.c.h.b16 %v3240
      %v3345 = vunpack.c.l.b16 %v3241
      %v3346 = vunpack.c.h.b16 %v3241
      %v3347 = vunpack.c.l.b16 %v3242
      %v3348 = vunpack.c.l.b16 %v3243
      %v3349 = vunpack.c.h.b16 %v3243
      %v3350 = vunpack.c.l.b16 %v3244
      %v3351 = vunpack.c.h.b16 %v3244
      %v3352 = vunpack.c.l.b16 %v3245
      %v3353 = vunpack.c.l.b16 %v3246
      %v3354 = vunpack.c.h.b16 %v3246
      %v3355 = vunpack.c.l.b16 %v3247
      %v3356 = vunpack.c.h.b16 %v3247
      %v3357 = vunpack.c.l.b16 %v3248
      %v3358 = vunpack.c.l.b16 %v3249
      %v3359 = vunpack.c.h.b16 %v3249
      %v3360 = vunpack.c.l.b16 %v3250
      %v3361 = vunpack.c.h.b16 %v3250
      %v3362 = vunpack.c.l.b16 %v3251
      %v3363 = vunpack.c.l.b16 %v3252
      %v3364 = vunpack.c.h.b16 %v3252
      %v3365 = vunpack.c.l.b16 %v3253
      %v3366 = vunpack.c.h.b16 %v3253
      %v3367 = vunpack.c.l.b16 %v3254
      %v3368 = vpack.c.b16 %v3333, %v3328
      %v3369 = vpack.c.b16 %v3334, %v3329
      %v3370 = vpack.c.b16 %v3335, %v3330
      %v3371 = vpack.c.b16 %v3336, %v3331
      %v3372 = vpack.c.b16 %v3337, %v3332
      %v3373 = vpack.c.b16 %v3343, %v3338
      %v3374 = vpack.c.b16 %v3344, %v3339
      %v3375 = vpack.c.b16 %v3345, %v3340
      %v3376 = vpack.c.b16 %v3346, %v3341
      %v3377 = vpack.c.b16 %v3347, %v3342
      %v3378 = vpack.c.b16 %v3353, %v3348
      %v3379 = vpack.c.b16 %v3354, %v3349
      %v3380 = vpack.c.b16 %v3355, %v3350
      %v3381 = vpack.c.b16 %v3356, %v3351
      %v3382 = vpack.c.b16 %v3357, %v3352
      %v3383 = vpack.c.b16 %v3363, %v3358
      %v3384 = vpack.c.b16 %v3364, %v3359
      %v3385 = vpack.c.b16 %v3365, %v3360
      %v3386 = vpack.c.b16 %v3366, %v3361
      %v3387 = vpack.c.b16 %v3367, %v3362
      %v3405 = vsel %vm959, %v3372, 0
      %v3408 = vsel %vm959, %v3377, 0
      %v3411 = vsel %vm959, %v3382, 0
      %v3414 = vsel %vm959, %v3387, 0
      %3416 = vmatprep.subr.bf16.mxu0 %v3123
      %3417 = vmatpush1.bf16.msra.mxu0 %v3122
      %3418 = vmatprep.subr.bf16.mxu0 %v3126
      %3419 = vmatpush1.bf16.msra.mxu0 %v3125
      %3420 = vmatprep.subr.bf16.mxu0 %v3129
      %3421 = vmatpush1.bf16.msra.mxu0 %v3128
      %3422 = vmatprep.subr.bf16.mxu0 %v3132
      %3423 = vmatpush1.bf16.msra.mxu0 %v3131
      %3424 = vmatprep.subr.bf16.mxu0 %v3135
      %3425 = vmatpush1.bf16.msra.mxu0 %v3134
      %3426 = vmatprep.subr.bf16.mxu0 %v3138
      %3427 = vmatpush1.bf16.msra.mxu0 %v3137
      %3428 = vmatprep.subr.bf16.mxu0 %v3141
      %3429 = vmatpush1.bf16.msra.mxu0 %v3140
      %3430 = vmatprep.subr.bf16.mxu0 %v3144
      %3431 = vmatpush1.bf16.msra.mxu0 %v3143
      %3432 = vmatprep.subr.bf16.mxu0 %v3147
      %3433 = vmatpush1.bf16.msra.mxu0 %v3146
      %3434 = vmatprep.subr.bf16.mxu0 %v3150
      %3435 = vmatpush1.bf16.msra.mxu0 %v3149
      %3436 = vmatprep.subr.bf16.mxu0 %v3153
      %3437 = vmatpush1.bf16.msra.mxu0 %v3152
      %3438 = vmatprep.subr.bf16.mxu0 %v3156
      %3439 = vmatpush1.bf16.msra.mxu0 %v3155
      %3440 = vmatprep.subr.bf16.mxu0 %v3159
      %3441 = vmatpush1.bf16.msra.mxu0 %v3158
      %3442 = vmatprep.subr.bf16.mxu0 %v3162
      %3443 = vmatpush1.bf16.msra.mxu0 %v3161
      %3444 = vmatprep.subr.bf16.mxu0 %v3165
      %3445 = vmatpush1.bf16.msra.mxu0 %v3164
      %3446 = vmatprep.subr.bf16.mxu0 %v3168
      %3447 = vmatpush1.bf16.msra.mxu0 %v3167
      %3448 = vmatprep.mubr.bf16.mxu0 %v3369
      %3449 = vmatmul.mubr.bf16.gmra.mrb[0].mxu0 %v3368
      %v3450 = vpop.f32.mrb[0].mxu0
      %v3451 = vadd.f32 %v3267, %v3450
      %v3452 = vpop.f32.mrb[0].mxu0
      %v3453 = vadd.f32 %v3267, %v3452
      %v3454 = vpop.f32.mrb[0].mxu0
      %v3455 = vadd.f32 %v3272, %v3454
      %v3456 = vpop.f32.mrb[0].mxu0
      %v3457 = vadd.f32 %v3272, %v3456
      %3458 = vmatprep.mubr.bf16.mxu0 %v3374
      %3459 = vmatmul.mubr.bf16.gmra.mrb[0].mxu0 %v3373
      %v3460 = vpop.f32.mrb[0].mxu0
      %v3461 = vadd.f32 %v3277, %v3460
      %v3462 = vpop.f32.mrb[0].mxu0
      %v3463 = vadd.f32 %v3277, %v3462
      %v3464 = vpop.f32.mrb[0].mxu0
      %v3465 = vadd.f32 %v3282, %v3464
      %v3466 = vpop.f32.mrb[0].mxu0
      %v3467 = vadd.f32 %v3282, %v3466
      %3468 = vmatprep.mubr.bf16.mxu0 %v3379
      %3469 = vmatmul.mubr.bf16.gmra.mrb[0].mxu0 %v3378
      %v3470 = vpop.f32.mrb[0].mxu0
      %v3471 = vadd.f32 %v3287, %v3470
      %v3472 = vpop.f32.mrb[0].mxu0
      %v3473 = vadd.f32 %v3287, %v3472
      %v3474 = vpop.f32.mrb[0].mxu0
      %v3475 = vadd.f32 %v3292, %v3474
      %v3476 = vpop.f32.mrb[0].mxu0
      %v3477 = vadd.f32 %v3292, %v3476
      %3478 = vmatprep.mubr.bf16.mxu0 %v3384
      %3479 = vmatmul.mubr.bf16.gmra.mrb[0].mxu0 %v3383
      %v3480 = vpop.f32.mrb[0].mxu0
      %v3481 = vadd.f32 %v3297, %v3480
      %v3482 = vpop.f32.mrb[0].mxu0
      %v3483 = vadd.f32 %v3297, %v3482
      %v3484 = vpop.f32.mrb[0].mxu0
      %v3485 = vadd.f32 %v3302, %v3484
      %v3486 = vpop.f32.mrb[0].mxu0
      %v3487 = vadd.f32 %v3302, %v3486
      %3488 = vdwg.mxu0
      %3489 = vmatprep.subr.bf16.mxu0 %v3171
      %3490 = vmatpush1.bf16.msra.mxu0 %v3170
      %3491 = vmatprep.subr.bf16.mxu0 %v3174
      %3492 = vmatpush1.bf16.msra.mxu0 %v3173
      %3493 = vmatprep.subr.bf16.mxu0 %v3177
      %3494 = vmatpush1.bf16.msra.mxu0 %v3176
      %3495 = vmatprep.subr.bf16.mxu0 %v3180
      %3496 = vmatpush1.bf16.msra.mxu0 %v3179
      %3497 = vmatprep.subr.bf16.mxu0 %v3183
      %3498 = vmatpush1.bf16.msra.mxu0 %v3182
      %3499 = vmatprep.subr.bf16.mxu0 %v3186
      %3500 = vmatpush1.bf16.msra.mxu0 %v3185
      %3501 = vmatprep.subr.bf16.mxu0 %v3189
      %3502 = vmatpush1.bf16.msra.mxu0 %v3188
      %3503 = vmatprep.subr.bf16.mxu0 %v3192
      %3504 = vmatpush1.bf16.msra.mxu0 %v3191
      %3505 = vmatprep.subr.bf16.mxu0 %v3195
      %3506 = vmatpush1.bf16.msra.mxu0 %v3194
      %3507 = vmatprep.subr.bf16.mxu0 %v3198
      %3508 = vmatpush1.bf16.msra.mxu0 %v3197
      %3509 = vmatprep.subr.bf16.mxu0 %v3201
      %3510 = vmatpush1.bf16.msra.mxu0 %v3200
      %3511 = vmatprep.subr.bf16.mxu0 %v3204
      %3512 = vmatpush1.bf16.msra.mxu0 %v3203
      %3513 = vmatprep.subr.bf16.mxu0 %v3207
      %3514 = vmatpush1.bf16.msra.mxu0 %v3206
      %3515 = vmatprep.subr.bf16.mxu0 %v3210
      %3516 = vmatpush1.bf16.msra.mxu0 %v3209
      %3517 = vmatprep.subr.bf16.mxu0 %v3213
      %3518 = vmatpush1.bf16.msra.mxu0 %v3212
      %3519 = vmatprep.subr.bf16.mxu0 %v3216
      %3520 = vmatpush1.bf16.msra.mxu0 %v3215
      %3521 = vmatprep.mubr.bf16.mxu0 %v3371
      %3522 = vmatmul.mubr.bf16.gmra.mrb[0].mxu0 %v3370
      %v3523 = vpop.f32.mrb[0].mxu0
      %v3524 = vadd.f32 %v3451, %v3523
      %v3525 = vpop.f32.mrb[0].mxu0
      %v3526 = vadd.f32 %v3453, %v3525
      %v3527 = vpop.f32.mrb[0].mxu0
      %v3528 = vadd.f32 %v3455, %v3527
      %v3529 = vpop.f32.mrb[0].mxu0
      %v3530 = vadd.f32 %v3457, %v3529
      %3531 = vmatprep.mubr.bf16.mxu0 %v3376
      %3532 = vmatmul.mubr.bf16.gmra.mrb[0].mxu0 %v3375
      %v3533 = vpop.f32.mrb[0].mxu0
      %v3534 = vadd.f32 %v3461, %v3533
      %v3535 = vpop.f32.mrb[0].mxu0
      %v3536 = vadd.f32 %v3463, %v3535
      %v3537 = vpop.f32.mrb[0].mxu0
      %v3538 = vadd.f32 %v3465, %v3537
      %v3539 = vpop.f32.mrb[0].mxu0
      %v3540 = vadd.f32 %v3467, %v3539
      %3541 = vmatprep.mubr.bf16.mxu0 %v3381
      %3542 = vmatmul.mubr.bf16.gmra.mrb[0].mxu0 %v3380
      %v3543 = vpop.f32.mrb[0].mxu0
      %v3544 = vadd.f32 %v3471, %v3543
      %v3545 = vpop.f32.mrb[0].mxu0
      %v3546 = vadd.f32 %v3473, %v3545
      %v3547 = vpop.f32.mrb[0].mxu0
      %v3548 = vadd.f32 %v3475, %v3547
      %v3549 = vpop.f32.mrb[0].mxu0
      %v3550 = vadd.f32 %v3477, %v3549
      %3551 = vmatprep.mubr.bf16.mxu0 %v3386
      %3552 = vmatmul.mubr.bf16.gmra.mrb[0].mxu0 %v3385
      %v3553 = vpop.f32.mrb[0].mxu0
      %v3554 = vadd.f32 %v3481, %v3553
      %v3555 = vpop.f32.mrb[0].mxu0
      %v3556 = vadd.f32 %v3483, %v3555
      %v3557 = vpop.f32.mrb[0].mxu0
      %v3558 = vadd.f32 %v3485, %v3557
      %v3559 = vpop.f32.mrb[0].mxu0
      %v3560 = vadd.f32 %v3487, %v3559
      %3561 = vdwg.mxu0
      %3562 = vmatprep.subr.bf16.mxu0 %v3219
      %3563 = vmatpush1.bf16.msra.mxu0 %v3218
      %3564 = vmatprep.subr.bf16.mxu0 %v3222
      %3565 = vmatpush1.bf16.msra.mxu0 %v3221
      %3566 = vmatprep.subr.bf16.mxu0 %v3225
      %3567 = vmatpush1.bf16.msra.mxu0 %v3224
      %3568 = vmatprep.subr.bf16.mxu0 %v3228
      %3569 = vmatpush1.bf16.msra.mxu0 %v3227
      %3570 = vmatprep.subr.bf16.mxu0 0
      %3571 = vmatpush1.bf16.msra.mxu0 0
      %3572 = vmatprep.subr.bf16.mxu0 0
      %3573 = vmatpush1.bf16.msra.mxu0 0
      %3574 = vmatprep.subr.bf16.mxu0 0
      %3575 = vmatpush1.bf16.msra.mxu0 0
      %3576 = vmatprep.subr.bf16.mxu0 0
      %3577 = vmatpush1.bf16.msra.mxu0 0
      %3578 = vmatprep.subr.bf16.mxu0 0
      %3579 = vmatpush1.bf16.msra.mxu0 0
      %3580 = vmatprep.subr.bf16.mxu0 0
      %3581 = vmatpush1.bf16.msra.mxu0 0
      %3582 = vmatprep.subr.bf16.mxu0 0
      %3583 = vmatpush1.bf16.msra.mxu0 0
      %3584 = vmatprep.subr.bf16.mxu0 0
      %3585 = vmatpush1.bf16.msra.mxu0 0
      %3586 = vmatprep.subr.bf16.mxu0 0
      %3587 = vmatpush1.bf16.msra.mxu0 0
      %3588 = vmatprep.subr.bf16.mxu0 0
      %3589 = vmatpush1.bf16.msra.mxu0 0
      %3590 = vmatprep.subr.bf16.mxu0 0
      %3591 = vmatpush1.bf16.msra.mxu0 0
      %3592 = vmatprep.subr.bf16.mxu0 0
      %3593 = vmatpush1.bf16.msra.mxu0 0
      %3594 = vmatprep.mubr.bf16.mxu0 0
      %3595 = vmatmul.mubr.bf16.gmra.mrb[0].mxu0 %v3405
      %v3596 = vpop.f32.mrb[0].mxu0
      %v3597 = vadd.f32 %v3524, %v3596
      %v3598 = vpop.f32.mrb[0].mxu0
      %v3599 = vadd.f32 %v3526, %v3598
      %v3600 = vpop.f32.mrb[0].mxu0
      %v3601 = vadd.f32 %v3528, %v3600
      %v3602 = vpop.f32.mrb[0].mxu0
      %v3603 = vadd.f32 %v3530, %v3602
      %3604 = vmatprep.mubr.bf16.mxu0 0
      %3605 = vmatmul.mubr.bf16.gmra.mrb[0].mxu0 %v3408
      %v3606 = vpop.f32.mrb[0].mxu0
      %v3607 = vadd.f32 %v3534, %v3606
      %v3608 = vpop.f32.mrb[0].mxu0
      %v3609 = vadd.f32 %v3536, %v3608
      %v3610 = vpop.f32.mrb[0].mxu0
      %v3611 = vadd.f32 %v3538, %v3610
      %v3612 = vpop.f32.mrb[0].mxu0
      %v3613 = vadd.f32 %v3540, %v3612
      %3614 = vmatprep.mubr.bf16.mxu0 0
      %3615 = vmatmul.mubr.bf16.gmra.mrb[0].mxu0 %v3411
      %v3616 = vpop.f32.mrb[0].mxu0
      %v3617 = vadd.f32 %v3544, %v3616
      %v3618 = vpop.f32.mrb[0].mxu0
      %v3619 = vadd.f32 %v3546, %v3618
      %v3620 = vpop.f32.mrb[0].mxu0
      %v3621 = vadd.f32 %v3548, %v3620
      %v3622 = vpop.f32.mrb[0].mxu0
      %v3623 = vadd.f32 %v3550, %v3622
      %3624 = vmatprep.mubr.bf16.mxu0 0
      %3625 = vmatmul.mubr.bf16.gmra.mrb[0].mxu0 %v3414
      %v3626 = vpop.f32.mrb[0].mxu0
      %v3627 = vadd.f32 %v3554, %v3626
      %v3628 = vpop.f32.mrb[0].mxu0
      %v3629 = vadd.f32 %v3556, %v3628
      %v3630 = vpop.f32.mrb[0].mxu0
      %v3631 = vadd.f32 %v3558, %v3630
      %v3632 = vpop.f32.mrb[0].mxu0
      %v3633 = vadd.f32 %v3560, %v3632
      %3634 = vdwg.mxu0
      %3635 = vmatprep.subr.bf16.mxu0 0
      %3636 = vmatpush1.bf16.msra.mxu0 %v3124
      %3637 = vmatprep.subr.bf16.mxu0 0
      %3638 = vmatpush1.bf16.msra.mxu0 %v3127
      %3639 = vmatprep.subr.bf16.mxu0 0
      %3640 = vmatpush1.bf16.msra.mxu0 %v3130
      %3641 = vmatprep.subr.bf16.mxu0 0
      %3642 = vmatpush1.bf16.msra.mxu0 %v3133
      %3643 = vmatprep.subr.bf16.mxu0 0
      %3644 = vmatpush1.bf16.msra.mxu0 %v3136
      %3645 = vmatprep.subr.bf16.mxu0 0
      %3646 = vmatpush1.bf16.msra.mxu0 %v3139
      %3647 = vmatprep.subr.bf16.mxu0 0
      %3648 = vmatpush1.bf16.msra.mxu0 %v3142
      %3649 = vmatprep.subr.bf16.mxu0 0
      %3650 = vmatpush1.bf16.msra.mxu0 %v3145
      %3651 = vmatprep.subr.bf16.mxu0 0
      %3652 = vmatpush1.bf16.msra.mxu0 %v3148
      %3653 = vmatprep.subr.bf16.mxu0 0
      %3654 = vmatpush1.bf16.msra.mxu0 %v3151
      %3655 = vmatprep.subr.bf16.mxu0 0
      %3656 = vmatpush1.bf16.msra.mxu0 %v3154
      %3657 = vmatprep.subr.bf16.mxu0 0
      %3658 = vmatpush1.bf16.msra.mxu0 %v3157
      %3659 = vmatprep.subr.bf16.mxu0 0
      %3660 = vmatpush1.bf16.msra.mxu0 %v3160
      %3661 = vmatprep.subr.bf16.mxu0 0
      %3662 = vmatpush1.bf16.msra.mxu0 %v3163
      %3663 = vmatprep.subr.bf16.mxu0 0
      %3664 = vmatpush1.bf16.msra.mxu0 %v3166
      %3665 = vmatprep.subr.bf16.mxu0 0
      %3666 = vmatpush1.bf16.msra.mxu0 %v3169
      %3667 = vmatprep.mubr.bf16.mxu0 %v3369
      %3668 = vmatmul.mubr.bf16.gmra.mrb[0].mxu0 %v3368
      %v3669 = vpop.f32.mrb[0].mxu0
      %v3670 = vadd.f32 %v3267, %v3669
      %v3671 = vpop.f32.mrb[0].mxu0
      %v3672 = vpop.f32.mrb[0].mxu0
      %v3673 = vadd.f32 %v3272, %v3672
      %v3674 = vpop.f32.mrb[0].mxu0
      %3675 = vmatprep.mubr.bf16.mxu0 %v3374
      %3676 = vmatmul.mubr.bf16.gmra.mrb[0].mxu0 %v3373
      %v3677 = vpop.f32.mrb[0].mxu0
      %v3678 = vadd.f32 %v3277, %v3677
      %v3679 = vpop.f32.mrb[0].mxu0
      %v3680 = vpop.f32.mrb[0].mxu0
      %v3681 = vadd.f32 %v3282, %v3680
      %v3682 = vpop.f32.mrb[0].mxu0
      %3683 = vmatprep.mubr.bf16.mxu0 %v3379
      %3684 = vmatmul.mubr.bf16.gmra.mrb[0].mxu0 %v3378
      %v3685 = vpop.f32.mrb[0].mxu0
      %v3686 = vadd.f32 %v3287, %v3685
      %v3687 = vpop.f32.mrb[0].mxu0
      %v3688 = vpop.f32.mrb[0].mxu0
      %v3689 = vadd.f32 %v3292, %v3688
      %v3690 = vpop.f32.mrb[0].mxu0
      %3691 = vmatprep.mubr.bf16.mxu0 %v3384
      %3692 = vmatmul.mubr.bf16.gmra.mrb[0].mxu0 %v3383
      %v3693 = vpop.f32.mrb[0].mxu0
      %v3694 = vadd.f32 %v3297, %v3693
      %v3695 = vpop.f32.mrb[0].mxu0
      %v3696 = vpop.f32.mrb[0].mxu0
      %v3697 = vadd.f32 %v3302, %v3696
      %v3698 = vpop.f32.mrb[0].mxu0
      %3699 = vdwg.mxu0
      %3700 = vmatprep.subr.bf16.mxu0 0
      %3701 = vmatpush1.bf16.msra.mxu0 %v3172
      %3702 = vmatprep.subr.bf16.mxu0 0
      %3703 = vmatpush1.bf16.msra.mxu0 %v3175
      %3704 = vmatprep.subr.bf16.mxu0 0
      %3705 = vmatpush1.bf16.msra.mxu0 %v3178
      %3706 = vmatprep.subr.bf16.mxu0 0
      %3707 = vmatpush1.bf16.msra.mxu0 %v3181
      %3708 = vmatprep.subr.bf16.mxu0 0
      %3709 = vmatpush1.bf16.msra.mxu0 %v3184
      %3710 = vmatprep.subr.bf16.mxu0 0
      %3711 = vmatpush1.bf16.msra.mxu0 %v3187
      %3712 = vmatprep.subr.bf16.mxu0 0
      %3713 = vmatpush1.bf16.msra.mxu0 %v3190
      %3714 = vmatprep.subr.bf16.mxu0 0
      %3715 = vmatpush1.bf16.msra.mxu0 %v3193
      %3716 = vmatprep.subr.bf16.mxu0 0
      %3717 = vmatpush1.bf16.msra.mxu0 %v3196
      %3718 = vmatprep.subr.bf16.mxu0 0
      %3719 = vmatpush1.bf16.msra.mxu0 %v3199
      %3720 = vmatprep.subr.bf16.mxu0 0
      %3721 = vmatpush1.bf16.msra.mxu0 %v3202
      %3722 = vmatprep.subr.bf16.mxu0 0
      %3723 = vmatpush1.bf16.msra.mxu0 %v3205
      %3724 = vmatprep.subr.bf16.mxu0 0
      %3725 = vmatpush1.bf16.msra.mxu0 %v3208
      %3726 = vmatprep.subr.bf16.mxu0 0
      %3727 = vmatpush1.bf16.msra.mxu0 %v3211
      %3728 = vmatprep.subr.bf16.mxu0 0
      %3729 = vmatpush1.bf16.msra.mxu0 %v3214
      %3730 = vmatprep.subr.bf16.mxu0 0
      %3731 = vmatpush1.bf16.msra.mxu0 %v3217
      %3732 = vmatprep.mubr.bf16.mxu0 %v3371
      %3733 = vmatmul.mubr.bf16.gmra.mrb[0].mxu0 %v3370
      %v3734 = vpop.f32.mrb[0].mxu0
      %v3735 = vadd.f32 %v3670, %v3734
      %v3736 = vpop.f32.mrb[0].mxu0
      %v3737 = vpop.f32.mrb[0].mxu0
      %v3738 = vadd.f32 %v3673, %v3737
      %v3739 = vpop.f32.mrb[0].mxu0
      %3740 = vmatprep.mubr.bf16.mxu0 %v3376
      %3741 = vmatmul.mubr.bf16.gmra.mrb[0].mxu0 %v3375
      %v3742 = vpop.f32.mrb[0].mxu0
      %v3743 = vadd.f32 %v3678, %v3742
      %v3744 = vpop.f32.mrb[0].mxu0
      %v3745 = vpop.f32.mrb[0].mxu0
      %v3746 = vadd.f32 %v3681, %v3745
      %v3747 = vpop.f32.mrb[0].mxu0
      %3748 = vmatprep.mubr.bf16.mxu0 %v3381
      %3749 = vmatmul.mubr.bf16.gmra.mrb[0].mxu0 %v3380
      %v3750 = vpop.f32.mrb[0].mxu0
      %v3751 = vadd.f32 %v3686, %v3750
      %v3752 = vpop.f32.mrb[0].mxu0
      %v3753 = vpop.f32.mrb[0].mxu0
      %v3754 = vadd.f32 %v3689, %v3753
      %v3755 = vpop.f32.mrb[0].mxu0
      %3756 = vmatprep.mubr.bf16.mxu0 %v3386
      %3757 = vmatmul.mubr.bf16.gmra.mrb[0].mxu0 %v3385
      %v3758 = vpop.f32.mrb[0].mxu0
      %v3759 = vadd.f32 %v3694, %v3758
      %v3760 = vpop.f32.mrb[0].mxu0
      %v3761 = vpop.f32.mrb[0].mxu0
      %v3762 = vadd.f32 %v3697, %v3761
      %v3763 = vpop.f32.mrb[0].mxu0
      %3764 = vdwg.mxu0
      %3765 = vmatprep.subr.bf16.mxu0 0
      %3766 = vmatpush1.bf16.msra.mxu0 %v3220
      %3767 = vmatprep.subr.bf16.mxu0 0
      %3768 = vmatpush1.bf16.msra.mxu0 %v3223
      %3769 = vmatprep.subr.bf16.mxu0 0
      %3770 = vmatpush1.bf16.msra.mxu0 %v3226
      %3771 = vmatprep.subr.bf16.mxu0 0
      %3772 = vmatpush1.bf16.msra.mxu0 %v3229
      %3773 = vmatprep.subr.bf16.mxu0 0
      %3774 = vmatpush1.bf16.msra.mxu0 0
      %3775 = vmatprep.subr.bf16.mxu0 0
      %3776 = vmatpush1.bf16.msra.mxu0 0
      %3777 = vmatprep.subr.bf16.mxu0 0
      %3778 = vmatpush1.bf16.msra.mxu0 0
      %3779 = vmatprep.subr.bf16.mxu0 0
      %3780 = vmatpush1.bf16.msra.mxu0 0
      %3781 = vmatprep.subr.bf16.mxu0 0
      %3782 = vmatpush1.bf16.msra.mxu0 0
      %3783 = vmatprep.subr.bf16.mxu0 0
      %3784 = vmatpush1.bf16.msra.mxu0 0
      %3785 = vmatprep.subr.bf16.mxu0 0
      %3786 = vmatpush1.bf16.msra.mxu0 0
      %3787 = vmatprep.subr.bf16.mxu0 0
      %3788 = vmatpush1.bf16.msra.mxu0 0
      %3789 = vmatprep.subr.bf16.mxu0 0
      %3790 = vmatpush1.bf16.msra.mxu0 0
      %3791 = vmatprep.subr.bf16.mxu0 0
      %3792 = vmatpush1.bf16.msra.mxu0 0
      %3793 = vmatprep.subr.bf16.mxu0 0
      %3794 = vmatpush1.bf16.msra.mxu0 0
      %3795 = vmatprep.subr.bf16.mxu0 0
      %3796 = vmatpush1.bf16.msra.mxu0 0
      %3797 = vmatprep.mubr.bf16.mxu0 0
      %3798 = vmatmul.mubr.bf16.gmra.mrb[0].mxu0 %v3405
      %v3799 = vpop.f32.mrb[0].mxu0
      %v3800 = vadd.f32 %v3735, %v3799
      %v3801 = vpop.f32.mrb[0].mxu0
      %v3802 = vpop.f32.mrb[0].mxu0
      %v3803 = vadd.f32 %v3738, %v3802
      %v3804 = vpop.f32.mrb[0].mxu0
      %3805 = vmatprep.mubr.bf16.mxu0 0
      %3806 = vmatmul.mubr.bf16.gmra.mrb[0].mxu0 %v3408
      %v3807 = vpop.f32.mrb[0].mxu0
      %v3808 = vadd.f32 %v3743, %v3807
      %v3809 = vpop.f32.mrb[0].mxu0
      %v3810 = vpop.f32.mrb[0].mxu0
      %v3811 = vadd.f32 %v3746, %v3810
      %v3812 = vpop.f32.mrb[0].mxu0
      %3813 = vmatprep.mubr.bf16.mxu0 0
      %3814 = vmatmul.mubr.bf16.gmra.mrb[0].mxu0 %v3411
      %v3815 = vpop.f32.mrb[0].mxu0
      %v3816 = vadd.f32 %v3751, %v3815
      %v3817 = vpop.f32.mrb[0].mxu0
      %v3818 = vpop.f32.mrb[0].mxu0
      %v3819 = vadd.f32 %v3754, %v3818
      %v3820 = vpop.f32.mrb[0].mxu0
      %3821 = vmatprep.mubr.bf16.mxu0 0
      %3822 = vmatmul.mubr.bf16.gmra.mrb[0].mxu0 %v3414
      %v3823 = vpop.f32.mrb[0].mxu0
      %v3824 = vadd.f32 %v3759, %v3823
      %v3825 = vpop.f32.mrb[0].mxu0
      %v3826 = vpop.f32.mrb[0].mxu0
      %v3827 = vadd.f32 %v3762, %v3826
      %v3828 = vpop.f32.mrb[0].mxu0
      %3829 = vdwg.mxu0
      %v3830 = vmax.f32 %v3597, 0.0
      %v3831 = vmax.f32 %v3599, 0.0
      %v3832 = vmax.f32 %v3800, 0.0
      %v3833 = vmax.f32 %v3601, 0.0
      %v3834 = vmax.f32 %v3603, 0.0
      %v3835 = vmax.f32 %v3803, 0.0
      %v3836 = vmax.f32 %v3607, 0.0
      %v3837 = vmax.f32 %v3609, 0.0
      %v3838 = vmax.f32 %v3808, 0.0
      %v3839 = vmax.f32 %v3611, 0.0
      %v3840 = vmax.f32 %v3613, 0.0
      %v3841 = vmax.f32 %v3811, 0.0
      %v3842 = vmax.f32 %v3617, 0.0
      %v3843 = vmax.f32 %v3619, 0.0
      %v3844 = vmax.f32 %v3816, 0.0
      %v3845 = vmax.f32 %v3621, 0.0
      %v3846 = vmax.f32 %v3623, 0.0
      %v3847 = vmax.f32 %v3819, 0.0
      %v3848 = vmax.f32 %v3627, 0.0
      %v3849 = vmax.f32 %v3629, 0.0
      %v3850 = vmax.f32 %v3824, 0.0
      %v3851 = vmax.f32 %v3631, 0.0
      %v3852 = vmax.f32 %v3633, 0.0
      %v3853 = vmax.f32 %v3827, 0.0
      %v3854 = vpack.c.bf16 %v3833, %v3830
      %v3855 = vpack.c.bf16 %v3834, %v3831
      %v3856 = vpack.c.bf16 %v3835, %v3832
      %v3857 = vpack.c.bf16 %v3839, %v3836
      %v3858 = vpack.c.bf16 %v3840, %v3837
      %v3859 = vpack.c.bf16 %v3841, %v3838
      %v3860 = vpack.c.bf16 %v3845, %v3842
      %v3861 = vpack.c.bf16 %v3846, %v3843
      %v3862 = vpack.c.bf16 %v3847, %v3844
      %v3863 = vpack.c.bf16 %v3851, %v3848
      %v3864 = vpack.c.bf16 %v3852, %v3849
      %v3865 = vpack.c.bf16 %v3853, %v3850
      %v3866 = vld [vmem:[%s8] sm:$0xff]
      %v3867 = vld [vmem:[%s8 + $0x8] sm:$0xff]
      %v3868 = vld [vmem:[%s8 + $0x10] sm:$0xff]
      %v3869 = vld [vmem:[%s8 + $0x18] sm:$0xff]
      %v3870 = vld [vmem:[%s8 + $0x20] sm:$0xff]
      %v3871 = vld [vmem:[%s8 + $0x28] sm:$0xff]
      %v3872 = vld [vmem:[%s8 + $0x30] sm:$0xff]
      %v3873 = vld [vmem:[%s8 + $0x38] sm:$0xff]
      %v3874 = vld [vmem:[%s8 + $0x40] sm:$0xff]
      %v3875 = vld [vmem:[%s8 + $0x48] sm:$0xff]
      %v3876 = vld [vmem:[%s8 + $0x50] sm:$0xff]
      %v3877 = vld [vmem:[%s8 + $0x58] sm:$0xff]
      %v3878 = vld [vmem:[%s8 + $0x60] sm:$0xff]
      %v3879 = vld [vmem:[%s8 + $0x68] sm:$0xff]
      %v3880 = vld [vmem:[%s8 + $0x70] sm:$0xff]
      %v3881 = vld [vmem:[%s8 + $0x78] sm:$0xff]
      %v3882 = vld [vmem:[%s8 + $0x80] sm:$0xff]
      %v3883 = vld [vmem:[%s8 + $0x88] sm:$0xff]
      %v3884 = vld [vmem:[%s8 + $0x90] sm:$0xff]
      %v3885 = vld [vmem:[%s8 + $0x98] sm:$0xff]
      %v3886 = vld [vmem:[%s8 + $0xa0] sm:$0xff]
      %v3887 = vld [vmem:[%s8 + $0xa8] sm:$0xff]
      %v3888 = vld [vmem:[%s8 + $0xb0] sm:$0xff]
      %v3889 = vld [vmem:[%s8 + $0xb8] sm:$0xff]
      %v3890 = vld [vmem:[%s8 + $0xc0] sm:$0xff]
      %v3891 = vld [vmem:[%s8 + $0xc8] sm:$0xff]
      %v3892 = vld [vmem:[%s8 + $0xd0] sm:$0xff]
      %v3893 = vld [vmem:[%s8 + $0xd8] sm:$0xff]
      %v3894 = vld [vmem:[%s8 + $0xe0] sm:$0xff]
      %v3895 = vld [vmem:[%s8 + $0xe8] sm:$0xff]
      %v3896 = vld [vmem:[%s8 + $0xf0] sm:$0xff]
      %v3897 = vld [vmem:[%s8 + $0xf8] sm:$0xff]
      %v3898 = vld [vmem:[%s8 + $0x100] sm:$0xff]
      %v3899 = vld [vmem:[%s8 + $0x108] sm:$0xff]
      %v3900 = vld [vmem:[%s8 + $0x110] sm:$0xff]
      %v3901 = vld [vmem:[%s8 + $0x118] sm:$0xff]
      %v3902 = vld [vmem:[%s8 + $0x120] sm:$0xff]
      %v3903 = vld [vmem:[%s8 + $0x128] sm:$0xff]
      %v3904 = vld [vmem:[%s8 + $0x130] sm:$0xff]
      %v3905 = vld [vmem:[%s8 + $0x138] sm:$0xff]
      %v3906 = vld [vmem:[%s8 + $0x140] sm:$0xff]
      %v3907 = vld [vmem:[%s8 + $0x148] sm:$0xff]
      %v3908 = vld [vmem:[%s8 + $0x150] sm:$0xff]
      %v3909 = vld [vmem:[%s8 + $0x158] sm:$0xff]
      %v3910 = vld [vmem:[%s8 + $0x160] sm:$0xff]
      %v3911 = vld [vmem:[%s8 + $0x168] sm:$0xff]
      %v3912 = vld [vmem:[%s8 + $0x170] sm:$0xff]
      %v3913 = vld [vmem:[%s8 + $0x178] sm:$0xff]
      %v3914 = vld [vmem:[%s8 + $0x180] sm:$0xff]
      %v3915 = vld [vmem:[%s8 + $0x188] sm:$0xff]
      %v3916 = vld [vmem:[%s8 + $0x190] sm:$0xff]
      %v3917 = vld [vmem:[%s8 + $0x198] sm:$0xff]
      %v3918 = vld [vmem:[%s8 + $0x1a0] sm:$0xff]
      %v3919 = vld [vmem:[%s8 + $0x1a8] sm:$0xff]
      %v3920 = vld [vmem:[%s8 + $0x1b0] sm:$0xff]
      %v3921 = vld [vmem:[%s8 + $0x1b8] sm:$0xff]
      %v3922 = vld [vmem:[%s8 + $0x1c0] sm:$0xff]
      %v3923 = vld [vmem:[%s8 + $0x1c8] sm:$0xff]
      %v3924 = vld [vmem:[%s8 + $0x1d0] sm:$0xff]
      %v3925 = vld [vmem:[%s8 + $0x1d8] sm:$0xff]
      %v3926 = vld [vmem:[%s8 + $0x1e0] sm:$0xff]
      %v3927 = vld [vmem:[%s8 + $0x1e8] sm:$0xff]
      %v3928 = vld [vmem:[%s8 + $0x1f0] sm:$0xff]
      %v3929 = vld [vmem:[%s8 + $0x1f8] sm:$0xff]
      %v3930 = vld [vmem:[%s8 + $0x200] sm:$0xff]
      %v3931 = vld [vmem:[%s8 + $0x208] sm:$0xff]
      %v3932 = vld [vmem:[%s8 + $0x210] sm:$0xff]
      %v3933 = vld [vmem:[%s8 + $0x218] sm:$0xff]
      %v3934 = vld [vmem:[%s8 + $0x220] sm:$0xff]
      %v3935 = vld [vmem:[%s8 + $0x228] sm:$0xff]
      %v3936 = vld [vmem:[%s8 + $0x230] sm:$0xff]
      %v3937 = vld [vmem:[%s8 + $0x238] sm:$0xff]
      %v3938 = vld [vmem:[%s8 + $0x240] sm:$0xff]
      %v3939 = vld [vmem:[%s8 + $0x248] sm:$0xff]
      %v3940 = vld [vmem:[%s8 + $0x250] sm:$0xff]
      %v3941 = vld [vmem:[%s8 + $0x258] sm:$0xff]
      %v3942 = vld [vmem:[%s8 + $0x260] sm:$0xff]
      %v3943 = vld [vmem:[%s8 + $0x268] sm:$0xff]
      %v3944 = vld [vmem:[%s8 + $0x270] sm:$0xff]
      %v3945 = vld [vmem:[%s8 + $0x278] sm:$0xff]
      %v3946 = vld [vmem:[%s8 + $0x280] sm:$0xff]
      %v3947 = vld [vmem:[%s8 + $0x288] sm:$0xff]
      %v3948 = vld [vmem:[%s8 + $0x290] sm:$0xff]
      %v3949 = vld [vmem:[%s8 + $0x298] sm:$0xff]
      %v3950 = vld [vmem:[%s8 + $0x2a0] sm:$0xff]
      %v3951 = vld [vmem:[%s8 + $0x2a8] sm:$0xff]
      %v3952 = vld [vmem:[%s8 + $0x2b0] sm:$0xff]
      %v3953 = vld [vmem:[%s8 + $0x2b8] sm:$0xff]
      %v3954 = vld [vmem:[%s8 + $0x2c0] sm:$0xff]
      %v3955 = vld [vmem:[%s8 + $0x2c8] sm:$0xff]
      %v3956 = vld [vmem:[%s8 + $0x2d0] sm:$0xff]
      %v3957 = vld [vmem:[%s8 + $0x2d8] sm:$0xff]
      %v3958 = vld [vmem:[%s8 + $0x2e0] sm:$0xff]
      %v3959 = vld [vmem:[%s8 + $0x2e8] sm:$0xff]
      %v3960 = vld [vmem:[%s8 + $0x2f0] sm:$0xff]
      %v3961 = vld [vmem:[%s8 + $0x2f8] sm:$0xff]
      %v3962 = vld [vmem:[%s8 + $0x300] sm:$0xff]
      %v3963 = vld [vmem:[%s8 + $0x308] sm:$0xff]
      %v3964 = vld [vmem:[%s8 + $0x310] sm:$0xff]
      %v3965 = vld [vmem:[%s8 + $0x318] sm:$0xff]
      %v3966 = vld [vmem:[%s8 + $0x320] sm:$0xff]
      %v3967 = vld [vmem:[%s8 + $0x328] sm:$0xff]
      %v3968 = vld [vmem:[%s8 + $0x330] sm:$0xff]
      %v3969 = vld [vmem:[%s8 + $0x338] sm:$0xff]
      %v3970 = vld [vmem:[%s8 + $0x340] sm:$0xff]
      %v3971 = vld [vmem:[%s8 + $0x348] sm:$0xff]
      %v3972 = vld [vmem:[%s8 + $0x350] sm:$0xff]
      %v3973 = vld [vmem:[%s8 + $0x358] sm:$0xff]
      %v3974 = vld [vmem:[%s8 + $0x360] sm:$0xff]
      %v3975 = vld [vmem:[%s8 + $0x368] sm:$0xff]
      %v3976 = vld [vmem:[%s8 + $0x370] sm:$0xff]
      %v3977 = vld [vmem:[%s8 + $0x378] sm:$0xff]
      %v3978 = vld [vmem:[%s8 + $0x380] sm:$0xff]
      %v3979 = vld [vmem:[%s8 + $0x388] sm:$0xff]
      %v3980 = vld [vmem:[%s8 + $0x390] sm:$0xff]
      %v3981 = vld [vmem:[%s8 + $0x398] sm:$0xff]
      %v3982 = vld [vmem:[%s8 + $0x3a0] sm:$0xff]
      %v3983 = vld [vmem:[%s8 + $0x3a8] sm:$0xff]
      %v3984 = vld [vmem:[%s8 + $0x3b0] sm:$0xff]
      %v3985 = vld [vmem:[%s8 + $0x3b8] sm:$0xff]
      %v3986 = vld [vmem:[%s8 + $0x3c0] sm:$0xff]
      %v3987 = vld [vmem:[%s8 + $0x3c8] sm:$0xff]
      %v3988 = vld [vmem:[%s8 + $0x3d0] sm:$0xff]
      %v3989 = vld [vmem:[%s8 + $0x3d8] sm:$0xff]
      %v3990 = vld [vmem:[%s8 + $0x3e0] sm:$0xff]
      %v3991 = vld [vmem:[%s8 + $0x3e8] sm:$0xff]
      %v3992 = vld [vmem:[%s8 + $0x3f0] sm:$0xff]
      %v3993 = vld [vmem:[%s8 + $0x3f8] sm:$0xff]
      %v3994 = vld [vmem:[%s8 + $0x400] sm:$0xff]
      %v3995 = vld [vmem:[%s8 + $0x408] sm:$0xff]
      %v3996 = vld [vmem:[%s8 + $0x410] sm:$0xff]
      %v3997 = vld [vmem:[%s8 + $0x418] sm:$0xff]
      %v3998 = vld [vmem:[%s8 + $0x420] sm:$0xff]
      %v3999 = vld [vmem:[%s8 + $0x428] sm:$0xff]
      %v4000 = vld [vmem:[%s8 + $0x430] sm:$0xff]
      %v4001 = vld [vmem:[%s8 + $0x438] sm:$0xff]
      %v4002 = vld [vmem:[%s8 + $0x440] sm:$0xff]
      %v4003 = vld [vmem:[%s8 + $0x448] sm:$0xff]
      %v4004 = vld [vmem:[%s8 + $0x450] sm:$0xff]
      %v4005 = vld [vmem:[%s8 + $0x458] sm:$0xff]
      %v4006 = vld [vmem:[%s8 + $0x460] sm:$0xff]
      %v4007 = vld [vmem:[%s8 + $0x468] sm:$0xff]
      %v4008 = vld [vmem:[%s8 + $0x470] sm:$0xff]
      %v4009 = vld [vmem:[%s8 + $0x478] sm:$0xff]
      %v4010 = vld [vmem:[%s8 + $0x480] sm:$0xff]
      %v4011 = vld [vmem:[%s8 + $0x488] sm:$0xff]
      %v4012 = vld [vmem:[%s8 + $0x490] sm:$0xff]
      %v4013 = vld [vmem:[%s8 + $0x498] sm:$0xff]
      %v4014 = vld [vmem:[%s8 + $0x4a0] sm:$0xff]
      %v4015 = vld [vmem:[%s8 + $0x4a8] sm:$0xff]
      %v4016 = vld [vmem:[%s8 + $0x4b0] sm:$0xff]
      %v4017 = vld [vmem:[%s8 + $0x4b8] sm:$0xff]
      %v4018 = vld [vmem:[%s8 + $0x4c0] sm:$0xff]
      %v4019 = vld [vmem:[%s8 + $0x4c8] sm:$0xff]
      %v4020 = vld [vmem:[%s8 + $0x4d0] sm:$0xff]
      %v4021 = vld [vmem:[%s8 + $0x4d8] sm:$0xff]
      %v4022 = vld [vmem:[%s8 + $0x4e0] sm:$0xff]
      %v4023 = vld [vmem:[%s8 + $0x4e8] sm:$0xff]
      %v4024 = vld [vmem:[%s8 + $0x4f0] sm:$0xff]
      %v4025 = vld [vmem:[%s8 + $0x4f8] sm:$0xff]
      %v4026 = vld [vmem:[%s8 + $0x500] sm:$0xff]
      %v4027 = vld [vmem:[%s8 + $0x508] sm:$0xff]
      %v4028 = vld [vmem:[%s8 + $0x510] sm:$0xff]
      %v4029 = vld [vmem:[%s8 + $0x518] sm:$0xff]
      %v4030 = vld [vmem:[%s8 + $0x520] sm:$0xff]
      %v4031 = vld [vmem:[%s8 + $0x528] sm:$0xff]
      %v4032 = vld [vmem:[%s8 + $0x530] sm:$0xff]
      %v4033 = vld [vmem:[%s8 + $0x538] sm:$0xff]
      %v4034 = vld [vmem:[%s8 + $0x540] sm:$0xff]
      %v4035 = vld [vmem:[%s8 + $0x548] sm:$0xff]
      %v4036 = vld [vmem:[%s8 + $0x550] sm:$0xff]
      %v4037 = vld [vmem:[%s8 + $0x558] sm:$0xff]
      %v4038 = vld [vmem:[%s8 + $0x560] sm:$0xff]
      %v4039 = vld [vmem:[%s8 + $0x568] sm:$0xff]
      %v4040 = vld [vmem:[%s8 + $0x570] sm:$0xff]
      %v4041 = vld [vmem:[%s8 + $0x578] sm:$0xff]
      %v4042 = vld [vmem:[%s8 + $0x580] sm:$0xff]
      %v4043 = vld [vmem:[%s8 + $0x588] sm:$0xff]
      %v4044 = vld [vmem:[%s8 + $0x590] sm:$0xff]
      %v4045 = vld [vmem:[%s8 + $0x598] sm:$0xff]
      %v4046 = vld [vmem:[%s8 + $0x5a0] sm:$0xff]
      %v4047 = vld [vmem:[%s8 + $0x5a8] sm:$0xff]
      %v4048 = vld [vmem:[%s8 + $0x5b0] sm:$0xff]
      %v4049 = vld [vmem:[%s8 + $0x5b8] sm:$0xff]
      %v4050 = vld [vmem:[%s8 + $0x5c0] sm:$0xff]
      %v4051 = vld [vmem:[%s8 + $0x5c8] sm:$0xff]
      %v4052 = vld [vmem:[%s8 + $0x5d0] sm:$0xff]
      %v4053 = vld [vmem:[%s8 + $0x5d8] sm:$0xff]
      %v4054 = vld [vmem:[%s8 + $0x5e0] sm:$0xff]
      %v4055 = vld [vmem:[%s8 + $0x5e8] sm:$0xff]
      %v4056 = vld [vmem:[%s8 + $0x5f0] sm:$0xff]
      %v4057 = vld [vmem:[%s8 + $0x5f8] sm:$0xff]
      %v4058 = vld [vmem:[%s8 + $0x600] sm:$0xff]
      %v4059 = vld [vmem:[%s8 + $0x608] sm:$0xff]
      %v4060 = vld [vmem:[%s8 + $0x610] sm:$0xff]
      %v4061 = vld [vmem:[%s8 + $0x618] sm:$0xff]
      %v4062 = vld [vmem:[%s8 + $0x620] sm:$0xff]
      %v4063 = vld [vmem:[%s8 + $0x628] sm:$0xff]
      %v4064 = vld [vmem:[%s8 + $0x630] sm:$0xff]
      %v4065 = vld [vmem:[%s8 + $0x638] sm:$0xff]
      %v4066 = vld [vmem:[%s8 + $0x640] sm:$0x33]
      %v4067 = vld [vmem:[%s8 + $0x648] sm:$0x33]
      %v4068 = vld [vmem:[%s8 + $0x650] sm:$0x33]
      %v4069 = vld [vmem:[%s8 + $0x658] sm:$0x33]
      %v4070 = vld [vmem:[%s8 + $0x660] sm:$0x33]
      %v4276 = vunpack.c.l.b16 %v3866
      %v4277 = vunpack.c.h.b16 %v3866
      %v4278 = vunpack.c.l.b16 %v3867
      %v4279 = vunpack.c.h.b16 %v3867
      %v4280 = vunpack.c.l.b16 %v3868
      %v4281 = vunpack.c.h.b16 %v3868
      %v4282 = vunpack.c.l.b16 %v3869
      %v4283 = vunpack.c.h.b16 %v3869
      %v4284 = vunpack.c.l.b16 %v3870
      %v4285 = vunpack.c.h.b16 %v3870
      %v4286 = vunpack.c.l.b16 %v3871
      %v4287 = vunpack.c.h.b16 %v3871
      %v4288 = vunpack.c.l.b16 %v3872
      %v4289 = vunpack.c.h.b16 %v3872
      %v4290 = vunpack.c.l.b16 %v3873
      %v4291 = vunpack.c.h.b16 %v3873
      %v4292 = vunpack.c.l.b16 %v3874
      %v4293 = vunpack.c.h.b16 %v3874
      %v4294 = vunpack.c.l.b16 %v3875
      %v4295 = vunpack.c.h.b16 %v3875
      %v4296 = vunpack.c.l.b16 %v3876
      %v4297 = vunpack.c.h.b16 %v3876
      %v4298 = vunpack.c.l.b16 %v3877
      %v4299 = vunpack.c.h.b16 %v3877
      %v4300 = vunpack.c.l.b16 %v3878
      %v4301 = vunpack.c.h.b16 %v3878
      %v4302 = vunpack.c.l.b16 %v3879
      %v4303 = vunpack.c.h.b16 %v3879
      %v4304 = vunpack.c.l.b16 %v3880
      %v4305 = vunpack.c.h.b16 %v3880
      %v4306 = vunpack.c.l.b16 %v3881
      %v4307 = vunpack.c.h.b16 %v3881
      %v4308 = vunpack.c.l.b16 %v3882
      %v4309 = vunpack.c.h.b16 %v3882
      %v4310 = vunpack.c.l.b16 %v3883
      %v4311 = vunpack.c.h.b16 %v3883
      %v4312 = vunpack.c.l.b16 %v3884
      %v4313 = vunpack.c.h.b16 %v3884
      %v4314 = vunpack.c.l.b16 %v3885
      %v4315 = vunpack.c.h.b16 %v3885
      %v4316 = vunpack.c.l.b16 %v3886
      %v4317 = vunpack.c.h.b16 %v3886
      %v4318 = vunpack.c.l.b16 %v3887
      %v4319 = vunpack.c.h.b16 %v3887
      %v4320 = vunpack.c.l.b16 %v3888
      %v4321 = vunpack.c.h.b16 %v3888
      %v4322 = vunpack.c.l.b16 %v3889
      %v4323 = vunpack.c.h.b16 %v3889
      %v4324 = vunpack.c.l.b16 %v3890
      %v4325 = vunpack.c.h.b16 %v3890
      %v4326 = vunpack.c.l.b16 %v3891
      %v4327 = vunpack.c.h.b16 %v3891
      %v4328 = vunpack.c.l.b16 %v3892
      %v4329 = vunpack.c.h.b16 %v3892
      %v4330 = vunpack.c.l.b16 %v3893
      %v4331 = vunpack.c.h.b16 %v3893
      %v4332 = vunpack.c.l.b16 %v3894
      %v4333 = vunpack.c.h.b16 %v3894
      %v4334 = vunpack.c.l.b16 %v3895
      %v4335 = vunpack.c.h.b16 %v3895
      %v4336 = vunpack.c.l.b16 %v3896
      %v4337 = vunpack.c.h.b16 %v3896
      %v4338 = vunpack.c.l.b16 %v3897
      %v4339 = vunpack.c.h.b16 %v3897
      %v4340 = vunpack.c.l.b16 %v3898
      %v4341 = vunpack.c.h.b16 %v3898
      %v4342 = vunpack.c.l.b16 %v3899
      %v4343 = vunpack.c.h.b16 %v3899
      %v4344 = vunpack.c.l.b16 %v3900
      %v4345 = vunpack.c.h.b16 %v3900
      %v4346 = vunpack.c.l.b16 %v3901
      %v4347 = vunpack.c.h.b16 %v3901
      %v4348 = vunpack.c.l.b16 %v3902
      %v4349 = vunpack.c.h.b16 %v3902
      %v4350 = vunpack.c.l.b16 %v3903
      %v4351 = vunpack.c.h.b16 %v3903
      %v4352 = vunpack.c.l.b16 %v3904
      %v4353 = vunpack.c.h.b16 %v3904
      %v4354 = vunpack.c.l.b16 %v3905
      %v4355 = vunpack.c.h.b16 %v3905
      %v4356 = vunpack.c.l.b16 %v3906
      %v4357 = vunpack.c.h.b16 %v3906
      %v4358 = vunpack.c.l.b16 %v3907
      %v4359 = vunpack.c.h.b16 %v3907
      %v4360 = vunpack.c.l.b16 %v3908
      %v4361 = vunpack.c.h.b16 %v3908
      %v4362 = vunpack.c.l.b16 %v3909
      %v4363 = vunpack.c.h.b16 %v3909
      %v4364 = vunpack.c.l.b16 %v3910
      %v4365 = vunpack.c.h.b16 %v3910
      %v4366 = vunpack.c.l.b16 %v3911
      %v4367 = vunpack.c.h.b16 %v3911
      %v4368 = vunpack.c.l.b16 %v3912
      %v4369 = vunpack.c.h.b16 %v3912
      %v4370 = vunpack.c.l.b16 %v3913
      %v4371 = vunpack.c.h.b16 %v3913
      %v4372 = vunpack.c.l.b16 %v3914
      %v4373 = vunpack.c.h.b16 %v3914
      %v4374 = vunpack.c.l.b16 %v3915
      %v4375 = vunpack.c.h.b16 %v3915
      %v4376 = vunpack.c.l.b16 %v3916
      %v4377 = vunpack.c.h.b16 %v3916
      %v4378 = vunpack.c.l.b16 %v3917
      %v4379 = vunpack.c.h.b16 %v3917
      %v4380 = vunpack.c.l.b16 %v3918
      %v4381 = vunpack.c.h.b16 %v3918
      %v4382 = vunpack.c.l.b16 %v3919
      %v4383 = vunpack.c.h.b16 %v3919
      %v4384 = vunpack.c.l.b16 %v3920
      %v4385 = vunpack.c.h.b16 %v3920
      %v4386 = vunpack.c.l.b16 %v3921
      %v4387 = vunpack.c.h.b16 %v3921
      %v4388 = vunpack.c.l.b16 %v3922
      %v4389 = vunpack.c.h.b16 %v3922
      %v4390 = vunpack.c.l.b16 %v3923
      %v4391 = vunpack.c.h.b16 %v3923
      %v4392 = vunpack.c.l.b16 %v3924
      %v4393 = vunpack.c.h.b16 %v3924
      %v4394 = vunpack.c.l.b16 %v3925
      %v4395 = vunpack.c.h.b16 %v3925
      %v4396 = vunpack.c.l.b16 %v3926
      %v4397 = vunpack.c.h.b16 %v3926
      %v4398 = vunpack.c.l.b16 %v3927
      %v4399 = vunpack.c.h.b16 %v3927
      %v4400 = vunpack.c.l.b16 %v3928
      %v4401 = vunpack.c.h.b16 %v3928
      %v4402 = vunpack.c.l.b16 %v3929
      %v4403 = vunpack.c.h.b16 %v3929
      %v4404 = vunpack.c.l.b16 %v3930
      %v4405 = vunpack.c.h.b16 %v3930
      %v4406 = vunpack.c.l.b16 %v3931
      %v4407 = vunpack.c.h.b16 %v3931
      %v4408 = vunpack.c.l.b16 %v3932
      %v4409 = vunpack.c.h.b16 %v3932
      %v4410 = vunpack.c.l.b16 %v3933
      %v4411 = vunpack.c.h.b16 %v3933
      %v4412 = vunpack.c.l.b16 %v3934
      %v4413 = vunpack.c.h.b16 %v3934
      %v4414 = vunpack.c.l.b16 %v3935
      %v4415 = vunpack.c.h.b16 %v3935
      %v4416 = vunpack.c.l.b16 %v3936
      %v4417 = vunpack.c.h.b16 %v3936
      %v4418 = vunpack.c.l.b16 %v3937
      %v4419 = vunpack.c.h.b16 %v3937
      %v4420 = vunpack.c.l.b16 %v3938
      %v4421 = vunpack.c.h.b16 %v3938
      %v4422 = vunpack.c.l.b16 %v3939
      %v4423 = vunpack.c.h.b16 %v3939
      %v4424 = vunpack.c.l.b16 %v3940
      %v4425 = vunpack.c.h.b16 %v3940
      %v4426 = vunpack.c.l.b16 %v3941
      %v4427 = vunpack.c.h.b16 %v3941
      %v4428 = vunpack.c.l.b16 %v3942
      %v4429 = vunpack.c.h.b16 %v3942
      %v4430 = vunpack.c.l.b16 %v3943
      %v4431 = vunpack.c.h.b16 %v3943
      %v4432 = vunpack.c.l.b16 %v3944
      %v4433 = vunpack.c.h.b16 %v3944
      %v4434 = vunpack.c.l.b16 %v3945
      %v4435 = vunpack.c.h.b16 %v3945
      %v4436 = vunpack.c.l.b16 %v3946
      %v4437 = vunpack.c.h.b16 %v3946
      %v4438 = vunpack.c.l.b16 %v3947
      %v4439 = vunpack.c.h.b16 %v3947
      %v4440 = vunpack.c.l.b16 %v3948
      %v4441 = vunpack.c.h.b16 %v3948
      %v4442 = vunpack.c.l.b16 %v3949
      %v4443 = vunpack.c.h.b16 %v3949
      %v4444 = vunpack.c.l.b16 %v3950
      %v4445 = vunpack.c.h.b16 %v3950
      %v4446 = vunpack.c.l.b16 %v3951
      %v4447 = vunpack.c.h.b16 %v3951
      %v4448 = vunpack.c.l.b16 %v3952
      %v4449 = vunpack.c.h.b16 %v3952
      %v4450 = vunpack.c.l.b16 %v3953
      %v4451 = vunpack.c.h.b16 %v3953
      %v4452 = vunpack.c.l.b16 %v3954
      %v4453 = vunpack.c.h.b16 %v3954
      %v4454 = vunpack.c.l.b16 %v3955
      %v4455 = vunpack.c.h.b16 %v3955
      %v4456 = vunpack.c.l.b16 %v3956
      %v4457 = vunpack.c.h.b16 %v3956
      %v4458 = vunpack.c.l.b16 %v3957
      %v4459 = vunpack.c.h.b16 %v3957
      %v4460 = vunpack.c.l.b16 %v3958
      %v4461 = vunpack.c.h.b16 %v3958
      %v4462 = vunpack.c.l.b16 %v3959
      %v4463 = vunpack.c.h.b16 %v3959
      %v4464 = vunpack.c.l.b16 %v3960
      %v4465 = vunpack.c.h.b16 %v3960
      %v4466 = vunpack.c.l.b16 %v3961
      %v4467 = vunpack.c.h.b16 %v3961
      %v4468 = vunpack.c.l.b16 %v3962
      %v4469 = vunpack.c.h.b16 %v3962
      %v4470 = vunpack.c.l.b16 %v3963
      %v4471 = vunpack.c.h.b16 %v3963
      %v4472 = vunpack.c.l.b16 %v3964
      %v4473 = vunpack.c.h.b16 %v3964
      %v4474 = vunpack.c.l.b16 %v3965
      %v4475 = vunpack.c.h.b16 %v3965
      %v4476 = vunpack.c.l.b16 %v3966
      %v4477 = vunpack.c.h.b16 %v3966
      %v4478 = vunpack.c.l.b16 %v3967
      %v4479 = vunpack.c.h.b16 %v3967
      %v4480 = vunpack.c.l.b16 %v3968
      %v4481 = vunpack.c.h.b16 %v3968
      %v4482 = vunpack.c.l.b16 %v3969
      %v4483 = vunpack.c.h.b16 %v3969
      %v4484 = vunpack.c.l.b16 %v3970
      %v4485 = vunpack.c.h.b16 %v3970
      %v4486 = vunpack.c.l.b16 %v3971
      %v4487 = vunpack.c.h.b16 %v3971
      %v4488 = vunpack.c.l.b16 %v3972
      %v4489 = vunpack.c.h.b16 %v3972
      %v4490 = vunpack.c.l.b16 %v3973
      %v4491 = vunpack.c.h.b16 %v3973
      %v4492 = vunpack.c.l.b16 %v3974
      %v4493 = vunpack.c.h.b16 %v3974
      %v4494 = vunpack.c.l.b16 %v3975
      %v4495 = vunpack.c.h.b16 %v3975
      %v4496 = vunpack.c.l.b16 %v3976
      %v4497 = vunpack.c.h.b16 %v3976
      %v4498 = vunpack.c.l.b16 %v3977
      %v4499 = vunpack.c.h.b16 %v3977
      %v4500 = vunpack.c.l.b16 %v3978
      %v4501 = vunpack.c.h.b16 %v3978
      %v4502 = vunpack.c.l.b16 %v3979
      %v4503 = vunpack.c.h.b16 %v3979
      %v4504 = vunpack.c.l.b16 %v3980
      %v4505 = vunpack.c.h.b16 %v3980
      %v4506 = vunpack.c.l.b16 %v3981
      %v4507 = vunpack.c.h.b16 %v3981
      %v4508 = vunpack.c.l.b16 %v3982
      %v4509 = vunpack.c.h.b16 %v3982
      %v4510 = vunpack.c.l.b16 %v3983
      %v4511 = vunpack.c.h.b16 %v3983
      %v4512 = vunpack.c.l.b16 %v3984
      %v4513 = vunpack.c.h.b16 %v3984
      %v4514 = vunpack.c.l.b16 %v3985
      %v4515 = vunpack.c.h.b16 %v3985
      %v4516 = vunpack.c.l.b16 %v3986
      %v4517 = vunpack.c.h.b16 %v3986
      %v4518 = vunpack.c.l.b16 %v3987
      %v4519 = vunpack.c.h.b16 %v3987
      %v4520 = vunpack.c.l.b16 %v3988
      %v4521 = vunpack.c.h.b16 %v3988
      %v4522 = vunpack.c.l.b16 %v3989
      %v4523 = vunpack.c.h.b16 %v3989
      %v4524 = vunpack.c.l.b16 %v3990
      %v4525 = vunpack.c.h.b16 %v3990
      %v4526 = vunpack.c.l.b16 %v3991
      %v4527 = vunpack.c.h.b16 %v3991
      %v4528 = vunpack.c.l.b16 %v3992
      %v4529 = vunpack.c.h.b16 %v3992
      %v4530 = vunpack.c.l.b16 %v3993
      %v4531 = vunpack.c.h.b16 %v3993
      %v4532 = vunpack.c.l.b16 %v3994
      %v4533 = vunpack.c.h.b16 %v3994
      %v4534 = vunpack.c.l.b16 %v3995
      %v4535 = vunpack.c.h.b16 %v3995
      %v4536 = vunpack.c.l.b16 %v3996
      %v4537 = vunpack.c.h.b16 %v3996
      %v4538 = vunpack.c.l.b16 %v3997
      %v4539 = vunpack.c.h.b16 %v3997
      %v4540 = vunpack.c.l.b16 %v3998
      %v4541 = vunpack.c.h.b16 %v3998
      %v4542 = vunpack.c.l.b16 %v3999
      %v4543 = vunpack.c.h.b16 %v3999
      %v4544 = vunpack.c.l.b16 %v4000
      %v4545 = vunpack.c.h.b16 %v4000
      %v4546 = vunpack.c.l.b16 %v4001
      %v4547 = vunpack.c.h.b16 %v4001
      %v4548 = vunpack.c.l.b16 %v4002
      %v4549 = vunpack.c.h.b16 %v4002
      %v4550 = vunpack.c.l.b16 %v4003
      %v4551 = vunpack.c.h.b16 %v4003
      %v4552 = vunpack.c.l.b16 %v4004
      %v4553 = vunpack.c.h.b16 %v4004
      %v4554 = vunpack.c.l.b16 %v4005
      %v4555 = vunpack.c.h.b16 %v4005
      %v4556 = vunpack.c.l.b16 %v4006
      %v4557 = vunpack.c.h.b16 %v4006
      %v4558 = vunpack.c.l.b16 %v4007
      %v4559 = vunpack.c.h.b16 %v4007
      %v4560 = vunpack.c.l.b16 %v4008
      %v4561 = vunpack.c.h.b16 %v4008
      %v4562 = vunpack.c.l.b16 %v4009
      %v4563 = vunpack.c.h.b16 %v4009
      %v4564 = vunpack.c.l.b16 %v4010
      %v4565 = vunpack.c.h.b16 %v4010
      %v4566 = vunpack.c.l.b16 %v4011
      %v4567 = vunpack.c.h.b16 %v4011
      %v4568 = vunpack.c.l.b16 %v4012
      %v4569 = vunpack.c.h.b16 %v4012
      %v4570 = vunpack.c.l.b16 %v4013
      %v4571 = vunpack.c.h.b16 %v4013
      %v4572 = vunpack.c.l.b16 %v4014
      %v4573 = vunpack.c.h.b16 %v4014
      %v4574 = vunpack.c.l.b16 %v4015
      %v4575 = vunpack.c.h.b16 %v4015
      %v4576 = vunpack.c.l.b16 %v4016
      %v4577 = vunpack.c.h.b16 %v4016
      %v4578 = vunpack.c.l.b16 %v4017
      %v4579 = vunpack.c.h.b16 %v4017
      %v4580 = vunpack.c.l.b16 %v4018
      %v4581 = vunpack.c.h.b16 %v4018
      %v4582 = vunpack.c.l.b16 %v4019
      %v4583 = vunpack.c.h.b16 %v4019
      %v4584 = vunpack.c.l.b16 %v4020
      %v4585 = vunpack.c.h.b16 %v4020
      %v4586 = vunpack.c.l.b16 %v4021
      %v4587 = vunpack.c.h.b16 %v4021
      %v4588 = vunpack.c.l.b16 %v4022
      %v4589 = vunpack.c.h.b16 %v4022
      %v4590 = vunpack.c.l.b16 %v4023
      %v4591 = vunpack.c.h.b16 %v4023
      %v4592 = vunpack.c.l.b16 %v4024
      %v4593 = vunpack.c.h.b16 %v4024
      %v4594 = vunpack.c.l.b16 %v4025
      %v4595 = vunpack.c.h.b16 %v4025
      %v4596 = vunpack.c.l.b16 %v4026
      %v4597 = vunpack.c.h.b16 %v4026
      %v4598 = vunpack.c.l.b16 %v4027
      %v4599 = vunpack.c.h.b16 %v4027
      %v4600 = vunpack.c.l.b16 %v4028
      %v4601 = vunpack.c.h.b16 %v4028
      %v4602 = vunpack.c.l.b16 %v4029
      %v4603 = vunpack.c.h.b16 %v4029
      %v4604 = vunpack.c.l.b16 %v4030
      %v4605 = vunpack.c.h.b16 %v4030
      %v4606 = vunpack.c.l.b16 %v4031
      %v4607 = vunpack.c.h.b16 %v4031
      %v4608 = vunpack.c.l.b16 %v4032
      %v4609 = vunpack.c.h.b16 %v4032
      %v4610 = vunpack.c.l.b16 %v4033
      %v4611 = vunpack.c.h.b16 %v4033
      %v4612 = vunpack.c.l.b16 %v4034
      %v4613 = vunpack.c.h.b16 %v4034
      %v4614 = vunpack.c.l.b16 %v4035
      %v4615 = vunpack.c.h.b16 %v4035
      %v4616 = vunpack.c.l.b16 %v4036
      %v4617 = vunpack.c.h.b16 %v4036
      %v4618 = vunpack.c.l.b16 %v4037
      %v4619 = vunpack.c.h.b16 %v4037
      %v4620 = vunpack.c.l.b16 %v4038
      %v4621 = vunpack.c.h.b16 %v4038
      %v4622 = vunpack.c.l.b16 %v4039
      %v4623 = vunpack.c.h.b16 %v4039
      %v4624 = vunpack.c.l.b16 %v4040
      %v4625 = vunpack.c.h.b16 %v4040
      %v4626 = vunpack.c.l.b16 %v4041
      %v4627 = vunpack.c.h.b16 %v4041
      %v4628 = vunpack.c.l.b16 %v4042
      %v4629 = vunpack.c.h.b16 %v4042
      %v4630 = vunpack.c.l.b16 %v4043
      %v4631 = vunpack.c.h.b16 %v4043
      %v4632 = vunpack.c.l.b16 %v4044
      %v4633 = vunpack.c.h.b16 %v4044
      %v4634 = vunpack.c.l.b16 %v4045
      %v4635 = vunpack.c.h.b16 %v4045
      %v4636 = vunpack.c.l.b16 %v4046
      %v4637 = vunpack.c.h.b16 %v4046
      %v4638 = vunpack.c.l.b16 %v4047
      %v4639 = vunpack.c.h.b16 %v4047
      %v4640 = vunpack.c.l.b16 %v4048
      %v4641 = vunpack.c.h.b16 %v4048
      %v4642 = vunpack.c.l.b16 %v4049
      %v4643 = vunpack.c.h.b16 %v4049
      %v4644 = vunpack.c.l.b16 %v4050
      %v4645 = vunpack.c.h.b16 %v4050
      %v4646 = vunpack.c.l.b16 %v4051
      %v4647 = vunpack.c.h.b16 %v4051
      %v4648 = vunpack.c.l.b16 %v4052
      %v4649 = vunpack.c.h.b16 %v4052
      %v4650 = vunpack.c.l.b16 %v4053
      %v4651 = vunpack.c.h.b16 %v4053
      %v4652 = vunpack.c.l.b16 %v4054
      %v4653 = vunpack.c.h.b16 %v4054
      %v4654 = vunpack.c.l.b16 %v4055
      %v4655 = vunpack.c.h.b16 %v4055
      %v4656 = vunpack.c.l.b16 %v4056
      %v4657 = vunpack.c.h.b16 %v4056
      %v4658 = vunpack.c.l.b16 %v4057
      %v4659 = vunpack.c.h.b16 %v4057
      %v4660 = vunpack.c.l.b16 %v4058
      %v4661 = vunpack.c.h.b16 %v4058
      %v4662 = vunpack.c.l.b16 %v4059
      %v4663 = vunpack.c.h.b16 %v4059
      %v4664 = vunpack.c.l.b16 %v4060
      %v4665 = vunpack.c.h.b16 %v4060
      %v4666 = vunpack.c.l.b16 %v4061
      %v4667 = vunpack.c.h.b16 %v4061
      %v4668 = vunpack.c.l.b16 %v4062
      %v4669 = vunpack.c.h.b16 %v4062
      %v4670 = vunpack.c.l.b16 %v4063
      %v4671 = vunpack.c.h.b16 %v4063
      %v4672 = vunpack.c.l.b16 %v4064
      %v4673 = vunpack.c.h.b16 %v4064
      %v4674 = vunpack.c.l.b16 %v4065
      %v4675 = vunpack.c.h.b16 %v4065
      %v4676 = vunpack.c.l.b16 %v4066
      %v4677 = vunpack.c.h.b16 %v4066
      %v4678 = vunpack.c.l.b16 %v4067
      %v4679 = vunpack.c.h.b16 %v4067
      %v4680 = vunpack.c.l.b16 %v4068
      %v4681 = vunpack.c.h.b16 %v4068
      %v4682 = vunpack.c.l.b16 %v4069
      %v4683 = vunpack.c.h.b16 %v4069
      %v4684 = vunpack.c.l.b16 %v4070
      %v4685 = vunpack.c.h.b16 %v4070
      %v4686 = vpack.c.b16 %v4286, %v4276
      %v4687 = vpack.c.b16 %v4287, %v4277
      %v4688 = vpack.c.b16 %v4288, %v4278
      %v4689 = vpack.c.b16 %v4289, %v4279
      %v4690 = vpack.c.b16 %v4290, %v4280
      %v4691 = vpack.c.b16 %v4291, %v4281
      %v4692 = vpack.c.b16 %v4292, %v4282
      %v4693 = vpack.c.b16 %v4293, %v4283
      %v4694 = vpack.c.b16 %v4294, %v4284
      %v4695 = vpack.c.b16 %v4295, %v4285
      %v4696 = vpack.c.b16 %v4306, %v4296
      %v4697 = vpack.c.b16 %v4307, %v4297
      %v4698 = vpack.c.b16 %v4308, %v4298
      %v4699 = vpack.c.b16 %v4309, %v4299
      %v4700 = vpack.c.b16 %v4310, %v4300
      %v4701 = vpack.c.b16 %v4311, %v4301
      %v4702 = vpack.c.b16 %v4312, %v4302
      %v4703 = vpack.c.b16 %v4313, %v4303
      %v4704 = vpack.c.b16 %v4314, %v4304
      %v4705 = vpack.c.b16 %v4315, %v4305
      %v4706 = vpack.c.b16 %v4326, %v4316
      %v4707 = vpack.c.b16 %v4327, %v4317
      %v4708 = vpack.c.b16 %v4328, %v4318
      %v4709 = vpack.c.b16 %v4329, %v4319
      %v4710 = vpack.c.b16 %v4330, %v4320
      %v4711 = vpack.c.b16 %v4331, %v4321
      %v4712 = vpack.c.b16 %v4332, %v4322
      %v4713 = vpack.c.b16 %v4333, %v4323
      %v4714 = vpack.c.b16 %v4334, %v4324
      %v4715 = vpack.c.b16 %v4335, %v4325
      %v4716 = vpack.c.b16 %v4346, %v4336
      %v4717 = vpack.c.b16 %v4347, %v4337
      %v4718 = vpack.c.b16 %v4348, %v4338
      %v4719 = vpack.c.b16 %v4349, %v4339
      %v4720 = vpack.c.b16 %v4350, %v4340
      %v4721 = vpack.c.b16 %v4351, %v4341
      %v4722 = vpack.c.b16 %v4352, %v4342
      %v4723 = vpack.c.b16 %v4353, %v4343
      %v4724 = vpack.c.b16 %v4354, %v4344
      %v4725 = vpack.c.b16 %v4355, %v4345
      %v4726 = vpack.c.b16 %v4366, %v4356
      %v4727 = vpack.c.b16 %v4367, %v4357
      %v4728 = vpack.c.b16 %v4368, %v4358
      %v4729 = vpack.c.b16 %v4369, %v4359
      %v4730 = vpack.c.b16 %v4370, %v4360
      %v4731 = vpack.c.b16 %v4371, %v4361
      %v4732 = vpack.c.b16 %v4372, %v4362
      %v4733 = vpack.c.b16 %v4373, %v4363
      %v4734 = vpack.c.b16 %v4374, %v4364
      %v4735 = vpack.c.b16 %v4375, %v4365
      %v4736 = vpack.c.b16 %v4386, %v4376
      %v4737 = vpack.c.b16 %v4387, %v4377
      %v4738 = vpack.c.b16 %v4388, %v4378
      %v4739 = vpack.c.b16 %v4389, %v4379
      %v4740 = vpack.c.b16 %v4390, %v4380
      %v4741 = vpack.c.b16 %v4391, %v4381
      %v4742 = vpack.c.b16 %v4392, %v4382
      %v4743 = vpack.c.b16 %v4393, %v4383
      %v4744 = vpack.c.b16 %v4394, %v4384
      %v4745 = vpack.c.b16 %v4395, %v4385
      %v4746 = vpack.c.b16 %v4406, %v4396
      %v4747 = vpack.c.b16 %v4407, %v4397
      %v4748 = vpack.c.b16 %v4408, %v4398
      %v4749 = vpack.c.b16 %v4409, %v4399
      %v4750 = vpack.c.b16 %v4410, %v4400
      %v4751 = vpack.c.b16 %v4411, %v4401
      %v4752 = vpack.c.b16 %v4412, %v4402
      %v4753 = vpack.c.b16 %v4413, %v4403
      %v4754 = vpack.c.b16 %v4414, %v4404
      %v4755 = vpack.c.b16 %v4415, %v4405
      %v4756 = vpack.c.b16 %v4426, %v4416
      %v4757 = vpack.c.b16 %v4427, %v4417
      %v4758 = vpack.c.b16 %v4428, %v4418
      %v4759 = vpack.c.b16 %v4429, %v4419
      %v4760 = vpack.c.b16 %v4430, %v4420
      %v4761 = vpack.c.b16 %v4431, %v4421
      %v4762 = vpack.c.b16 %v4432, %v4422
      %v4763 = vpack.c.b16 %v4433, %v4423
      %v4764 = vpack.c.b16 %v4434, %v4424
      %v4765 = vpack.c.b16 %v4435, %v4425
      %v4766 = vpack.c.b16 %v4446, %v4436
      %v4767 = vpack.c.b16 %v4447, %v4437
      %v4768 = vpack.c.b16 %v4448, %v4438
      %v4769 = vpack.c.b16 %v4449, %v4439
      %v4770 = vpack.c.b16 %v4450, %v4440
      %v4771 = vpack.c.b16 %v4451, %v4441
      %v4772 = vpack.c.b16 %v4452, %v4442
      %v4773 = vpack.c.b16 %v4453, %v4443
      %v4774 = vpack.c.b16 %v4454, %v4444
      %v4775 = vpack.c.b16 %v4455, %v4445
      %v4776 = vpack.c.b16 %v4466, %v4456
      %v4777 = vpack.c.b16 %v4467, %v4457
      %v4778 = vpack.c.b16 %v4468, %v4458
      %v4779 = vpack.c.b16 %v4469, %v4459
      %v4780 = vpack.c.b16 %v4470, %v4460
      %v4781 = vpack.c.b16 %v4471, %v4461
      %v4782 = vpack.c.b16 %v4472, %v4462
      %v4783 = vpack.c.b16 %v4473, %v4463
      %v4784 = vpack.c.b16 %v4474, %v4464
      %v4785 = vpack.c.b16 %v4475, %v4465
      %v4786 = vpack.c.b16 %v4486, %v4476
      %v4787 = vpack.c.b16 %v4487, %v4477
      %v4788 = vpack.c.b16 %v4488, %v4478
      %v4789 = vpack.c.b16 %v4489, %v4479
      %v4790 = vpack.c.b16 %v4490, %v4480
      %v4791 = vpack.c.b16 %v4491, %v4481
      %v4792 = vpack.c.b16 %v4492, %v4482
      %v4793 = vpack.c.b16 %v4493, %v4483
      %v4794 = vpack.c.b16 %v4494, %v4484
      %v4795 = vpack.c.b16 %v4495, %v4485
      %v4796 = vpack.c.b16 %v4506, %v4496
      %v4797 = vpack.c.b16 %v4507, %v4497
      %v4798 = vpack.c.b16 %v4508, %v4498
      %v4799 = vpack.c.b16 %v4509, %v4499
      %v4800 = vpack.c.b16 %v4510, %v4500
      %v4801 = vpack.c.b16 %v4511, %v4501
      %v4802 = vpack.c.b16 %v4512, %v4502
      %v4803 = vpack.c.b16 %v4513, %v4503
      %v4804 = vpack.c.b16 %v4514, %v4504
      %v4805 = vpack.c.b16 %v4515, %v4505
      %v4806 = vpack.c.b16 %v4526, %v4516
      %v4807 = vpack.c.b16 %v4527, %v4517
      %v4808 = vpack.c.b16 %v4528, %v4518
      %v4809 = vpack.c.b16 %v4529, %v4519
      %v4810 = vpack.c.b16 %v4530, %v4520
      %v4811 = vpack.c.b16 %v4531, %v4521
      %v4812 = vpack.c.b16 %v4532, %v4522
      %v4813 = vpack.c.b16 %v4533, %v4523
      %v4814 = vpack.c.b16 %v4534, %v4524
      %v4815 = vpack.c.b16 %v4535, %v4525
      %v4816 = vpack.c.b16 %v4546, %v4536
      %v4817 = vpack.c.b16 %v4547, %v4537
      %v4818 = vpack.c.b16 %v4548, %v4538
      %v4819 = vpack.c.b16 %v4549, %v4539
      %v4820 = vpack.c.b16 %v4550, %v4540
      %v4821 = vpack.c.b16 %v4551, %v4541
      %v4822 = vpack.c.b16 %v4552, %v4542
      %v4823 = vpack.c.b16 %v4553, %v4543
      %v4824 = vpack.c.b16 %v4554, %v4544
      %v4825 = vpack.c.b16 %v4555, %v4545
      %v4826 = vpack.c.b16 %v4566, %v4556
      %v4827 = vpack.c.b16 %v4567, %v4557
      %v4828 = vpack.c.b16 %v4568, %v4558
      %v4829 = vpack.c.b16 %v4569, %v4559
      %v4830 = vpack.c.b16 %v4570, %v4560
      %v4831 = vpack.c.b16 %v4571, %v4561
      %v4832 = vpack.c.b16 %v4572, %v4562
      %v4833 = vpack.c.b16 %v4573, %v4563
      %v4834 = vpack.c.b16 %v4574, %v4564
      %v4835 = vpack.c.b16 %v4575, %v4565
      %v4836 = vpack.c.b16 %v4586, %v4576
      %v4837 = vpack.c.b16 %v4587, %v4577
      %v4838 = vpack.c.b16 %v4588, %v4578
      %v4839 = vpack.c.b16 %v4589, %v4579
      %v4840 = vpack.c.b16 %v4590, %v4580
      %v4841 = vpack.c.b16 %v4591, %v4581
      %v4842 = vpack.c.b16 %v4592, %v4582
      %v4843 = vpack.c.b16 %v4593, %v4583
      %v4844 = vpack.c.b16 %v4594, %v4584
      %v4845 = vpack.c.b16 %v4595, %v4585
      %v4846 = vpack.c.b16 %v4606, %v4596
      %v4847 = vpack.c.b16 %v4607, %v4597
      %v4848 = vpack.c.b16 %v4608, %v4598
      %v4849 = vpack.c.b16 %v4609, %v4599
      %v4850 = vpack.c.b16 %v4610, %v4600
      %v4851 = vpack.c.b16 %v4611, %v4601
      %v4852 = vpack.c.b16 %v4612, %v4602
      %v4853 = vpack.c.b16 %v4613, %v4603
      %v4854 = vpack.c.b16 %v4614, %v4604
      %v4855 = vpack.c.b16 %v4615, %v4605
      %v4856 = vpack.c.b16 %v4626, %v4616
      %v4857 = vpack.c.b16 %v4627, %v4617
      %v4858 = vpack.c.b16 %v4628, %v4618
      %v4859 = vpack.c.b16 %v4629, %v4619
      %v4860 = vpack.c.b16 %v4630, %v4620
      %v4861 = vpack.c.b16 %v4631, %v4621
      %v4862 = vpack.c.b16 %v4632, %v4622
      %v4863 = vpack.c.b16 %v4633, %v4623
      %v4864 = vpack.c.b16 %v4634, %v4624
      %v4865 = vpack.c.b16 %v4635, %v4625
      %v4866 = vpack.c.b16 %v4646, %v4636
      %v4867 = vpack.c.b16 %v4647, %v4637
      %v4868 = vpack.c.b16 %v4648, %v4638
      %v4869 = vpack.c.b16 %v4649, %v4639
      %v4870 = vpack.c.b16 %v4650, %v4640
      %v4871 = vpack.c.b16 %v4651, %v4641
      %v4872 = vpack.c.b16 %v4652, %v4642
      %v4873 = vpack.c.b16 %v4653, %v4643
      %v4874 = vpack.c.b16 %v4654, %v4644
      %v4875 = vpack.c.b16 %v4655, %v4645
      %v4876 = vpack.c.b16 %v4666, %v4656
      %v4877 = vpack.c.b16 %v4667, %v4657
      %v4878 = vpack.c.b16 %v4668, %v4658
      %v4879 = vpack.c.b16 %v4669, %v4659
      %v4880 = vpack.c.b16 %v4670, %v4660
      %v4881 = vpack.c.b16 %v4671, %v4661
      %v4882 = vpack.c.b16 %v4672, %v4662
      %v4883 = vpack.c.b16 %v4673, %v4663
      %v4884 = vpack.c.b16 %v4674, %v4664
      %v4885 = vpack.c.b16 %v4675, %v4665
      %v4886 = vpack.c.b16 %v4676, %v4676
      %v4887 = vpack.c.b16 %v4677, %v4677
      %v4888 = vpack.c.b16 %v4678, %v4678
      %v4889 = vpack.c.b16 %v4679, %v4679
      %v4890 = vpack.c.b16 %v4680, %v4680
      %v4891 = vpack.c.b16 %v4681, %v4681
      %v4892 = vpack.c.b16 %v4682, %v4682
      %v4893 = vpack.c.b16 %v4683, %v4683
      %v4894 = vpack.c.b16 %v4684, %v4684
      %v4895 = vpack.c.b16 %v4685, %v4685
      %v5097 = vsel %vm2384, %v3856, 0
      %v5100 = vsel %vm2384, %v3859, 0
      %v5103 = vsel %vm2384, %v3862, 0
      %v5106 = vsel %vm2384, %v3865, 0
      %v5109 = vsel %vm1211, %v4886, 0
      %v5112 = vsel %vm1211, %v4887, 0
      %v5115 = vsel %vm1211, %v4888, 0
      %v5118 = vsel %vm1211, %v4889, 0
      %v5121 = vsel %vm1211, %v4890, 0
      %v5124 = vsel %vm1211, %v4891, 0
      %v5127 = vsel %vm1211, %v4892, 0
      %v5130 = vsel %vm1211, %v4893, 0
      %v5133 = vsel %vm1211, %v4894, 0
      %v5136 = vsel %vm1211, %v4895, 0
      %5138 = vmatprep.subr.bf16.mxu0 %v4687
      %5139 = vmatpush1.bf16.msra.mxu0 %v4686
      %5140 = vmatprep.subr.bf16.mxu0 %v4697
      %5141 = vmatpush1.bf16.msra.mxu0 %v4696
      %5142 = vmatprep.subr.bf16.mxu0 %v4707
      %5143 = vmatpush1.bf16.msra.mxu0 %v4706
      %5144 = vmatprep.subr.bf16.mxu0 %v4717
      %5145 = vmatpush1.bf16.msra.mxu0 %v4716
      %5146 = vmatprep.subr.bf16.mxu0 %v4727
      %5147 = vmatpush1.bf16.msra.mxu0 %v4726
      %5148 = vmatprep.subr.bf16.mxu0 %v4737
      %5149 = vmatpush1.bf16.msra.mxu0 %v4736
      %5150 = vmatprep.subr.bf16.mxu0 %v4747
      %5151 = vmatpush1.bf16.msra.mxu0 %v4746
      %5152 = vmatprep.subr.bf16.mxu0 %v4757
      %5153 = vmatpush1.bf16.msra.mxu0 %v4756
      %5154 = vmatprep.subr.bf16.mxu0 %v4767
      %5155 = vmatpush1.bf16.msra.mxu0 %v4766
      %5156 = vmatprep.subr.bf16.mxu0 %v4777
      %5157 = vmatpush1.bf16.msra.mxu0 %v4776
      %5158 = vmatprep.subr.bf16.mxu0 %v4787
      %5159 = vmatpush1.bf16.msra.mxu0 %v4786
      %5160 = vmatprep.subr.bf16.mxu0 %v4797
      %5161 = vmatpush1.bf16.msra.mxu0 %v4796
      %5162 = vmatprep.subr.bf16.mxu0 %v4807
      %5163 = vmatpush1.bf16.msra.mxu0 %v4806
      %5164 = vmatprep.subr.bf16.mxu0 %v4817
      %5165 = vmatpush1.bf16.msra.mxu0 %v4816
      %5166 = vmatprep.subr.bf16.mxu0 %v4827
      %5167 = vmatpush1.bf16.msra.mxu0 %v4826
      %5168 = vmatprep.subr.bf16.mxu0 %v4837
      %5169 = vmatpush1.bf16.msra.mxu0 %v4836
      %5170 = vmatprep.mubr.bf16.mxu0 %v3855
      %5171 = vmatmul.mubr.bf16.gmra.mrb[0].mxu0 %v3854
      %v5172 = vpop.f32.mrb[0].mxu0
      %v5173 = vadd.f32 0.0, %v5172
      %v5174 = vpop.f32.mrb[0].mxu0
      %v5175 = vadd.f32 0.0, %v5174
      %v5176 = vpop.f32.mrb[0].mxu0
      %v5177 = vadd.f32 0.0, %v5176
      %v5178 = vpop.f32.mrb[0].mxu0
      %v5179 = vadd.f32 0.0, %v5178
      %5180 = vmatprep.mubr.bf16.mxu0 %v3858
      %5181 = vmatmul.mubr.bf16.gmra.mrb[0].mxu0 %v3857
      %v5182 = vpop.f32.mrb[0].mxu0
      %v5183 = vadd.f32 0.0, %v5182
      %v5184 = vpop.f32.mrb[0].mxu0
      %v5185 = vadd.f32 0.0, %v5184
      %v5186 = vpop.f32.mrb[0].mxu0
      %v5187 = vadd.f32 0.0, %v5186
      %v5188 = vpop.f32.mrb[0].mxu0
      %v5189 = vadd.f32 0.0, %v5188
      %5190 = vmatprep.mubr.bf16.mxu0 %v3861
      %5191 = vmatmul.mubr.bf16.gmra.mrb[0].mxu0 %v3860
      %v5192 = vpop.f32.mrb[0].mxu0
      %v5193 = vadd.f32 0.0, %v5192
      %v5194 = vpop.f32.mrb[0].mxu0
      %v5195 = vadd.f32 0.0, %v5194
      %v5196 = vpop.f32.mrb[0].mxu0
      %v5197 = vadd.f32 0.0, %v5196
      %v5198 = vpop.f32.mrb[0].mxu0
      %v5199 = vadd.f32 0.0, %v5198
      %5200 = vmatprep.mubr.bf16.mxu0 %v3864
      %5201 = vmatmul.mubr.bf16.gmra.mrb[0].mxu0 %v3863
      %v5202 = vpop.f32.mrb[0].mxu0
      %v5203 = vadd.f32 0.0, %v5202
      %v5204 = vpop.f32.mrb[0].mxu0
      %v5205 = vadd.f32 0.0, %v5204
      %v5206 = vpop.f32.mrb[0].mxu0
      %v5207 = vadd.f32 0.0, %v5206
      %v5208 = vpop.f32.mrb[0].mxu0
      %v5209 = vadd.f32 0.0, %v5208
      %5210 = vdwg.mxu0
      %5211 = vmatprep.subr.bf16.mxu0 %v4847
      %5212 = vmatpush1.bf16.msra.mxu0 %v4846
      %5213 = vmatprep.subr.bf16.mxu0 %v4857
      %5214 = vmatpush1.bf16.msra.mxu0 %v4856
      %5215 = vmatprep.subr.bf16.mxu0 %v4867
      %5216 = vmatpush1.bf16.msra.mxu0 %v4866
      %5217 = vmatprep.subr.bf16.mxu0 %v4877
      %5218 = vmatpush1.bf16.msra.mxu0 %v4876
      %5219 = vmatprep.subr.bf16.mxu0 %v5112
      %5220 = vmatpush1.bf16.msra.mxu0 %v5109
      %5221 = vmatprep.subr.bf16.mxu0 0
      %5222 = vmatpush1.bf16.msra.mxu0 0
      %5223 = vmatprep.subr.bf16.mxu0 0
      %5224 = vmatpush1.bf16.msra.mxu0 0
      %5225 = vmatprep.subr.bf16.mxu0 0
      %5226 = vmatpush1.bf16.msra.mxu0 0
      %5227 = vmatprep.subr.bf16.mxu0 0
      %5228 = vmatpush1.bf16.msra.mxu0 0
      %5229 = vmatprep.subr.bf16.mxu0 0
      %5230 = vmatpush1.bf16.msra.mxu0 0
      %5231 = vmatprep.subr.bf16.mxu0 0
      %5232 = vmatpush1.bf16.msra.mxu0 0
      %5233 = vmatprep.subr.bf16.mxu0 0
      %5234 = vmatpush1.bf16.msra.mxu0 0
      %5235 = vmatprep.subr.bf16.mxu0 0
      %5236 = vmatpush1.bf16.msra.mxu0 0
      %5237 = vmatprep.subr.bf16.mxu0 0
      %5238 = vmatpush1.bf16.msra.mxu0 0
      %5239 = vmatprep.subr.bf16.mxu0 0
      %5240 = vmatpush1.bf16.msra.mxu0 0
      %5241 = vmatprep.subr.bf16.mxu0 0
      %5242 = vmatpush1.bf16.msra.mxu0 0
      %5243 = vmatprep.mubr.bf16.mxu0 0
      %5244 = vmatmul.mubr.bf16.gmra.mrb[0].mxu0 %v5097
      %v5245 = vpop.f32.mrb[0].mxu0
      %v5246 = vadd.f32 %v5173, %v5245
      %v5247 = vpop.f32.mrb[0].mxu0
      %v5248 = vadd.f32 %v5175, %v5247
      %v5249 = vpop.f32.mrb[0].mxu0
      %v5250 = vadd.f32 %v5177, %v5249
      %v5251 = vpop.f32.mrb[0].mxu0
      %v5252 = vadd.f32 %v5179, %v5251
      %5253 = vmatprep.mubr.bf16.mxu0 0
      %5254 = vmatmul.mubr.bf16.gmra.mrb[0].mxu0 %v5100
      %v5255 = vpop.f32.mrb[0].mxu0
      %v5256 = vadd.f32 %v5183, %v5255
      %v5257 = vpop.f32.mrb[0].mxu0
      %v5258 = vadd.f32 %v5185, %v5257
      %v5259 = vpop.f32.mrb[0].mxu0
      %v5260 = vadd.f32 %v5187, %v5259
      %v5261 = vpop.f32.mrb[0].mxu0
      %v5262 = vadd.f32 %v5189, %v5261
      %5263 = vmatprep.mubr.bf16.mxu0 0
      %5264 = vmatmul.mubr.bf16.gmra.mrb[0].mxu0 %v5103
      %v5265 = vpop.f32.mrb[0].mxu0
      %v5266 = vadd.f32 %v5193, %v5265
      %v5267 = vpop.f32.mrb[0].mxu0
      %v5268 = vadd.f32 %v5195, %v5267
      %v5269 = vpop.f32.mrb[0].mxu0
      %v5270 = vadd.f32 %v5197, %v5269
      %v5271 = vpop.f32.mrb[0].mxu0
      %v5272 = vadd.f32 %v5199, %v5271
      %5273 = vmatprep.mubr.bf16.mxu0 0
      %5274 = vmatmul.mubr.bf16.gmra.mrb[0].mxu0 %v5106
      %v5275 = vpop.f32.mrb[0].mxu0
      %v5276 = vadd.f32 %v5203, %v5275
      %v5277 = vpop.f32.mrb[0].mxu0
      %v5278 = vadd.f32 %v5205, %v5277
      %v5279 = vpop.f32.mrb[0].mxu0
      %v5280 = vadd.f32 %v5207, %v5279
      %v5281 = vpop.f32.mrb[0].mxu0
      %v5282 = vadd.f32 %v5209, %v5281
      %5283 = vdwg.mxu0
      %5284 = vmatprep.subr.bf16.mxu0 %v4689
      %5285 = vmatpush1.bf16.msra.mxu0 %v4688
      %5286 = vmatprep.subr.bf16.mxu0 %v4699
      %5287 = vmatpush1.bf16.msra.mxu0 %v4698
      %5288 = vmatprep.subr.bf16.mxu0 %v4709
      %5289 = vmatpush1.bf16.msra.mxu0 %v4708
      %5290 = vmatprep.subr.bf16.mxu0 %v4719
      %5291 = vmatpush1.bf16.msra.mxu0 %v4718
      %5292 = vmatprep.subr.bf16.mxu0 %v4729
      %5293 = vmatpush1.bf16.msra.mxu0 %v4728
      %5294 = vmatprep.subr.bf16.mxu0 %v4739
      %5295 = vmatpush1.bf16.msra.mxu0 %v4738
      %5296 = vmatprep.subr.bf16.mxu0 %v4749
      %5297 = vmatpush1.bf16.msra.mxu0 %v4748
      %5298 = vmatprep.subr.bf16.mxu0 %v4759
      %5299 = vmatpush1.bf16.msra.mxu0 %v4758
      %5300 = vmatprep.subr.bf16.mxu0 %v4769
      %5301 = vmatpush1.bf16.msra.mxu0 %v4768
      %5302 = vmatprep.subr.bf16.mxu0 %v4779
      %5303 = vmatpush1.bf16.msra.mxu0 %v4778
      %5304 = vmatprep.subr.bf16.mxu0 %v4789
      %5305 = vmatpush1.bf16.msra.mxu0 %v4788
      %5306 = vmatprep.subr.bf16.mxu0 %v4799
      %5307 = vmatpush1.bf16.msra.mxu0 %v4798
      %5308 = vmatprep.subr.bf16.mxu0 %v4809
      %5309 = vmatpush1.bf16.msra.mxu0 %v4808
      %5310 = vmatprep.subr.bf16.mxu0 %v4819
      %5311 = vmatpush1.bf16.msra.mxu0 %v4818
      %5312 = vmatprep.subr.bf16.mxu0 %v4829
      %5313 = vmatpush1.bf16.msra.mxu0 %v4828
      %5314 = vmatprep.subr.bf16.mxu0 %v4839
      %5315 = vmatpush1.bf16.msra.mxu0 %v4838
      %5316 = vmatprep.mubr.bf16.mxu0 %v3855
      %5317 = vmatmul.mubr.bf16.gmra.mrb[0].mxu0 %v3854
      %v5318 = vpop.f32.mrb[0].mxu0
      %v5319 = vadd.f32 0.0, %v5318
      %v5320 = vpop.f32.mrb[0].mxu0
      %v5321 = vadd.f32 0.0, %v5320
      %v5322 = vpop.f32.mrb[0].mxu0
      %v5323 = vadd.f32 0.0, %v5322
      %v5324 = vpop.f32.mrb[0].mxu0
      %v5325 = vadd.f32 0.0, %v5324
      %5326 = vmatprep.mubr.bf16.mxu0 %v3858
      %5327 = vmatmul.mubr.bf16.gmra.mrb[0].mxu0 %v3857
      %v5328 = vpop.f32.mrb[0].mxu0
      %v5329 = vadd.f32 0.0, %v5328
      %v5330 = vpop.f32.mrb[0].mxu0
      %v5331 = vadd.f32 0.0, %v5330
      %v5332 = vpop.f32.mrb[0].mxu0
      %v5333 = vadd.f32 0.0, %v5332
      %v5334 = vpop.f32.mrb[0].mxu0
      %v5335 = vadd.f32 0.0, %v5334
      %5336 = vmatprep.mubr.bf16.mxu0 %v3861
      %5337 = vmatmul.mubr.bf16.gmra.mrb[0].mxu0 %v3860
      %v5338 = vpop.f32.mrb[0].mxu0
      %v5339 = vadd.f32 0.0, %v5338
      %v5340 = vpop.f32.mrb[0].mxu0
      %v5341 = vadd.f32 0.0, %v5340
      %v5342 = vpop.f32.mrb[0].mxu0
      %v5343 = vadd.f32 0.0, %v5342
      %v5344 = vpop.f32.mrb[0].mxu0
      %v5345 = vadd.f32 0.0, %v5344
      %5346 = vmatprep.mubr.bf16.mxu0 %v3864
      %5347 = vmatmul.mubr.bf16.gmra.mrb[0].mxu0 %v3863
      %v5348 = vpop.f32.mrb[0].mxu0
      %v5349 = vadd.f32 0.0, %v5348
      %v5350 = vpop.f32.mrb[0].mxu0
      %v5351 = vadd.f32 0.0, %v5350
      %v5352 = vpop.f32.mrb[0].mxu0
      %v5353 = vadd.f32 0.0, %v5352
      %v5354 = vpop.f32.mrb[0].mxu0
      %v5355 = vadd.f32 0.0, %v5354
      %5356 = vdwg.mxu0
      %5357 = vmatprep.subr.bf16.mxu0 %v4849
      %5358 = vmatpush1.bf16.msra.mxu0 %v4848
      %5359 = vmatprep.subr.bf16.mxu0 %v4859
      %5360 = vmatpush1.bf16.msra.mxu0 %v4858
      %5361 = vmatprep.subr.bf16.mxu0 %v4869
      %5362 = vmatpush1.bf16.msra.mxu0 %v4868
      %5363 = vmatprep.subr.bf16.mxu0 %v4879
      %5364 = vmatpush1.bf16.msra.mxu0 %v4878
      %5365 = vmatprep.subr.bf16.mxu0 %v5118
      %5366 = vmatpush1.bf16.msra.mxu0 %v5115
      %5367 = vmatprep.subr.bf16.mxu0 0
      %5368 = vmatpush1.bf16.msra.mxu0 0
      %5369 = vmatprep.subr.bf16.mxu0 0
      %5370 = vmatpush1.bf16.msra.mxu0 0
      %5371 = vmatprep.subr.bf16.mxu0 0
      %5372 = vmatpush1.bf16.msra.mxu0 0
      %5373 = vmatprep.subr.bf16.mxu0 0
      %5374 = vmatpush1.bf16.msra.mxu0 0
      %5375 = vmatprep.subr.bf16.mxu0 0
      %5376 = vmatpush1.bf16.msra.mxu0 0
      %5377 = vmatprep.subr.bf16.mxu0 0
      %5378 = vmatpush1.bf16.msra.mxu0 0
      %5379 = vmatprep.subr.bf16.mxu0 0
      %5380 = vmatpush1.bf16.msra.mxu0 0
      %5381 = vmatprep.subr.bf16.mxu0 0
      %5382 = vmatpush1.bf16.msra.mxu0 0
      %5383 = vmatprep.subr.bf16.mxu0 0
      %5384 = vmatpush1.bf16.msra.mxu0 0
      %5385 = vmatprep.subr.bf16.mxu0 0
      %5386 = vmatpush1.bf16.msra.mxu0 0
      %5387 = vmatprep.subr.bf16.mxu0 0
      %5388 = vmatpush1.bf16.msra.mxu0 0
      %5389 = vmatprep.mubr.bf16.mxu0 0
      %5390 = vmatmul.mubr.bf16.gmra.mrb[0].mxu0 %v5097
      %v5391 = vpop.f32.mrb[0].mxu0
      %v5392 = vadd.f32 %v5319, %v5391
      %v5393 = vpop.f32.mrb[0].mxu0
      %v5394 = vadd.f32 %v5321, %v5393
      %v5395 = vpop.f32.mrb[0].mxu0
      %v5396 = vadd.f32 %v5323, %v5395
      %v5397 = vpop.f32.mrb[0].mxu0
      %v5398 = vadd.f32 %v5325, %v5397
      %5399 = vmatprep.mubr.bf16.mxu0 0
      %5400 = vmatmul.mubr.bf16.gmra.mrb[0].mxu0 %v5100
      %v5401 = vpop.f32.mrb[0].mxu0
      %v5402 = vadd.f32 %v5329, %v5401
      %v5403 = vpop.f32.mrb[0].mxu0
      %v5404 = vadd.f32 %v5331, %v5403
      %v5405 = vpop.f32.mrb[0].mxu0
      %v5406 = vadd.f32 %v5333, %v5405
      %v5407 = vpop.f32.mrb[0].mxu0
      %v5408 = vadd.f32 %v5335, %v5407
      %5409 = vmatprep.mubr.bf16.mxu0 0
      %5410 = vmatmul.mubr.bf16.gmra.mrb[0].mxu0 %v5103
      %v5411 = vpop.f32.mrb[0].mxu0
      %v5412 = vadd.f32 %v5339, %v5411
      %v5413 = vpop.f32.mrb[0].mxu0
      %v5414 = vadd.f32 %v5341, %v5413
      %v5415 = vpop.f32.mrb[0].mxu0
      %v5416 = vadd.f32 %v5343, %v5415
      %v5417 = vpop.f32.mrb[0].mxu0
      %v5418 = vadd.f32 %v5345, %v5417
      %5419 = vmatprep.mubr.bf16.mxu0 0
      %5420 = vmatmul.mubr.bf16.gmra.mrb[0].mxu0 %v5106
      %v5421 = vpop.f32.mrb[0].mxu0
      %v5422 = vadd.f32 %v5349, %v5421
      %v5423 = vpop.f32.mrb[0].mxu0
      %v5424 = vadd.f32 %v5351, %v5423
      %v5425 = vpop.f32.mrb[0].mxu0
      %v5426 = vadd.f32 %v5353, %v5425
      %v5427 = vpop.f32.mrb[0].mxu0
      %v5428 = vadd.f32 %v5355, %v5427
      %5429 = vdwg.mxu0
      %5430 = vmatprep.subr.bf16.mxu0 %v4691
      %5431 = vmatpush1.bf16.msra.mxu0 %v4690
      %5432 = vmatprep.subr.bf16.mxu0 %v4701
      %5433 = vmatpush1.bf16.msra.mxu0 %v4700
      %5434 = vmatprep.subr.bf16.mxu0 %v4711
      %5435 = vmatpush1.bf16.msra.mxu0 %v4710
      %5436 = vmatprep.subr.bf16.mxu0 %v4721
      %5437 = vmatpush1.bf16.msra.mxu0 %v4720
      %5438 = vmatprep.subr.bf16.mxu0 %v4731
      %5439 = vmatpush1.bf16.msra.mxu0 %v4730
      %5440 = vmatprep.subr.bf16.mxu0 %v4741
      %5441 = vmatpush1.bf16.msra.mxu0 %v4740
      %5442 = vmatprep.subr.bf16.mxu0 %v4751
      %5443 = vmatpush1.bf16.msra.mxu0 %v4750
      %5444 = vmatprep.subr.bf16.mxu0 %v4761
      %5445 = vmatpush1.bf16.msra.mxu0 %v4760
      %5446 = vmatprep.subr.bf16.mxu0 %v4771
      %5447 = vmatpush1.bf16.msra.mxu0 %v4770
      %5448 = vmatprep.subr.bf16.mxu0 %v4781
      %5449 = vmatpush1.bf16.msra.mxu0 %v4780
      %5450 = vmatprep.subr.bf16.mxu0 %v4791
      %5451 = vmatpush1.bf16.msra.mxu0 %v4790
      %5452 = vmatprep.subr.bf16.mxu0 %v4801
      %5453 = vmatpush1.bf16.msra.mxu0 %v4800
      %5454 = vmatprep.subr.bf16.mxu0 %v4811
      %5455 = vmatpush1.bf16.msra.mxu0 %v4810
      %5456 = vmatprep.subr.bf16.mxu0 %v4821
      %5457 = vmatpush1.bf16.msra.mxu0 %v4820
      %5458 = vmatprep.subr.bf16.mxu0 %v4831
      %5459 = vmatpush1.bf16.msra.mxu0 %v4830
      %5460 = vmatprep.subr.bf16.mxu0 %v4841
      %5461 = vmatpush1.bf16.msra.mxu0 %v4840
      %5462 = vmatprep.mubr.bf16.mxu0 %v3855
      %5463 = vmatmul.mubr.bf16.gmra.mrb[0].mxu0 %v3854
      %v5464 = vpop.f32.mrb[0].mxu0
      %v5465 = vadd.f32 0.0, %v5464
      %v5466 = vpop.f32.mrb[0].mxu0
      %v5467 = vadd.f32 0.0, %v5466
      %v5468 = vpop.f32.mrb[0].mxu0
      %v5469 = vadd.f32 0.0, %v5468
      %v5470 = vpop.f32.mrb[0].mxu0
      %v5471 = vadd.f32 0.0, %v5470
      %5472 = vmatprep.mubr.bf16.mxu0 %v3858
      %5473 = vmatmul.mubr.bf16.gmra.mrb[0].mxu0 %v3857
      %v5474 = vpop.f32.mrb[0].mxu0
      %v5475 = vadd.f32 0.0, %v5474
      %v5476 = vpop.f32.mrb[0].mxu0
      %v5477 = vadd.f32 0.0, %v5476
      %v5478 = vpop.f32.mrb[0].mxu0
      %v5479 = vadd.f32 0.0, %v5478
      %v5480 = vpop.f32.mrb[0].mxu0
      %v5481 = vadd.f32 0.0, %v5480
      %5482 = vmatprep.mubr.bf16.mxu0 %v3861
      %5483 = vmatmul.mubr.bf16.gmra.mrb[0].mxu0 %v3860
      %v5484 = vpop.f32.mrb[0].mxu0
      %v5485 = vadd.f32 0.0, %v5484
      %v5486 = vpop.f32.mrb[0].mxu0
      %v5487 = vadd.f32 0.0, %v5486
      %v5488 = vpop.f32.mrb[0].mxu0
      %v5489 = vadd.f32 0.0, %v5488
      %v5490 = vpop.f32.mrb[0].mxu0
      %v5491 = vadd.f32 0.0, %v5490
      %5492 = vmatprep.mubr.bf16.mxu0 %v3864
      %5493 = vmatmul.mubr.bf16.gmra.mrb[0].mxu0 %v3863
      %v5494 = vpop.f32.mrb[0].mxu0
      %v5495 = vadd.f32 0.0, %v5494
      %v5496 = vpop.f32.mrb[0].mxu0
      %v5497 = vadd.f32 0.0, %v5496
      %v5498 = vpop.f32.mrb[0].mxu0
      %v5499 = vadd.f32 0.0, %v5498
      %v5500 = vpop.f32.mrb[0].mxu0
      %v5501 = vadd.f32 0.0, %v5500
      %5502 = vdwg.mxu0
      %5503 = vmatprep.subr.bf16.mxu0 %v4851
      %5504 = vmatpush1.bf16.msra.mxu0 %v4850
      %5505 = vmatprep.subr.bf16.mxu0 %v4861
      %5506 = vmatpush1.bf16.msra.mxu0 %v4860
      %5507 = vmatprep.subr.bf16.mxu0 %v4871
      %5508 = vmatpush1.bf16.msra.mxu0 %v4870
      %5509 = vmatprep.subr.bf16.mxu0 %v4881
      %5510 = vmatpush1.bf16.msra.mxu0 %v4880
      %5511 = vmatprep.subr.bf16.mxu0 %v5124
      %5512 = vmatpush1.bf16.msra.mxu0 %v5121
      %5513 = vmatprep.subr.bf16.mxu0 0
      %5514 = vmatpush1.bf16.msra.mxu0 0
      %5515 = vmatprep.subr.bf16.mxu0 0
      %5516 = vmatpush1.bf16.msra.mxu0 0
      %5517 = vmatprep.subr.bf16.mxu0 0
      %5518 = vmatpush1.bf16.msra.mxu0 0
      %5519 = vmatprep.subr.bf16.mxu0 0
      %5520 = vmatpush1.bf16.msra.mxu0 0
      %5521 = vmatprep.subr.bf16.mxu0 0
      %5522 = vmatpush1.bf16.msra.mxu0 0
      %5523 = vmatprep.subr.bf16.mxu0 0
      %5524 = vmatpush1.bf16.msra.mxu0 0
      %5525 = vmatprep.subr.bf16.mxu0 0
      %5526 = vmatpush1.bf16.msra.mxu0 0
      %5527 = vmatprep.subr.bf16.mxu0 0
      %5528 = vmatpush1.bf16.msra.mxu0 0
      %5529 = vmatprep.subr.bf16.mxu0 0
      %5530 = vmatpush1.bf16.msra.mxu0 0
      %5531 = vmatprep.subr.bf16.mxu0 0
      %5532 = vmatpush1.bf16.msra.mxu0 0
      %5533 = vmatprep.subr.bf16.mxu0 0
      %5534 = vmatpush1.bf16.msra.mxu0 0
      %5535 = vmatprep.mubr.bf16.mxu0 0
      %5536 = vmatmul.mubr.bf16.gmra.mrb[0].mxu0 %v5097
      %v5537 = vpop.f32.mrb[0].mxu0
      %v5538 = vadd.f32 %v5465, %v5537
      %v5539 = vpop.f32.mrb[0].mxu0
      %v5540 = vadd.f32 %v5467, %v5539
      %v5541 = vpop.f32.mrb[0].mxu0
      %v5542 = vadd.f32 %v5469, %v5541
      %v5543 = vpop.f32.mrb[0].mxu0
      %v5544 = vadd.f32 %v5471, %v5543
      %5545 = vmatprep.mubr.bf16.mxu0 0
      %5546 = vmatmul.mubr.bf16.gmra.mrb[0].mxu0 %v5100
      %v5547 = vpop.f32.mrb[0].mxu0
      %v5548 = vadd.f32 %v5475, %v5547
      %v5549 = vpop.f32.mrb[0].mxu0
      %v5550 = vadd.f32 %v5477, %v5549
      %v5551 = vpop.f32.mrb[0].mxu0
      %v5552 = vadd.f32 %v5479, %v5551
      %v5553 = vpop.f32.mrb[0].mxu0
      %v5554 = vadd.f32 %v5481, %v5553
      %5555 = vmatprep.mubr.bf16.mxu0 0
      %5556 = vmatmul.mubr.bf16.gmra.mrb[0].mxu0 %v5103
      %v5557 = vpop.f32.mrb[0].mxu0
      %v5558 = vadd.f32 %v5485, %v5557
      %v5559 = vpop.f32.mrb[0].mxu0
      %v5560 = vadd.f32 %v5487, %v5559
      %v5561 = vpop.f32.mrb[0].mxu0
      %v5562 = vadd.f32 %v5489, %v5561
      %v5563 = vpop.f32.mrb[0].mxu0
      %v5564 = vadd.f32 %v5491, %v5563
      %5565 = vmatprep.mubr.bf16.mxu0 0
      %5566 = vmatmul.mubr.bf16.gmra.mrb[0].mxu0 %v5106
      %v5567 = vpop.f32.mrb[0].mxu0
      %v5568 = vadd.f32 %v5495, %v5567
      %v5569 = vpop.f32.mrb[0].mxu0
      %v5570 = vadd.f32 %v5497, %v5569
      %v5571 = vpop.f32.mrb[0].mxu0
      %v5572 = vadd.f32 %v5499, %v5571
      %v5573 = vpop.f32.mrb[0].mxu0
      %v5574 = vadd.f32 %v5501, %v5573
      %5575 = vdwg.mxu0
      %5576 = vmatprep.subr.bf16.mxu0 %v4693
      %5577 = vmatpush1.bf16.msra.mxu0 %v4692
      %5578 = vmatprep.subr.bf16.mxu0 %v4703
      %5579 = vmatpush1.bf16.msra.mxu0 %v4702
      %5580 = vmatprep.subr.bf16.mxu0 %v4713
      %5581 = vmatpush1.bf16.msra.mxu0 %v4712
      %5582 = vmatprep.subr.bf16.mxu0 %v4723
      %5583 = vmatpush1.bf16.msra.mxu0 %v4722
      %5584 = vmatprep.subr.bf16.mxu0 %v4733
      %5585 = vmatpush1.bf16.msra.mxu0 %v4732
      %5586 = vmatprep.subr.bf16.mxu0 %v4743
      %5587 = vmatpush1.bf16.msra.mxu0 %v4742
      %5588 = vmatprep.subr.bf16.mxu0 %v4753
      %5589 = vmatpush1.bf16.msra.mxu0 %v4752
      %5590 = vmatprep.subr.bf16.mxu0 %v4763
      %5591 = vmatpush1.bf16.msra.mxu0 %v4762
      %5592 = vmatprep.subr.bf16.mxu0 %v4773
      %5593 = vmatpush1.bf16.msra.mxu0 %v4772
      %5594 = vmatprep.subr.bf16.mxu0 %v4783
      %5595 = vmatpush1.bf16.msra.mxu0 %v4782
      %5596 = vmatprep.subr.bf16.mxu0 %v4793
      %5597 = vmatpush1.bf16.msra.mxu0 %v4792
      %5598 = vmatprep.subr.bf16.mxu0 %v4803
      %5599 = vmatpush1.bf16.msra.mxu0 %v4802
      %5600 = vmatprep.subr.bf16.mxu0 %v4813
      %5601 = vmatpush1.bf16.msra.mxu0 %v4812
      %5602 = vmatprep.subr.bf16.mxu0 %v4823
      %5603 = vmatpush1.bf16.msra.mxu0 %v4822
      %5604 = vmatprep.subr.bf16.mxu0 %v4833
      %5605 = vmatpush1.bf16.msra.mxu0 %v4832
      %5606 = vmatprep.subr.bf16.mxu0 %v4843
      %5607 = vmatpush1.bf16.msra.mxu0 %v4842
      %5608 = vmatprep.mubr.bf16.mxu0 %v3855
      %5609 = vmatmul.mubr.bf16.gmra.mrb[0].mxu0 %v3854
      %v5610 = vpop.f32.mrb[0].mxu0
      %v5611 = vadd.f32 0.0, %v5610
      %v5612 = vpop.f32.mrb[0].mxu0
      %v5613 = vadd.f32 0.0, %v5612
      %v5614 = vpop.f32.mrb[0].mxu0
      %v5615 = vadd.f32 0.0, %v5614
      %v5616 = vpop.f32.mrb[0].mxu0
      %v5617 = vadd.f32 0.0, %v5616
      %5618 = vmatprep.mubr.bf16.mxu0 %v3858
      %5619 = vmatmul.mubr.bf16.gmra.mrb[0].mxu0 %v3857
      %v5620 = vpop.f32.mrb[0].mxu0
      %v5621 = vadd.f32 0.0, %v5620
      %v5622 = vpop.f32.mrb[0].mxu0
      %v5623 = vadd.f32 0.0, %v5622
      %v5624 = vpop.f32.mrb[0].mxu0
      %v5625 = vadd.f32 0.0, %v5624
      %v5626 = vpop.f32.mrb[0].mxu0
      %v5627 = vadd.f32 0.0, %v5626
      %5628 = vmatprep.mubr.bf16.mxu0 %v3861
      %5629 = vmatmul.mubr.bf16.gmra.mrb[0].mxu0 %v3860
      %v5630 = vpop.f32.mrb[0].mxu0
      %v5631 = vadd.f32 0.0, %v5630
      %v5632 = vpop.f32.mrb[0].mxu0
      %v5633 = vadd.f32 0.0, %v5632
      %v5634 = vpop.f32.mrb[0].mxu0
      %v5635 = vadd.f32 0.0, %v5634
      %v5636 = vpop.f32.mrb[0].mxu0
      %v5637 = vadd.f32 0.0, %v5636
      %5638 = vmatprep.mubr.bf16.mxu0 %v3864
      %5639 = vmatmul.mubr.bf16.gmra.mrb[0].mxu0 %v3863
      %v5640 = vpop.f32.mrb[0].mxu0
      %v5641 = vadd.f32 0.0, %v5640
      %v5642 = vpop.f32.mrb[0].mxu0
      %v5643 = vadd.f32 0.0, %v5642
      %v5644 = vpop.f32.mrb[0].mxu0
      %v5645 = vadd.f32 0.0, %v5644
      %v5646 = vpop.f32.mrb[0].mxu0
      %v5647 = vadd.f32 0.0, %v5646
      %5648 = vdwg.mxu0
      %5649 = vmatprep.subr.bf16.mxu0 %v4853
      %5650 = vmatpush1.bf16.msra.mxu0 %v4852
      %5651 = vmatprep.subr.bf16.mxu0 %v4863
      %5652 = vmatpush1.bf16.msra.mxu0 %v4862
      %5653 = vmatprep.subr.bf16.mxu0 %v4873
      %5654 = vmatpush1.bf16.msra.mxu0 %v4872
      %5655 = vmatprep.subr.bf16.mxu0 %v4883
      %5656 = vmatpush1.bf16.msra.mxu0 %v4882
      %5657 = vmatprep.subr.bf16.mxu0 %v5130
      %5658 = vmatpush1.bf16.msra.mxu0 %v5127
      %5659 = vmatprep.subr.bf16.mxu0 0
      %5660 = vmatpush1.bf16.msra.mxu0 0
      %5661 = vmatprep.subr.bf16.mxu0 0
      %5662 = vmatpush1.bf16.msra.mxu0 0
      %5663 = vmatprep.subr.bf16.mxu0 0
      %5664 = vmatpush1.bf16.msra.mxu0 0
      %5665 = vmatprep.subr.bf16.mxu0 0
      %5666 = vmatpush1.bf16.msra.mxu0 0
      %5667 = vmatprep.subr.bf16.mxu0 0
      %5668 = vmatpush1.bf16.msra.mxu0 0
      %5669 = vmatprep.subr.bf16.mxu0 0
      %5670 = vmatpush1.bf16.msra.mxu0 0
      %5671 = vmatprep.subr.bf16.mxu0 0
      %5672 = vmatpush1.bf16.msra.mxu0 0
      %5673 = vmatprep.subr.bf16.mxu0 0
      %5674 = vmatpush1.bf16.msra.mxu0 0
      %5675 = vmatprep.subr.bf16.mxu0 0
      %5676 = vmatpush1.bf16.msra.mxu0 0
      %5677 = vmatprep.subr.bf16.mxu0 0
      %5678 = vmatpush1.bf16.msra.mxu0 0
      %5679 = vmatprep.subr.bf16.mxu0 0
      %5680 = vmatpush1.bf16.msra.mxu0 0
      %5681 = vmatprep.mubr.bf16.mxu0 0
      %5682 = vmatmul.mubr.bf16.gmra.mrb[0].mxu0 %v5097
      %v5683 = vpop.f32.mrb[0].mxu0
      %v5684 = vadd.f32 %v5611, %v5683
      %v5685 = vpop.f32.mrb[0].mxu0
      %v5686 = vadd.f32 %v5613, %v5685
      %v5687 = vpop.f32.mrb[0].mxu0
      %v5688 = vadd.f32 %v5615, %v5687
      %v5689 = vpop.f32.mrb[0].mxu0
      %v5690 = vadd.f32 %v5617, %v5689
      %5691 = vmatprep.mubr.bf16.mxu0 0
      %5692 = vmatmul.mubr.bf16.gmra.mrb[0].mxu0 %v5100
      %v5693 = vpop.f32.mrb[0].mxu0
      %v5694 = vadd.f32 %v5621, %v5693
      %v5695 = vpop.f32.mrb[0].mxu0
      %v5696 = vadd.f32 %v5623, %v5695
      %v5697 = vpop.f32.mrb[0].mxu0
      %v5698 = vadd.f32 %v5625, %v5697
      %v5699 = vpop.f32.mrb[0].mxu0
      %v5700 = vadd.f32 %v5627, %v5699
      %5701 = vmatprep.mubr.bf16.mxu0 0
      %5702 = vmatmul.mubr.bf16.gmra.mrb[0].mxu0 %v5103
      %v5703 = vpop.f32.mrb[0].mxu0
      %v5704 = vadd.f32 %v5631, %v5703
      %v5705 = vpop.f32.mrb[0].mxu0
      %v5706 = vadd.f32 %v5633, %v5705
      %v5707 = vpop.f32.mrb[0].mxu0
      %v5708 = vadd.f32 %v5635, %v5707
      %v5709 = vpop.f32.mrb[0].mxu0
      %v5710 = vadd.f32 %v5637, %v5709
      %5711 = vmatprep.mubr.bf16.mxu0 0
      %5712 = vmatmul.mubr.bf16.gmra.mrb[0].mxu0 %v5106
      %v5713 = vpop.f32.mrb[0].mxu0
      %v5714 = vadd.f32 %v5641, %v5713
      %v5715 = vpop.f32.mrb[0].mxu0
      %v5716 = vadd.f32 %v5643, %v5715
      %v5717 = vpop.f32.mrb[0].mxu0
      %v5718 = vadd.f32 %v5645, %v5717
      %v5719 = vpop.f32.mrb[0].mxu0
      %v5720 = vadd.f32 %v5647, %v5719
      %5721 = vdwg.mxu0
      %5722 = vmatprep.subr.bf16.mxu0 %v4695
      %5723 = vmatpush1.bf16.msra.mxu0 %v4694
      %5724 = vmatprep.subr.bf16.mxu0 %v4705
      %5725 = vmatpush1.bf16.msra.mxu0 %v4704
      %5726 = vmatprep.subr.bf16.mxu0 %v4715
      %5727 = vmatpush1.bf16.msra.mxu0 %v4714
      %5728 = vmatprep.subr.bf16.mxu0 %v4725
      %5729 = vmatpush1.bf16.msra.mxu0 %v4724
      %5730 = vmatprep.subr.bf16.mxu0 %v4735
      %5731 = vmatpush1.bf16.msra.mxu0 %v4734
      %5732 = vmatprep.subr.bf16.mxu0 %v4745
      %5733 = vmatpush1.bf16.msra.mxu0 %v4744
      %5734 = vmatprep.subr.bf16.mxu0 %v4755
      %5735 = vmatpush1.bf16.msra.mxu0 %v4754
      %5736 = vmatprep.subr.bf16.mxu0 %v4765
      %5737 = vmatpush1.bf16.msra.mxu0 %v4764
      %5738 = vmatprep.subr.bf16.mxu0 %v4775
      %5739 = vmatpush1.bf16.msra.mxu0 %v4774
      %5740 = vmatprep.subr.bf16.mxu0 %v4785
      %5741 = vmatpush1.bf16.msra.mxu0 %v4784
      %5742 = vmatprep.subr.bf16.mxu0 %v4795
      %5743 = vmatpush1.bf16.msra.mxu0 %v4794
      %5744 = vmatprep.subr.bf16.mxu0 %v4805
      %5745 = vmatpush1.bf16.msra.mxu0 %v4804
      %5746 = vmatprep.subr.bf16.mxu0 %v4815
      %5747 = vmatpush1.bf16.msra.mxu0 %v4814
      %5748 = vmatprep.subr.bf16.mxu0 %v4825
      %5749 = vmatpush1.bf16.msra.mxu0 %v4824
      %5750 = vmatprep.subr.bf16.mxu0 %v4835
      %5751 = vmatpush1.bf16.msra.mxu0 %v4834
      %5752 = vmatprep.subr.bf16.mxu0 %v4845
      %5753 = vmatpush1.bf16.msra.mxu0 %v4844
      %5754 = vmatprep.mubr.bf16.mxu0 %v3855
      %5755 = vmatmul.mubr.bf16.gmra.mrb[0].mxu0 %v3854
      %v5756 = vpop.f32.mrb[0].mxu0
      %v5757 = vadd.f32 0.0, %v5756
      %v5758 = vpop.f32.mrb[0].mxu0
      %v5759 = vadd.f32 0.0, %v5758
      %v5760 = vpop.f32.mrb[0].mxu0
      %v5761 = vadd.f32 0.0, %v5760
      %v5762 = vpop.f32.mrb[0].mxu0
      %v5763 = vadd.f32 0.0, %v5762
      %5764 = vmatprep.mubr.bf16.mxu0 %v3858
      %5765 = vmatmul.mubr.bf16.gmra.mrb[0].mxu0 %v3857
      %v5766 = vpop.f32.mrb[0].mxu0
      %v5767 = vadd.f32 0.0, %v5766
      %v5768 = vpop.f32.mrb[0].mxu0
      %v5769 = vadd.f32 0.0, %v5768
      %v5770 = vpop.f32.mrb[0].mxu0
      %v5771 = vadd.f32 0.0, %v5770
      %v5772 = vpop.f32.mrb[0].mxu0
      %v5773 = vadd.f32 0.0, %v5772
      %5774 = vmatprep.mubr.bf16.mxu0 %v3861
      %5775 = vmatmul.mubr.bf16.gmra.mrb[0].mxu0 %v3860
      %v5776 = vpop.f32.mrb[0].mxu0
      %v5777 = vadd.f32 0.0, %v5776
      %v5778 = vpop.f32.mrb[0].mxu0
      %v5779 = vadd.f32 0.0, %v5778
      %v5780 = vpop.f32.mrb[0].mxu0
      %v5781 = vadd.f32 0.0, %v5780
      %v5782 = vpop.f32.mrb[0].mxu0
      %v5783 = vadd.f32 0.0, %v5782
      %5784 = vmatprep.mubr.bf16.mxu0 %v3864
      %5785 = vmatmul.mubr.bf16.gmra.mrb[0].mxu0 %v3863
      %v5786 = vpop.f32.mrb[0].mxu0
      %v5787 = vadd.f32 0.0, %v5786
      %v5788 = vpop.f32.mrb[0].mxu0
      %v5789 = vadd.f32 0.0, %v5788
      %v5790 = vpop.f32.mrb[0].mxu0
      %v5791 = vadd.f32 0.0, %v5790
      %v5792 = vpop.f32.mrb[0].mxu0
      %v5793 = vadd.f32 0.0, %v5792
      %5794 = vdwg.mxu0
      %5795 = vmatprep.subr.bf16.mxu0 %v4855
      %5796 = vmatpush1.bf16.msra.mxu0 %v4854
      %5797 = vmatprep.subr.bf16.mxu0 %v4865
      %5798 = vmatpush1.bf16.msra.mxu0 %v4864
      %5799 = vmatprep.subr.bf16.mxu0 %v4875
      %5800 = vmatpush1.bf16.msra.mxu0 %v4874
      %5801 = vmatprep.subr.bf16.mxu0 %v4885
      %5802 = vmatpush1.bf16.msra.mxu0 %v4884
      %5803 = vmatprep.subr.bf16.mxu0 %v5136
      %5804 = vmatpush1.bf16.msra.mxu0 %v5133
      %5805 = vmatprep.subr.bf16.mxu0 0
      %5806 = vmatpush1.bf16.msra.mxu0 0
      %5807 = vmatprep.subr.bf16.mxu0 0
      %5808 = vmatpush1.bf16.msra.mxu0 0
      %5809 = vmatprep.subr.bf16.mxu0 0
      %5810 = vmatpush1.bf16.msra.mxu0 0
      %5811 = vmatprep.subr.bf16.mxu0 0
      %5812 = vmatpush1.bf16.msra.mxu0 0
      %5813 = vmatprep.subr.bf16.mxu0 0
      %5814 = vmatpush1.bf16.msra.mxu0 0
      %5815 = vmatprep.subr.bf16.mxu0 0
      %5816 = vmatpush1.bf16.msra.mxu0 0
      %5817 = vmatprep.subr.bf16.mxu0 0
      %5818 = vmatpush1.bf16.msra.mxu0 0
      %5819 = vmatprep.subr.bf16.mxu0 0
      %5820 = vmatpush1.bf16.msra.mxu0 0
      %5821 = vmatprep.subr.bf16.mxu0 0
      %5822 = vmatpush1.bf16.msra.mxu0 0
      %5823 = vmatprep.subr.bf16.mxu0 0
      %5824 = vmatpush1.bf16.msra.mxu0 0
      %5825 = vmatprep.subr.bf16.mxu0 0
      %5826 = vmatpush1.bf16.msra.mxu0 0
      %5827 = vmatprep.mubr.bf16.mxu0 0
      %5828 = vmatmul.mubr.bf16.gmra.mrb[0].mxu0 %v5097
      %v5829 = vpop.f32.mrb[0].mxu0
      %v5830 = vadd.f32 %v5757, %v5829
      %v5831 = vpop.f32.mrb[0].mxu0
      %v5832 = vadd.f32 %v5759, %v5831
      %v5833 = vpop.f32.mrb[0].mxu0
      %v5834 = vadd.f32 %v5761, %v5833
      %v5835 = vpop.f32.mrb[0].mxu0
      %v5836 = vadd.f32 %v5763, %v5835
      %5837 = vmatprep.mubr.bf16.mxu0 0
      %5838 = vmatmul.mubr.bf16.gmra.mrb[0].mxu0 %v5100
      %v5839 = vpop.f32.mrb[0].mxu0
      %v5840 = vadd.f32 %v5767, %v5839
      %v5841 = vpop.f32.mrb[0].mxu0
      %v5842 = vadd.f32 %v5769, %v5841
      %v5843 = vpop.f32.mrb[0].mxu0
      %v5844 = vadd.f32 %v5771, %v5843
      %v5845 = vpop.f32.mrb[0].mxu0
      %v5846 = vadd.f32 %v5773, %v5845
      %5847 = vmatprep.mubr.bf16.mxu0 0
      %5848 = vmatmul.mubr.bf16.gmra.mrb[0].mxu0 %v5103
      %v5849 = vpop.f32.mrb[0].mxu0
      %v5850 = vadd.f32 %v5777, %v5849
      %v5851 = vpop.f32.mrb[0].mxu0
      %v5852 = vadd.f32 %v5779, %v5851
      %v5853 = vpop.f32.mrb[0].mxu0
      %v5854 = vadd.f32 %v5781, %v5853
      %v5855 = vpop.f32.mrb[0].mxu0
      %v5856 = vadd.f32 %v5783, %v5855
      %5857 = vmatprep.mubr.bf16.mxu0 0
      %5858 = vmatmul.mubr.bf16.gmra.mrb[0].mxu0 %v5106
      %v5859 = vpop.f32.mrb[0].mxu0
      %v5860 = vadd.f32 %v5787, %v5859
      %v5861 = vpop.f32.mrb[0].mxu0
      %v5862 = vadd.f32 %v5789, %v5861
      %v5863 = vpop.f32.mrb[0].mxu0
      %v5864 = vadd.f32 %v5791, %v5863
      %v5865 = vpop.f32.mrb[0].mxu0
      %v5866 = vadd.f32 %v5793, %v5865
      %5867 = vdwg.mxu0
      %v5868 = vld [vmem:[%s387] sm:$0xff]
      %v5869 = vld [vmem:[%s387 + $0x8] sm:$0xff]
      %v5870 = vld [vmem:[%s387 + $0x10] sm:$0xff]
      %v5871 = vld [vmem:[%s387 + $0x18] sm:$0xff]
      %v5872 = vld [vmem:[%s387 + $0x20] sm:$0xff]
      %v5873 = vld [vmem:[%s387 + $0x28] sm:$0xff]
      %v5874 = vld [vmem:[%s387 + $0x30] sm:$0xff]
      %v5875 = vld [vmem:[%s387 + $0x38] sm:$0xff]
      %v5876 = vld [vmem:[%s387 + $0x40] sm:$0xff]
      %v5877 = vld [vmem:[%s387 + $0x48] sm:$0xff]
      %v5878 = vld [vmem:[%s387 + $0x50] sm:$0xff]
      %v5879 = vld [vmem:[%s387 + $0x58] sm:$0xff]
      %v5880 = vld [vmem:[%s387 + $0x60] sm:$0xff]
      %v5881 = vld [vmem:[%s387 + $0x68] sm:$0xff]
      %v5882 = vld [vmem:[%s387 + $0x70] sm:$0xff]
      %v5883 = vld [vmem:[%s387 + $0x78] sm:$0xff]
      %v5884 = vld [vmem:[%s387 + $0x80] sm:$0xff]
      %v5885 = vld [vmem:[%s387 + $0x88] sm:$0xff]
      %v5886 = vld [vmem:[%s387 + $0x90] sm:$0xff]
      %v5887 = vld [vmem:[%s387 + $0x98] sm:$0xff]
      %v5888 = vld [vmem:[%s387 + $0xa0] sm:$0xff]
      %v5889 = vld [vmem:[%s387 + $0xa8] sm:$0xff]
      %v5890 = vld [vmem:[%s387 + $0xb0] sm:$0xff]
      %v5891 = vld [vmem:[%s387 + $0xb8] sm:$0xff]
      %v5892 = vld [vmem:[%s387 + $0xc0] sm:$0xff]
      %v5893 = vld [vmem:[%s387 + $0xc8] sm:$0xff]
      %v5894 = vld [vmem:[%s387 + $0xd0] sm:$0xff]
      %v5895 = vld [vmem:[%s387 + $0xd8] sm:$0xff]
      %v5896 = vld [vmem:[%s387 + $0xe0] sm:$0xff]
      %v5897 = vld [vmem:[%s387 + $0xe8] sm:$0xff]
      %v5898 = vld [vmem:[%s387 + $0xf0] sm:$0xff]
      %v5899 = vld [vmem:[%s387 + $0xf8] sm:$0xff]
      %v5900 = vld [vmem:[%s387 + $0x100] sm:$0xff]
      %v5901 = vld [vmem:[%s387 + $0x108] sm:$0xff]
      %v5902 = vld [vmem:[%s387 + $0x110] sm:$0xff]
      %v5903 = vld [vmem:[%s387 + $0x118] sm:$0xff]
      %v5904 = vld [vmem:[%s387 + $0x120] sm:$0xff]
      %v5905 = vld [vmem:[%s387 + $0x128] sm:$0xff]
      %v5906 = vld [vmem:[%s387 + $0x130] sm:$0xff]
      %v5907 = vld [vmem:[%s387 + $0x138] sm:$0xff]
      %v5908 = vunpack.c.l.bf16 %v5868
      %v5909 = vunpack.c.h.bf16 %v5868
      %v5910 = vunpack.c.l.bf16 %v5869
      %v5911 = vunpack.c.h.bf16 %v5869
      %v5912 = vunpack.c.l.bf16 %v5870
      %v5913 = vunpack.c.h.bf16 %v5870
      %v5914 = vunpack.c.l.bf16 %v5871
      %v5915 = vunpack.c.h.bf16 %v5871
      %v5916 = vunpack.c.l.bf16 %v5872
      %v5917 = vunpack.c.h.bf16 %v5872
      %v5918 = vunpack.c.l.bf16 %v5873
      %v5919 = vunpack.c.h.bf16 %v5873
      %v5920 = vunpack.c.l.bf16 %v5874
      %v5921 = vunpack.c.h.bf16 %v5874
      %v5922 = vunpack.c.l.bf16 %v5875
      %v5923 = vunpack.c.h.bf16 %v5875
      %v5924 = vunpack.c.l.bf16 %v5876
      %v5925 = vunpack.c.h.bf16 %v5876
      %v5926 = vunpack.c.l.bf16 %v5877
      %v5927 = vunpack.c.h.bf16 %v5877
      %v5928 = vunpack.c.l.bf16 %v5878
      %v5929 = vunpack.c.h.bf16 %v5878
      %v5930 = vunpack.c.l.bf16 %v5879
      %v5931 = vunpack.c.h.bf16 %v5879
      %v5932 = vunpack.c.l.bf16 %v5880
      %v5933 = vunpack.c.h.bf16 %v5880
      %v5934 = vunpack.c.l.bf16 %v5881
      %v5935 = vunpack.c.h.bf16 %v5881
      %v5936 = vunpack.c.l.bf16 %v5882
      %v5937 = vunpack.c.h.bf16 %v5882
      %v5938 = vunpack.c.l.bf16 %v5883
      %v5939 = vunpack.c.h.bf16 %v5883
      %v5940 = vunpack.c.l.bf16 %v5884
      %v5941 = vunpack.c.h.bf16 %v5884
      %v5942 = vunpack.c.l.bf16 %v5885
      %v5943 = vunpack.c.h.bf16 %v5885
      %v5944 = vunpack.c.l.bf16 %v5886
      %v5945 = vunpack.c.h.bf16 %v5886
      %v5946 = vunpack.c.l.bf16 %v5887
      %v5947 = vunpack.c.h.bf16 %v5887
      %v5948 = vunpack.c.l.bf16 %v5888
      %v5949 = vunpack.c.h.bf16 %v5888
      %v5950 = vunpack.c.l.bf16 %v5889
      %v5951 = vunpack.c.h.bf16 %v5889
      %v5952 = vunpack.c.l.bf16 %v5890
      %v5953 = vunpack.c.h.bf16 %v5890
      %v5954 = vunpack.c.l.bf16 %v5891
      %v5955 = vunpack.c.h.bf16 %v5891
      %v5956 = vunpack.c.l.bf16 %v5892
      %v5957 = vunpack.c.h.bf16 %v5892
      %v5958 = vunpack.c.l.bf16 %v5893
      %v5959 = vunpack.c.h.bf16 %v5893
      %v5960 = vunpack.c.l.bf16 %v5894
      %v5961 = vunpack.c.h.bf16 %v5894
      %v5962 = vunpack.c.l.bf16 %v5895
      %v5963 = vunpack.c.h.bf16 %v5895
      %v5964 = vunpack.c.l.bf16 %v5896
      %v5965 = vunpack.c.h.bf16 %v5896
      %v5966 = vunpack.c.l.bf16 %v5897
      %v5967 = vunpack.c.h.bf16 %v5897
      %v5968 = vunpack.c.l.bf16 %v5898
      %v5969 = vunpack.c.h.bf16 %v5898
      %v5970 = vunpack.c.l.bf16 %v5899
      %v5971 = vunpack.c.h.bf16 %v5899
      %v5972 = vunpack.c.l.bf16 %v5900
      %v5973 = vunpack.c.h.bf16 %v5900
      %v5974 = vunpack.c.l.bf16 %v5901
      %v5975 = vunpack.c.h.bf16 %v5901
      %v5976 = vunpack.c.l.bf16 %v5902
      %v5977 = vunpack.c.h.bf16 %v5902
      %v5978 = vunpack.c.l.bf16 %v5903
      %v5979 = vunpack.c.h.bf16 %v5903
      %v5980 = vunpack.c.l.bf16 %v5904
      %v5981 = vunpack.c.h.bf16 %v5904
      %v5982 = vunpack.c.l.bf16 %v5905
      %v5983 = vunpack.c.h.bf16 %v5905
      %v5984 = vunpack.c.l.bf16 %v5906
      %v5985 = vunpack.c.h.bf16 %v5906
      %v5986 = vunpack.c.l.bf16 %v5907
      %v5987 = vunpack.c.h.bf16 %v5907
      %v5988 = vadd.f32 %v5908, %v5246
      %v5989 = vadd.f32 %v5909, %v5248
      %v5990 = vadd.f32 %v5910, %v5392
      %v5991 = vadd.f32 %v5911, %v5394
      %v5992 = vadd.f32 %v5912, %v5538
      %v5993 = vadd.f32 %v5913, %v5540
      %v5994 = vadd.f32 %v5914, %v5684
      %v5995 = vadd.f32 %v5915, %v5686
      %v5996 = vadd.f32 %v5916, %v5830
      %v5997 = vadd.f32 %v5917, %v5832
      %v5998 = vadd.f32 %v5918, %v5250
      %v5999 = vadd.f32 %v5919, %v5252
      %v6000 = vadd.f32 %v5920, %v5396
      %v6001 = vadd.f32 %v5921, %v5398
      %v6002 = vadd.f32 %v5922, %v5542
      %v6003 = vadd.f32 %v5923, %v5544
      %v6004 = vadd.f32 %v5924, %v5688
      %v6005 = vadd.f32 %v5925, %v5690
      %v6006 = vadd.f32 %v5926, %v5834
      %v6007 = vadd.f32 %v5927, %v5836
      %v6008 = vadd.f32 %v5928, %v5256
      %v6009 = vadd.f32 %v5929, %v5258
      %v6010 = vadd.f32 %v5930, %v5402
      %v6011 = vadd.f32 %v5931, %v5404
      %v6012 = vadd.f32 %v5932, %v5548
      %v6013 = vadd.f32 %v5933, %v5550
      %v6014 = vadd.f32 %v5934, %v5694
      %v6015 = vadd.f32 %v5935, %v5696
      %v6016 = vadd.f32 %v5936, %v5840
      %v6017 = vadd.f32 %v5937, %v5842
      %v6018 = vadd.f32 %v5938, %v5260
      %v6019 = vadd.f32 %v5939, %v5262
      %v6020 = vadd.f32 %v5940, %v5406
      %v6021 = vadd.f32 %v5941, %v5408
      %v6022 = vadd.f32 %v5942, %v5552
      %v6023 = vadd.f32 %v5943, %v5554
      %v6024 = vadd.f32 %v5944, %v5698
      %v6025 = vadd.f32 %v5945, %v5700
      %v6026 = vadd.f32 %v5946, %v5844
      %v6027 = vadd.f32 %v5947, %v5846
      %v6028 = vadd.f32 %v5948, %v5266
      %v6029 = vadd.f32 %v5949, %v5268
      %v6030 = vadd.f32 %v5950, %v5412
      %v6031 = vadd.f32 %v5951, %v5414
      %v6032 = vadd.f32 %v5952, %v5558
      %v6033 = vadd.f32 %v5953, %v5560
      %v6034 = vadd.f32 %v5954, %v5704
      %v6035 = vadd.f32 %v5955, %v5706
      %v6036 = vadd.f32 %v5956, %v5850
      %v6037 = vadd.f32 %v5957, %v5852
      %v6038 = vadd.f32 %v5958, %v5270
      %v6039 = vadd.f32 %v5959, %v5272
      %v6040 = vadd.f32 %v5960, %v5416
      %v6041 = vadd.f32 %v5961, %v5418
      %v6042 = vadd.f32 %v5962, %v5562
      %v6043 = vadd.f32 %v5963, %v5564
      %v6044 = vadd.f32 %v5964, %v5708
      %v6045 = vadd.f32 %v5965, %v5710
      %v6046 = vadd.f32 %v5966, %v5854
      %v6047 = vadd.f32 %v5967, %v5856
      %v6048 = vadd.f32 %v5968, %v5276
      %v6049 = vadd.f32 %v5969, %v5278
      %v6050 = vadd.f32 %v5970, %v5422
      %v6051 = vadd.f32 %v5971, %v5424
      %v6052 = vadd.f32 %v5972, %v5568
      %v6053 = vadd.f32 %v5973, %v5570
      %v6054 = vadd.f32 %v5974, %v5714
      %v6055 = vadd.f32 %v5975, %v5716
      %v6056 = vadd.f32 %v5976, %v5860
      %v6057 = vadd.f32 %v5977, %v5862
      %v6058 = vadd.f32 %v5978, %v5280
      %v6059 = vadd.f32 %v5979, %v5282
      %v6060 = vadd.f32 %v5980, %v5426
      %v6061 = vadd.f32 %v5981, %v5428
      %v6062 = vadd.f32 %v5982, %v5572
      %v6063 = vadd.f32 %v5983, %v5574
      %v6064 = vadd.f32 %v5984, %v5718
      %v6065 = vadd.f32 %v5985, %v5720
      %v6066 = vadd.f32 %v5986, %v5864
      %v6067 = vadd.f32 %v5987, %v5866
      %v6068 = vpack.c.bf16 %v5998, %v5988
      %v6069 = vpack.c.bf16 %v5999, %v5989
      %v6070 = vpack.c.bf16 %v6000, %v5990
      %v6071 = vpack.c.bf16 %v6001, %v5991
      %v6072 = vpack.c.bf16 %v6002, %v5992
      %v6073 = vpack.c.bf16 %v6003, %v5993
      %v6074 = vpack.c.bf16 %v6004, %v5994
      %v6075 = vpack.c.bf16 %v6005, %v5995
      %v6076 = vpack.c.bf16 %v6006, %v5996
      %v6077 = vpack.c.bf16 %v6007, %v5997
      %v6078 = vpack.c.bf16 %v6018, %v6008
      %v6079 = vpack.c.bf16 %v6019, %v6009
      %v6080 = vpack.c.bf16 %v6020, %v6010
      %v6081 = vpack.c.bf16 %v6021, %v6011
      %v6082 = vpack.c.bf16 %v6022, %v6012
      %v6083 = vpack.c.bf16 %v6023, %v6013
      %v6084 = vpack.c.bf16 %v6024, %v6014
      %v6085 = vpack.c.bf16 %v6025, %v6015
      %v6086 = vpack.c.bf16 %v6026, %v6016
      %v6087 = vpack.c.bf16 %v6027, %v6017
      %v6088 = vpack.c.bf16 %v6038, %v6028
      %v6089 = vpack.c.bf16 %v6039, %v6029
      %v6090 = vpack.c.bf16 %v6040, %v6030
      %v6091 = vpack.c.bf16 %v6041, %v6031
      %v6092 = vpack.c.bf16 %v6042, %v6032
      %v6093 = vpack.c.bf16 %v6043, %v6033
      %v6094 = vpack.c.bf16 %v6044, %v6034
      %v6095 = vpack.c.bf16 %v6045, %v6035
      %v6096 = vpack.c.bf16 %v6046, %v6036
      %v6097 = vpack.c.bf16 %v6047, %v6037
      %v6098 = vpack.c.bf16 %v6058, %v6048
      %v6099 = vpack.c.bf16 %v6059, %v6049
      %v6100 = vpack.c.bf16 %v6060, %v6050
      %v6101 = vpack.c.bf16 %v6061, %v6051
      %v6102 = vpack.c.bf16 %v6062, %v6052
      %v6103 = vpack.c.bf16 %v6063, %v6053
      %v6104 = vpack.c.bf16 %v6064, %v6054
      %v6105 = vpack.c.bf16 %v6065, %v6055
      %v6106 = vpack.c.bf16 %v6066, %v6056
      %v6107 = vpack.c.bf16 %v6067, %v6057
      %6108 = vst [vmem:[#allocation2 + $0x588] sm:$0xff] %v6068
      %6109 = vst [vmem:[#allocation2 + $0x590] sm:$0xff] %v6069
      %6110 = vst [vmem:[#allocation2 + $0x598] sm:$0xff] %v6070
      %6111 = vst [vmem:[#allocation2 + $0x5a0] sm:$0xff] %v6071
      %6112 = vst [vmem:[#allocation2 + $0x5a8] sm:$0xff] %v6072
      %6113 = vst [vmem:[#allocation2 + $0x5b0] sm:$0xff] %v6073
      %6114 = vst [vmem:[#allocation2 + $0x5b8] sm:$0xff] %v6074
      %6115 = vst [vmem:[#allocation2 + $0x5c0] sm:$0xff] %v6075
      %6116 = vst [vmem:[#allocation2 + $0x5c8] sm:$0xff] %v6076
      %vm6117 = vcmask 31744
      %6118 = vst.msk [vmem:[#allocation2 + $0x5d0] sm:$0xff] %vm6117, %v6077
      %6119 = vst [vmem:[#allocation2 + $0x5e0] sm:$0xff] %v6078
      %6120 = vst [vmem:[#allocation2 + $0x5e8] sm:$0xff] %v6079
      %6121 = vst [vmem:[#allocation2 + $0x5f0] sm:$0xff] %v6080
      %6122 = vst [vmem:[#allocation2 + $0x5f8] sm:$0xff] %v6081
      %6123 = vst [vmem:[#allocation2 + $0x600] sm:$0xff] %v6082
      %6124 = vst [vmem:[#allocation2 + $0x608] sm:$0xff] %v6083
      %6125 = vst [vmem:[#allocation2 + $0x610] sm:$0xff] %v6084
      %6126 = vst [vmem:[#allocation2 + $0x618] sm:$0xff] %v6085
      %6127 = vst [vmem:[#allocation2 + $0x620] sm:$0xff] %v6086
      %6128 = vst.msk [vmem:[#allocation2 + $0x628] sm:$0xff] %vm6117, %v6087
      %6129 = vst [vmem:[#allocation2 + $0x638] sm:$0xff] %v6088
      %6130 = vst [vmem:[#allocation2 + $0x640] sm:$0xff] %v6089
      %6131 = vst [vmem:[#allocation2 + $0x648] sm:$0xff] %v6090
      %6132 = vst [vmem:[#allocation2 + $0x650] sm:$0xff] %v6091
      %6133 = vst [vmem:[#allocation2 + $0x658] sm:$0xff] %v6092
      %6134 = vst [vmem:[#allocation2 + $0x660] sm:$0xff] %v6093
      %6135 = vst [vmem:[#allocation2 + $0x668] sm:$0xff] %v6094
      %6136 = vst [vmem:[#allocation2 + $0x670] sm:$0xff] %v6095
      %6137 = vst [vmem:[#allocation2 + $0x678] sm:$0xff] %v6096
      %6138 = vst.msk [vmem:[#allocation2 + $0x680] sm:$0xff] %vm6117, %v6097
      %6139 = vst [vmem:[#allocation2 + $0x690] sm:$0xff] %v6098
      %6140 = vst [vmem:[#allocation2 + $0x698] sm:$0xff] %v6099
      %6141 = vst [vmem:[#allocation2 + $0x6a0] sm:$0xff] %v6100
      %6142 = vst [vmem:[#allocation2 + $0x6a8] sm:$0xff] %v6101
      %6143 = vst [vmem:[#allocation2 + $0x6b0] sm:$0xff] %v6102
      %6144 = vst [vmem:[#allocation2 + $0x6b8] sm:$0xff] %v6103
      %6145 = vst [vmem:[#allocation2 + $0x6c0] sm:$0xff] %v6104
      %6146 = vst [vmem:[#allocation2 + $0x6c8] sm:$0xff] %v6105
      %6147 = vst [vmem:[#allocation2 + $0x6d0] sm:$0xff] %v6106
      %6148 = vst.msk [vmem:[#allocation2 + $0x6d8] sm:$0xff] %vm6117, %v6107
      %v6149 = vld [vmem:[#allocation2 + $0x580] sm:$0xff]
      %v6150 = vld [vmem:[#allocation2 + $0x588] sm:$0xff]
      %v6151 = vld [vmem:[#allocation2 + $0x590] sm:$0xff]
      %v6152 = vld [vmem:[#allocation2 + $0x598] sm:$0xff]
      %v6153 = vld [vmem:[#allocation2 + $0x5a0] sm:$0xff]
      %v6154 = vld [vmem:[#allocation2 + $0x5a8] sm:$0xff]
      %v6155 = vld [vmem:[#allocation2 + $0x5b0] sm:$0xff]
      %v6156 = vld [vmem:[#allocation2 + $0x5b8] sm:$0xff]
      %v6157 = vld [vmem:[#allocation2 + $0x5c0] sm:$0xff]
      %v6158 = vld [vmem:[#allocation2 + $0x5c8] sm:$0xff]
      %v6159 = vld [vmem:[#allocation2 + $0x5d8] sm:$0xff]
      %v6160 = vld [vmem:[#allocation2 + $0x5e0] sm:$0xff]
      %v6161 = vld [vmem:[#allocation2 + $0x5e8] sm:$0xff]
      %v6162 = vld [vmem:[#allocation2 + $0x5f0] sm:$0xff]
      %v6163 = vld [vmem:[#allocation2 + $0x5f8] sm:$0xff]
      %v6164 = vld [vmem:[#allocation2 + $0x600] sm:$0xff]
      %v6165 = vld [vmem:[#allocation2 + $0x608] sm:$0xff]
      %v6166 = vld [vmem:[#allocation2 + $0x610] sm:$0xff]
      %v6167 = vld [vmem:[#allocation2 + $0x618] sm:$0xff]
      %v6168 = vld [vmem:[#allocation2 + $0x620] sm:$0xff]
      %v6169 = vld [vmem:[#allocation2 + $0x630] sm:$0xff]
      %v6170 = vld [vmem:[#allocation2 + $0x638] sm:$0xff]
      %v6171 = vld [vmem:[#allocation2 + $0x640] sm:$0xff]
      %v6172 = vld [vmem:[#allocation2 + $0x648] sm:$0xff]
      %v6173 = vld [vmem:[#allocation2 + $0x650] sm:$0xff]
      %v6174 = vld [vmem:[#allocation2 + $0x658] sm:$0xff]
      %v6175 = vld [vmem:[#allocation2 + $0x660] sm:$0xff]
      %v6176 = vld [vmem:[#allocation2 + $0x668] sm:$0xff]
      %v6177 = vld [vmem:[#allocation2 + $0x670] sm:$0xff]
      %v6178 = vld [vmem:[#allocation2 + $0x678] sm:$0xff]
      %v6179 = vld [vmem:[#allocation2 + $0x688] sm:$0xff]
      %v6180 = vld [vmem:[#allocation2 + $0x690] sm:$0xff]
      %v6181 = vld [vmem:[#allocation2 + $0x698] sm:$0xff]
      %v6182 = vld [vmem:[#allocation2 + $0x6a0] sm:$0xff]
      %v6183 = vld [vmem:[#allocation2 + $0x6a8] sm:$0xff]
      %v6184 = vld [vmem:[#allocation2 + $0x6b0] sm:$0xff]
      %v6185 = vld [vmem:[#allocation2 + $0x6b8] sm:$0xff]
      %v6186 = vld [vmem:[#allocation2 + $0x6c0] sm:$0xff]
      %v6187 = vld [vmem:[#allocation2 + $0x6c8] sm:$0xff]
      %v6188 = vld [vmem:[#allocation2 + $0x6d0] sm:$0xff]
      %6229 = vrot.lane.b32.xlu0 %v6149, 35
      %v6230 = vpop.permute.xlu0 %6229
      %6231 = vrot.lane.b32.xlu0 %v6150, 35
      %v6232 = vpop.permute.xlu0 %6231
      %6233 = vrot.lane.b32.xlu0 %v6151, 35
      %v6234 = vpop.permute.xlu0 %6233
      %6235 = vrot.lane.b32.xlu0 %v6152, 35
      %v6236 = vpop.permute.xlu0 %6235
      %6237 = vrot.lane.b32.xlu0 %v6153, 35
      %v6238 = vpop.permute.xlu0 %6237
      %6239 = vrot.lane.b32.xlu0 %v6154, 35
      %v6240 = vpop.permute.xlu0 %6239
      %6241 = vrot.lane.b32.xlu0 %v6155, 35
      %v6242 = vpop.permute.xlu0 %6241
      %6243 = vrot.lane.b32.xlu0 %v6156, 35
      %v6244 = vpop.permute.xlu0 %6243
      %6245 = vrot.lane.b32.xlu0 %v6157, 35
      %v6246 = vpop.permute.xlu0 %6245
      %6247 = vrot.lane.b32.xlu0 %v6158, 35
      %v6248 = vpop.permute.xlu0 %6247
      %6249 = vrot.lane.b32.xlu0 %v6159, 35
      %v6250 = vpop.permute.xlu0 %6249
      %6251 = vrot.lane.b32.xlu0 %v6160, 35
      %v6252 = vpop.permute.xlu0 %6251
      %6253 = vrot.lane.b32.xlu0 %v6161, 35
      %v6254 = vpop.permute.xlu0 %6253
      %6255 = vrot.lane.b32.xlu0 %v6162, 35
      %v6256 = vpop.permute.xlu0 %6255
      %6257 = vrot.lane.b32.xlu0 %v6163, 35
      %v6258 = vpop.permute.xlu0 %6257
      %6259 = vrot.lane.b32.xlu0 %v6164, 35
      %v6260 = vpop.permute.xlu0 %6259
      %6261 = vrot.lane.b32.xlu0 %v6165, 35
      %v6262 = vpop.permute.xlu0 %6261
      %6263 = vrot.lane.b32.xlu0 %v6166, 35
      %v6264 = vpop.permute.xlu0 %6263
      %6265 = vrot.lane.b32.xlu0 %v6167, 35
      %v6266 = vpop.permute.xlu0 %6265
      %6267 = vrot.lane.b32.xlu0 %v6168, 35
      %v6268 = vpop.permute.xlu0 %6267
      %6269 = vrot.lane.b32.xlu0 %v6169, 35
      %v6270 = vpop.permute.xlu0 %6269
      %6271 = vrot.lane.b32.xlu0 %v6170, 35
      %v6272 = vpop.permute.xlu0 %6271
      %6273 = vrot.lane.b32.xlu0 %v6171, 35
      %v6274 = vpop.permute.xlu0 %6273
      %6275 = vrot.lane.b32.xlu0 %v6172, 35
      %v6276 = vpop.permute.xlu0 %6275
      %6277 = vrot.lane.b32.xlu0 %v6173, 35
      %v6278 = vpop.permute.xlu0 %6277
      %6279 = vrot.lane.b32.xlu0 %v6174, 35
      %v6280 = vpop.permute.xlu0 %6279
      %6281 = vrot.lane.b32.xlu0 %v6175, 35
      %v6282 = vpop.permute.xlu0 %6281
      %6283 = vrot.lane.b32.xlu0 %v6176, 35
      %v6284 = vpop.permute.xlu0 %6283
      %6285 = vrot.lane.b32.xlu0 %v6177, 35
      %v6286 = vpop.permute.xlu0 %6285
      %6287 = vrot.lane.b32.xlu0 %v6178, 35
      %v6288 = vpop.permute.xlu0 %6287
      %6289 = vrot.lane.b32.xlu0 %v6179, 35
      %v6290 = vpop.permute.xlu0 %6289
      %6291 = vrot.lane.b32.xlu0 %v6180, 35
      %v6292 = vpop.permute.xlu0 %6291
      %6293 = vrot.lane.b32.xlu0 %v6181, 35
      %v6294 = vpop.permute.xlu0 %6293
      %6295 = vrot.lane.b32.xlu0 %v6182, 35
      %v6296 = vpop.permute.xlu0 %6295
      %6297 = vrot.lane.b32.xlu0 %v6183, 35
      %v6298 = vpop.permute.xlu0 %6297
      %6299 = vrot.lane.b32.xlu0 %v6184, 35
      %v6300 = vpop.permute.xlu0 %6299
      %6301 = vrot.lane.b32.xlu0 %v6185, 35
      %v6302 = vpop.permute.xlu0 %6301
      %6303 = vrot.lane.b32.xlu0 %v6186, 35
      %v6304 = vpop.permute.xlu0 %6303
      %6305 = vrot.lane.b32.xlu0 %v6187, 35
      %v6306 = vpop.permute.xlu0 %6305
      %6307 = vrot.lane.b32.xlu0 %v6188, 35
      %v6308 = vpop.permute.xlu0 %6307
      %vm6309 = vcmask 285696
      %v6310 = vsel %vm6309, %v6230, %v6232
      %v6311 = vsel %vm6309, %v6232, %v6234
      %v6312 = vsel %vm6309, %v6234, %v6236
      %v6313 = vsel %vm6309, %v6236, %v6238
      %v6314 = vsel %vm6309, %v6238, %v6240
      %v6315 = vsel %vm6309, %v6240, %v6242
      %v6316 = vsel %vm6309, %v6242, %v6244
      %v6317 = vsel %vm6309, %v6244, %v6246
      %v6318 = vsel %vm6309, %v6246, %v6248
      %v6319 = vsel %vm6309, %v6250, %v6252
      %v6320 = vsel %vm6309, %v6252, %v6254
      %v6321 = vsel %vm6309, %v6254, %v6256
      %v6322 = vsel %vm6309, %v6256, %v6258
      %v6323 = vsel %vm6309, %v6258, %v6260
      %v6324 = vsel %vm6309, %v6260, %v6262
      %v6325 = vsel %vm6309, %v6262, %v6264
      %v6326 = vsel %vm6309, %v6264, %v6266
      %v6327 = vsel %vm6309, %v6266, %v6268
      %v6328 = vsel %vm6309, %v6270, %v6272
      %v6329 = vsel %vm6309, %v6272, %v6274
      %v6330 = vsel %vm6309, %v6274, %v6276
      %v6331 = vsel %vm6309, %v6276, %v6278
      %v6332 = vsel %vm6309, %v6278, %v6280
      %v6333 = vsel %vm6309, %v6280, %v6282
      %v6334 = vsel %vm6309, %v6282, %v6284
      %v6335 = vsel %vm6309, %v6284, %v6286
      %v6336 = vsel %vm6309, %v6286, %v6288
      %v6337 = vsel %vm6309, %v6290, %v6292
      %v6338 = vsel %vm6309, %v6292, %v6294
      %v6339 = vsel %vm6309, %v6294, %v6296
      %v6340 = vsel %vm6309, %v6296, %v6298
      %v6341 = vsel %vm6309, %v6298, %v6300
      %v6342 = vsel %vm6309, %v6300, %v6302
      %v6343 = vsel %vm6309, %v6302, %v6304
      %v6344 = vsel %vm6309, %v6304, %v6306
      %v6345 = vsel %vm6309, %v6306, %v6308
      %6386 = vst [vmem:[#allocation2 + $0x8] sm:$0xff] %v6310
      %6387 = vst [vmem:[#allocation2 + $0x10] sm:$0xff] %v6311
      %6388 = vst [vmem:[#allocation2 + $0x18] sm:$0xff] %v6312
      %6389 = vst [vmem:[#allocation2 + $0x20] sm:$0xff] %v6313
      %6390 = vst [vmem:[#allocation2 + $0x28] sm:$0xff] %v6314
      %6391 = vst [vmem:[#allocation2 + $0x30] sm:$0xff] %v6315
      %6392 = vst [vmem:[#allocation2 + $0x38] sm:$0xff] %v6316
      %6393 = vst [vmem:[#allocation2 + $0x40] sm:$0xff] %v6317
      %6394 = vst [vmem:[#allocation2 + $0x48] sm:$0xff] %v6318
      %6395 = vst.msk [vmem:[#allocation2 + $0x50] sm:$0xff] %vm6117, %v6248
      %6396 = vst [vmem:[#allocation2 + $0x60] sm:$0xff] %v6319
      %6397 = vst [vmem:[#allocation2 + $0x68] sm:$0xff] %v6320
      %6398 = vst [vmem:[#allocation2 + $0x70] sm:$0xff] %v6321
      %6399 = vst [vmem:[#allocation2 + $0x78] sm:$0xff] %v6322
      %6400 = vst [vmem:[#allocation2 + $0x80] sm:$0xff] %v6323
      %6401 = vst [vmem:[#allocation2 + $0x88] sm:$0xff] %v6324
      %6402 = vst [vmem:[#allocation2 + $0x90] sm:$0xff] %v6325
      %6403 = vst [vmem:[#allocation2 + $0x98] sm:$0xff] %v6326
      %6404 = vst [vmem:[#allocation2 + $0xa0] sm:$0xff] %v6327
      %6405 = vst.msk [vmem:[#allocation2 + $0xa8] sm:$0xff] %vm6117, %v6268
      %6406 = vst [vmem:[#allocation2 + $0xb8] sm:$0xff] %v6328
      %6407 = vst [vmem:[#allocation2 + $0xc0] sm:$0xff] %v6329
      %6408 = vst [vmem:[#allocation2 + $0xc8] sm:$0xff] %v6330
      %6409 = vst [vmem:[#allocation2 + $0xd0] sm:$0xff] %v6331
      %6410 = vst [vmem:[#allocation2 + $0xd8] sm:$0xff] %v6332
      %6411 = vst [vmem:[#allocation2 + $0xe0] sm:$0xff] %v6333
      %6412 = vst [vmem:[#allocation2 + $0xe8] sm:$0xff] %v6334
      %6413 = vst [vmem:[#allocation2 + $0xf0] sm:$0xff] %v6335
      %6414 = vst [vmem:[#allocation2 + $0xf8] sm:$0xff] %v6336
      %6415 = vst.msk [vmem:[#allocation2 + $0x100] sm:$0xff] %vm6117, %v6288
      %6416 = vst [vmem:[#allocation2 + $0x110] sm:$0xff] %v6337
      %6417 = vst [vmem:[#allocation2 + $0x118] sm:$0xff] %v6338
      %6418 = vst [vmem:[#allocation2 + $0x120] sm:$0xff] %v6339
      %6419 = vst [vmem:[#allocation2 + $0x128] sm:$0xff] %v6340
      %6420 = vst [vmem:[#allocation2 + $0x130] sm:$0xff] %v6341
      %6421 = vst [vmem:[#allocation2 + $0x138] sm:$0xff] %v6342
      %6422 = vst [vmem:[#allocation2 + $0x140] sm:$0xff] %v6343
      %6423 = vst [vmem:[#allocation2 + $0x148] sm:$0xff] %v6344
      %6424 = vst [vmem:[#allocation2 + $0x150] sm:$0xff] %v6345
      %6425 = vst.msk [vmem:[#allocation2 + $0x158] sm:$0xff] %vm6117, %v6308
      %v6426 = vld [vmem:[#allocation2 + $0x580] sm:$0xff]
      %v6427 = vld [vmem:[#allocation2 + $0x588] sm:$0xff]
      %v6428 = vld [vmem:[#allocation2 + $0x590] sm:$0xff]
      %v6429 = vld [vmem:[#allocation2 + $0x598] sm:$0xff]
      %v6430 = vld [vmem:[#allocation2 + $0x5a0] sm:$0xff]
      %v6431 = vld [vmem:[#allocation2 + $0x5a8] sm:$0xff]
      %v6432 = vld [vmem:[#allocation2 + $0x5b0] sm:$0xff]
      %v6433 = vld [vmem:[#allocation2 + $0x5b8] sm:$0xff]
      %v6434 = vld [vmem:[#allocation2 + $0x5c0] sm:$0xff]
      %v6435 = vld [vmem:[#allocation2 + $0x5c8] sm:$0xff]
      %v6436 = vld [vmem:[#allocation2 + $0x5d8] sm:$0xff]
      %v6437 = vld [vmem:[#allocation2 + $0x5e0] sm:$0xff]
      %v6438 = vld [vmem:[#allocation2 + $0x5e8] sm:$0xff]
      %v6439 = vld [vmem:[#allocation2 + $0x5f0] sm:$0xff]
      %v6440 = vld [vmem:[#allocation2 + $0x5f8] sm:$0xff]
      %v6441 = vld [vmem:[#allocation2 + $0x600] sm:$0xff]
      %v6442 = vld [vmem:[#allocation2 + $0x608] sm:$0xff]
      %v6443 = vld [vmem:[#allocation2 + $0x610] sm:$0xff]
      %v6444 = vld [vmem:[#allocation2 + $0x618] sm:$0xff]
      %v6445 = vld [vmem:[#allocation2 + $0x620] sm:$0xff]
      %v6446 = vld [vmem:[#allocation2 + $0x630] sm:$0xff]
      %v6447 = vld [vmem:[#allocation2 + $0x638] sm:$0xff]
      %v6448 = vld [vmem:[#allocation2 + $0x640] sm:$0xff]
      %v6449 = vld [vmem:[#allocation2 + $0x648] sm:$0xff]
      %v6450 = vld [vmem:[#allocation2 + $0x650] sm:$0xff]
      %v6451 = vld [vmem:[#allocation2 + $0x658] sm:$0xff]
      %v6452 = vld [vmem:[#allocation2 + $0x660] sm:$0xff]
      %v6453 = vld [vmem:[#allocation2 + $0x668] sm:$0xff]
      %v6454 = vld [vmem:[#allocation2 + $0x670] sm:$0xff]
      %v6455 = vld [vmem:[#allocation2 + $0x678] sm:$0xff]
      %v6456 = vld [vmem:[#allocation2 + $0x688] sm:$0xff]
      %v6457 = vld [vmem:[#allocation2 + $0x690] sm:$0xff]
      %v6458 = vld [vmem:[#allocation2 + $0x698] sm:$0xff]
      %v6459 = vld [vmem:[#allocation2 + $0x6a0] sm:$0xff]
      %v6460 = vld [vmem:[#allocation2 + $0x6a8] sm:$0xff]
      %v6461 = vld [vmem:[#allocation2 + $0x6b0] sm:$0xff]
      %v6462 = vld [vmem:[#allocation2 + $0x6b8] sm:$0xff]
      %v6463 = vld [vmem:[#allocation2 + $0x6c0] sm:$0xff]
      %v6464 = vld [vmem:[#allocation2 + $0x6c8] sm:$0xff]
      %v6465 = vld [vmem:[#allocation2 + $0x6d0] sm:$0xff]
      %6506 = vrot.lane.b32.xlu0 %v6426, 34
      %v6507 = vpop.permute.xlu0 %6506
      %6508 = vrot.lane.b32.xlu0 %v6427, 34
      %v6509 = vpop.permute.xlu0 %6508
      %6510 = vrot.lane.b32.xlu0 %v6428, 34
      %v6511 = vpop.permute.xlu0 %6510
      %6512 = vrot.lane.b32.xlu0 %v6429, 34
      %v6513 = vpop.permute.xlu0 %6512
      %6514 = vrot.lane.b32.xlu0 %v6430, 34
      %v6515 = vpop.permute.xlu0 %6514
      %6516 = vrot.lane.b32.xlu0 %v6431, 34
      %v6517 = vpop.permute.xlu0 %6516
      %6518 = vrot.lane.b32.xlu0 %v6432, 34
      %v6519 = vpop.permute.xlu0 %6518
      %6520 = vrot.lane.b32.xlu0 %v6433, 34
      %v6521 = vpop.permute.xlu0 %6520
      %6522 = vrot.lane.b32.xlu0 %v6434, 34
      %v6523 = vpop.permute.xlu0 %6522
      %6524 = vrot.lane.b32.xlu0 %v6435, 34
      %v6525 = vpop.permute.xlu0 %6524
      %6526 = vrot.lane.b32.xlu0 %v6436, 34
      %v6527 = vpop.permute.xlu0 %6526
      %6528 = vrot.lane.b32.xlu0 %v6437, 34
      %v6529 = vpop.permute.xlu0 %6528
      %6530 = vrot.lane.b32.xlu0 %v6438, 34
      %v6531 = vpop.permute.xlu0 %6530
      %6532 = vrot.lane.b32.xlu0 %v6439, 34
      %v6533 = vpop.permute.xlu0 %6532
      %6534 = vrot.lane.b32.xlu0 %v6440, 34
      %v6535 = vpop.permute.xlu0 %6534
      %6536 = vrot.lane.b32.xlu0 %v6441, 34
      %v6537 = vpop.permute.xlu0 %6536
      %6538 = vrot.lane.b32.xlu0 %v6442, 34
      %v6539 = vpop.permute.xlu0 %6538
      %6540 = vrot.lane.b32.xlu0 %v6443, 34
      %v6541 = vpop.permute.xlu0 %6540
      %6542 = vrot.lane.b32.xlu0 %v6444, 34
      %v6543 = vpop.permute.xlu0 %6542
      %6544 = vrot.lane.b32.xlu0 %v6445, 34
      %v6545 = vpop.permute.xlu0 %6544
      %6546 = vrot.lane.b32.xlu0 %v6446, 34
      %v6547 = vpop.permute.xlu0 %6546
      %6548 = vrot.lane.b32.xlu0 %v6447, 34
      %v6549 = vpop.permute.xlu0 %6548
      %6550 = vrot.lane.b32.xlu0 %v6448, 34
      %v6551 = vpop.permute.xlu0 %6550
      %6552 = vrot.lane.b32.xlu0 %v6449, 34
      %v6553 = vpop.permute.xlu0 %6552
      %6554 = vrot.lane.b32.xlu0 %v6450, 34
      %v6555 = vpop.permute.xlu0 %6554
      %6556 = vrot.lane.b32.xlu0 %v6451, 34
      %v6557 = vpop.permute.xlu0 %6556
      %6558 = vrot.lane.b32.xlu0 %v6452, 34
      %v6559 = vpop.permute.xlu0 %6558
      %6560 = vrot.lane.b32.xlu0 %v6453, 34
      %v6561 = vpop.permute.xlu0 %6560
      %6562 = vrot.lane.b32.xlu0 %v6454, 34
      %v6563 = vpop.permute.xlu0 %6562
      %6564 = vrot.lane.b32.xlu0 %v6455, 34
      %v6565 = vpop.permute.xlu0 %6564
      %6566 = vrot.lane.b32.xlu0 %v6456, 34
      %v6567 = vpop.permute.xlu0 %6566
      %6568 = vrot.lane.b32.xlu0 %v6457, 34
      %v6569 = vpop.permute.xlu0 %6568
      %6570 = vrot.lane.b32.xlu0 %v6458, 34
      %v6571 = vpop.permute.xlu0 %6570
      %6572 = vrot.lane.b32.xlu0 %v6459, 34
      %v6573 = vpop.permute.xlu0 %6572
      %6574 = vrot.lane.b32.xlu0 %v6460, 34
      %v6575 = vpop.permute.xlu0 %6574
      %6576 = vrot.lane.b32.xlu0 %v6461, 34
      %v6577 = vpop.permute.xlu0 %6576
      %6578 = vrot.lane.b32.xlu0 %v6462, 34
      %v6579 = vpop.permute.xlu0 %6578
      %6580 = vrot.lane.b32.xlu0 %v6463, 34
      %v6581 = vpop.permute.xlu0 %6580
      %6582 = vrot.lane.b32.xlu0 %v6464, 34
      %v6583 = vpop.permute.xlu0 %6582
      %6584 = vrot.lane.b32.xlu0 %v6465, 34
      %v6585 = vpop.permute.xlu0 %6584
      %vm6586 = vcmask 277504
      %v6587 = vsel %vm6586, %v6507, %v6509
      %v6588 = vsel %vm6586, %v6509, %v6511
      %v6589 = vsel %vm6586, %v6511, %v6513
      %v6590 = vsel %vm6586, %v6513, %v6515
      %v6591 = vsel %vm6586, %v6515, %v6517
      %v6592 = vsel %vm6586, %v6517, %v6519
      %v6593 = vsel %vm6586, %v6519, %v6521
      %v6594 = vsel %vm6586, %v6521, %v6523
      %v6595 = vsel %vm6586, %v6523, %v6525
      %v6596 = vsel %vm6586, %v6527, %v6529
      %v6597 = vsel %vm6586, %v6529, %v6531
      %v6598 = vsel %vm6586, %v6531, %v6533
      %v6599 = vsel %vm6586, %v6533, %v6535
      %v6600 = vsel %vm6586, %v6535, %v6537
      %v6601 = vsel %vm6586, %v6537, %v6539
      %v6602 = vsel %vm6586, %v6539, %v6541
      %v6603 = vsel %vm6586, %v6541, %v6543
      %v6604 = vsel %vm6586, %v6543, %v6545
      %v6605 = vsel %vm6586, %v6547, %v6549
      %v6606 = vsel %vm6586, %v6549, %v6551
      %v6607 = vsel %vm6586, %v6551, %v6553
      %v6608 = vsel %vm6586, %v6553, %v6555
      %v6609 = vsel %vm6586, %v6555, %v6557
      %v6610 = vsel %vm6586, %v6557, %v6559
      %v6611 = vsel %vm6586, %v6559, %v6561
      %v6612 = vsel %vm6586, %v6561, %v6563
      %v6613 = vsel %vm6586, %v6563, %v6565
      %v6614 = vsel %vm6586, %v6567, %v6569
      %v6615 = vsel %vm6586, %v6569, %v6571
      %v6616 = vsel %vm6586, %v6571, %v6573
      %v6617 = vsel %vm6586, %v6573, %v6575
      %v6618 = vsel %vm6586, %v6575, %v6577
      %v6619 = vsel %vm6586, %v6577, %v6579
      %v6620 = vsel %vm6586, %v6579, %v6581
      %v6621 = vsel %vm6586, %v6581, %v6583
      %v6622 = vsel %vm6586, %v6583, %v6585
      %6663 = vst [vmem:[#allocation2 + $0x168] sm:$0xff] %v6587
      %6664 = vst [vmem:[#allocation2 + $0x170] sm:$0xff] %v6588
      %6665 = vst [vmem:[#allocation2 + $0x178] sm:$0xff] %v6589
      %6666 = vst [vmem:[#allocation2 + $0x180] sm:$0xff] %v6590
      %6667 = vst [vmem:[#allocation2 + $0x188] sm:$0xff] %v6591
      %6668 = vst [vmem:[#allocation2 + $0x190] sm:$0xff] %v6592
      %6669 = vst [vmem:[#allocation2 + $0x198] sm:$0xff] %v6593
      %6670 = vst [vmem:[#allocation2 + $0x1a0] sm:$0xff] %v6594
      %6671 = vst [vmem:[#allocation2 + $0x1a8] sm:$0xff] %v6595
      %6672 = vst.msk [vmem:[#allocation2 + $0x1b0] sm:$0xff] %vm6117, %v6525
      %6673 = vst [vmem:[#allocation2 + $0x1c0] sm:$0xff] %v6596
      %6674 = vst [vmem:[#allocation2 + $0x1c8] sm:$0xff] %v6597
      %6675 = vst [vmem:[#allocation2 + $0x1d0] sm:$0xff] %v6598
      %6676 = vst [vmem:[#allocation2 + $0x1d8] sm:$0xff] %v6599
      %6677 = vst [vmem:[#allocation2 + $0x1e0] sm:$0xff] %v6600
      %6678 = vst [vmem:[#allocation2 + $0x1e8] sm:$0xff] %v6601
      %6679 = vst [vmem:[#allocation2 + $0x1f0] sm:$0xff] %v6602
      %6680 = vst [vmem:[#allocation2 + $0x1f8] sm:$0xff] %v6603
      %6681 = vst [vmem:[#allocation2 + $0x200] sm:$0xff] %v6604
      %6682 = vst.msk [vmem:[#allocation2 + $0x208] sm:$0xff] %vm6117, %v6545
      %6683 = vst [vmem:[#allocation2 + $0x218] sm:$0xff] %v6605
      %6684 = vst [vmem:[#allocation2 + $0x220] sm:$0xff] %v6606
      %6685 = vst [vmem:[#allocation2 + $0x228] sm:$0xff] %v6607
      %6686 = vst [vmem:[#allocation2 + $0x230] sm:$0xff] %v6608
      %6687 = vst [vmem:[#allocation2 + $0x238] sm:$0xff] %v6609
      %6688 = vst [vmem:[#allocation2 + $0x240] sm:$0xff] %v6610
      %6689 = vst [vmem:[#allocation2 + $0x248] sm:$0xff] %v6611
      %6690 = vst [vmem:[#allocation2 + $0x250] sm:$0xff] %v6612
      %6691 = vst [vmem:[#allocation2 + $0x258] sm:$0xff] %v6613
      %6692 = vst.msk [vmem:[#allocation2 + $0x260] sm:$0xff] %vm6117, %v6565
      %6693 = vst [vmem:[#allocation2 + $0x270] sm:$0xff] %v6614
      %6694 = vst [vmem:[#allocation2 + $0x278] sm:$0xff] %v6615
      %6695 = vst [vmem:[#allocation2 + $0x280] sm:$0xff] %v6616
      %6696 = vst [vmem:[#allocation2 + $0x288] sm:$0xff] %v6617
      %6697 = vst [vmem:[#allocation2 + $0x290] sm:$0xff] %v6618
      %6698 = vst [vmem:[#allocation2 + $0x298] sm:$0xff] %v6619
      %6699 = vst [vmem:[#allocation2 + $0x2a0] sm:$0xff] %v6620
      %6700 = vst [vmem:[#allocation2 + $0x2a8] sm:$0xff] %v6621
      %6701 = vst [vmem:[#allocation2 + $0x2b0] sm:$0xff] %v6622
      %6702 = vst.msk [vmem:[#allocation2 + $0x2b8] sm:$0xff] %vm6117, %v6585
      %v6703 = vld [vmem:[#allocation2 + $0x580] sm:$0xff]
      %v6704 = vld [vmem:[#allocation2 + $0x588] sm:$0xff]
      %v6705 = vld [vmem:[#allocation2 + $0x590] sm:$0xff]
      %v6706 = vld [vmem:[#allocation2 + $0x598] sm:$0xff]
      %v6707 = vld [vmem:[#allocation2 + $0x5a0] sm:$0xff]
      %v6708 = vld [vmem:[#allocation2 + $0x5a8] sm:$0xff]
      %v6709 = vld [vmem:[#allocation2 + $0x5b0] sm:$0xff]
      %v6710 = vld [vmem:[#allocation2 + $0x5b8] sm:$0xff]
      %v6711 = vld [vmem:[#allocation2 + $0x5c0] sm:$0xff]
      %v6712 = vld [vmem:[#allocation2 + $0x5c8] sm:$0xff]
      %v6713 = vld [vmem:[#allocation2 + $0x5d8] sm:$0xff]
      %v6714 = vld [vmem:[#allocation2 + $0x5e0] sm:$0xff]
      %v6715 = vld [vmem:[#allocation2 + $0x5e8] sm:$0xff]
      %v6716 = vld [vmem:[#allocation2 + $0x5f0] sm:$0xff]
      %v6717 = vld [vmem:[#allocation2 + $0x5f8] sm:$0xff]
      %v6718 = vld [vmem:[#allocation2 + $0x600] sm:$0xff]
      %v6719 = vld [vmem:[#allocation2 + $0x608] sm:$0xff]
      %v6720 = vld [vmem:[#allocation2 + $0x610] sm:$0xff]
      %v6721 = vld [vmem:[#allocation2 + $0x618] sm:$0xff]
      %v6722 = vld [vmem:[#allocation2 + $0x620] sm:$0xff]
      %v6723 = vld [vmem:[#allocation2 + $0x630] sm:$0xff]
      %v6724 = vld [vmem:[#allocation2 + $0x638] sm:$0xff]
      %v6725 = vld [vmem:[#allocation2 + $0x640] sm:$0xff]
      %v6726 = vld [vmem:[#allocation2 + $0x648] sm:$0xff]
      %v6727 = vld [vmem:[#allocation2 + $0x650] sm:$0xff]
      %v6728 = vld [vmem:[#allocation2 + $0x658] sm:$0xff]
      %v6729 = vld [vmem:[#allocation2 + $0x660] sm:$0xff]
      %v6730 = vld [vmem:[#allocation2 + $0x668] sm:$0xff]
      %v6731 = vld [vmem:[#allocation2 + $0x670] sm:$0xff]
      %v6732 = vld [vmem:[#allocation2 + $0x678] sm:$0xff]
      %v6733 = vld [vmem:[#allocation2 + $0x688] sm:$0xff]
      %v6734 = vld [vmem:[#allocation2 + $0x690] sm:$0xff]
      %v6735 = vld [vmem:[#allocation2 + $0x698] sm:$0xff]
      %v6736 = vld [vmem:[#allocation2 + $0x6a0] sm:$0xff]
      %v6737 = vld [vmem:[#allocation2 + $0x6a8] sm:$0xff]
      %v6738 = vld [vmem:[#allocation2 + $0x6b0] sm:$0xff]
      %v6739 = vld [vmem:[#allocation2 + $0x6b8] sm:$0xff]
      %v6740 = vld [vmem:[#allocation2 + $0x6c0] sm:$0xff]
      %v6741 = vld [vmem:[#allocation2 + $0x6c8] sm:$0xff]
      %v6742 = vld [vmem:[#allocation2 + $0x6d0] sm:$0xff]
      %6783 = vrot.lane.b32.xlu0 %v6703, 33
      %v6784 = vpop.permute.xlu0 %6783
      %6785 = vrot.lane.b32.xlu0 %v6704, 33
      %v6786 = vpop.permute.xlu0 %6785
      %6787 = vrot.lane.b32.xlu0 %v6705, 33
      %v6788 = vpop.permute.xlu0 %6787
      %6789 = vrot.lane.b32.xlu0 %v6706, 33
      %v6790 = vpop.permute.xlu0 %6789
      %6791 = vrot.lane.b32.xlu0 %v6707, 33
      %v6792 = vpop.permute.xlu0 %6791
      %6793 = vrot.lane.b32.xlu0 %v6708, 33
      %v6794 = vpop.permute.xlu0 %6793
      %6795 = vrot.lane.b32.xlu0 %v6709, 33
      %v6796 = vpop.permute.xlu0 %6795
      %6797 = vrot.lane.b32.xlu0 %v6710, 33
      %v6798 = vpop.permute.xlu0 %6797
      %6799 = vrot.lane.b32.xlu0 %v6711, 33
      %v6800 = vpop.permute.xlu0 %6799
      %6801 = vrot.lane.b32.xlu0 %v6712, 33
      %v6802 = vpop.permute.xlu0 %6801
      %6803 = vrot.lane.b32.xlu0 %v6713, 33
      %v6804 = vpop.permute.xlu0 %6803
      %6805 = vrot.lane.b32.xlu0 %v6714, 33
      %v6806 = vpop.permute.xlu0 %6805
      %6807 = vrot.lane.b32.xlu0 %v6715, 33
      %v6808 = vpop.permute.xlu0 %6807
      %6809 = vrot.lane.b32.xlu0 %v6716, 33
      %v6810 = vpop.permute.xlu0 %6809
      %6811 = vrot.lane.b32.xlu0 %v6717, 33
      %v6812 = vpop.permute.xlu0 %6811
      %6813 = vrot.lane.b32.xlu0 %v6718, 33
      %v6814 = vpop.permute.xlu0 %6813
      %6815 = vrot.lane.b32.xlu0 %v6719, 33
      %v6816 = vpop.permute.xlu0 %6815
      %6817 = vrot.lane.b32.xlu0 %v6720, 33
      %v6818 = vpop.permute.xlu0 %6817
      %6819 = vrot.lane.b32.xlu0 %v6721, 33
      %v6820 = vpop.permute.xlu0 %6819
      %6821 = vrot.lane.b32.xlu0 %v6722, 33
      %v6822 = vpop.permute.xlu0 %6821
      %6823 = vrot.lane.b32.xlu0 %v6723, 33
      %v6824 = vpop.permute.xlu0 %6823
      %6825 = vrot.lane.b32.xlu0 %v6724, 33
      %v6826 = vpop.permute.xlu0 %6825
      %6827 = vrot.lane.b32.xlu0 %v6725, 33
      %v6828 = vpop.permute.xlu0 %6827
      %6829 = vrot.lane.b32.xlu0 %v6726, 33
      %v6830 = vpop.permute.xlu0 %6829
      %6831 = vrot.lane.b32.xlu0 %v6727, 33
      %v6832 = vpop.permute.xlu0 %6831
      %6833 = vrot.lane.b32.xlu0 %v6728, 33
      %v6834 = vpop.permute.xlu0 %6833
      %6835 = vrot.lane.b32.xlu0 %v6729, 33
      %v6836 = vpop.permute.xlu0 %6835
      %6837 = vrot.lane.b32.xlu0 %v6730, 33
      %v6838 = vpop.permute.xlu0 %6837
      %6839 = vrot.lane.b32.xlu0 %v6731, 33
      %v6840 = vpop.permute.xlu0 %6839
      %6841 = vrot.lane.b32.xlu0 %v6732, 33
      %v6842 = vpop.permute.xlu0 %6841
      %6843 = vrot.lane.b32.xlu0 %v6733, 33
      %v6844 = vpop.permute.xlu0 %6843
      %6845 = vrot.lane.b32.xlu0 %v6734, 33
      %v6846 = vpop.permute.xlu0 %6845
      %6847 = vrot.lane.b32.xlu0 %v6735, 33
      %v6848 = vpop.permute.xlu0 %6847
      %6849 = vrot.lane.b32.xlu0 %v6736, 33
      %v6850 = vpop.permute.xlu0 %6849
      %6851 = vrot.lane.b32.xlu0 %v6737, 33
      %v6852 = vpop.permute.xlu0 %6851
      %6853 = vrot.lane.b32.xlu0 %v6738, 33
      %v6854 = vpop.permute.xlu0 %6853
      %6855 = vrot.lane.b32.xlu0 %v6739, 33
      %v6856 = vpop.permute.xlu0 %6855
      %6857 = vrot.lane.b32.xlu0 %v6740, 33
      %v6858 = vpop.permute.xlu0 %6857
      %6859 = vrot.lane.b32.xlu0 %v6741, 33
      %v6860 = vpop.permute.xlu0 %6859
      %6861 = vrot.lane.b32.xlu0 %v6742, 33
      %v6862 = vpop.permute.xlu0 %6861
      %vm6863 = vcmask 269312
      %v6864 = vsel %vm6863, %v6784, %v6786
      %v6865 = vsel %vm6863, %v6786, %v6788
      %v6866 = vsel %vm6863, %v6788, %v6790
      %v6867 = vsel %vm6863, %v6790, %v6792
      %v6868 = vsel %vm6863, %v6792, %v6794
      %v6869 = vsel %vm6863, %v6794, %v6796
      %v6870 = vsel %vm6863, %v6796, %v6798
      %v6871 = vsel %vm6863, %v6798, %v6800
      %v6872 = vsel %vm6863, %v6800, %v6802
      %v6873 = vsel %vm6863, %v6804, %v6806
      %v6874 = vsel %vm6863, %v6806, %v6808
      %v6875 = vsel %vm6863, %v6808, %v6810
      %v6876 = vsel %vm6863, %v6810, %v6812
      %v6877 = vsel %vm6863, %v6812, %v6814
      %v6878 = vsel %vm6863, %v6814, %v6816
      %v6879 = vsel %vm6863, %v6816, %v6818
      %v6880 = vsel %vm6863, %v6818, %v6820
      %v6881 = vsel %vm6863, %v6820, %v6822
      %v6882 = vsel %vm6863, %v6824, %v6826
      %v6883 = vsel %vm6863, %v6826, %v6828
      %v6884 = vsel %vm6863, %v6828, %v6830
      %v6885 = vsel %vm6863, %v6830, %v6832
      %v6886 = vsel %vm6863, %v6832, %v6834
      %v6887 = vsel %vm6863, %v6834, %v6836
      %v6888 = vsel %vm6863, %v6836, %v6838
      %v6889 = vsel %vm6863, %v6838, %v6840
      %v6890 = vsel %vm6863, %v6840, %v6842
      %v6891 = vsel %vm6863, %v6844, %v6846
      %v6892 = vsel %vm6863, %v6846, %v6848
      %v6893 = vsel %vm6863, %v6848, %v6850
      %v6894 = vsel %vm6863, %v6850, %v6852
      %v6895 = vsel %vm6863, %v6852, %v6854
      %v6896 = vsel %vm6863, %v6854, %v6856
      %v6897 = vsel %vm6863, %v6856, %v6858
      %v6898 = vsel %vm6863, %v6858, %v6860
      %v6899 = vsel %vm6863, %v6860, %v6862
      %6940 = vst [vmem:[#allocation2 + $0x2c8] sm:$0xff] %v6864
      %6941 = vst [vmem:[#allocation2 + $0x2d0] sm:$0xff] %v6865
      %6942 = vst [vmem:[#allocation2 + $0x2d8] sm:$0xff] %v6866
      %6943 = vst [vmem:[#allocation2 + $0x2e0] sm:$0xff] %v6867
      %6944 = vst [vmem:[#allocation2 + $0x2e8] sm:$0xff] %v6868
      %6945 = vst [vmem:[#allocation2 + $0x2f0] sm:$0xff] %v6869
      %6946 = vst [vmem:[#allocation2 + $0x2f8] sm:$0xff] %v6870
      %6947 = vst [vmem:[#allocation2 + $0x300] sm:$0xff] %v6871
      %6948 = vst [vmem:[#allocation2 + $0x308] sm:$0xff] %v6872
      %6949 = vst.msk [vmem:[#allocation2 + $0x310] sm:$0xff] %vm6117, %v6802
      %6950 = vst [vmem:[#allocation2 + $0x320] sm:$0xff] %v6873
      %6951 = vst [vmem:[#allocation2 + $0x328] sm:$0xff] %v6874
      %6952 = vst [vmem:[#allocation2 + $0x330] sm:$0xff] %v6875
      %6953 = vst [vmem:[#allocation2 + $0x338] sm:$0xff] %v6876
      %6954 = vst [vmem:[#allocation2 + $0x340] sm:$0xff] %v6877
      %6955 = vst [vmem:[#allocation2 + $0x348] sm:$0xff] %v6878
      %6956 = vst [vmem:[#allocation2 + $0x350] sm:$0xff] %v6879
      %6957 = vst [vmem:[#allocation2 + $0x358] sm:$0xff] %v6880
      %6958 = vst [vmem:[#allocation2 + $0x360] sm:$0xff] %v6881
      %6959 = vst.msk [vmem:[#allocation2 + $0x368] sm:$0xff] %vm6117, %v6822
      %6960 = vst [vmem:[#allocation2 + $0x378] sm:$0xff] %v6882
      %6961 = vst [vmem:[#allocation2 + $0x380] sm:$0xff] %v6883
      %6962 = vst [vmem:[#allocation2 + $0x388] sm:$0xff] %v6884
      %6963 = vst [vmem:[#allocation2 + $0x390] sm:$0xff] %v6885
      %6964 = vst [vmem:[#allocation2 + $0x398] sm:$0xff] %v6886
      %6965 = vst [vmem:[#allocation2 + $0x3a0] sm:$0xff] %v6887
      %6966 = vst [vmem:[#allocation2 + $0x3a8] sm:$0xff] %v6888
      %6967 = vst [vmem:[#allocation2 + $0x3b0] sm:$0xff] %v6889
      %6968 = vst [vmem:[#allocation2 + $0x3b8] sm:$0xff] %v6890
      %6969 = vst.msk [vmem:[#allocation2 + $0x3c0] sm:$0xff] %vm6117, %v6842
      %6970 = vst [vmem:[#allocation2 + $0x3d0] sm:$0xff] %v6891
      %6971 = vst [vmem:[#allocation2 + $0x3d8] sm:$0xff] %v6892
      %6972 = vst [vmem:[#allocation2 + $0x3e0] sm:$0xff] %v6893
      %6973 = vst [vmem:[#allocation2 + $0x3e8] sm:$0xff] %v6894
      %6974 = vst [vmem:[#allocation2 + $0x3f0] sm:$0xff] %v6895
      %6975 = vst [vmem:[#allocation2 + $0x3f8] sm:$0xff] %v6896
      %6976 = vst [vmem:[#allocation2 + $0x400] sm:$0xff] %v6897
      %6977 = vst [vmem:[#allocation2 + $0x408] sm:$0xff] %v6898
      %6978 = vst [vmem:[#allocation2 + $0x410] sm:$0xff] %v6899
      %6979 = vst.msk [vmem:[#allocation2 + $0x418] sm:$0xff] %vm6117, %v6862
      %v6980 = vld [vmem:[#allocation2 + $0x580] sm:$0xff]
      %v6981 = vld [vmem:[#allocation2 + $0x588] sm:$0xff]
      %v6982 = vld [vmem:[#allocation2 + $0x590] sm:$0xff]
      %v6983 = vld [vmem:[#allocation2 + $0x598] sm:$0xff]
      %v6984 = vld [vmem:[#allocation2 + $0x5a0] sm:$0xff]
      %v6985 = vld [vmem:[#allocation2 + $0x5a8] sm:$0xff]
      %v6986 = vld [vmem:[#allocation2 + $0x5b0] sm:$0xff]
      %v6987 = vld [vmem:[#allocation2 + $0x5b8] sm:$0xff]
      %v6988 = vld [vmem:[#allocation2 + $0x5c0] sm:$0xff]
      %v6989 = vld [vmem:[#allocation2 + $0x5c8] sm:$0xff]
      %v6990 = vld [vmem:[#allocation2 + $0x5d0] sm:$0xff]
      %v6991 = vld [vmem:[#allocation2 + $0x5d8] sm:$0xff]
      %v6992 = vld [vmem:[#allocation2 + $0x5e0] sm:$0xff]
      %v6993 = vld [vmem:[#allocation2 + $0x5e8] sm:$0xff]
      %v6994 = vld [vmem:[#allocation2 + $0x5f0] sm:$0xff]
      %v6995 = vld [vmem:[#allocation2 + $0x5f8] sm:$0xff]
      %v6996 = vld [vmem:[#allocation2 + $0x600] sm:$0xff]
      %v6997 = vld [vmem:[#allocation2 + $0x608] sm:$0xff]
      %v6998 = vld [vmem:[#allocation2 + $0x610] sm:$0xff]
      %v6999 = vld [vmem:[#allocation2 + $0x618] sm:$0xff]
      %v7000 = vld [vmem:[#allocation2 + $0x620] sm:$0xff]
      %v7001 = vld [vmem:[#allocation2 + $0x628] sm:$0xff]
      %v7002 = vld [vmem:[#allocation2 + $0x630] sm:$0xff]
      %v7003 = vld [vmem:[#allocation2 + $0x638] sm:$0xff]
      %v7004 = vld [vmem:[#allocation2 + $0x640] sm:$0xff]
      %v7005 = vld [vmem:[#allocation2 + $0x648] sm:$0xff]
      %v7006 = vld [vmem:[#allocation2 + $0x650] sm:$0xff]
      %v7007 = vld [vmem:[#allocation2 + $0x658] sm:$0xff]
      %v7008 = vld [vmem:[#allocation2 + $0x660] sm:$0xff]
      %v7009 = vld [vmem:[#allocation2 + $0x668] sm:$0xff]
      %v7010 = vld [vmem:[#allocation2 + $0x670] sm:$0xff]
      %v7011 = vld [vmem:[#allocation2 + $0x678] sm:$0xff]
      %v7012 = vld [vmem:[#allocation2 + $0x680] sm:$0xff]
      %v7013 = vld [vmem:[#allocation2 + $0x688] sm:$0xff]
      %v7014 = vld [vmem:[#allocation2 + $0x690] sm:$0xff]
      %v7015 = vld [vmem:[#allocation2 + $0x698] sm:$0xff]
      %v7016 = vld [vmem:[#allocation2 + $0x6a0] sm:$0xff]
      %v7017 = vld [vmem:[#allocation2 + $0x6a8] sm:$0xff]
      %v7018 = vld [vmem:[#allocation2 + $0x6b0] sm:$0xff]
      %v7019 = vld [vmem:[#allocation2 + $0x6b8] sm:$0xff]
      %v7020 = vld [vmem:[#allocation2 + $0x6c0] sm:$0xff]
      %v7021 = vld [vmem:[#allocation2 + $0x6c8] sm:$0xff]
      %v7022 = vld [vmem:[#allocation2 + $0x6d0] sm:$0xff]
      %v7023 = vld [vmem:[#allocation2 + $0x6d8] sm:$0xff]
      %7068 = vrot.lane.b32.xlu0 %v6980, 1
      %v7069 = vpop.permute.xlu0 %7068
      %7070 = vrot.lane.b32.xlu0 %v6981, 1
      %v7071 = vpop.permute.xlu0 %7070
      %7072 = vrot.lane.b32.xlu0 %v6982, 1
      %v7073 = vpop.permute.xlu0 %7072
      %7074 = vrot.lane.b32.xlu0 %v6983, 1
      %v7075 = vpop.permute.xlu0 %7074
      %7076 = vrot.lane.b32.xlu0 %v6984, 1
      %v7077 = vpop.permute.xlu0 %7076
      %7078 = vrot.lane.b32.xlu0 %v6985, 1
      %v7079 = vpop.permute.xlu0 %7078
      %7080 = vrot.lane.b32.xlu0 %v6986, 1
      %v7081 = vpop.permute.xlu0 %7080
      %7082 = vrot.lane.b32.xlu0 %v6987, 1
      %v7083 = vpop.permute.xlu0 %7082
      %7084 = vrot.lane.b32.xlu0 %v6988, 1
      %v7085 = vpop.permute.xlu0 %7084
      %7086 = vrot.lane.b32.xlu0 %v6989, 1
      %v7087 = vpop.permute.xlu0 %7086
      %7088 = vrot.lane.b32.xlu0 %v6990, 1
      %v7089 = vpop.permute.xlu0 %7088
      %7090 = vrot.lane.b32.xlu0 %v6991, 1
      %v7091 = vpop.permute.xlu0 %7090
      %7092 = vrot.lane.b32.xlu0 %v6992, 1
      %v7093 = vpop.permute.xlu0 %7092
      %7094 = vrot.lane.b32.xlu0 %v6993, 1
      %v7095 = vpop.permute.xlu0 %7094
      %7096 = vrot.lane.b32.xlu0 %v6994, 1
      %v7097 = vpop.permute.xlu0 %7096
      %7098 = vrot.lane.b32.xlu0 %v6995, 1
      %v7099 = vpop.permute.xlu0 %7098
      %7100 = vrot.lane.b32.xlu0 %v6996, 1
      %v7101 = vpop.permute.xlu0 %7100
      %7102 = vrot.lane.b32.xlu0 %v6997, 1
      %v7103 = vpop.permute.xlu0 %7102
      %7104 = vrot.lane.b32.xlu0 %v6998, 1
      %v7105 = vpop.permute.xlu0 %7104
      %7106 = vrot.lane.b32.xlu0 %v6999, 1
      %v7107 = vpop.permute.xlu0 %7106
      %7108 = vrot.lane.b32.xlu0 %v7000, 1
      %v7109 = vpop.permute.xlu0 %7108
      %7110 = vrot.lane.b32.xlu0 %v7001, 1
      %v7111 = vpop.permute.xlu0 %7110
      %7112 = vrot.lane.b32.xlu0 %v7002, 1
      %v7113 = vpop.permute.xlu0 %7112
      %7114 = vrot.lane.b32.xlu0 %v7003, 1
      %v7115 = vpop.permute.xlu0 %7114
      %7116 = vrot.lane.b32.xlu0 %v7004, 1
      %v7117 = vpop.permute.xlu0 %7116
      %7118 = vrot.lane.b32.xlu0 %v7005, 1
      %v7119 = vpop.permute.xlu0 %7118
      %7120 = vrot.lane.b32.xlu0 %v7006, 1
      %v7121 = vpop.permute.xlu0 %7120
      %7122 = vrot.lane.b32.xlu0 %v7007, 1
      %v7123 = vpop.permute.xlu0 %7122
      %7124 = vrot.lane.b32.xlu0 %v7008, 1
      %v7125 = vpop.permute.xlu0 %7124
      %7126 = vrot.lane.b32.xlu0 %v7009, 1
      %v7127 = vpop.permute.xlu0 %7126
      %7128 = vrot.lane.b32.xlu0 %v7010, 1
      %v7129 = vpop.permute.xlu0 %7128
      %7130 = vrot.lane.b32.xlu0 %v7011, 1
      %v7131 = vpop.permute.xlu0 %7130
      %7132 = vrot.lane.b32.xlu0 %v7012, 1
      %v7133 = vpop.permute.xlu0 %7132
      %7134 = vrot.lane.b32.xlu0 %v7013, 1
      %v7135 = vpop.permute.xlu0 %7134
      %7136 = vrot.lane.b32.xlu0 %v7014, 1
      %v7137 = vpop.permute.xlu0 %7136
      %7138 = vrot.lane.b32.xlu0 %v7015, 1
      %v7139 = vpop.permute.xlu0 %7138
      %7140 = vrot.lane.b32.xlu0 %v7016, 1
      %v7141 = vpop.permute.xlu0 %7140
      %7142 = vrot.lane.b32.xlu0 %v7017, 1
      %v7143 = vpop.permute.xlu0 %7142
      %7144 = vrot.lane.b32.xlu0 %v7018, 1
      %v7145 = vpop.permute.xlu0 %7144
      %7146 = vrot.lane.b32.xlu0 %v7019, 1
      %v7147 = vpop.permute.xlu0 %7146
      %7148 = vrot.lane.b32.xlu0 %v7020, 1
      %v7149 = vpop.permute.xlu0 %7148
      %7150 = vrot.lane.b32.xlu0 %v7021, 1
      %v7151 = vpop.permute.xlu0 %7150
      %7152 = vrot.lane.b32.xlu0 %v7022, 1
      %v7153 = vpop.permute.xlu0 %7152
      %7154 = vrot.lane.b32.xlu0 %v7023, 1
      %v7155 = vpop.permute.xlu0 %7154
      %v7156 = vsel %vm642, %v7069, %v7071
      %v7157 = vsel %vm642, %v7071, %v7073
      %v7158 = vsel %vm642, %v7073, %v7075
      %v7159 = vsel %vm642, %v7075, %v7077
      %v7160 = vsel %vm642, %v7077, %v7079
      %v7161 = vsel %vm642, %v7079, %v7081
      %v7162 = vsel %vm642, %v7081, %v7083
      %v7163 = vsel %vm642, %v7083, %v7085
      %v7164 = vsel %vm642, %v7085, %v7087
      %v7165 = vsel %vm642, %v7087, %v7089
      %v7166 = vsel %vm642, %v7091, %v7093
      %v7167 = vsel %vm642, %v7093, %v7095
      %v7168 = vsel %vm642, %v7095, %v7097
      %v7169 = vsel %vm642, %v7097, %v7099
      %v7170 = vsel %vm642, %v7099, %v7101
      %v7171 = vsel %vm642, %v7101, %v7103
      %v7172 = vsel %vm642, %v7103, %v7105
      %v7173 = vsel %vm642, %v7105, %v7107
      %v7174 = vsel %vm642, %v7107, %v7109
      %v7175 = vsel %vm642, %v7109, %v7111
      %v7176 = vsel %vm642, %v7113, %v7115
      %v7177 = vsel %vm642, %v7115, %v7117
      %v7178 = vsel %vm642, %v7117, %v7119
      %v7179 = vsel %vm642, %v7119, %v7121
      %v7180 = vsel %vm642, %v7121, %v7123
      %v7181 = vsel %vm642, %v7123, %v7125
      %v7182 = vsel %vm642, %v7125, %v7127
      %v7183 = vsel %vm642, %v7127, %v7129
      %v7184 = vsel %vm642, %v7129, %v7131
      %v7185 = vsel %vm642, %v7131, %v7133
      %v7186 = vsel %vm642, %v7135, %v7137
      %v7187 = vsel %vm642, %v7137, %v7139
      %v7188 = vsel %vm642, %v7139, %v7141
      %v7189 = vsel %vm642, %v7141, %v7143
      %v7190 = vsel %vm642, %v7143, %v7145
      %v7191 = vsel %vm642, %v7145, %v7147
      %v7192 = vsel %vm642, %v7147, %v7149
      %v7193 = vsel %vm642, %v7149, %v7151
      %v7194 = vsel %vm642, %v7151, %v7153
      %v7195 = vsel %vm642, %v7153, %v7155
      %7236 = vst [vmem:[#allocation2 + $0x428] sm:$0xff] %v7156
      %7237 = vst [vmem:[#allocation2 + $0x430] sm:$0xff] %v7157
      %7238 = vst [vmem:[#allocation2 + $0x438] sm:$0xff] %v7158
      %7239 = vst [vmem:[#allocation2 + $0x440] sm:$0xff] %v7159
      %7240 = vst [vmem:[#allocation2 + $0x448] sm:$0xff] %v7160
      %7241 = vst [vmem:[#allocation2 + $0x450] sm:$0xff] %v7161
      %7242 = vst [vmem:[#allocation2 + $0x458] sm:$0xff] %v7162
      %7243 = vst [vmem:[#allocation2 + $0x460] sm:$0xff] %v7163
      %7244 = vst [vmem:[#allocation2 + $0x468] sm:$0xff] %v7164
      %7245 = vst.msk [vmem:[#allocation2 + $0x470] sm:$0xff] %vm6117, %v7165
      %7246 = vst [vmem:[#allocation2 + $0x480] sm:$0xff] %v7166
      %7247 = vst [vmem:[#allocation2 + $0x488] sm:$0xff] %v7167
      %7248 = vst [vmem:[#allocation2 + $0x490] sm:$0xff] %v7168
      %7249 = vst [vmem:[#allocation2 + $0x498] sm:$0xff] %v7169
      %7250 = vst [vmem:[#allocation2 + $0x4a0] sm:$0xff] %v7170
      %7251 = vst [vmem:[#allocation2 + $0x4a8] sm:$0xff] %v7171
      %7252 = vst [vmem:[#allocation2 + $0x4b0] sm:$0xff] %v7172
      %7253 = vst [vmem:[#allocation2 + $0x4b8] sm:$0xff] %v7173
      %7254 = vst [vmem:[#allocation2 + $0x4c0] sm:$0xff] %v7174
      %7255 = vst.msk [vmem:[#allocation2 + $0x4c8] sm:$0xff] %vm6117, %v7175
      %7256 = vst [vmem:[#allocation2 + $0x4d8] sm:$0xff] %v7176
      %7257 = vst [vmem:[#allocation2 + $0x4e0] sm:$0xff] %v7177
      %7258 = vst [vmem:[#allocation2 + $0x4e8] sm:$0xff] %v7178
      %7259 = vst [vmem:[#allocation2 + $0x4f0] sm:$0xff] %v7179
      %7260 = vst [vmem:[#allocation2 + $0x4f8] sm:$0xff] %v7180
      %7261 = vst [vmem:[#allocation2 + $0x500] sm:$0xff] %v7181
      %7262 = vst [vmem:[#allocation2 + $0x508] sm:$0xff] %v7182
      %7263 = vst [vmem:[#allocation2 + $0x510] sm:$0xff] %v7183
      %7264 = vst [vmem:[#allocation2 + $0x518] sm:$0xff] %v7184
      %7265 = vst.msk [vmem:[#allocation2 + $0x520] sm:$0xff] %vm6117, %v7185
      %7266 = vst [vmem:[#allocation2 + $0x530] sm:$0xff] %v7186
      %7267 = vst [vmem:[#allocation2 + $0x538] sm:$0xff] %v7187
      %7268 = vst [vmem:[#allocation2 + $0x540] sm:$0xff] %v7188
      %7269 = vst [vmem:[#allocation2 + $0x548] sm:$0xff] %v7189
      %7270 = vst [vmem:[#allocation2 + $0x550] sm:$0xff] %v7190
      %7271 = vst [vmem:[#allocation2 + $0x558] sm:$0xff] %v7191
      %7272 = vst [vmem:[#allocation2 + $0x560] sm:$0xff] %v7192
      %7273 = vst [vmem:[#allocation2 + $0x568] sm:$0xff] %v7193
      %7274 = vst [vmem:[#allocation2 + $0x570] sm:$0xff] %v7194
      %7275 = vst.msk [vmem:[#allocation2 + $0x578] sm:$0xff] %vm6117, %v7195
      %v7276 = vld [vmem:[#allocation2 + $0x588] sm:$0xff]
      %v7277 = vld [vmem:[#allocation2 + $0x590] sm:$0xff]
      %v7278 = vld [vmem:[#allocation2 + $0x598] sm:$0xff]
      %v7279 = vld [vmem:[#allocation2 + $0x5a0] sm:$0xff]
      %v7280 = vld [vmem:[#allocation2 + $0x5a8] sm:$0xff]
      %v7281 = vld [vmem:[#allocation2 + $0x5b0] sm:$0xff]
      %v7282 = vld [vmem:[#allocation2 + $0x5b8] sm:$0xff]
      %v7283 = vld [vmem:[#allocation2 + $0x5c0] sm:$0xff]
      %v7284 = vld [vmem:[#allocation2 + $0x5c8] sm:$0xff]
      %v7285 = vld [vmem:[#allocation2 + $0x5d0] sm:$0xff]
      %v7286 = vld [vmem:[#allocation2 + $0x5e0] sm:$0xff]
      %v7287 = vld [vmem:[#allocation2 + $0x5e8] sm:$0xff]
      %v7288 = vld [vmem:[#allocation2 + $0x5f0] sm:$0xff]
      %v7289 = vld [vmem:[#allocation2 + $0x5f8] sm:$0xff]
      %v7290 = vld [vmem:[#allocation2 + $0x600] sm:$0xff]
      %v7291 = vld [vmem:[#allocation2 + $0x608] sm:$0xff]
      %v7292 = vld [vmem:[#allocation2 + $0x610] sm:$0xff]
      %v7293 = vld [vmem:[#allocation2 + $0x618] sm:$0xff]
      %v7294 = vld [vmem:[#allocation2 + $0x620] sm:$0xff]
      %v7295 = vld [vmem:[#allocation2 + $0x628] sm:$0xff]
      %v7296 = vld [vmem:[#allocation2 + $0x638] sm:$0xff]
      %v7297 = vld [vmem:[#allocation2 + $0x640] sm:$0xff]
      %v7298 = vld [vmem:[#allocation2 + $0x648] sm:$0xff]
      %v7299 = vld [vmem:[#allocation2 + $0x650] sm:$0xff]
      %v7300 = vld [vmem:[#allocation2 + $0x658] sm:$0xff]
      %v7301 = vld [vmem:[#allocation2 + $0x660] sm:$0xff]
      %v7302 = vld [vmem:[#allocation2 + $0x668] sm:$0xff]
      %v7303 = vld [vmem:[#allocation2 + $0x670] sm:$0xff]
      %v7304 = vld [vmem:[#allocation2 + $0x678] sm:$0xff]
      %v7305 = vld [vmem:[#allocation2 + $0x680] sm:$0xff]
      %v7306 = vld [vmem:[#allocation2 + $0x690] sm:$0xff]
      %v7307 = vld [vmem:[#allocation2 + $0x698] sm:$0xff]
      %v7308 = vld [vmem:[#allocation2 + $0x6a0] sm:$0xff]
      %v7309 = vld [vmem:[#allocation2 + $0x6a8] sm:$0xff]
      %v7310 = vld [vmem:[#allocation2 + $0x6b0] sm:$0xff]
      %v7311 = vld [vmem:[#allocation2 + $0x6b8] sm:$0xff]
      %v7312 = vld [vmem:[#allocation2 + $0x6c0] sm:$0xff]
      %v7313 = vld [vmem:[#allocation2 + $0x6c8] sm:$0xff]
      %v7314 = vld [vmem:[#allocation2 + $0x6d0] sm:$0xff]
      %v7315 = vld [vmem:[#allocation2 + $0x6d8] sm:$0xff]
      %7356 = vrot.lane.b32.xlu0 %v7276, 127
      %v7357 = vpop.permute.xlu0 %7356
      %7358 = vrot.lane.b32.xlu0 %v7277, 127
      %v7359 = vpop.permute.xlu0 %7358
      %7360 = vrot.lane.b32.xlu0 %v7278, 127
      %v7361 = vpop.permute.xlu0 %7360
      %7362 = vrot.lane.b32.xlu0 %v7279, 127
      %v7363 = vpop.permute.xlu0 %7362
      %7364 = vrot.lane.b32.xlu0 %v7280, 127
      %v7365 = vpop.permute.xlu0 %7364
      %7366 = vrot.lane.b32.xlu0 %v7281, 127
      %v7367 = vpop.permute.xlu0 %7366
      %7368 = vrot.lane.b32.xlu0 %v7282, 127
      %v7369 = vpop.permute.xlu0 %7368
      %7370 = vrot.lane.b32.xlu0 %v7283, 127
      %v7371 = vpop.permute.xlu0 %7370
      %7372 = vrot.lane.b32.xlu0 %v7284, 127
      %v7373 = vpop.permute.xlu0 %7372
      %7374 = vrot.lane.b32.xlu0 %v7285, 127
      %v7375 = vpop.permute.xlu0 %7374
      %7376 = vrot.lane.b32.xlu0 %v7286, 127
      %v7377 = vpop.permute.xlu0 %7376
      %7378 = vrot.lane.b32.xlu0 %v7287, 127
      %v7379 = vpop.permute.xlu0 %7378
      %7380 = vrot.lane.b32.xlu0 %v7288, 127
      %v7381 = vpop.permute.xlu0 %7380
      %7382 = vrot.lane.b32.xlu0 %v7289, 127
      %v7383 = vpop.permute.xlu0 %7382
      %7384 = vrot.lane.b32.xlu0 %v7290, 127
      %v7385 = vpop.permute.xlu0 %7384
      %7386 = vrot.lane.b32.xlu0 %v7291, 127
      %v7387 = vpop.permute.xlu0 %7386
      %7388 = vrot.lane.b32.xlu0 %v7292, 127
      %v7389 = vpop.permute.xlu0 %7388
      %7390 = vrot.lane.b32.xlu0 %v7293, 127
      %v7391 = vpop.permute.xlu0 %7390
      %7392 = vrot.lane.b32.xlu0 %v7294, 127
      %v7393 = vpop.permute.xlu0 %7392
      %7394 = vrot.lane.b32.xlu0 %v7295, 127
      %v7395 = vpop.permute.xlu0 %7394
      %7396 = vrot.lane.b32.xlu0 %v7296, 127
      %v7397 = vpop.permute.xlu0 %7396
      %7398 = vrot.lane.b32.xlu0 %v7297, 127
      %v7399 = vpop.permute.xlu0 %7398
      %7400 = vrot.lane.b32.xlu0 %v7298, 127
      %v7401 = vpop.permute.xlu0 %7400
      %7402 = vrot.lane.b32.xlu0 %v7299, 127
      %v7403 = vpop.permute.xlu0 %7402
      %7404 = vrot.lane.b32.xlu0 %v7300, 127
      %v7405 = vpop.permute.xlu0 %7404
      %7406 = vrot.lane.b32.xlu0 %v7301, 127
      %v7407 = vpop.permute.xlu0 %7406
      %7408 = vrot.lane.b32.xlu0 %v7302, 127
      %v7409 = vpop.permute.xlu0 %7408
      %7410 = vrot.lane.b32.xlu0 %v7303, 127
      %v7411 = vpop.permute.xlu0 %7410
      %7412 = vrot.lane.b32.xlu0 %v7304, 127
      %v7413 = vpop.permute.xlu0 %7412
      %7414 = vrot.lane.b32.xlu0 %v7305, 127
      %v7415 = vpop.permute.xlu0 %7414
      %7416 = vrot.lane.b32.xlu0 %v7306, 127
      %v7417 = vpop.permute.xlu0 %7416
      %7418 = vrot.lane.b32.xlu0 %v7307, 127
      %v7419 = vpop.permute.xlu0 %7418
      %7420 = vrot.lane.b32.xlu0 %v7308, 127
      %v7421 = vpop.permute.xlu0 %7420
      %7422 = vrot.lane.b32.xlu0 %v7309, 127
      %v7423 = vpop.permute.xlu0 %7422
      %7424 = vrot.lane.b32.xlu0 %v7310, 127
      %v7425 = vpop.permute.xlu0 %7424
      %7426 = vrot.lane.b32.xlu0 %v7311, 127
      %v7427 = vpop.permute.xlu0 %7426
      %7428 = vrot.lane.b32.xlu0 %v7312, 127
      %v7429 = vpop.permute.xlu0 %7428
      %7430 = vrot.lane.b32.xlu0 %v7313, 127
      %v7431 = vpop.permute.xlu0 %7430
      %7432 = vrot.lane.b32.xlu0 %v7314, 127
      %v7433 = vpop.permute.xlu0 %7432
      %7434 = vrot.lane.b32.xlu0 %v7315, 127
      %v7435 = vpop.permute.xlu0 %7434
      %v7436 = vsel %vm2846, %v7357, %v7359
      %v7437 = vsel %vm2846, %v7359, %v7361
      %v7438 = vsel %vm2846, %v7361, %v7363
      %v7439 = vsel %vm2846, %v7363, %v7365
      %v7440 = vsel %vm2846, %v7365, %v7367
      %v7441 = vsel %vm2846, %v7367, %v7369
      %v7442 = vsel %vm2846, %v7369, %v7371
      %v7443 = vsel %vm2846, %v7371, %v7373
      %v7444 = vsel %vm2846, %v7373, %v7375
      %v7445 = vsel %vm2846, %v7377, %v7379
      %v7446 = vsel %vm2846, %v7379, %v7381
      %v7447 = vsel %vm2846, %v7381, %v7383
      %v7448 = vsel %vm2846, %v7383, %v7385
      %v7449 = vsel %vm2846, %v7385, %v7387
      %v7450 = vsel %vm2846, %v7387, %v7389
      %v7451 = vsel %vm2846, %v7389, %v7391
      %v7452 = vsel %vm2846, %v7391, %v7393
      %v7453 = vsel %vm2846, %v7393, %v7395
      %v7454 = vsel %vm2846, %v7397, %v7399
      %v7455 = vsel %vm2846, %v7399, %v7401
      %v7456 = vsel %vm2846, %v7401, %v7403
      %v7457 = vsel %vm2846, %v7403, %v7405
      %v7458 = vsel %vm2846, %v7405, %v7407
      %v7459 = vsel %vm2846, %v7407, %v7409
      %v7460 = vsel %vm2846, %v7409, %v7411
      %v7461 = vsel %vm2846, %v7411, %v7413
      %v7462 = vsel %vm2846, %v7413, %v7415
      %v7463 = vsel %vm2846, %v7417, %v7419
      %v7464 = vsel %vm2846, %v7419, %v7421
      %v7465 = vsel %vm2846, %v7421, %v7423
      %v7466 = vsel %vm2846, %v7423, %v7425
      %v7467 = vsel %vm2846, %v7425, %v7427
      %v7468 = vsel %vm2846, %v7427, %v7429
      %v7469 = vsel %vm2846, %v7429, %v7431
      %v7470 = vsel %vm2846, %v7431, %v7433
      %v7471 = vsel %vm2846, %v7433, %v7435
      %7512 = vst [vmem:[#allocation2 + $0x6e8] sm:$0xff] %v7436
      %7513 = vst [vmem:[#allocation2 + $0x6f0] sm:$0xff] %v7437
      %7514 = vst [vmem:[#allocation2 + $0x6f8] sm:$0xff] %v7438
      %7515 = vst [vmem:[#allocation2 + $0x700] sm:$0xff] %v7439
      %7516 = vst [vmem:[#allocation2 + $0x708] sm:$0xff] %v7440
      %7517 = vst [vmem:[#allocation2 + $0x710] sm:$0xff] %v7441
      %7518 = vst [vmem:[#allocation2 + $0x718] sm:$0xff] %v7442
      %7519 = vst [vmem:[#allocation2 + $0x720] sm:$0xff] %v7443
      %7520 = vst [vmem:[#allocation2 + $0x728] sm:$0xff] %v7444
      %7521 = vst.msk [vmem:[#allocation2 + $0x730] sm:$0xff] %vm6117, %v7375
      %7522 = vst [vmem:[#allocation2 + $0x740] sm:$0xff] %v7445
      %7523 = vst [vmem:[#allocation2 + $0x748] sm:$0xff] %v7446
      %7524 = vst [vmem:[#allocation2 + $0x750] sm:$0xff] %v7447
      %7525 = vst [vmem:[#allocation2 + $0x758] sm:$0xff] %v7448
      %7526 = vst [vmem:[#allocation2 + $0x760] sm:$0xff] %v7449
      %7527 = vst [vmem:[#allocation2 + $0x768] sm:$0xff] %v7450
      %7528 = vst [vmem:[#allocation2 + $0x770] sm:$0xff] %v7451
      %7529 = vst [vmem:[#allocation2 + $0x778] sm:$0xff] %v7452
      %7530 = vst [vmem:[#allocation2 + $0x780] sm:$0xff] %v7453
      %7531 = vst.msk [vmem:[#allocation2 + $0x788] sm:$0xff] %vm6117, %v7395
      %7532 = vst [vmem:[#allocation2 + $0x798] sm:$0xff] %v7454
      %7533 = vst [vmem:[#allocation2 + $0x7a0] sm:$0xff] %v7455
      %7534 = vst [vmem:[#allocation2 + $0x7a8] sm:$0xff] %v7456
      %7535 = vst [vmem:[#allocation2 + $0x7b0] sm:$0xff] %v7457
      %7536 = vst [vmem:[#allocation2 + $0x7b8] sm:$0xff] %v7458
      %7537 = vst [vmem:[#allocation2 + $0x7c0] sm:$0xff] %v7459
      %7538 = vst [vmem:[#allocation2 + $0x7c8] sm:$0xff] %v7460
      %7539 = vst [vmem:[#allocation2 + $0x7d0] sm:$0xff] %v7461
      %7540 = vst [vmem:[#allocation2 + $0x7d8] sm:$0xff] %v7462
      %7541 = vst.msk [vmem:[#allocation2 + $0x7e0] sm:$0xff] %vm6117, %v7415
      %7542 = vst [vmem:[#allocation2 + $0x7f0] sm:$0xff] %v7463
      %7543 = vst [vmem:[#allocation2 + $0x7f8] sm:$0xff] %v7464
      %7544 = vst [vmem:[#allocation2 + $0x800] sm:$0xff] %v7465
      %7545 = vst [vmem:[#allocation2 + $0x808] sm:$0xff] %v7466
      %7546 = vst [vmem:[#allocation2 + $0x810] sm:$0xff] %v7467
      %7547 = vst [vmem:[#allocation2 + $0x818] sm:$0xff] %v7468
      %7548 = vst [vmem:[#allocation2 + $0x820] sm:$0xff] %v7469
      %7549 = vst [vmem:[#allocation2 + $0x828] sm:$0xff] %v7470
      %7550 = vst [vmem:[#allocation2 + $0x830] sm:$0xff] %v7471
      %7551 = vst.msk [vmem:[#allocation2 + $0x838] sm:$0xff] %vm6117, %v7435
      %v7552 = vld [vmem:[#allocation2 + $0x588] sm:$0xff]
      %v7553 = vld [vmem:[#allocation2 + $0x590] sm:$0xff]
      %v7554 = vld [vmem:[#allocation2 + $0x598] sm:$0xff]
      %v7555 = vld [vmem:[#allocation2 + $0x5a0] sm:$0xff]
      %v7556 = vld [vmem:[#allocation2 + $0x5a8] sm:$0xff]
      %v7557 = vld [vmem:[#allocation2 + $0x5b0] sm:$0xff]
      %v7558 = vld [vmem:[#allocation2 + $0x5b8] sm:$0xff]
      %v7559 = vld [vmem:[#allocation2 + $0x5c0] sm:$0xff]
      %v7560 = vld [vmem:[#allocation2 + $0x5c8] sm:$0xff]
      %v7561 = vld [vmem:[#allocation2 + $0x5d0] sm:$0xff]
      %v7562 = vld [vmem:[#allocation2 + $0x5e0] sm:$0xff]
      %v7563 = vld [vmem:[#allocation2 + $0x5e8] sm:$0xff]
      %v7564 = vld [vmem:[#allocation2 + $0x5f0] sm:$0xff]
      %v7565 = vld [vmem:[#allocation2 + $0x5f8] sm:$0xff]
      %v7566 = vld [vmem:[#allocation2 + $0x600] sm:$0xff]
      %v7567 = vld [vmem:[#allocation2 + $0x608] sm:$0xff]
      %v7568 = vld [vmem:[#allocation2 + $0x610] sm:$0xff]
      %v7569 = vld [vmem:[#allocation2 + $0x618] sm:$0xff]
      %v7570 = vld [vmem:[#allocation2 + $0x620] sm:$0xff]
      %v7571 = vld [vmem:[#allocation2 + $0x628] sm:$0xff]
      %v7572 = vld [vmem:[#allocation2 + $0x638] sm:$0xff]
      %v7573 = vld [vmem:[#allocation2 + $0x640] sm:$0xff]
      %v7574 = vld [vmem:[#allocation2 + $0x648] sm:$0xff]
      %v7575 = vld [vmem:[#allocation2 + $0x650] sm:$0xff]
      %v7576 = vld [vmem:[#allocation2 + $0x658] sm:$0xff]
      %v7577 = vld [vmem:[#allocation2 + $0x660] sm:$0xff]
      %v7578 = vld [vmem:[#allocation2 + $0x668] sm:$0xff]
      %v7579 = vld [vmem:[#allocation2 + $0x670] sm:$0xff]
      %v7580 = vld [vmem:[#allocation2 + $0x678] sm:$0xff]
      %v7581 = vld [vmem:[#allocation2 + $0x680] sm:$0xff]
      %v7582 = vld [vmem:[#allocation2 + $0x690] sm:$0xff]
      %v7583 = vld [vmem:[#allocation2 + $0x698] sm:$0xff]
      %v7584 = vld [vmem:[#allocation2 + $0x6a0] sm:$0xff]
      %v7585 = vld [vmem:[#allocation2 + $0x6a8] sm:$0xff]
      %v7586 = vld [vmem:[#allocation2 + $0x6b0] sm:$0xff]
      %v7587 = vld [vmem:[#allocation2 + $0x6b8] sm:$0xff]
      %v7588 = vld [vmem:[#allocation2 + $0x6c0] sm:$0xff]
      %v7589 = vld [vmem:[#allocation2 + $0x6c8] sm:$0xff]
      %v7590 = vld [vmem:[#allocation2 + $0x6d0] sm:$0xff]
      %v7591 = vld [vmem:[#allocation2 + $0x6d8] sm:$0xff]
      %7632 = vrot.lane.b32.xlu0 %v7552, 95
      %v7633 = vpop.permute.xlu0 %7632
      %7634 = vrot.lane.b32.xlu0 %v7553, 95
      %v7635 = vpop.permute.xlu0 %7634
      %7636 = vrot.lane.b32.xlu0 %v7554, 95
      %v7637 = vpop.permute.xlu0 %7636
      %7638 = vrot.lane.b32.xlu0 %v7555, 95
      %v7639 = vpop.permute.xlu0 %7638
      %7640 = vrot.lane.b32.xlu0 %v7556, 95
      %v7641 = vpop.permute.xlu0 %7640
      %7642 = vrot.lane.b32.xlu0 %v7557, 95
      %v7643 = vpop.permute.xlu0 %7642
      %7644 = vrot.lane.b32.xlu0 %v7558, 95
      %v7645 = vpop.permute.xlu0 %7644
      %7646 = vrot.lane.b32.xlu0 %v7559, 95
      %v7647 = vpop.permute.xlu0 %7646
      %7648 = vrot.lane.b32.xlu0 %v7560, 95
      %v7649 = vpop.permute.xlu0 %7648
      %7650 = vrot.lane.b32.xlu0 %v7561, 95
      %v7651 = vpop.permute.xlu0 %7650
      %7652 = vrot.lane.b32.xlu0 %v7562, 95
      %v7653 = vpop.permute.xlu0 %7652
      %7654 = vrot.lane.b32.xlu0 %v7563, 95
      %v7655 = vpop.permute.xlu0 %7654
      %7656 = vrot.lane.b32.xlu0 %v7564, 95
      %v7657 = vpop.permute.xlu0 %7656
      %7658 = vrot.lane.b32.xlu0 %v7565, 95
      %v7659 = vpop.permute.xlu0 %7658
      %7660 = vrot.lane.b32.xlu0 %v7566, 95
      %v7661 = vpop.permute.xlu0 %7660
      %7662 = vrot.lane.b32.xlu0 %v7567, 95
      %v7663 = vpop.permute.xlu0 %7662
      %7664 = vrot.lane.b32.xlu0 %v7568, 95
      %v7665 = vpop.permute.xlu0 %7664
      %7666 = vrot.lane.b32.xlu0 %v7569, 95
      %v7667 = vpop.permute.xlu0 %7666
      %7668 = vrot.lane.b32.xlu0 %v7570, 95
      %v7669 = vpop.permute.xlu0 %7668
      %7670 = vrot.lane.b32.xlu0 %v7571, 95
      %v7671 = vpop.permute.xlu0 %7670
      %7672 = vrot.lane.b32.xlu0 %v7572, 95
      %v7673 = vpop.permute.xlu0 %7672
      %7674 = vrot.lane.b32.xlu0 %v7573, 95
      %v7675 = vpop.permute.xlu0 %7674
      %7676 = vrot.lane.b32.xlu0 %v7574, 95
      %v7677 = vpop.permute.xlu0 %7676
      %7678 = vrot.lane.b32.xlu0 %v7575, 95
      %v7679 = vpop.permute.xlu0 %7678
      %7680 = vrot.lane.b32.xlu0 %v7576, 95
      %v7681 = vpop.permute.xlu0 %7680
      %7682 = vrot.lane.b32.xlu0 %v7577, 95
      %v7683 = vpop.permute.xlu0 %7682
      %7684 = vrot.lane.b32.xlu0 %v7578, 95
      %v7685 = vpop.permute.xlu0 %7684
      %7686 = vrot.lane.b32.xlu0 %v7579, 95
      %v7687 = vpop.permute.xlu0 %7686
      %7688 = vrot.lane.b32.xlu0 %v7580, 95
      %v7689 = vpop.permute.xlu0 %7688
      %7690 = vrot.lane.b32.xlu0 %v7581, 95
      %v7691 = vpop.permute.xlu0 %7690
      %7692 = vrot.lane.b32.xlu0 %v7582, 95
      %v7693 = vpop.permute.xlu0 %7692
      %7694 = vrot.lane.b32.xlu0 %v7583, 95
      %v7695 = vpop.permute.xlu0 %7694
      %7696 = vrot.lane.b32.xlu0 %v7584, 95
      %v7697 = vpop.permute.xlu0 %7696
      %7698 = vrot.lane.b32.xlu0 %v7585, 95
      %v7699 = vpop.permute.xlu0 %7698
      %7700 = vrot.lane.b32.xlu0 %v7586, 95
      %v7701 = vpop.permute.xlu0 %7700
      %7702 = vrot.lane.b32.xlu0 %v7587, 95
      %v7703 = vpop.permute.xlu0 %7702
      %7704 = vrot.lane.b32.xlu0 %v7588, 95
      %v7705 = vpop.permute.xlu0 %7704
      %7706 = vrot.lane.b32.xlu0 %v7589, 95
      %v7707 = vpop.permute.xlu0 %7706
      %7708 = vrot.lane.b32.xlu0 %v7590, 95
      %v7709 = vpop.permute.xlu0 %7708
      %7710 = vrot.lane.b32.xlu0 %v7591, 95
      %v7711 = vpop.permute.xlu0 %7710
      %vm7712 = vcmask 777216
      %v7713 = vsel %vm7712, %v7633, %v7635
      %v7714 = vsel %vm7712, %v7635, %v7637
      %v7715 = vsel %vm7712, %v7637, %v7639
      %v7716 = vsel %vm7712, %v7639, %v7641
      %v7717 = vsel %vm7712, %v7641, %v7643
      %v7718 = vsel %vm7712, %v7643, %v7645
      %v7719 = vsel %vm7712, %v7645, %v7647
      %v7720 = vsel %vm7712, %v7647, %v7649
      %v7721 = vsel %vm7712, %v7649, %v7651
      %v7722 = vsel %vm7712, %v7653, %v7655
      %v7723 = vsel %vm7712, %v7655, %v7657
      %v7724 = vsel %vm7712, %v7657, %v7659
      %v7725 = vsel %vm7712, %v7659, %v7661
      %v7726 = vsel %vm7712, %v7661, %v7663
      %v7727 = vsel %vm7712, %v7663, %v7665
      %v7728 = vsel %vm7712, %v7665, %v7667
      %v7729 = vsel %vm7712, %v7667, %v7669
      %v7730 = vsel %vm7712, %v7669, %v7671
      %v7731 = vsel %vm7712, %v7673, %v7675
      %v7732 = vsel %vm7712, %v7675, %v7677
      %v7733 = vsel %vm7712, %v7677, %v7679
      %v7734 = vsel %vm7712, %v7679, %v7681
      %v7735 = vsel %vm7712, %v7681, %v7683
      %v7736 = vsel %vm7712, %v7683, %v7685
      %v7737 = vsel %vm7712, %v7685, %v7687
      %v7738 = vsel %vm7712, %v7687, %v7689
      %v7739 = vsel %vm7712, %v7689, %v7691
      %v7740 = vsel %vm7712, %v7693, %v7695
      %v7741 = vsel %vm7712, %v7695, %v7697
      %v7742 = vsel %vm7712, %v7697, %v7699
      %v7743 = vsel %vm7712, %v7699, %v7701
      %v7744 = vsel %vm7712, %v7701, %v7703
      %v7745 = vsel %vm7712, %v7703, %v7705
      %v7746 = vsel %vm7712, %v7705, %v7707
      %v7747 = vsel %vm7712, %v7707, %v7709
      %v7748 = vsel %vm7712, %v7709, %v7711
      %7789 = vst [vmem:[#allocation2 + $0x848] sm:$0xff] %v7713
      %7790 = vst [vmem:[#allocation2 + $0x850] sm:$0xff] %v7714
      %7791 = vst [vmem:[#allocation2 + $0x858] sm:$0xff] %v7715
      %7792 = vst [vmem:[#allocation2 + $0x860] sm:$0xff] %v7716
      %7793 = vst [vmem:[#allocation2 + $0x868] sm:$0xff] %v7717
      %7794 = vst [vmem:[#allocation2 + $0x870] sm:$0xff] %v7718
      %7795 = vst [vmem:[#allocation2 + $0x878] sm:$0xff] %v7719
      %7796 = vst [vmem:[#allocation2 + $0x880] sm:$0xff] %v7720
      %7797 = vst [vmem:[#allocation2 + $0x888] sm:$0xff] %v7721
      %7798 = vst.msk [vmem:[#allocation2 + $0x890] sm:$0xff] %vm6117, %v7651
      %7799 = vst [vmem:[#allocation2 + $0x8a0] sm:$0xff] %v7722
      %7800 = vst [vmem:[#allocation2 + $0x8a8] sm:$0xff] %v7723
      %7801 = vst [vmem:[#allocation2 + $0x8b0] sm:$0xff] %v7724
      %7802 = vst [vmem:[#allocation2 + $0x8b8] sm:$0xff] %v7725
      %7803 = vst [vmem:[#allocation2 + $0x8c0] sm:$0xff] %v7726
      %7804 = vst [vmem:[#allocation2 + $0x8c8] sm:$0xff] %v7727
      %7805 = vst [vmem:[#allocation2 + $0x8d0] sm:$0xff] %v7728
      %7806 = vst [vmem:[#allocation2 + $0x8d8] sm:$0xff] %v7729
      %7807 = vst [vmem:[#allocation2 + $0x8e0] sm:$0xff] %v7730
      %7808 = vst.msk [vmem:[#allocation2 + $0x8e8] sm:$0xff] %vm6117, %v7671
      %7809 = vst [vmem:[#allocation2 + $0x8f8] sm:$0xff] %v7731
      %7810 = vst [vmem:[#allocation2 + $0x900] sm:$0xff] %v7732
      %7811 = vst [vmem:[#allocation2 + $0x908] sm:$0xff] %v7733
      %7812 = vst [vmem:[#allocation2 + $0x910] sm:$0xff] %v7734
      %7813 = vst [vmem:[#allocation2 + $0x918] sm:$0xff] %v7735
      %7814 = vst [vmem:[#allocation2 + $0x920] sm:$0xff] %v7736
      %7815 = vst [vmem:[#allocation2 + $0x928] sm:$0xff] %v7737
      %7816 = vst [vmem:[#allocation2 + $0x930] sm:$0xff] %v7738
      %7817 = vst [vmem:[#allocation2 + $0x938] sm:$0xff] %v7739
      %7818 = vst.msk [vmem:[#allocation2 + $0x940] sm:$0xff] %vm6117, %v7691
      %7819 = vst [vmem:[#allocation2 + $0x950] sm:$0xff] %v7740
      %7820 = vst [vmem:[#allocation2 + $0x958] sm:$0xff] %v7741
      %7821 = vst [vmem:[#allocation2 + $0x960] sm:$0xff] %v7742
      %7822 = vst [vmem:[#allocation2 + $0x968] sm:$0xff] %v7743
      %7823 = vst [vmem:[#allocation2 + $0x970] sm:$0xff] %v7744
      %7824 = vst [vmem:[#allocation2 + $0x978] sm:$0xff] %v7745
      %7825 = vst [vmem:[#allocation2 + $0x980] sm:$0xff] %v7746
      %7826 = vst [vmem:[#allocation2 + $0x988] sm:$0xff] %v7747
      %7827 = vst [vmem:[#allocation2 + $0x990] sm:$0xff] %v7748
      %7828 = vst.msk [vmem:[#allocation2 + $0x998] sm:$0xff] %vm6117, %v7711
      %v7829 = vld [vmem:[#allocation2 + $0x588] sm:$0xff]
      %v7830 = vld [vmem:[#allocation2 + $0x590] sm:$0xff]
      %v7831 = vld [vmem:[#allocation2 + $0x598] sm:$0xff]
      %v7832 = vld [vmem:[#allocation2 + $0x5a0] sm:$0xff]
      %v7833 = vld [vmem:[#allocation2 + $0x5a8] sm:$0xff]
      %v7834 = vld [vmem:[#allocation2 + $0x5b0] sm:$0xff]
      %v7835 = vld [vmem:[#allocation2 + $0x5b8] sm:$0xff]
      %v7836 = vld [vmem:[#allocation2 + $0x5c0] sm:$0xff]
      %v7837 = vld [vmem:[#allocation2 + $0x5c8] sm:$0xff]
      %v7838 = vld [vmem:[#allocation2 + $0x5d0] sm:$0xff]
      %v7839 = vld [vmem:[#allocation2 + $0x5e0] sm:$0xff]
      %v7840 = vld [vmem:[#allocation2 + $0x5e8] sm:$0xff]
      %v7841 = vld [vmem:[#allocation2 + $0x5f0] sm:$0xff]
      %v7842 = vld [vmem:[#allocation2 + $0x5f8] sm:$0xff]
      %v7843 = vld [vmem:[#allocation2 + $0x600] sm:$0xff]
      %v7844 = vld [vmem:[#allocation2 + $0x608] sm:$0xff]
      %v7845 = vld [vmem:[#allocation2 + $0x610] sm:$0xff]
      %v7846 = vld [vmem:[#allocation2 + $0x618] sm:$0xff]
      %v7847 = vld [vmem:[#allocation2 + $0x620] sm:$0xff]
      %v7848 = vld [vmem:[#allocation2 + $0x628] sm:$0xff]
      %v7849 = vld [vmem:[#allocation2 + $0x638] sm:$0xff]
      %v7850 = vld [vmem:[#allocation2 + $0x640] sm:$0xff]
      %v7851 = vld [vmem:[#allocation2 + $0x648] sm:$0xff]
      %v7852 = vld [vmem:[#allocation2 + $0x650] sm:$0xff]
      %v7853 = vld [vmem:[#allocation2 + $0x658] sm:$0xff]
      %v7854 = vld [vmem:[#allocation2 + $0x660] sm:$0xff]
      %v7855 = vld [vmem:[#allocation2 + $0x668] sm:$0xff]
      %v7856 = vld [vmem:[#allocation2 + $0x670] sm:$0xff]
      %v7857 = vld [vmem:[#allocation2 + $0x678] sm:$0xff]
      %v7858 = vld [vmem:[#allocation2 + $0x680] sm:$0xff]
      %v7859 = vld [vmem:[#allocation2 + $0x690] sm:$0xff]
      %v7860 = vld [vmem:[#allocation2 + $0x698] sm:$0xff]
      %v7861 = vld [vmem:[#allocation2 + $0x6a0] sm:$0xff]
      %v7862 = vld [vmem:[#allocation2 + $0x6a8] sm:$0xff]
      %v7863 = vld [vmem:[#allocation2 + $0x6b0] sm:$0xff]
      %v7864 = vld [vmem:[#allocation2 + $0x6b8] sm:$0xff]
      %v7865 = vld [vmem:[#allocation2 + $0x6c0] sm:$0xff]
      %v7866 = vld [vmem:[#allocation2 + $0x6c8] sm:$0xff]
      %v7867 = vld [vmem:[#allocation2 + $0x6d0] sm:$0xff]
      %v7868 = vld [vmem:[#allocation2 + $0x6d8] sm:$0xff]
      %7909 = vrot.lane.b32.xlu0 %v7829, 94
      %v7910 = vpop.permute.xlu0 %7909
      %7911 = vrot.lane.b32.xlu0 %v7830, 94
      %v7912 = vpop.permute.xlu0 %7911
      %7913 = vrot.lane.b32.xlu0 %v7831, 94
      %v7914 = vpop.permute.xlu0 %7913
      %7915 = vrot.lane.b32.xlu0 %v7832, 94
      %v7916 = vpop.permute.xlu0 %7915
      %7917 = vrot.lane.b32.xlu0 %v7833, 94
      %v7918 = vpop.permute.xlu0 %7917
      %7919 = vrot.lane.b32.xlu0 %v7834, 94
      %v7920 = vpop.permute.xlu0 %7919
      %7921 = vrot.lane.b32.xlu0 %v7835, 94
      %v7922 = vpop.permute.xlu0 %7921
      %7923 = vrot.lane.b32.xlu0 %v7836, 94
      %v7924 = vpop.permute.xlu0 %7923
      %7925 = vrot.lane.b32.xlu0 %v7837, 94
      %v7926 = vpop.permute.xlu0 %7925
      %7927 = vrot.lane.b32.xlu0 %v7838, 94
      %v7928 = vpop.permute.xlu0 %7927
      %7929 = vrot.lane.b32.xlu0 %v7839, 94
      %v7930 = vpop.permute.xlu0 %7929
      %7931 = vrot.lane.b32.xlu0 %v7840, 94
      %v7932 = vpop.permute.xlu0 %7931
      %7933 = vrot.lane.b32.xlu0 %v7841, 94
      %v7934 = vpop.permute.xlu0 %7933
      %7935 = vrot.lane.b32.xlu0 %v7842, 94
      %v7936 = vpop.permute.xlu0 %7935
      %7937 = vrot.lane.b32.xlu0 %v7843, 94
      %v7938 = vpop.permute.xlu0 %7937
      %7939 = vrot.lane.b32.xlu0 %v7844, 94
      %v7940 = vpop.permute.xlu0 %7939
      %7941 = vrot.lane.b32.xlu0 %v7845, 94
      %v7942 = vpop.permute.xlu0 %7941
      %7943 = vrot.lane.b32.xlu0 %v7846, 94
      %v7944 = vpop.permute.xlu0 %7943
      %7945 = vrot.lane.b32.xlu0 %v7847, 94
      %v7946 = vpop.permute.xlu0 %7945
      %7947 = vrot.lane.b32.xlu0 %v7848, 94
      %v7948 = vpop.permute.xlu0 %7947
      %7949 = vrot.lane.b32.xlu0 %v7849, 94
      %v7950 = vpop.permute.xlu0 %7949
      %7951 = vrot.lane.b32.xlu0 %v7850, 94
      %v7952 = vpop.permute.xlu0 %7951
      %7953 = vrot.lane.b32.xlu0 %v7851, 94
      %v7954 = vpop.permute.xlu0 %7953
      %7955 = vrot.lane.b32.xlu0 %v7852, 94
      %v7956 = vpop.permute.xlu0 %7955
      %7957 = vrot.lane.b32.xlu0 %v7853, 94
      %v7958 = vpop.permute.xlu0 %7957
      %7959 = vrot.lane.b32.xlu0 %v7854, 94
      %v7960 = vpop.permute.xlu0 %7959
      %7961 = vrot.lane.b32.xlu0 %v7855, 94
      %v7962 = vpop.permute.xlu0 %7961
      %7963 = vrot.lane.b32.xlu0 %v7856, 94
      %v7964 = vpop.permute.xlu0 %7963
      %7965 = vrot.lane.b32.xlu0 %v7857, 94
      %v7966 = vpop.permute.xlu0 %7965
      %7967 = vrot.lane.b32.xlu0 %v7858, 94
      %v7968 = vpop.permute.xlu0 %7967
      %7969 = vrot.lane.b32.xlu0 %v7859, 94
      %v7970 = vpop.permute.xlu0 %7969
      %7971 = vrot.lane.b32.xlu0 %v7860, 94
      %v7972 = vpop.permute.xlu0 %7971
      %7973 = vrot.lane.b32.xlu0 %v7861, 94
      %v7974 = vpop.permute.xlu0 %7973
      %7975 = vrot.lane.b32.xlu0 %v7862, 94
      %v7976 = vpop.permute.xlu0 %7975
      %7977 = vrot.lane.b32.xlu0 %v7863, 94
      %v7978 = vpop.permute.xlu0 %7977
      %7979 = vrot.lane.b32.xlu0 %v7864, 94
      %v7980 = vpop.permute.xlu0 %7979
      %7981 = vrot.lane.b32.xlu0 %v7865, 94
      %v7982 = vpop.permute.xlu0 %7981
      %7983 = vrot.lane.b32.xlu0 %v7866, 94
      %v7984 = vpop.permute.xlu0 %7983
      %7985 = vrot.lane.b32.xlu0 %v7867, 94
      %v7986 = vpop.permute.xlu0 %7985
      %7987 = vrot.lane.b32.xlu0 %v7868, 94
      %v7988 = vpop.permute.xlu0 %7987
      %vm7989 = vcmask 769024
      %v7990 = vsel %vm7989, %v7910, %v7912
      %v7991 = vsel %vm7989, %v7912, %v7914
      %v7992 = vsel %vm7989, %v7914, %v7916
      %v7993 = vsel %vm7989, %v7916, %v7918
      %v7994 = vsel %vm7989, %v7918, %v7920
      %v7995 = vsel %vm7989, %v7920, %v7922
      %v7996 = vsel %vm7989, %v7922, %v7924
      %v7997 = vsel %vm7989, %v7924, %v7926
      %v7998 = vsel %vm7989, %v7926, %v7928
      %v7999 = vsel %vm7989, %v7930, %v7932
      %v8000 = vsel %vm7989, %v7932, %v7934
      %v8001 = vsel %vm7989, %v7934, %v7936
      %v8002 = vsel %vm7989, %v7936, %v7938
      %v8003 = vsel %vm7989, %v7938, %v7940
      %v8004 = vsel %vm7989, %v7940, %v7942
      %v8005 = vsel %vm7989, %v7942, %v7944
      %v8006 = vsel %vm7989, %v7944, %v7946
      %v8007 = vsel %vm7989, %v7946, %v7948
      %v8008 = vsel %vm7989, %v7950, %v7952
      %v8009 = vsel %vm7989, %v7952, %v7954
      %v8010 = vsel %vm7989, %v7954, %v7956
      %v8011 = vsel %vm7989, %v7956, %v7958
      %v8012 = vsel %vm7989, %v7958, %v7960
      %v8013 = vsel %vm7989, %v7960, %v7962
      %v8014 = vsel %vm7989, %v7962, %v7964
      %v8015 = vsel %vm7989, %v7964, %v7966
      %v8016 = vsel %vm7989, %v7966, %v7968
      %v8017 = vsel %vm7989, %v7970, %v7972
      %v8018 = vsel %vm7989, %v7972, %v7974
      %v8019 = vsel %vm7989, %v7974, %v7976
      %v8020 = vsel %vm7989, %v7976, %v7978
      %v8021 = vsel %vm7989, %v7978, %v7980
      %v8022 = vsel %vm7989, %v7980, %v7982
      %v8023 = vsel %vm7989, %v7982, %v7984
      %v8024 = vsel %vm7989, %v7984, %v7986
      %v8025 = vsel %vm7989, %v7986, %v7988
      %8066 = vst [vmem:[#allocation2 + $0x9a8] sm:$0xff] %v7990
      %8067 = vst [vmem:[#allocation2 + $0x9b0] sm:$0xff] %v7991
      %8068 = vst [vmem:[#allocation2 + $0x9b8] sm:$0xff] %v7992
      %8069 = vst [vmem:[#allocation2 + $0x9c0] sm:$0xff] %v7993
      %8070 = vst [vmem:[#allocation2 + $0x9c8] sm:$0xff] %v7994
      %8071 = vst [vmem:[#allocation2 + $0x9d0] sm:$0xff] %v7995
      %8072 = vst [vmem:[#allocation2 + $0x9d8] sm:$0xff] %v7996
      %8073 = vst [vmem:[#allocation2 + $0x9e0] sm:$0xff] %v7997
      %8074 = vst [vmem:[#allocation2 + $0x9e8] sm:$0xff] %v7998
      %8075 = vst.msk [vmem:[#allocation2 + $0x9f0] sm:$0xff] %vm6117, %v7928
      %8076 = vst [vmem:[#allocation2 + $0xa00] sm:$0xff] %v7999
      %8077 = vst [vmem:[#allocation2 + $0xa08] sm:$0xff] %v8000
      %8078 = vst [vmem:[#allocation2 + $0xa10] sm:$0xff] %v8001
      %8079 = vst [vmem:[#allocation2 + $0xa18] sm:$0xff] %v8002
      %8080 = vst [vmem:[#allocation2 + $0xa20] sm:$0xff] %v8003
      %8081 = vst [vmem:[#allocation2 + $0xa28] sm:$0xff] %v8004
      %8082 = vst [vmem:[#allocation2 + $0xa30] sm:$0xff] %v8005
      %8083 = vst [vmem:[#allocation2 + $0xa38] sm:$0xff] %v8006
      %8084 = vst [vmem:[#allocation2 + $0xa40] sm:$0xff] %v8007
      %8085 = vst.msk [vmem:[#allocation2 + $0xa48] sm:$0xff] %vm6117, %v7948
      %8086 = vst [vmem:[#allocation2 + $0xa58] sm:$0xff] %v8008
      %8087 = vst [vmem:[#allocation2 + $0xa60] sm:$0xff] %v8009
      %8088 = vst [vmem:[#allocation2 + $0xa68] sm:$0xff] %v8010
      %8089 = vst [vmem:[#allocation2 + $0xa70] sm:$0xff] %v8011
      %8090 = vst [vmem:[#allocation2 + $0xa78] sm:$0xff] %v8012
      %8091 = vst [vmem:[#allocation2 + $0xa80] sm:$0xff] %v8013
      %8092 = vst [vmem:[#allocation2 + $0xa88] sm:$0xff] %v8014
      %8093 = vst [vmem:[#allocation2 + $0xa90] sm:$0xff] %v8015
      %8094 = vst [vmem:[#allocation2 + $0xa98] sm:$0xff] %v8016
      %8095 = vst.msk [vmem:[#allocation2 + $0xaa0] sm:$0xff] %vm6117, %v7968
      %8096 = vst [vmem:[#allocation2 + $0xab0] sm:$0xff] %v8017
      %8097 = vst [vmem:[#allocation2 + $0xab8] sm:$0xff] %v8018
      %8098 = vst [vmem:[#allocation2 + $0xac0] sm:$0xff] %v8019
      %8099 = vst [vmem:[#allocation2 + $0xac8] sm:$0xff] %v8020
      %8100 = vst [vmem:[#allocation2 + $0xad0] sm:$0xff] %v8021
      %8101 = vst [vmem:[#allocation2 + $0xad8] sm:$0xff] %v8022
      %8102 = vst [vmem:[#allocation2 + $0xae0] sm:$0xff] %v8023
      %8103 = vst [vmem:[#allocation2 + $0xae8] sm:$0xff] %v8024
      %8104 = vst [vmem:[#allocation2 + $0xaf0] sm:$0xff] %v8025
      %8105 = vst.msk [vmem:[#allocation2 + $0xaf8] sm:$0xff] %vm6117, %v7988
      %v8106 = vld [vmem:[#allocation2 + $0x588] sm:$0xff]
      %v8107 = vld [vmem:[#allocation2 + $0x590] sm:$0xff]
      %v8108 = vld [vmem:[#allocation2 + $0x598] sm:$0xff]
      %v8109 = vld [vmem:[#allocation2 + $0x5a0] sm:$0xff]
      %v8110 = vld [vmem:[#allocation2 + $0x5a8] sm:$0xff]
      %v8111 = vld [vmem:[#allocation2 + $0x5b0] sm:$0xff]
      %v8112 = vld [vmem:[#allocation2 + $0x5b8] sm:$0xff]
      %v8113 = vld [vmem:[#allocation2 + $0x5c0] sm:$0xff]
      %v8114 = vld [vmem:[#allocation2 + $0x5c8] sm:$0xff]
      %v8115 = vld [vmem:[#allocation2 + $0x5d0] sm:$0xff]
      %v8116 = vld [vmem:[#allocation2 + $0x5e0] sm:$0xff]
      %v8117 = vld [vmem:[#allocation2 + $0x5e8] sm:$0xff]
      %v8118 = vld [vmem:[#allocation2 + $0x5f0] sm:$0xff]
      %v8119 = vld [vmem:[#allocation2 + $0x5f8] sm:$0xff]
      %v8120 = vld [vmem:[#allocation2 + $0x600] sm:$0xff]
      %v8121 = vld [vmem:[#allocation2 + $0x608] sm:$0xff]
      %v8122 = vld [vmem:[#allocation2 + $0x610] sm:$0xff]
      %v8123 = vld [vmem:[#allocation2 + $0x618] sm:$0xff]
      %v8124 = vld [vmem:[#allocation2 + $0x620] sm:$0xff]
      %v8125 = vld [vmem:[#allocation2 + $0x628] sm:$0xff]
      %v8126 = vld [vmem:[#allocation2 + $0x638] sm:$0xff]
      %v8127 = vld [vmem:[#allocation2 + $0x640] sm:$0xff]
      %v8128 = vld [vmem:[#allocation2 + $0x648] sm:$0xff]
      %v8129 = vld [vmem:[#allocation2 + $0x650] sm:$0xff]
      %v8130 = vld [vmem:[#allocation2 + $0x658] sm:$0xff]
      %v8131 = vld [vmem:[#allocation2 + $0x660] sm:$0xff]
      %v8132 = vld [vmem:[#allocation2 + $0x668] sm:$0xff]
      %v8133 = vld [vmem:[#allocation2 + $0x670] sm:$0xff]
      %v8134 = vld [vmem:[#allocation2 + $0x678] sm:$0xff]
      %v8135 = vld [vmem:[#allocation2 + $0x680] sm:$0xff]
      %v8136 = vld [vmem:[#allocation2 + $0x690] sm:$0xff]
      %v8137 = vld [vmem:[#allocation2 + $0x698] sm:$0xff]
      %v8138 = vld [vmem:[#allocation2 + $0x6a0] sm:$0xff]
      %v8139 = vld [vmem:[#allocation2 + $0x6a8] sm:$0xff]
      %v8140 = vld [vmem:[#allocation2 + $0x6b0] sm:$0xff]
      %v8141 = vld [vmem:[#allocation2 + $0x6b8] sm:$0xff]
      %v8142 = vld [vmem:[#allocation2 + $0x6c0] sm:$0xff]
      %v8143 = vld [vmem:[#allocation2 + $0x6c8] sm:$0xff]
      %v8144 = vld [vmem:[#allocation2 + $0x6d0] sm:$0xff]
      %v8145 = vld [vmem:[#allocation2 + $0x6d8] sm:$0xff]
      %8186 = vrot.lane.b32.xlu0 %v8106, 93
      %v8187 = vpop.permute.xlu0 %8186
      %8188 = vrot.lane.b32.xlu0 %v8107, 93
      %v8189 = vpop.permute.xlu0 %8188
      %8190 = vrot.lane.b32.xlu0 %v8108, 93
      %v8191 = vpop.permute.xlu0 %8190
      %8192 = vrot.lane.b32.xlu0 %v8109, 93
      %v8193 = vpop.permute.xlu0 %8192
      %8194 = vrot.lane.b32.xlu0 %v8110, 93
      %v8195 = vpop.permute.xlu0 %8194
      %8196 = vrot.lane.b32.xlu0 %v8111, 93
      %v8197 = vpop.permute.xlu0 %8196
      %8198 = vrot.lane.b32.xlu0 %v8112, 93
      %v8199 = vpop.permute.xlu0 %8198
      %8200 = vrot.lane.b32.xlu0 %v8113, 93
      %v8201 = vpop.permute.xlu0 %8200
      %8202 = vrot.lane.b32.xlu0 %v8114, 93
      %v8203 = vpop.permute.xlu0 %8202
      %8204 = vrot.lane.b32.xlu0 %v8115, 93
      %v8205 = vpop.permute.xlu0 %8204
      %8206 = vrot.lane.b32.xlu0 %v8116, 93
      %v8207 = vpop.permute.xlu0 %8206
      %8208 = vrot.lane.b32.xlu0 %v8117, 93
      %v8209 = vpop.permute.xlu0 %8208
      %8210 = vrot.lane.b32.xlu0 %v8118, 93
      %v8211 = vpop.permute.xlu0 %8210
      %8212 = vrot.lane.b32.xlu0 %v8119, 93
      %v8213 = vpop.permute.xlu0 %8212
      %8214 = vrot.lane.b32.xlu0 %v8120, 93
      %v8215 = vpop.permute.xlu0 %8214
      %8216 = vrot.lane.b32.xlu0 %v8121, 93
      %v8217 = vpop.permute.xlu0 %8216
      %8218 = vrot.lane.b32.xlu0 %v8122, 93
      %v8219 = vpop.permute.xlu0 %8218
      %8220 = vrot.lane.b32.xlu0 %v8123, 93
      %v8221 = vpop.permute.xlu0 %8220
      %8222 = vrot.lane.b32.xlu0 %v8124, 93
      %v8223 = vpop.permute.xlu0 %8222
      %8224 = vrot.lane.b32.xlu0 %v8125, 93
      %v8225 = vpop.permute.xlu0 %8224
      %8226 = vrot.lane.b32.xlu0 %v8126, 93
      %v8227 = vpop.permute.xlu0 %8226
      %8228 = vrot.lane.b32.xlu0 %v8127, 93
      %v8229 = vpop.permute.xlu0 %8228
      %8230 = vrot.lane.b32.xlu0 %v8128, 93
      %v8231 = vpop.permute.xlu0 %8230
      %8232 = vrot.lane.b32.xlu0 %v8129, 93
      %v8233 = vpop.permute.xlu0 %8232
      %8234 = vrot.lane.b32.xlu0 %v8130, 93
      %v8235 = vpop.permute.xlu0 %8234
      %8236 = vrot.lane.b32.xlu0 %v8131, 93
      %v8237 = vpop.permute.xlu0 %8236
      %8238 = vrot.lane.b32.xlu0 %v8132, 93
      %v8239 = vpop.permute.xlu0 %8238
      %8240 = vrot.lane.b32.xlu0 %v8133, 93
      %v8241 = vpop.permute.xlu0 %8240
      %8242 = vrot.lane.b32.xlu0 %v8134, 93
      %v8243 = vpop.permute.xlu0 %8242
      %8244 = vrot.lane.b32.xlu0 %v8135, 93
      %v8245 = vpop.permute.xlu0 %8244
      %8246 = vrot.lane.b32.xlu0 %v8136, 93
      %v8247 = vpop.permute.xlu0 %8246
      %8248 = vrot.lane.b32.xlu0 %v8137, 93
      %v8249 = vpop.permute.xlu0 %8248
      %8250 = vrot.lane.b32.xlu0 %v8138, 93
      %v8251 = vpop.permute.xlu0 %8250
      %8252 = vrot.lane.b32.xlu0 %v8139, 93
      %v8253 = vpop.permute.xlu0 %8252
      %8254 = vrot.lane.b32.xlu0 %v8140, 93
      %v8255 = vpop.permute.xlu0 %8254
      %8256 = vrot.lane.b32.xlu0 %v8141, 93
      %v8257 = vpop.permute.xlu0 %8256
      %8258 = vrot.lane.b32.xlu0 %v8142, 93
      %v8259 = vpop.permute.xlu0 %8258
      %8260 = vrot.lane.b32.xlu0 %v8143, 93
      %v8261 = vpop.permute.xlu0 %8260
      %8262 = vrot.lane.b32.xlu0 %v8144, 93
      %v8263 = vpop.permute.xlu0 %8262
      %8264 = vrot.lane.b32.xlu0 %v8145, 93
      %v8265 = vpop.permute.xlu0 %8264
      %vm8266 = vcmask 760832
      %v8267 = vsel %vm8266, %v8187, %v8189
      %v8268 = vsel %vm8266, %v8189, %v8191
      %v8269 = vsel %vm8266, %v8191, %v8193
      %v8270 = vsel %vm8266, %v8193, %v8195
      %v8271 = vsel %vm8266, %v8195, %v8197
      %v8272 = vsel %vm8266, %v8197, %v8199
      %v8273 = vsel %vm8266, %v8199, %v8201
      %v8274 = vsel %vm8266, %v8201, %v8203
      %v8275 = vsel %vm8266, %v8203, %v8205
      %v8276 = vsel %vm8266, %v8207, %v8209
      %v8277 = vsel %vm8266, %v8209, %v8211
      %v8278 = vsel %vm8266, %v8211, %v8213
      %v8279 = vsel %vm8266, %v8213, %v8215
      %v8280 = vsel %vm8266, %v8215, %v8217
      %v8281 = vsel %vm8266, %v8217, %v8219
      %v8282 = vsel %vm8266, %v8219, %v8221
      %v8283 = vsel %vm8266, %v8221, %v8223
      %v8284 = vsel %vm8266, %v8223, %v8225
      %v8285 = vsel %vm8266, %v8227, %v8229
      %v8286 = vsel %vm8266, %v8229, %v8231
      %v8287 = vsel %vm8266, %v8231, %v8233
      %v8288 = vsel %vm8266, %v8233, %v8235
      %v8289 = vsel %vm8266, %v8235, %v8237
      %v8290 = vsel %vm8266, %v8237, %v8239
      %v8291 = vsel %vm8266, %v8239, %v8241
      %v8292 = vsel %vm8266, %v8241, %v8243
      %v8293 = vsel %vm8266, %v8243, %v8245
      %v8294 = vsel %vm8266, %v8247, %v8249
      %v8295 = vsel %vm8266, %v8249, %v8251
      %v8296 = vsel %vm8266, %v8251, %v8253
      %v8297 = vsel %vm8266, %v8253, %v8255
      %v8298 = vsel %vm8266, %v8255, %v8257
      %v8299 = vsel %vm8266, %v8257, %v8259
      %v8300 = vsel %vm8266, %v8259, %v8261
      %v8301 = vsel %vm8266, %v8261, %v8263
      %v8302 = vsel %vm8266, %v8263, %v8265
      %8343 = vst [vmem:[#allocation2 + $0xb08] sm:$0xff] %v8267
      %8344 = vst [vmem:[#allocation2 + $0xb10] sm:$0xff] %v8268
      %8345 = vst [vmem:[#allocation2 + $0xb18] sm:$0xff] %v8269
      %8346 = vst [vmem:[#allocation2 + $0xb20] sm:$0xff] %v8270
      %8347 = vst [vmem:[#allocation2 + $0xb28] sm:$0xff] %v8271
      %8348 = vst [vmem:[#allocation2 + $0xb30] sm:$0xff] %v8272
      %8349 = vst [vmem:[#allocation2 + $0xb38] sm:$0xff] %v8273
      %8350 = vst [vmem:[#allocation2 + $0xb40] sm:$0xff] %v8274
      %8351 = vst [vmem:[#allocation2 + $0xb48] sm:$0xff] %v8275
      %8352 = vst.msk [vmem:[#allocation2 + $0xb50] sm:$0xff] %vm6117, %v8205
      %8353 = vst [vmem:[#allocation2 + $0xb60] sm:$0xff] %v8276
      %8354 = vst [vmem:[#allocation2 + $0xb68] sm:$0xff] %v8277
      %8355 = vst [vmem:[#allocation2 + $0xb70] sm:$0xff] %v8278
      %8356 = vst [vmem:[#allocation2 + $0xb78] sm:$0xff] %v8279
      %8357 = vst [vmem:[#allocation2 + $0xb80] sm:$0xff] %v8280
      %8358 = vst [vmem:[#allocation2 + $0xb88] sm:$0xff] %v8281
      %8359 = vst [vmem:[#allocation2 + $0xb90] sm:$0xff] %v8282
      %8360 = vst [vmem:[#allocation2 + $0xb98] sm:$0xff] %v8283
      %8361 = vst [vmem:[#allocation2 + $0xba0] sm:$0xff] %v8284
      %8362 = vst.msk [vmem:[#allocation2 + $0xba8] sm:$0xff] %vm6117, %v8225
      %8363 = vst [vmem:[#allocation2 + $0xbb8] sm:$0xff] %v8285
      %8364 = vst [vmem:[#allocation2 + $0xbc0] sm:$0xff] %v8286
      %8365 = vst [vmem:[#allocation2 + $0xbc8] sm:$0xff] %v8287
      %8366 = vst [vmem:[#allocation2 + $0xbd0] sm:$0xff] %v8288
      %8367 = vst [vmem:[#allocation2 + $0xbd8] sm:$0xff] %v8289
      %8368 = vst [vmem:[#allocation2 + $0xbe0] sm:$0xff] %v8290
      %8369 = vst [vmem:[#allocation2 + $0xbe8] sm:$0xff] %v8291
      %8370 = vst [vmem:[#allocation2 + $0xbf0] sm:$0xff] %v8292
      %8371 = vst [vmem:[#allocation2 + $0xbf8] sm:$0xff] %v8293
      %8372 = vst.msk [vmem:[#allocation2 + $0xc00] sm:$0xff] %vm6117, %v8245
      %8373 = vst [vmem:[#allocation2 + $0xc10] sm:$0xff] %v8294
      %8374 = vst [vmem:[#allocation2 + $0xc18] sm:$0xff] %v8295
      %8375 = vst [vmem:[#allocation2 + $0xc20] sm:$0xff] %v8296
      %8376 = vst [vmem:[#allocation2 + $0xc28] sm:$0xff] %v8297
      %8377 = vst [vmem:[#allocation2 + $0xc30] sm:$0xff] %v8298
      %8378 = vst [vmem:[#allocation2 + $0xc38] sm:$0xff] %v8299
      %8379 = vst [vmem:[#allocation2 + $0xc40] sm:$0xff] %v8300
      %8380 = vst [vmem:[#allocation2 + $0xc48] sm:$0xff] %v8301
      %8381 = vst [vmem:[#allocation2 + $0xc50] sm:$0xff] %v8302
      %8382 = vst.msk [vmem:[#allocation2 + $0xc58] sm:$0xff] %vm6117, %v8265
      %v8383 = vld [vmem:[#allocation2 + $0x8] sm:$0xff]
      %v8384 = vld [vmem:[#allocation2 + $0x10] sm:$0xff]
      %v8385 = vld [vmem:[#allocation2 + $0x18] sm:$0xff]
      %v8386 = vld [vmem:[#allocation2 + $0x20] sm:$0xff]
      %v8387 = vld [vmem:[#allocation2 + $0x28] sm:$0xff]
      %v8388 = vld [vmem:[#allocation2 + $0x30] sm:$0xff]
      %v8389 = vld [vmem:[#allocation2 + $0x38] sm:$0xff]
      %v8390 = vld [vmem:[#allocation2 + $0x40] sm:$0xff]
      %v8391 = vld [vmem:[#allocation2 + $0x48] sm:$0xff]
      %v8392 = vld [vmem:[#allocation2 + $0x50] sm:$0xff]
      %v8393 = vld [vmem:[#allocation2 + $0x60] sm:$0xff]
      %v8394 = vld [vmem:[#allocation2 + $0x68] sm:$0xff]
      %v8395 = vld [vmem:[#allocation2 + $0x70] sm:$0xff]
      %v8396 = vld [vmem:[#allocation2 + $0x78] sm:$0xff]
      %v8397 = vld [vmem:[#allocation2 + $0x80] sm:$0xff]
      %v8398 = vld [vmem:[#allocation2 + $0x88] sm:$0xff]
      %v8399 = vld [vmem:[#allocation2 + $0x90] sm:$0xff]
      %v8400 = vld [vmem:[#allocation2 + $0x98] sm:$0xff]
      %v8401 = vld [vmem:[#allocation2 + $0xa0] sm:$0xff]
      %v8402 = vld [vmem:[#allocation2 + $0xa8] sm:$0xff]
      %v8403 = vld [vmem:[#allocation2 + $0xb8] sm:$0xff]
      %v8404 = vld [vmem:[#allocation2 + $0xc0] sm:$0xff]
      %v8405 = vld [vmem:[#allocation2 + $0xc8] sm:$0xff]
      %v8406 = vld [vmem:[#allocation2 + $0xd0] sm:$0xff]
      %v8407 = vld [vmem:[#allocation2 + $0xd8] sm:$0xff]
      %v8408 = vld [vmem:[#allocation2 + $0xe0] sm:$0xff]
      %v8409 = vld [vmem:[#allocation2 + $0xe8] sm:$0xff]
      %v8410 = vld [vmem:[#allocation2 + $0xf0] sm:$0xff]
      %v8411 = vld [vmem:[#allocation2 + $0xf8] sm:$0xff]
      %v8412 = vld [vmem:[#allocation2 + $0x100] sm:$0xff]
      %v8413 = vld [vmem:[#allocation2 + $0x110] sm:$0xff]
      %v8414 = vld [vmem:[#allocation2 + $0x118] sm:$0xff]
      %v8415 = vld [vmem:[#allocation2 + $0x120] sm:$0xff]
      %v8416 = vld [vmem:[#allocation2 + $0x128] sm:$0xff]
      %v8417 = vld [vmem:[#allocation2 + $0x130] sm:$0xff]
      %v8418 = vld [vmem:[#allocation2 + $0x138] sm:$0xff]
      %v8419 = vld [vmem:[#allocation2 + $0x140] sm:$0xff]
      %v8420 = vld [vmem:[#allocation2 + $0x148] sm:$0xff]
      %v8421 = vld [vmem:[#allocation2 + $0x150] sm:$0xff]
      %v8422 = vld [vmem:[#allocation2 + $0x158] sm:$0xff]
      %v8423 = vld [vmem:[#allocation2 + $0x168] sm:$0xff]
      %v8424 = vld [vmem:[#allocation2 + $0x170] sm:$0xff]
      %v8425 = vld [vmem:[#allocation2 + $0x178] sm:$0xff]
      %v8426 = vld [vmem:[#allocation2 + $0x180] sm:$0xff]
      %v8427 = vld [vmem:[#allocation2 + $0x188] sm:$0xff]
      %v8428 = vld [vmem:[#allocation2 + $0x190] sm:$0xff]
      %v8429 = vld [vmem:[#allocation2 + $0x198] sm:$0xff]
      %v8430 = vld [vmem:[#allocation2 + $0x1a0] sm:$0xff]
      %v8431 = vld [vmem:[#allocation2 + $0x1a8] sm:$0xff]
      %v8432 = vld [vmem:[#allocation2 + $0x1b0] sm:$0xff]
      %v8433 = vld [vmem:[#allocation2 + $0x1c0] sm:$0xff]
      %v8434 = vld [vmem:[#allocation2 + $0x1c8] sm:$0xff]
      %v8435 = vld [vmem:[#allocation2 + $0x1d0] sm:$0xff]
      %v8436 = vld [vmem:[#allocation2 + $0x1d8] sm:$0xff]
      %v8437 = vld [vmem:[#allocation2 + $0x1e0] sm:$0xff]
      %v8438 = vld [vmem:[#allocation2 + $0x1e8] sm:$0xff]
      %v8439 = vld [vmem:[#allocation2 + $0x1f0] sm:$0xff]
      %v8440 = vld [vmem:[#allocation2 + $0x1f8] sm:$0xff]
      %v8441 = vld [vmem:[#allocation2 + $0x200] sm:$0xff]
      %v8442 = vld [vmem:[#allocation2 + $0x208] sm:$0xff]
      %v8443 = vld [vmem:[#allocation2 + $0x218] sm:$0xff]
      %v8444 = vld [vmem:[#allocation2 + $0x220] sm:$0xff]
      %v8445 = vld [vmem:[#allocation2 + $0x228] sm:$0xff]
      %v8446 = vld [vmem:[#allocation2 + $0x230] sm:$0xff]
      %v8447 = vld [vmem:[#allocation2 + $0x238] sm:$0xff]
      %v8448 = vld [vmem:[#allocation2 + $0x240] sm:$0xff]
      %v8449 = vld [vmem:[#allocation2 + $0x248] sm:$0xff]
      %v8450 = vld [vmem:[#allocation2 + $0x250] sm:$0xff]
      %v8451 = vld [vmem:[#allocation2 + $0x258] sm:$0xff]
      %v8452 = vld [vmem:[#allocation2 + $0x260] sm:$0xff]
      %v8453 = vld [vmem:[#allocation2 + $0x270] sm:$0xff]
      %v8454 = vld [vmem:[#allocation2 + $0x278] sm:$0xff]
      %v8455 = vld [vmem:[#allocation2 + $0x280] sm:$0xff]
      %v8456 = vld [vmem:[#allocation2 + $0x288] sm:$0xff]
      %v8457 = vld [vmem:[#allocation2 + $0x290] sm:$0xff]
      %v8458 = vld [vmem:[#allocation2 + $0x298] sm:$0xff]
      %v8459 = vld [vmem:[#allocation2 + $0x2a0] sm:$0xff]
      %v8460 = vld [vmem:[#allocation2 + $0x2a8] sm:$0xff]
      %v8461 = vld [vmem:[#allocation2 + $0x2b0] sm:$0xff]
      %v8462 = vld [vmem:[#allocation2 + $0x2b8] sm:$0xff]
      %v8463 = vld [vmem:[#allocation2 + $0x2c8] sm:$0xff]
      %v8464 = vld [vmem:[#allocation2 + $0x2d0] sm:$0xff]
      %v8465 = vld [vmem:[#allocation2 + $0x2d8] sm:$0xff]
      %v8466 = vld [vmem:[#allocation2 + $0x2e0] sm:$0xff]
      %v8467 = vld [vmem:[#allocation2 + $0x2e8] sm:$0xff]
      %v8468 = vld [vmem:[#allocation2 + $0x2f0] sm:$0xff]
      %v8469 = vld [vmem:[#allocation2 + $0x2f8] sm:$0xff]
      %v8470 = vld [vmem:[#allocation2 + $0x300] sm:$0xff]
      %v8471 = vld [vmem:[#allocation2 + $0x308] sm:$0xff]
      %v8472 = vld [vmem:[#allocation2 + $0x310] sm:$0xff]
      %v8473 = vld [vmem:[#allocation2 + $0x320] sm:$0xff]
      %v8474 = vld [vmem:[#allocation2 + $0x328] sm:$0xff]
      %v8475 = vld [vmem:[#allocation2 + $0x330] sm:$0xff]
      %v8476 = vld [vmem:[#allocation2 + $0x338] sm:$0xff]
      %v8477 = vld [vmem:[#allocation2 + $0x340] sm:$0xff]
      %v8478 = vld [vmem:[#allocation2 + $0x348] sm:$0xff]
      %v8479 = vld [vmem:[#allocation2 + $0x350] sm:$0xff]
      %v8480 = vld [vmem:[#allocation2 + $0x358] sm:$0xff]
      %v8481 = vld [vmem:[#allocation2 + $0x360] sm:$0xff]
      %v8482 = vld [vmem:[#allocation2 + $0x368] sm:$0xff]
      %v8483 = vld [vmem:[#allocation2 + $0x378] sm:$0xff]
      %v8484 = vld [vmem:[#allocation2 + $0x380] sm:$0xff]
      %v8485 = vld [vmem:[#allocation2 + $0x388] sm:$0xff]
      %v8486 = vld [vmem:[#allocation2 + $0x390] sm:$0xff]
      %v8487 = vld [vmem:[#allocation2 + $0x398] sm:$0xff]
      %v8488 = vld [vmem:[#allocation2 + $0x3a0] sm:$0xff]
      %v8489 = vld [vmem:[#allocation2 + $0x3a8] sm:$0xff]
      %v8490 = vld [vmem:[#allocation2 + $0x3b0] sm:$0xff]
      %v8491 = vld [vmem:[#allocation2 + $0x3b8] sm:$0xff]
      %v8492 = vld [vmem:[#allocation2 + $0x3c0] sm:$0xff]
      %v8493 = vld [vmem:[#allocation2 + $0x3d0] sm:$0xff]
      %v8494 = vld [vmem:[#allocation2 + $0x3d8] sm:$0xff]
      %v8495 = vld [vmem:[#allocation2 + $0x3e0] sm:$0xff]
      %v8496 = vld [vmem:[#allocation2 + $0x3e8] sm:$0xff]
      %v8497 = vld [vmem:[#allocation2 + $0x3f0] sm:$0xff]
      %v8498 = vld [vmem:[#allocation2 + $0x3f8] sm:$0xff]
      %v8499 = vld [vmem:[#allocation2 + $0x400] sm:$0xff]
      %v8500 = vld [vmem:[#allocation2 + $0x408] sm:$0xff]
      %v8501 = vld [vmem:[#allocation2 + $0x410] sm:$0xff]
      %v8502 = vld [vmem:[#allocation2 + $0x418] sm:$0xff]
      %v8503 = vld [vmem:[#allocation2 + $0x428] sm:$0xff]
      %v8504 = vld [vmem:[#allocation2 + $0x430] sm:$0xff]
      %v8505 = vld [vmem:[#allocation2 + $0x438] sm:$0xff]
      %v8506 = vld [vmem:[#allocation2 + $0x440] sm:$0xff]
      %v8507 = vld [vmem:[#allocation2 + $0x448] sm:$0xff]
      %v8508 = vld [vmem:[#allocation2 + $0x450] sm:$0xff]
      %v8509 = vld [vmem:[#allocation2 + $0x458] sm:$0xff]
      %v8510 = vld [vmem:[#allocation2 + $0x460] sm:$0xff]
      %v8511 = vld [vmem:[#allocation2 + $0x468] sm:$0xff]
      %v8512 = vld [vmem:[#allocation2 + $0x470] sm:$0xff]
      %v8513 = vld [vmem:[#allocation2 + $0x480] sm:$0xff]
      %v8514 = vld [vmem:[#allocation2 + $0x488] sm:$0xff]
      %v8515 = vld [vmem:[#allocation2 + $0x490] sm:$0xff]
      %v8516 = vld [vmem:[#allocation2 + $0x498] sm:$0xff]
      %v8517 = vld [vmem:[#allocation2 + $0x4a0] sm:$0xff]
      %v8518 = vld [vmem:[#allocation2 + $0x4a8] sm:$0xff]
      %v8519 = vld [vmem:[#allocation2 + $0x4b0] sm:$0xff]
      %v8520 = vld [vmem:[#allocation2 + $0x4b8] sm:$0xff]
      %v8521 = vld [vmem:[#allocation2 + $0x4c0] sm:$0xff]
      %v8522 = vld [vmem:[#allocation2 + $0x4c8] sm:$0xff]
      %v8523 = vld [vmem:[#allocation2 + $0x4d8] sm:$0xff]
      %v8524 = vld [vmem:[#allocation2 + $0x4e0] sm:$0xff]
      %v8525 = vld [vmem:[#allocation2 + $0x4e8] sm:$0xff]
      %v8526 = vld [vmem:[#allocation2 + $0x4f0] sm:$0xff]
      %v8527 = vld [vmem:[#allocation2 + $0x4f8] sm:$0xff]
      %v8528 = vld [vmem:[#allocation2 + $0x500] sm:$0xff]
      %v8529 = vld [vmem:[#allocation2 + $0x508] sm:$0xff]
      %v8530 = vld [vmem:[#allocation2 + $0x510] sm:$0xff]
      %v8531 = vld [vmem:[#allocation2 + $0x518] sm:$0xff]
      %v8532 = vld [vmem:[#allocation2 + $0x520] sm:$0xff]
      %v8533 = vld [vmem:[#allocation2 + $0x530] sm:$0xff]
      %v8534 = vld [vmem:[#allocation2 + $0x538] sm:$0xff]
      %v8535 = vld [vmem:[#allocation2 + $0x540] sm:$0xff]
      %v8536 = vld [vmem:[#allocation2 + $0x548] sm:$0xff]
      %v8537 = vld [vmem:[#allocation2 + $0x550] sm:$0xff]
      %v8538 = vld [vmem:[#allocation2 + $0x558] sm:$0xff]
      %v8539 = vld [vmem:[#allocation2 + $0x560] sm:$0xff]
      %v8540 = vld [vmem:[#allocation2 + $0x568] sm:$0xff]
      %v8541 = vld [vmem:[#allocation2 + $0x570] sm:$0xff]
      %v8542 = vld [vmem:[#allocation2 + $0x578] sm:$0xff]
      %v8543 = vld [vmem:[#allocation2 + $0x588] sm:$0xff]
      %v8544 = vld [vmem:[#allocation2 + $0x590] sm:$0xff]
      %v8545 = vld [vmem:[#allocation2 + $0x598] sm:$0xff]
      %v8546 = vld [vmem:[#allocation2 + $0x5a0] sm:$0xff]
      %v8547 = vld [vmem:[#allocation2 + $0x5a8] sm:$0xff]
      %v8548 = vld [vmem:[#allocation2 + $0x5b0] sm:$0xff]
      %v8549 = vld [vmem:[#allocation2 + $0x5b8] sm:$0xff]
      %v8550 = vld [vmem:[#allocation2 + $0x5c0] sm:$0xff]
      %v8551 = vld [vmem:[#allocation2 + $0x5c8] sm:$0xff]
      %v8552 = vld [vmem:[#allocation2 + $0x5d0] sm:$0xff]
      %v8553 = vld [vmem:[#allocation2 + $0x5e0] sm:$0xff]
      %v8554 = vld [vmem:[#allocation2 + $0x5e8] sm:$0xff]
      %v8555 = vld [vmem:[#allocation2 + $0x5f0] sm:$0xff]
      %v8556 = vld [vmem:[#allocation2 + $0x5f8] sm:$0xff]
      %v8557 = vld [vmem:[#allocation2 + $0x600] sm:$0xff]
      %v8558 = vld [vmem:[#allocation2 + $0x608] sm:$0xff]
      %v8559 = vld [vmem:[#allocation2 + $0x610] sm:$0xff]
      %v8560 = vld [vmem:[#allocation2 + $0x618] sm:$0xff]
      %v8561 = vld [vmem:[#allocation2 + $0x620] sm:$0xff]
      %v8562 = vld [vmem:[#allocation2 + $0x628] sm:$0xff]
      %v8563 = vld [vmem:[#allocation2 + $0x638] sm:$0xff]
      %v8564 = vld [vmem:[#allocation2 + $0x640] sm:$0xff]
      %v8565 = vld [vmem:[#allocation2 + $0x648] sm:$0xff]
      %v8566 = vld [vmem:[#allocation2 + $0x650] sm:$0xff]
      %v8567 = vld [vmem:[#allocation2 + $0x658] sm:$0xff]
      %v8568 = vld [vmem:[#allocation2 + $0x660] sm:$0xff]
      %v8569 = vld [vmem:[#allocation2 + $0x668] sm:$0xff]
      %v8570 = vld [vmem:[#allocation2 + $0x670] sm:$0xff]
      %v8571 = vld [vmem:[#allocation2 + $0x678] sm:$0xff]
      %v8572 = vld [vmem:[#allocation2 + $0x680] sm:$0xff]
      %v8573 = vld [vmem:[#allocation2 + $0x690] sm:$0xff]
      %v8574 = vld [vmem:[#allocation2 + $0x698] sm:$0xff]
      %v8575 = vld [vmem:[#allocation2 + $0x6a0] sm:$0xff]
      %v8576 = vld [vmem:[#allocation2 + $0x6a8] sm:$0xff]
      %v8577 = vld [vmem:[#allocation2 + $0x6b0] sm:$0xff]
      %v8578 = vld [vmem:[#allocation2 + $0x6b8] sm:$0xff]
      %v8579 = vld [vmem:[#allocation2 + $0x6c0] sm:$0xff]
      %v8580 = vld [vmem:[#allocation2 + $0x6c8] sm:$0xff]
      %v8581 = vld [vmem:[#allocation2 + $0x6d0] sm:$0xff]
      %v8582 = vld [vmem:[#allocation2 + $0x6d8] sm:$0xff]
      %v8583 = vld [vmem:[#allocation2 + $0x6e8] sm:$0xff]
      %v8584 = vld [vmem:[#allocation2 + $0x6f0] sm:$0xff]
      %v8585 = vld [vmem:[#allocation2 + $0x6f8] sm:$0xff]
      %v8586 = vld [vmem:[#allocation2 + $0x700] sm:$0xff]
      %v8587 = vld [vmem:[#allocation2 + $0x708] sm:$0xff]
      %v8588 = vld [vmem:[#allocation2 + $0x710] sm:$0xff]
      %v8589 = vld [vmem:[#allocation2 + $0x718] sm:$0xff]
      %v8590 = vld [vmem:[#allocation2 + $0x720] sm:$0xff]
      %v8591 = vld [vmem:[#allocation2 + $0x728] sm:$0xff]
      %v8592 = vld [vmem:[#allocation2 + $0x730] sm:$0xff]
      %v8593 = vld [vmem:[#allocation2 + $0x740] sm:$0xff]
      %v8594 = vld [vmem:[#allocation2 + $0x748] sm:$0xff]
      %v8595 = vld [vmem:[#allocation2 + $0x750] sm:$0xff]
      %v8596 = vld [vmem:[#allocation2 + $0x758] sm:$0xff]
      %v8597 = vld [vmem:[#allocation2 + $0x760] sm:$0xff]
      %v8598 = vld [vmem:[#allocation2 + $0x768] sm:$0xff]
      %v8599 = vld [vmem:[#allocation2 + $0x770] sm:$0xff]
      %v8600 = vld [vmem:[#allocation2 + $0x778] sm:$0xff]
      %v8601 = vld [vmem:[#allocation2 + $0x780] sm:$0xff]
      %v8602 = vld [vmem:[#allocation2 + $0x788] sm:$0xff]
      %v8603 = vld [vmem:[#allocation2 + $0x798] sm:$0xff]
      %v8604 = vld [vmem:[#allocation2 + $0x7a0] sm:$0xff]
      %v8605 = vld [vmem:[#allocation2 + $0x7a8] sm:$0xff]
      %v8606 = vld [vmem:[#allocation2 + $0x7b0] sm:$0xff]
      %v8607 = vld [vmem:[#allocation2 + $0x7b8] sm:$0xff]
      %v8608 = vld [vmem:[#allocation2 + $0x7c0] sm:$0xff]
      %v8609 = vld [vmem:[#allocation2 + $0x7c8] sm:$0xff]
      %v8610 = vld [vmem:[#allocation2 + $0x7d0] sm:$0xff]
      %v8611 = vld [vmem:[#allocation2 + $0x7d8] sm:$0xff]
      %v8612 = vld [vmem:[#allocation2 + $0x7e0] sm:$0xff]
      %v8613 = vld [vmem:[#allocation2 + $0x7f0] sm:$0xff]
      %v8614 = vld [vmem:[#allocation2 + $0x7f8] sm:$0xff]
      %v8615 = vld [vmem:[#allocation2 + $0x800] sm:$0xff]
      %v8616 = vld [vmem:[#allocation2 + $0x808] sm:$0xff]
      %v8617 = vld [vmem:[#allocation2 + $0x810] sm:$0xff]
      %v8618 = vld [vmem:[#allocation2 + $0x818] sm:$0xff]
      %v8619 = vld [vmem:[#allocation2 + $0x820] sm:$0xff]
      %v8620 = vld [vmem:[#allocation2 + $0x828] sm:$0xff]
      %v8621 = vld [vmem:[#allocation2 + $0x830] sm:$0xff]
      %v8622 = vld [vmem:[#allocation2 + $0x838] sm:$0xff]
      %v8623 = vld [vmem:[#allocation2 + $0x848] sm:$0xff]
      %v8624 = vld [vmem:[#allocation2 + $0x850] sm:$0xff]
      %v8625 = vld [vmem:[#allocation2 + $0x858] sm:$0xff]
      %v8626 = vld [vmem:[#allocation2 + $0x860] sm:$0xff]
      %v8627 = vld [vmem:[#allocation2 + $0x868] sm:$0xff]
      %v8628 = vld [vmem:[#allocation2 + $0x870] sm:$0xff]
      %v8629 = vld [vmem:[#allocation2 + $0x878] sm:$0xff]
      %v8630 = vld [vmem:[#allocation2 + $0x880] sm:$0xff]
      %v8631 = vld [vmem:[#allocation2 + $0x888] sm:$0xff]
      %v8632 = vld [vmem:[#allocation2 + $0x890] sm:$0xff]
      %v8633 = vld [vmem:[#allocation2 + $0x8a0] sm:$0xff]
      %v8634 = vld [vmem:[#allocation2 + $0x8a8] sm:$0xff]
      %v8635 = vld [vmem:[#allocation2 + $0x8b0] sm:$0xff]
      %v8636 = vld [vmem:[#allocation2 + $0x8b8] sm:$0xff]
      %v8637 = vld [vmem:[#allocation2 + $0x8c0] sm:$0xff]
      %v8638 = vld [vmem:[#allocation2 + $0x8c8] sm:$0xff]
      %v8639 = vld [vmem:[#allocation2 + $0x8d0] sm:$0xff]
      %v8640 = vld [vmem:[#allocation2 + $0x8d8] sm:$0xff]
      %v8641 = vld [vmem:[#allocation2 + $0x8e0] sm:$0xff]
      %v8642 = vld [vmem:[#allocation2 + $0x8e8] sm:$0xff]
      %v8643 = vld [vmem:[#allocation2 + $0x8f8] sm:$0xff]
      %v8644 = vld [vmem:[#allocation2 + $0x900] sm:$0xff]
      %v8645 = vld [vmem:[#allocation2 + $0x908] sm:$0xff]
      %v8646 = vld [vmem:[#allocation2 + $0x910] sm:$0xff]
      %v8647 = vld [vmem:[#allocation2 + $0x918] sm:$0xff]
      %v8648 = vld [vmem:[#allocation2 + $0x920] sm:$0xff]
      %v8649 = vld [vmem:[#allocation2 + $0x928] sm:$0xff]
      %v8650 = vld [vmem:[#allocation2 + $0x930] sm:$0xff]
      %v8651 = vld [vmem:[#allocation2 + $0x938] sm:$0xff]
      %v8652 = vld [vmem:[#allocation2 + $0x940] sm:$0xff]
      %v8653 = vld [vmem:[#allocation2 + $0x950] sm:$0xff]
      %v8654 = vld [vmem:[#allocation2 + $0x958] sm:$0xff]
      %v8655 = vld [vmem:[#allocation2 + $0x960] sm:$0xff]
      %v8656 = vld [vmem:[#allocation2 + $0x968] sm:$0xff]
      %v8657 = vld [vmem:[#allocation2 + $0x970] sm:$0xff]
      %v8658 = vld [vmem:[#allocation2 + $0x978] sm:$0xff]
      %v8659 = vld [vmem:[#allocation2 + $0x980] sm:$0xff]
      %v8660 = vld [vmem:[#allocation2 + $0x988] sm:$0xff]
      %v8661 = vld [vmem:[#allocation2 + $0x990] sm:$0xff]
      %v8662 = vld [vmem:[#allocation2 + $0x998] sm:$0xff]
      %v8663 = vld [vmem:[#allocation2 + $0x9a8] sm:$0xff]
      %v8664 = vld [vmem:[#allocation2 + $0x9b0] sm:$0xff]
      %v8665 = vld [vmem:[#allocation2 + $0x9b8] sm:$0xff]
      %v8666 = vld [vmem:[#allocation2 + $0x9c0] sm:$0xff]
      %v8667 = vld [vmem:[#allocation2 + $0x9c8] sm:$0xff]
      %v8668 = vld [vmem:[#allocation2 + $0x9d0] sm:$0xff]
      %v8669 = vld [vmem:[#allocation2 + $0x9d8] sm:$0xff]
      %v8670 = vld [vmem:[#allocation2 + $0x9e0] sm:$0xff]
      %v8671 = vld [vmem:[#allocation2 + $0x9e8] sm:$0xff]
      %v8672 = vld [vmem:[#allocation2 + $0x9f0] sm:$0xff]
      %v8673 = vld [vmem:[#allocation2 + $0xa00] sm:$0xff]
      %v8674 = vld [vmem:[#allocation2 + $0xa08] sm:$0xff]
      %v8675 = vld [vmem:[#allocation2 + $0xa10] sm:$0xff]
      %v8676 = vld [vmem:[#allocation2 + $0xa18] sm:$0xff]
      %v8677 = vld [vmem:[#allocation2 + $0xa20] sm:$0xff]
      %v8678 = vld [vmem:[#allocation2 + $0xa28] sm:$0xff]
      %v8679 = vld [vmem:[#allocation2 + $0xa30] sm:$0xff]
      %v8680 = vld [vmem:[#allocation2 + $0xa38] sm:$0xff]
      %v8681 = vld [vmem:[#allocation2 + $0xa40] sm:$0xff]
      %v8682 = vld [vmem:[#allocation2 + $0xa48] sm:$0xff]
      %v8683 = vld [vmem:[#allocation2 + $0xa58] sm:$0xff]
      %v8684 = vld [vmem:[#allocation2 + $0xa60] sm:$0xff]
      %v8685 = vld [vmem:[#allocation2 + $0xa68] sm:$0xff]
      %v8686 = vld [vmem:[#allocation2 + $0xa70] sm:$0xff]
      %v8687 = vld [vmem:[#allocation2 + $0xa78] sm:$0xff]
      %v8688 = vld [vmem:[#allocation2 + $0xa80] sm:$0xff]
      %v8689 = vld [vmem:[#allocation2 + $0xa88] sm:$0xff]
      %v8690 = vld [vmem:[#allocation2 + $0xa90] sm:$0xff]
      %v8691 = vld [vmem:[#allocation2 + $0xa98] sm:$0xff]
      %v8692 = vld [vmem:[#allocation2 + $0xaa0] sm:$0xff]
      %v8693 = vld [vmem:[#allocation2 + $0xab0] sm:$0xff]
      %v8694 = vld [vmem:[#allocation2 + $0xab8] sm:$0xff]
      %v8695 = vld [vmem:[#allocation2 + $0xac0] sm:$0xff]
      %v8696 = vld [vmem:[#allocation2 + $0xac8] sm:$0xff]
      %v8697 = vld [vmem:[#allocation2 + $0xad0] sm:$0xff]
      %v8698 = vld [vmem:[#allocation2 + $0xad8] sm:$0xff]
      %v8699 = vld [vmem:[#allocation2 + $0xae0] sm:$0xff]
      %v8700 = vld [vmem:[#allocation2 + $0xae8] sm:$0xff]
      %v8701 = vld [vmem:[#allocation2 + $0xaf0] sm:$0xff]
      %v8702 = vld [vmem:[#allocation2 + $0xaf8] sm:$0xff]
      %v8703 = vld [vmem:[#allocation2 + $0xb08] sm:$0xff]
      %v8704 = vld [vmem:[#allocation2 + $0xb10] sm:$0xff]
      %v8705 = vld [vmem:[#allocation2 + $0xb18] sm:$0xff]
      %v8706 = vld [vmem:[#allocation2 + $0xb20] sm:$0xff]
      %v8707 = vld [vmem:[#allocation2 + $0xb28] sm:$0xff]
      %v8708 = vld [vmem:[#allocation2 + $0xb30] sm:$0xff]
      %v8709 = vld [vmem:[#allocation2 + $0xb38] sm:$0xff]
      %v8710 = vld [vmem:[#allocation2 + $0xb40] sm:$0xff]
      %v8711 = vld [vmem:[#allocation2 + $0xb48] sm:$0xff]
      %v8712 = vld [vmem:[#allocation2 + $0xb50] sm:$0xff]
      %v8713 = vld [vmem:[#allocation2 + $0xb60] sm:$0xff]
      %v8714 = vld [vmem:[#allocation2 + $0xb68] sm:$0xff]
      %v8715 = vld [vmem:[#allocation2 + $0xb70] sm:$0xff]
      %v8716 = vld [vmem:[#allocation2 + $0xb78] sm:$0xff]
      %v8717 = vld [vmem:[#allocation2 + $0xb80] sm:$0xff]
      %v8718 = vld [vmem:[#allocation2 + $0xb88] sm:$0xff]
      %v8719 = vld [vmem:[#allocation2 + $0xb90] sm:$0xff]
      %v8720 = vld [vmem:[#allocation2 + $0xb98] sm:$0xff]
      %v8721 = vld [vmem:[#allocation2 + $0xba0] sm:$0xff]
      %v8722 = vld [vmem:[#allocation2 + $0xba8] sm:$0xff]
      %v8723 = vld [vmem:[#allocation2 + $0xbb8] sm:$0xff]
      %v8724 = vld [vmem:[#allocation2 + $0xbc0] sm:$0xff]
      %v8725 = vld [vmem:[#allocation2 + $0xbc8] sm:$0xff]
      %v8726 = vld [vmem:[#allocation2 + $0xbd0] sm:$0xff]
      %v8727 = vld [vmem:[#allocation2 + $0xbd8] sm:$0xff]
      %v8728 = vld [vmem:[#allocation2 + $0xbe0] sm:$0xff]
      %v8729 = vld [vmem:[#allocation2 + $0xbe8] sm:$0xff]
      %v8730 = vld [vmem:[#allocation2 + $0xbf0] sm:$0xff]
      %v8731 = vld [vmem:[#allocation2 + $0xbf8] sm:$0xff]
      %v8732 = vld [vmem:[#allocation2 + $0xc00] sm:$0xff]
      %v8733 = vld [vmem:[#allocation2 + $0xc10] sm:$0xff]
      %v8734 = vld [vmem:[#allocation2 + $0xc18] sm:$0xff]
      %v8735 = vld [vmem:[#allocation2 + $0xc20] sm:$0xff]
      %v8736 = vld [vmem:[#allocation2 + $0xc28] sm:$0xff]
      %v8737 = vld [vmem:[#allocation2 + $0xc30] sm:$0xff]
      %v8738 = vld [vmem:[#allocation2 + $0xc38] sm:$0xff]
      %v8739 = vld [vmem:[#allocation2 + $0xc40] sm:$0xff]
      %v8740 = vld [vmem:[#allocation2 + $0xc48] sm:$0xff]
      %v8741 = vld [vmem:[#allocation2 + $0xc50] sm:$0xff]
      %v8742 = vld [vmem:[#allocation2 + $0xc58] sm:$0xff]
      %s8743 = scalar_lea.vmem %s4, 480
      %v8744 = vld [vmem:[%s8743] sm:$0xff]
      %v8745 = vld [vmem:[%s8743 + $0x8] sm:$0xff]
      %v8746 = vld [vmem:[%s8743 + $0x10] sm:$0xf]
      %v8747 = vld [vmem:[%s8743 + $0x14] sm:$0xff]
      %v8748 = vld [vmem:[%s8743 + $0x1c] sm:$0xff]
      %v8749 = vld [vmem:[%s8743 + $0x24] sm:$0xf]
      %v8750 = vld [vmem:[%s8743 + $0x28] sm:$0xff]
      %v8751 = vld [vmem:[%s8743 + $0x30] sm:$0xff]
      %v8752 = vld [vmem:[%s8743 + $0x38] sm:$0xf]
      %v8753 = vld [vmem:[%s8743 + $0x3c] sm:$0xff]
      %v8754 = vld [vmem:[%s8743 + $0x44] sm:$0xff]
      %v8755 = vld [vmem:[%s8743 + $0x4c] sm:$0xf]
      %v8756 = vld [vmem:[%s8743 + $0x50] sm:$0xff]
      %v8757 = vld [vmem:[%s8743 + $0x58] sm:$0xff]
      %v8758 = vld [vmem:[%s8743 + $0x60] sm:$0xf]
      %v8759 = vld [vmem:[%s8743 + $0x64] sm:$0xff]
      %v8760 = vld [vmem:[%s8743 + $0x6c] sm:$0xff]
      %v8761 = vld [vmem:[%s8743 + $0x74] sm:$0xf]
      %v8762 = vld [vmem:[%s8743 + $0x78] sm:$0xff]
      %v8763 = vld [vmem:[%s8743 + $0x80] sm:$0xff]
      %v8764 = vld [vmem:[%s8743 + $0x88] sm:$0xf]
      %v8765 = vld [vmem:[%s8743 + $0x8c] sm:$0xff]
      %v8766 = vld [vmem:[%s8743 + $0x94] sm:$0xff]
      %v8767 = vld [vmem:[%s8743 + $0x9c] sm:$0xf]
      %s8768 = scalar_lea.vmem %s5, 192
      %v8769 = vld [vmem:[%s8768] sm:$0xff]
      %v8770 = vld [vmem:[%s8768 + $0x8] sm:$0xff]
      %v8771 = vld [vmem:[%s8768 + $0x10] sm:$0xff]
      %v8772 = vld [vmem:[%s8768 + $0x18] sm:$0xff]
      %v8773 = vld [vmem:[%s8768 + $0x20] sm:$0xff]
      %v8774 = vld [vmem:[%s8768 + $0x28] sm:$0xff]
      %v8775 = vld [vmem:[%s8768 + $0x30] sm:$0xff]
      %v8776 = vld [vmem:[%s8768 + $0x38] sm:$0xff]
      %8778 = vset.pattern.permute.xlu0 0
      %8779 = vperm.xlu0 %8778, %v8769
      %v8780 = vpop.permute.xlu0 %8779
      %8783 = vset.pattern.permute.xlu0 0
      %8784 = vperm.xlu0 %8783, %v8770
      %v8785 = vpop.permute.xlu0 %8784
      %8788 = vset.pattern.permute.xlu0 0
      %8789 = vperm.xlu0 %8788, %v8771
      %v8790 = vpop.permute.xlu0 %8789
      %8793 = vset.pattern.permute.xlu0 0
      %8794 = vperm.xlu0 %8793, %v8772
      %v8795 = vpop.permute.xlu0 %8794
      %8798 = vset.pattern.permute.xlu0 0
      %8799 = vperm.xlu0 %8798, %v8773
      %v8800 = vpop.permute.xlu0 %8799
      %8803 = vset.pattern.permute.xlu0 0
      %8804 = vperm.xlu0 %8803, %v8774
      %v8805 = vpop.permute.xlu0 %8804
      %8808 = vset.pattern.permute.xlu0 0
      %8809 = vperm.xlu0 %8808, %v8775
      %v8810 = vpop.permute.xlu0 %8809
      %8813 = vset.pattern.permute.xlu0 0
      %8814 = vperm.xlu0 %8813, %v8776
      %v8815 = vpop.permute.xlu0 %8814
      %v8841 = vunpack.c.l.b16 %v8744
      %v8842 = vunpack.c.h.b16 %v8744
      %v8843 = vunpack.c.l.b16 %v8745
      %v8844 = vunpack.c.h.b16 %v8745
      %v8845 = vunpack.c.l.b16 %v8746
      %v8846 = vunpack.c.l.b16 %v8747
      %v8847 = vunpack.c.h.b16 %v8747
      %v8848 = vunpack.c.l.b16 %v8748
      %v8849 = vunpack.c.h.b16 %v8748
      %v8850 = vunpack.c.l.b16 %v8749
      %v8851 = vunpack.c.l.b16 %v8750
      %v8852 = vunpack.c.h.b16 %v8750
      %v8853 = vunpack.c.l.b16 %v8751
      %v8854 = vunpack.c.h.b16 %v8751
      %v8855 = vunpack.c.l.b16 %v8752
      %v8856 = vunpack.c.l.b16 %v8753
      %v8857 = vunpack.c.h.b16 %v8753
      %v8858 = vunpack.c.l.b16 %v8754
      %v8859 = vunpack.c.h.b16 %v8754
      %v8860 = vunpack.c.l.b16 %v8755
      %v8861 = vunpack.c.l.b16 %v8756
      %v8862 = vunpack.c.h.b16 %v8756
      %v8863 = vunpack.c.l.b16 %v8757
      %v8864 = vunpack.c.h.b16 %v8757
      %v8865 = vunpack.c.l.b16 %v8758
      %v8866 = vunpack.c.l.b16 %v8759
      %v8867 = vunpack.c.h.b16 %v8759
      %v8868 = vunpack.c.l.b16 %v8760
      %v8869 = vunpack.c.h.b16 %v8760
      %v8870 = vunpack.c.l.b16 %v8761
      %v8871 = vunpack.c.l.b16 %v8762
      %v8872 = vunpack.c.h.b16 %v8762
      %v8873 = vunpack.c.l.b16 %v8763
      %v8874 = vunpack.c.h.b16 %v8763
      %v8875 = vunpack.c.l.b16 %v8764
      %v8876 = vunpack.c.l.b16 %v8765
      %v8877 = vunpack.c.h.b16 %v8765
      %v8878 = vunpack.c.l.b16 %v8766
      %v8879 = vunpack.c.h.b16 %v8766
      %v8880 = vunpack.c.l.b16 %v8767
      %v8881 = vpack.c.b16 %v8846, %v8841
      %v8882 = vpack.c.b16 %v8847, %v8842
      %v8883 = vpack.c.b16 %v8848, %v8843
      %v8884 = vpack.c.b16 %v8849, %v8844
      %v8885 = vpack.c.b16 %v8850, %v8845
      %v8886 = vpack.c.b16 %v8856, %v8851
      %v8887 = vpack.c.b16 %v8857, %v8852
      %v8888 = vpack.c.b16 %v8858, %v8853
      %v8889 = vpack.c.b16 %v8859, %v8854
      %v8890 = vpack.c.b16 %v8860, %v8855
      %v8891 = vpack.c.b16 %v8866, %v8861
      %v8892 = vpack.c.b16 %v8867, %v8862
      %v8893 = vpack.c.b16 %v8868, %v8863
      %v8894 = vpack.c.b16 %v8869, %v8864
      %v8895 = vpack.c.b16 %v8870, %v8865
      %v8896 = vpack.c.b16 %v8876, %v8871
      %v8897 = vpack.c.b16 %v8877, %v8872
      %v8898 = vpack.c.b16 %v8878, %v8873
      %v8899 = vpack.c.b16 %v8879, %v8874
      %v8900 = vpack.c.b16 %v8880, %v8875
      %v8918 = vsel %vm959, %v8885, 0
      %v8921 = vsel %vm959, %v8890, 0
      %v8924 = vsel %vm959, %v8895, 0
      %v8927 = vsel %vm959, %v8900, 0
      %8929 = vmatprep.subr.bf16.mxu0 %v8384
      %8930 = vmatpush1.bf16.msra.mxu0 %v8383
      %8931 = vmatprep.subr.bf16.mxu0 %v8394
      %8932 = vmatpush1.bf16.msra.mxu0 %v8393
      %8933 = vmatprep.subr.bf16.mxu0 %v8404
      %8934 = vmatpush1.bf16.msra.mxu0 %v8403
      %8935 = vmatprep.subr.bf16.mxu0 %v8414
      %8936 = vmatpush1.bf16.msra.mxu0 %v8413
      %8937 = vmatprep.subr.bf16.mxu0 %v8424
      %8938 = vmatpush1.bf16.msra.mxu0 %v8423
      %8939 = vmatprep.subr.bf16.mxu0 %v8434
      %8940 = vmatpush1.bf16.msra.mxu0 %v8433
      %8941 = vmatprep.subr.bf16.mxu0 %v8444
      %8942 = vmatpush1.bf16.msra.mxu0 %v8443
      %8943 = vmatprep.subr.bf16.mxu0 %v8454
      %8944 = vmatpush1.bf16.msra.mxu0 %v8453
      %8945 = vmatprep.subr.bf16.mxu0 %v8464
      %8946 = vmatpush1.bf16.msra.mxu0 %v8463
      %8947 = vmatprep.subr.bf16.mxu0 %v8474
      %8948 = vmatpush1.bf16.msra.mxu0 %v8473
      %8949 = vmatprep.subr.bf16.mxu0 %v8484
      %8950 = vmatpush1.bf16.msra.mxu0 %v8483
      %8951 = vmatprep.subr.bf16.mxu0 %v8494
      %8952 = vmatpush1.bf16.msra.mxu0 %v8493
      %8953 = vmatprep.subr.bf16.mxu0 %v8504
      %8954 = vmatpush1.bf16.msra.mxu0 %v8503
      %8955 = vmatprep.subr.bf16.mxu0 %v8514
      %8956 = vmatpush1.bf16.msra.mxu0 %v8513
      %8957 = vmatprep.subr.bf16.mxu0 %v8524
      %8958 = vmatpush1.bf16.msra.mxu0 %v8523
      %8959 = vmatprep.subr.bf16.mxu0 %v8534
      %8960 = vmatpush1.bf16.msra.mxu0 %v8533
      %8961 = vmatprep.mubr.bf16.mxu0 %v8882
      %8962 = vmatmul.mubr.bf16.gmra.mrb[0].mxu0 %v8881
      %v8963 = vpop.f32.mrb[0].mxu0
      %v8964 = vadd.f32 %v8780, %v8963
      %v8965 = vpop.f32.mrb[0].mxu0
      %v8966 = vadd.f32 %v8780, %v8965
      %v8967 = vpop.f32.mrb[0].mxu0
      %v8968 = vadd.f32 %v8785, %v8967
      %v8969 = vpop.f32.mrb[0].mxu0
      %v8970 = vadd.f32 %v8785, %v8969
      %8971 = vmatprep.mubr.bf16.mxu0 %v8887
      %8972 = vmatmul.mubr.bf16.gmra.mrb[0].mxu0 %v8886
      %v8973 = vpop.f32.mrb[0].mxu0
      %v8974 = vadd.f32 %v8790, %v8973
      %v8975 = vpop.f32.mrb[0].mxu0
      %v8976 = vadd.f32 %v8790, %v8975
      %v8977 = vpop.f32.mrb[0].mxu0
      %v8978 = vadd.f32 %v8795, %v8977
      %v8979 = vpop.f32.mrb[0].mxu0
      %v8980 = vadd.f32 %v8795, %v8979
      %8981 = vmatprep.mubr.bf16.mxu0 %v8892
      %8982 = vmatmul.mubr.bf16.gmra.mrb[0].mxu0 %v8891
      %v8983 = vpop.f32.mrb[0].mxu0
      %v8984 = vadd.f32 %v8800, %v8983
      %v8985 = vpop.f32.mrb[0].mxu0
      %v8986 = vadd.f32 %v8800, %v8985
      %v8987 = vpop.f32.mrb[0].mxu0
      %v8988 = vadd.f32 %v8805, %v8987
      %v8989 = vpop.f32.mrb[0].mxu0
      %v8990 = vadd.f32 %v8805, %v8989
      %8991 = vmatprep.mubr.bf16.mxu0 %v8897
      %8992 = vmatmul.mubr.bf16.gmra.mrb[0].mxu0 %v8896
      %v8993 = vpop.f32.mrb[0].mxu0
      %v8994 = vadd.f32 %v8810, %v8993
      %v8995 = vpop.f32.mrb[0].mxu0
      %v8996 = vadd.f32 %v8810, %v8995
      %v8997 = vpop.f32.mrb[0].mxu0
      %v8998 = vadd.f32 %v8815, %v8997
      %v8999 = vpop.f32.mrb[0].mxu0
      %v9000 = vadd.f32 %v8815, %v8999
      %9001 = vdwg.mxu0
      %9002 = vmatprep.subr.bf16.mxu0 %v8544
      %9003 = vmatpush1.bf16.msra.mxu0 %v8543
      %9004 = vmatprep.subr.bf16.mxu0 %v8554
      %9005 = vmatpush1.bf16.msra.mxu0 %v8553
      %9006 = vmatprep.subr.bf16.mxu0 %v8564
      %9007 = vmatpush1.bf16.msra.mxu0 %v8563
      %9008 = vmatprep.subr.bf16.mxu0 %v8574
      %9009 = vmatpush1.bf16.msra.mxu0 %v8573
      %9010 = vmatprep.subr.bf16.mxu0 %v8584
      %9011 = vmatpush1.bf16.msra.mxu0 %v8583
      %9012 = vmatprep.subr.bf16.mxu0 %v8594
      %9013 = vmatpush1.bf16.msra.mxu0 %v8593
      %9014 = vmatprep.subr.bf16.mxu0 %v8604
      %9015 = vmatpush1.bf16.msra.mxu0 %v8603
      %9016 = vmatprep.subr.bf16.mxu0 %v8614
      %9017 = vmatpush1.bf16.msra.mxu0 %v8613
      %9018 = vmatprep.subr.bf16.mxu0 %v8624
      %9019 = vmatpush1.bf16.msra.mxu0 %v8623
      %9020 = vmatprep.subr.bf16.mxu0 %v8634
      %9021 = vmatpush1.bf16.msra.mxu0 %v8633
      %9022 = vmatprep.subr.bf16.mxu0 %v8644
      %9023 = vmatpush1.bf16.msra.mxu0 %v8643
      %9024 = vmatprep.subr.bf16.mxu0 %v8654
      %9025 = vmatpush1.bf16.msra.mxu0 %v8653
      %9026 = vmatprep.subr.bf16.mxu0 %v8664
      %9027 = vmatpush1.bf16.msra.mxu0 %v8663
      %9028 = vmatprep.subr.bf16.mxu0 %v8674
      %9029 = vmatpush1.bf16.msra.mxu0 %v8673
      %9030 = vmatprep.subr.bf16.mxu0 %v8684
      %9031 = vmatpush1.bf16.msra.mxu0 %v8683
      %9032 = vmatprep.subr.bf16.mxu0 %v8694
      %9033 = vmatpush1.bf16.msra.mxu0 %v8693
      %9034 = vmatprep.mubr.bf16.mxu0 %v8884
      %9035 = vmatmul.mubr.bf16.gmra.mrb[0].mxu0 %v8883
      %v9036 = vpop.f32.mrb[0].mxu0
      %v9037 = vadd.f32 %v8964, %v9036
      %v9038 = vpop.f32.mrb[0].mxu0
      %v9039 = vadd.f32 %v8966, %v9038
      %v9040 = vpop.f32.mrb[0].mxu0
      %v9041 = vadd.f32 %v8968, %v9040
      %v9042 = vpop.f32.mrb[0].mxu0
      %v9043 = vadd.f32 %v8970, %v9042
      %9044 = vmatprep.mubr.bf16.mxu0 %v8889
      %9045 = vmatmul.mubr.bf16.gmra.mrb[0].mxu0 %v8888
      %v9046 = vpop.f32.mrb[0].mxu0
      %v9047 = vadd.f32 %v8974, %v9046
      %v9048 = vpop.f32.mrb[0].mxu0
      %v9049 = vadd.f32 %v8976, %v9048
      %v9050 = vpop.f32.mrb[0].mxu0
      %v9051 = vadd.f32 %v8978, %v9050
      %v9052 = vpop.f32.mrb[0].mxu0
      %v9053 = vadd.f32 %v8980, %v9052
      %9054 = vmatprep.mubr.bf16.mxu0 %v8894
      %9055 = vmatmul.mubr.bf16.gmra.mrb[0].mxu0 %v8893
      %v9056 = vpop.f32.mrb[0].mxu0
      %v9057 = vadd.f32 %v8984, %v9056
      %v9058 = vpop.f32.mrb[0].mxu0
      %v9059 = vadd.f32 %v8986, %v9058
      %v9060 = vpop.f32.mrb[0].mxu0
      %v9061 = vadd.f32 %v8988, %v9060
      %v9062 = vpop.f32.mrb[0].mxu0
      %v9063 = vadd.f32 %v8990, %v9062
      %9064 = vmatprep.mubr.bf16.mxu0 %v8899
      %9065 = vmatmul.mubr.bf16.gmra.mrb[0].mxu0 %v8898
      %v9066 = vpop.f32.mrb[0].mxu0
      %v9067 = vadd.f32 %v8994, %v9066
      %v9068 = vpop.f32.mrb[0].mxu0
      %v9069 = vadd.f32 %v8996, %v9068
      %v9070 = vpop.f32.mrb[0].mxu0
      %v9071 = vadd.f32 %v8998, %v9070
      %v9072 = vpop.f32.mrb[0].mxu0
      %v9073 = vadd.f32 %v9000, %v9072
      %9074 = vdwg.mxu0
      %9075 = vmatprep.subr.bf16.mxu0 %v8704
      %9076 = vmatpush1.bf16.msra.mxu0 %v8703
      %9077 = vmatprep.subr.bf16.mxu0 %v8714
      %9078 = vmatpush1.bf16.msra.mxu0 %v8713
      %9079 = vmatprep.subr.bf16.mxu0 %v8724
      %9080 = vmatpush1.bf16.msra.mxu0 %v8723
      %9081 = vmatprep.subr.bf16.mxu0 %v8734
      %9082 = vmatpush1.bf16.msra.mxu0 %v8733
      %9083 = vmatprep.subr.bf16.mxu0 0
      %9084 = vmatpush1.bf16.msra.mxu0 0
      %9085 = vmatprep.subr.bf16.mxu0 0
      %9086 = vmatpush1.bf16.msra.mxu0 0
      %9087 = vmatprep.subr.bf16.mxu0 0
      %9088 = vmatpush1.bf16.msra.mxu0 0
      %9089 = vmatprep.subr.bf16.mxu0 0
      %9090 = vmatpush1.bf16.msra.mxu0 0
      %9091 = vmatprep.subr.bf16.mxu0 0
      %9092 = vmatpush1.bf16.msra.mxu0 0
      %9093 = vmatprep.subr.bf16.mxu0 0
      %9094 = vmatpush1.bf16.msra.mxu0 0
      %9095 = vmatprep.subr.bf16.mxu0 0
      %9096 = vmatpush1.bf16.msra.mxu0 0
      %9097 = vmatprep.subr.bf16.mxu0 0
      %9098 = vmatpush1.bf16.msra.mxu0 0
      %9099 = vmatprep.subr.bf16.mxu0 0
      %9100 = vmatpush1.bf16.msra.mxu0 0
      %9101 = vmatprep.subr.bf16.mxu0 0
      %9102 = vmatpush1.bf16.msra.mxu0 0
      %9103 = vmatprep.subr.bf16.mxu0 0
      %9104 = vmatpush1.bf16.msra.mxu0 0
      %9105 = vmatprep.subr.bf16.mxu0 0
      %9106 = vmatpush1.bf16.msra.mxu0 0
      %9107 = vmatprep.mubr.bf16.mxu0 0
      %9108 = vmatmul.mubr.bf16.gmra.mrb[0].mxu0 %v8918
      %v9109 = vpop.f32.mrb[0].mxu0
      %v9110 = vadd.f32 %v9037, %v9109
      %v9111 = vpop.f32.mrb[0].mxu0
      %v9112 = vadd.f32 %v9039, %v9111
      %v9113 = vpop.f32.mrb[0].mxu0
      %v9114 = vadd.f32 %v9041, %v9113
      %v9115 = vpop.f32.mrb[0].mxu0
      %v9116 = vadd.f32 %v9043, %v9115
      %9117 = vmatprep.mubr.bf16.mxu0 0
      %9118 = vmatmul.mubr.bf16.gmra.mrb[0].mxu0 %v8921
      %v9119 = vpop.f32.mrb[0].mxu0
      %v9120 = vadd.f32 %v9047, %v9119
      %v9121 = vpop.f32.mrb[0].mxu0
      %v9122 = vadd.f32 %v9049, %v9121
      %v9123 = vpop.f32.mrb[0].mxu0
      %v9124 = vadd.f32 %v9051, %v9123
      %v9125 = vpop.f32.mrb[0].mxu0
      %v9126 = vadd.f32 %v9053, %v9125
      %9127 = vmatprep.mubr.bf16.mxu0 0
      %9128 = vmatmul.mubr.bf16.gmra.mrb[0].mxu0 %v8924
      %v9129 = vpop.f32.mrb[0].mxu0
      %v9130 = vadd.f32 %v9057, %v9129
      %v9131 = vpop.f32.mrb[0].mxu0
      %v9132 = vadd.f32 %v9059, %v9131
      %v9133 = vpop.f32.mrb[0].mxu0
      %v9134 = vadd.f32 %v9061, %v9133
      %v9135 = vpop.f32.mrb[0].mxu0
      %v9136 = vadd.f32 %v9063, %v9135
      %9137 = vmatprep.mubr.bf16.mxu0 0
      %9138 = vmatmul.mubr.bf16.gmra.mrb[0].mxu0 %v8927
      %v9139 = vpop.f32.mrb[0].mxu0
      %v9140 = vadd.f32 %v9067, %v9139
      %v9141 = vpop.f32.mrb[0].mxu0
      %v9142 = vadd.f32 %v9069, %v9141
      %v9143 = vpop.f32.mrb[0].mxu0
      %v9144 = vadd.f32 %v9071, %v9143
      %v9145 = vpop.f32.mrb[0].mxu0
      %v9146 = vadd.f32 %v9073, %v9145
      %9147 = vdwg.mxu0
      %9148 = vmatprep.subr.bf16.mxu0 %v8386
      %9149 = vmatpush1.bf16.msra.mxu0 %v8385
      %9150 = vmatprep.subr.bf16.mxu0 %v8396
      %9151 = vmatpush1.bf16.msra.mxu0 %v8395
      %9152 = vmatprep.subr.bf16.mxu0 %v8406
      %9153 = vmatpush1.bf16.msra.mxu0 %v8405
      %9154 = vmatprep.subr.bf16.mxu0 %v8416
      %9155 = vmatpush1.bf16.msra.mxu0 %v8415
      %9156 = vmatprep.subr.bf16.mxu0 %v8426
      %9157 = vmatpush1.bf16.msra.mxu0 %v8425
      %9158 = vmatprep.subr.bf16.mxu0 %v8436
      %9159 = vmatpush1.bf16.msra.mxu0 %v8435
      %9160 = vmatprep.subr.bf16.mxu0 %v8446
      %9161 = vmatpush1.bf16.msra.mxu0 %v8445
      %9162 = vmatprep.subr.bf16.mxu0 %v8456
      %9163 = vmatpush1.bf16.msra.mxu0 %v8455
      %9164 = vmatprep.subr.bf16.mxu0 %v8466
      %9165 = vmatpush1.bf16.msra.mxu0 %v8465
      %9166 = vmatprep.subr.bf16.mxu0 %v8476
      %9167 = vmatpush1.bf16.msra.mxu0 %v8475
      %9168 = vmatprep.subr.bf16.mxu0 %v8486
      %9169 = vmatpush1.bf16.msra.mxu0 %v8485
      %9170 = vmatprep.subr.bf16.mxu0 %v8496
      %9171 = vmatpush1.bf16.msra.mxu0 %v8495
      %9172 = vmatprep.subr.bf16.mxu0 %v8506
      %9173 = vmatpush1.bf16.msra.mxu0 %v8505
      %9174 = vmatprep.subr.bf16.mxu0 %v8516
      %9175 = vmatpush1.bf16.msra.mxu0 %v8515
      %9176 = vmatprep.subr.bf16.mxu0 %v8526
      %9177 = vmatpush1.bf16.msra.mxu0 %v8525
      %9178 = vmatprep.subr.bf16.mxu0 %v8536
      %9179 = vmatpush1.bf16.msra.mxu0 %v8535
      %9180 = vmatprep.mubr.bf16.mxu0 %v8882
      %9181 = vmatmul.mubr.bf16.gmra.mrb[0].mxu0 %v8881
      %v9182 = vpop.f32.mrb[0].mxu0
      %v9183 = vadd.f32 %v8780, %v9182
      %v9184 = vpop.f32.mrb[0].mxu0
      %v9185 = vadd.f32 %v8780, %v9184
      %v9186 = vpop.f32.mrb[0].mxu0
      %v9187 = vadd.f32 %v8785, %v9186
      %v9188 = vpop.f32.mrb[0].mxu0
      %v9189 = vadd.f32 %v8785, %v9188
      %9190 = vmatprep.mubr.bf16.mxu0 %v8887
      %9191 = vmatmul.mubr.bf16.gmra.mrb[0].mxu0 %v8886
      %v9192 = vpop.f32.mrb[0].mxu0
      %v9193 = vadd.f32 %v8790, %v9192
      %v9194 = vpop.f32.mrb[0].mxu0
      %v9195 = vadd.f32 %v8790, %v9194
      %v9196 = vpop.f32.mrb[0].mxu0
      %v9197 = vadd.f32 %v8795, %v9196
      %v9198 = vpop.f32.mrb[0].mxu0
      %v9199 = vadd.f32 %v8795, %v9198
      %9200 = vmatprep.mubr.bf16.mxu0 %v8892
      %9201 = vmatmul.mubr.bf16.gmra.mrb[0].mxu0 %v8891
      %v9202 = vpop.f32.mrb[0].mxu0
      %v9203 = vadd.f32 %v8800, %v9202
      %v9204 = vpop.f32.mrb[0].mxu0
      %v9205 = vadd.f32 %v8800, %v9204
      %v9206 = vpop.f32.mrb[0].mxu0
      %v9207 = vadd.f32 %v8805, %v9206
      %v9208 = vpop.f32.mrb[0].mxu0
      %v9209 = vadd.f32 %v8805, %v9208
      %9210 = vmatprep.mubr.bf16.mxu0 %v8897
      %9211 = vmatmul.mubr.bf16.gmra.mrb[0].mxu0 %v8896
      %v9212 = vpop.f32.mrb[0].mxu0
      %v9213 = vadd.f32 %v8810, %v9212
      %v9214 = vpop.f32.mrb[0].mxu0
      %v9215 = vadd.f32 %v8810, %v9214
      %v9216 = vpop.f32.mrb[0].mxu0
      %v9217 = vadd.f32 %v8815, %v9216
      %v9218 = vpop.f32.mrb[0].mxu0
      %v9219 = vadd.f32 %v8815, %v9218
      %9220 = vdwg.mxu0
      %9221 = vmatprep.subr.bf16.mxu0 %v8546
      %9222 = vmatpush1.bf16.msra.mxu0 %v8545
      %9223 = vmatprep.subr.bf16.mxu0 %v8556
      %9224 = vmatpush1.bf16.msra.mxu0 %v8555
      %9225 = vmatprep.subr.bf16.mxu0 %v8566
      %9226 = vmatpush1.bf16.msra.mxu0 %v8565
      %9227 = vmatprep.subr.bf16.mxu0 %v8576
      %9228 = vmatpush1.bf16.msra.mxu0 %v8575
      %9229 = vmatprep.subr.bf16.mxu0 %v8586
      %9230 = vmatpush1.bf16.msra.mxu0 %v8585
      %9231 = vmatprep.subr.bf16.mxu0 %v8596
      %9232 = vmatpush1.bf16.msra.mxu0 %v8595
      %9233 = vmatprep.subr.bf16.mxu0 %v8606
      %9234 = vmatpush1.bf16.msra.mxu0 %v8605
      %9235 = vmatprep.subr.bf16.mxu0 %v8616
      %9236 = vmatpush1.bf16.msra.mxu0 %v8615
      %9237 = vmatprep.subr.bf16.mxu0 %v8626
      %9238 = vmatpush1.bf16.msra.mxu0 %v8625
      %9239 = vmatprep.subr.bf16.mxu0 %v8636
      %9240 = vmatpush1.bf16.msra.mxu0 %v8635
      %9241 = vmatprep.subr.bf16.mxu0 %v8646
      %9242 = vmatpush1.bf16.msra.mxu0 %v8645
      %9243 = vmatprep.subr.bf16.mxu0 %v8656
      %9244 = vmatpush1.bf16.msra.mxu0 %v8655
      %9245 = vmatprep.subr.bf16.mxu0 %v8666
      %9246 = vmatpush1.bf16.msra.mxu0 %v8665
      %9247 = vmatprep.subr.bf16.mxu0 %v8676
      %9248 = vmatpush1.bf16.msra.mxu0 %v8675
      %9249 = vmatprep.subr.bf16.mxu0 %v8686
      %9250 = vmatpush1.bf16.msra.mxu0 %v8685
      %9251 = vmatprep.subr.bf16.mxu0 %v8696
      %9252 = vmatpush1.bf16.msra.mxu0 %v8695
      %9253 = vmatprep.mubr.bf16.mxu0 %v8884
      %9254 = vmatmul.mubr.bf16.gmra.mrb[0].mxu0 %v8883
      %v9255 = vpop.f32.mrb[0].mxu0
      %v9256 = vadd.f32 %v9183, %v9255
      %v9257 = vpop.f32.mrb[0].mxu0
      %v9258 = vadd.f32 %v9185, %v9257
      %v9259 = vpop.f32.mrb[0].mxu0
      %v9260 = vadd.f32 %v9187, %v9259
      %v9261 = vpop.f32.mrb[0].mxu0
      %v9262 = vadd.f32 %v9189, %v9261
      %9263 = vmatprep.mubr.bf16.mxu0 %v8889
      %9264 = vmatmul.mubr.bf16.gmra.mrb[0].mxu0 %v8888
      %v9265 = vpop.f32.mrb[0].mxu0
      %v9266 = vadd.f32 %v9193, %v9265
      %v9267 = vpop.f32.mrb[0].mxu0
      %v9268 = vadd.f32 %v9195, %v9267
      %v9269 = vpop.f32.mrb[0].mxu0
      %v9270 = vadd.f32 %v9197, %v9269
      %v9271 = vpop.f32.mrb[0].mxu0
      %v9272 = vadd.f32 %v9199, %v9271
      %9273 = vmatprep.mubr.bf16.mxu0 %v8894
      %9274 = vmatmul.mubr.bf16.gmra.mrb[0].mxu0 %v8893
      %v9275 = vpop.f32.mrb[0].mxu0
      %v9276 = vadd.f32 %v9203, %v9275
      %v9277 = vpop.f32.mrb[0].mxu0
      %v9278 = vadd.f32 %v9205, %v9277
      %v9279 = vpop.f32.mrb[0].mxu0
      %v9280 = vadd.f32 %v9207, %v9279
      %v9281 = vpop.f32.mrb[0].mxu0
      %v9282 = vadd.f32 %v9209, %v9281
      %9283 = vmatprep.mubr.bf16.mxu0 %v8899
      %9284 = vmatmul.mubr.bf16.gmra.mrb[0].mxu0 %v8898
      %v9285 = vpop.f32.mrb[0].mxu0
      %v9286 = vadd.f32 %v9213, %v9285
      %v9287 = vpop.f32.mrb[0].mxu0
      %v9288 = vadd.f32 %v9215, %v9287
      %v9289 = vpop.f32.mrb[0].mxu0
      %v9290 = vadd.f32 %v9217, %v9289
      %v9291 = vpop.f32.mrb[0].mxu0
      %v9292 = vadd.f32 %v9219, %v9291
      %9293 = vdwg.mxu0
      %9294 = vmatprep.subr.bf16.mxu0 %v8706
      %9295 = vmatpush1.bf16.msra.mxu0 %v8705
      %9296 = vmatprep.subr.bf16.mxu0 %v8716
      %9297 = vmatpush1.bf16.msra.mxu0 %v8715
      %9298 = vmatprep.subr.bf16.mxu0 %v8726
      %9299 = vmatpush1.bf16.msra.mxu0 %v8725
      %9300 = vmatprep.subr.bf16.mxu0 %v8736
      %9301 = vmatpush1.bf16.msra.mxu0 %v8735
      %9302 = vmatprep.subr.bf16.mxu0 0
      %9303 = vmatpush1.bf16.msra.mxu0 0
      %9304 = vmatprep.subr.bf16.mxu0 0
      %9305 = vmatpush1.bf16.msra.mxu0 0
      %9306 = vmatprep.subr.bf16.mxu0 0
      %9307 = vmatpush1.bf16.msra.mxu0 0
      %9308 = vmatprep.subr.bf16.mxu0 0
      %9309 = vmatpush1.bf16.msra.mxu0 0
      %9310 = vmatprep.subr.bf16.mxu0 0
      %9311 = vmatpush1.bf16.msra.mxu0 0
      %9312 = vmatprep.subr.bf16.mxu0 0
      %9313 = vmatpush1.bf16.msra.mxu0 0
      %9314 = vmatprep.subr.bf16.mxu0 0
      %9315 = vmatpush1.bf16.msra.mxu0 0
      %9316 = vmatprep.subr.bf16.mxu0 0
      %9317 = vmatpush1.bf16.msra.mxu0 0
      %9318 = vmatprep.subr.bf16.mxu0 0
      %9319 = vmatpush1.bf16.msra.mxu0 0
      %9320 = vmatprep.subr.bf16.mxu0 0
      %9321 = vmatpush1.bf16.msra.mxu0 0
      %9322 = vmatprep.subr.bf16.mxu0 0
      %9323 = vmatpush1.bf16.msra.mxu0 0
      %9324 = vmatprep.subr.bf16.mxu0 0
      %9325 = vmatpush1.bf16.msra.mxu0 0
      %9326 = vmatprep.mubr.bf16.mxu0 0
      %9327 = vmatmul.mubr.bf16.gmra.mrb[0].mxu0 %v8918
      %v9328 = vpop.f32.mrb[0].mxu0
      %v9329 = vadd.f32 %v9256, %v9328
      %v9330 = vpop.f32.mrb[0].mxu0
      %v9331 = vadd.f32 %v9258, %v9330
      %v9332 = vpop.f32.mrb[0].mxu0
      %v9333 = vadd.f32 %v9260, %v9332
      %v9334 = vpop.f32.mrb[0].mxu0
      %v9335 = vadd.f32 %v9262, %v9334
      %9336 = vmatprep.mubr.bf16.mxu0 0
      %9337 = vmatmul.mubr.bf16.gmra.mrb[0].mxu0 %v8921
      %v9338 = vpop.f32.mrb[0].mxu0
      %v9339 = vadd.f32 %v9266, %v9338
      %v9340 = vpop.f32.mrb[0].mxu0
      %v9341 = vadd.f32 %v9268, %v9340
      %v9342 = vpop.f32.mrb[0].mxu0
      %v9343 = vadd.f32 %v9270, %v9342
      %v9344 = vpop.f32.mrb[0].mxu0
      %v9345 = vadd.f32 %v9272, %v9344
      %9346 = vmatprep.mubr.bf16.mxu0 0
      %9347 = vmatmul.mubr.bf16.gmra.mrb[0].mxu0 %v8924
      %v9348 = vpop.f32.mrb[0].mxu0
      %v9349 = vadd.f32 %v9276, %v9348
      %v9350 = vpop.f32.mrb[0].mxu0
      %v9351 = vadd.f32 %v9278, %v9350
      %v9352 = vpop.f32.mrb[0].mxu0
      %v9353 = vadd.f32 %v9280, %v9352
      %v9354 = vpop.f32.mrb[0].mxu0
      %v9355 = vadd.f32 %v9282, %v9354
      %9356 = vmatprep.mubr.bf16.mxu0 0
      %9357 = vmatmul.mubr.bf16.gmra.mrb[0].mxu0 %v8927
      %v9358 = vpop.f32.mrb[0].mxu0
      %v9359 = vadd.f32 %v9286, %v9358
      %v9360 = vpop.f32.mrb[0].mxu0
      %v9361 = vadd.f32 %v9288, %v9360
      %v9362 = vpop.f32.mrb[0].mxu0
      %v9363 = vadd.f32 %v9290, %v9362
      %v9364 = vpop.f32.mrb[0].mxu0
      %v9365 = vadd.f32 %v9292, %v9364
      %9366 = vdwg.mxu0
      %9367 = vmatprep.subr.bf16.mxu0 %v8388
      %9368 = vmatpush1.bf16.msra.mxu0 %v8387
      %9369 = vmatprep.subr.bf16.mxu0 %v8398
      %9370 = vmatpush1.bf16.msra.mxu0 %v8397
      %9371 = vmatprep.subr.bf16.mxu0 %v8408
      %9372 = vmatpush1.bf16.msra.mxu0 %v8407
      %9373 = vmatprep.subr.bf16.mxu0 %v8418
      %9374 = vmatpush1.bf16.msra.mxu0 %v8417
      %9375 = vmatprep.subr.bf16.mxu0 %v8428
      %9376 = vmatpush1.bf16.msra.mxu0 %v8427
      %9377 = vmatprep.subr.bf16.mxu0 %v8438
      %9378 = vmatpush1.bf16.msra.mxu0 %v8437
      %9379 = vmatprep.subr.bf16.mxu0 %v8448
      %9380 = vmatpush1.bf16.msra.mxu0 %v8447
      %9381 = vmatprep.subr.bf16.mxu0 %v8458
      %9382 = vmatpush1.bf16.msra.mxu0 %v8457
      %9383 = vmatprep.subr.bf16.mxu0 %v8468
      %9384 = vmatpush1.bf16.msra.mxu0 %v8467
      %9385 = vmatprep.subr.bf16.mxu0 %v8478
      %9386 = vmatpush1.bf16.msra.mxu0 %v8477
      %9387 = vmatprep.subr.bf16.mxu0 %v8488
      %9388 = vmatpush1.bf16.msra.mxu0 %v8487
      %9389 = vmatprep.subr.bf16.mxu0 %v8498
      %9390 = vmatpush1.bf16.msra.mxu0 %v8497
      %9391 = vmatprep.subr.bf16.mxu0 %v8508
      %9392 = vmatpush1.bf16.msra.mxu0 %v8507
      %9393 = vmatprep.subr.bf16.mxu0 %v8518
      %9394 = vmatpush1.bf16.msra.mxu0 %v8517
      %9395 = vmatprep.subr.bf16.mxu0 %v8528
      %9396 = vmatpush1.bf16.msra.mxu0 %v8527
      %9397 = vmatprep.subr.bf16.mxu0 %v8538
      %9398 = vmatpush1.bf16.msra.mxu0 %v8537
      %9399 = vmatprep.mubr.bf16.mxu0 %v8882
      %9400 = vmatmul.mubr.bf16.gmra.mrb[0].mxu0 %v8881
      %v9401 = vpop.f32.mrb[0].mxu0
      %v9402 = vadd.f32 %v8780, %v9401
      %v9403 = vpop.f32.mrb[0].mxu0
      %v9404 = vadd.f32 %v8780, %v9403
      %v9405 = vpop.f32.mrb[0].mxu0
      %v9406 = vadd.f32 %v8785, %v9405
      %v9407 = vpop.f32.mrb[0].mxu0
      %v9408 = vadd.f32 %v8785, %v9407
      %9409 = vmatprep.mubr.bf16.mxu0 %v8887
      %9410 = vmatmul.mubr.bf16.gmra.mrb[0].mxu0 %v8886
      %v9411 = vpop.f32.mrb[0].mxu0
      %v9412 = vadd.f32 %v8790, %v9411
      %v9413 = vpop.f32.mrb[0].mxu0
      %v9414 = vadd.f32 %v8790, %v9413
      %v9415 = vpop.f32.mrb[0].mxu0
      %v9416 = vadd.f32 %v8795, %v9415
      %v9417 = vpop.f32.mrb[0].mxu0
      %v9418 = vadd.f32 %v8795, %v9417
      %9419 = vmatprep.mubr.bf16.mxu0 %v8892
      %9420 = vmatmul.mubr.bf16.gmra.mrb[0].mxu0 %v8891
      %v9421 = vpop.f32.mrb[0].mxu0
      %v9422 = vadd.f32 %v8800, %v9421
      %v9423 = vpop.f32.mrb[0].mxu0
      %v9424 = vadd.f32 %v8800, %v9423
      %v9425 = vpop.f32.mrb[0].mxu0
      %v9426 = vadd.f32 %v8805, %v9425
      %v9427 = vpop.f32.mrb[0].mxu0
      %v9428 = vadd.f32 %v8805, %v9427
      %9429 = vmatprep.mubr.bf16.mxu0 %v8897
      %9430 = vmatmul.mubr.bf16.gmra.mrb[0].mxu0 %v8896
      %v9431 = vpop.f32.mrb[0].mxu0
      %v9432 = vadd.f32 %v8810, %v9431
      %v9433 = vpop.f32.mrb[0].mxu0
      %v9434 = vadd.f32 %v8810, %v9433
      %v9435 = vpop.f32.mrb[0].mxu0
      %v9436 = vadd.f32 %v8815, %v9435
      %v9437 = vpop.f32.mrb[0].mxu0
      %v9438 = vadd.f32 %v8815, %v9437
      %9439 = vdwg.mxu0
      %9440 = vmatprep.subr.bf16.mxu0 %v8548
      %9441 = vmatpush1.bf16.msra.mxu0 %v8547
      %9442 = vmatprep.subr.bf16.mxu0 %v8558
      %9443 = vmatpush1.bf16.msra.mxu0 %v8557
      %9444 = vmatprep.subr.bf16.mxu0 %v8568
      %9445 = vmatpush1.bf16.msra.mxu0 %v8567
      %9446 = vmatprep.subr.bf16.mxu0 %v8578
      %9447 = vmatpush1.bf16.msra.mxu0 %v8577
      %9448 = vmatprep.subr.bf16.mxu0 %v8588
      %9449 = vmatpush1.bf16.msra.mxu0 %v8587
      %9450 = vmatprep.subr.bf16.mxu0 %v8598
      %9451 = vmatpush1.bf16.msra.mxu0 %v8597
      %9452 = vmatprep.subr.bf16.mxu0 %v8608
      %9453 = vmatpush1.bf16.msra.mxu0 %v8607
      %9454 = vmatprep.subr.bf16.mxu0 %v8618
      %9455 = vmatpush1.bf16.msra.mxu0 %v8617
      %9456 = vmatprep.subr.bf16.mxu0 %v8628
      %9457 = vmatpush1.bf16.msra.mxu0 %v8627
      %9458 = vmatprep.subr.bf16.mxu0 %v8638
      %9459 = vmatpush1.bf16.msra.mxu0 %v8637
      %9460 = vmatprep.subr.bf16.mxu0 %v8648
      %9461 = vmatpush1.bf16.msra.mxu0 %v8647
      %9462 = vmatprep.subr.bf16.mxu0 %v8658
      %9463 = vmatpush1.bf16.msra.mxu0 %v8657
      %9464 = vmatprep.subr.bf16.mxu0 %v8668
      %9465 = vmatpush1.bf16.msra.mxu0 %v8667
      %9466 = vmatprep.subr.bf16.mxu0 %v8678
      %9467 = vmatpush1.bf16.msra.mxu0 %v8677
      %9468 = vmatprep.subr.bf16.mxu0 %v8688
      %9469 = vmatpush1.bf16.msra.mxu0 %v8687
      %9470 = vmatprep.subr.bf16.mxu0 %v8698
      %9471 = vmatpush1.bf16.msra.mxu0 %v8697
      %9472 = vmatprep.mubr.bf16.mxu0 %v8884
      %9473 = vmatmul.mubr.bf16.gmra.mrb[0].mxu0 %v8883
      %v9474 = vpop.f32.mrb[0].mxu0
      %v9475 = vadd.f32 %v9402, %v9474
      %v9476 = vpop.f32.mrb[0].mxu0
      %v9477 = vadd.f32 %v9404, %v9476
      %v9478 = vpop.f32.mrb[0].mxu0
      %v9479 = vadd.f32 %v9406, %v9478
      %v9480 = vpop.f32.mrb[0].mxu0
      %v9481 = vadd.f32 %v9408, %v9480
      %9482 = vmatprep.mubr.bf16.mxu0 %v8889
      %9483 = vmatmul.mubr.bf16.gmra.mrb[0].mxu0 %v8888
      %v9484 = vpop.f32.mrb[0].mxu0
      %v9485 = vadd.f32 %v9412, %v9484
      %v9486 = vpop.f32.mrb[0].mxu0
      %v9487 = vadd.f32 %v9414, %v9486
      %v9488 = vpop.f32.mrb[0].mxu0
      %v9489 = vadd.f32 %v9416, %v9488
      %v9490 = vpop.f32.mrb[0].mxu0
      %v9491 = vadd.f32 %v9418, %v9490
      %9492 = vmatprep.mubr.bf16.mxu0 %v8894
      %9493 = vmatmul.mubr.bf16.gmra.mrb[0].mxu0 %v8893
      %v9494 = vpop.f32.mrb[0].mxu0
      %v9495 = vadd.f32 %v9422, %v9494
      %v9496 = vpop.f32.mrb[0].mxu0
      %v9497 = vadd.f32 %v9424, %v9496
      %v9498 = vpop.f32.mrb[0].mxu0
      %v9499 = vadd.f32 %v9426, %v9498
      %v9500 = vpop.f32.mrb[0].mxu0
      %v9501 = vadd.f32 %v9428, %v9500
      %9502 = vmatprep.mubr.bf16.mxu0 %v8899
      %9503 = vmatmul.mubr.bf16.gmra.mrb[0].mxu0 %v8898
      %v9504 = vpop.f32.mrb[0].mxu0
      %v9505 = vadd.f32 %v9432, %v9504
      %v9506 = vpop.f32.mrb[0].mxu0
      %v9507 = vadd.f32 %v9434, %v9506
      %v9508 = vpop.f32.mrb[0].mxu0
      %v9509 = vadd.f32 %v9436, %v9508
      %v9510 = vpop.f32.mrb[0].mxu0
      %v9511 = vadd.f32 %v9438, %v9510
      %9512 = vdwg.mxu0
      %9513 = vmatprep.subr.bf16.mxu0 %v8708
      %9514 = vmatpush1.bf16.msra.mxu0 %v8707
      %9515 = vmatprep.subr.bf16.mxu0 %v8718
      %9516 = vmatpush1.bf16.msra.mxu0 %v8717
      %9517 = vmatprep.subr.bf16.mxu0 %v8728
      %9518 = vmatpush1.bf16.msra.mxu0 %v8727
      %9519 = vmatprep.subr.bf16.mxu0 %v8738
      %9520 = vmatpush1.bf16.msra.mxu0 %v8737
      %9521 = vmatprep.subr.bf16.mxu0 0
      %9522 = vmatpush1.bf16.msra.mxu0 0
      %9523 = vmatprep.subr.bf16.mxu0 0
      %9524 = vmatpush1.bf16.msra.mxu0 0
      %9525 = vmatprep.subr.bf16.mxu0 0
      %9526 = vmatpush1.bf16.msra.mxu0 0
      %9527 = vmatprep.subr.bf16.mxu0 0
      %9528 = vmatpush1.bf16.msra.mxu0 0
      %9529 = vmatprep.subr.bf16.mxu0 0
      %9530 = vmatpush1.bf16.msra.mxu0 0
      %9531 = vmatprep.subr.bf16.mxu0 0
      %9532 = vmatpush1.bf16.msra.mxu0 0
      %9533 = vmatprep.subr.bf16.mxu0 0
      %9534 = vmatpush1.bf16.msra.mxu0 0
      %9535 = vmatprep.subr.bf16.mxu0 0
      %9536 = vmatpush1.bf16.msra.mxu0 0
      %9537 = vmatprep.subr.bf16.mxu0 0
      %9538 = vmatpush1.bf16.msra.mxu0 0
      %9539 = vmatprep.subr.bf16.mxu0 0
      %9540 = vmatpush1.bf16.msra.mxu0 0
      %9541 = vmatprep.subr.bf16.mxu0 0
      %9542 = vmatpush1.bf16.msra.mxu0 0
      %9543 = vmatprep.subr.bf16.mxu0 0
      %9544 = vmatpush1.bf16.msra.mxu0 0
      %9545 = vmatprep.mubr.bf16.mxu0 0
      %9546 = vmatmul.mubr.bf16.gmra.mrb[0].mxu0 %v8918
      %v9547 = vpop.f32.mrb[0].mxu0
      %v9548 = vadd.f32 %v9475, %v9547
      %v9549 = vpop.f32.mrb[0].mxu0
      %v9550 = vadd.f32 %v9477, %v9549
      %v9551 = vpop.f32.mrb[0].mxu0
      %v9552 = vadd.f32 %v9479, %v9551
      %v9553 = vpop.f32.mrb[0].mxu0
      %v9554 = vadd.f32 %v9481, %v9553
      %9555 = vmatprep.mubr.bf16.mxu0 0
      %9556 = vmatmul.mubr.bf16.gmra.mrb[0].mxu0 %v8921
      %v9557 = vpop.f32.mrb[0].mxu0
      %v9558 = vadd.f32 %v9485, %v9557
      %v9559 = vpop.f32.mrb[0].mxu0
      %v9560 = vadd.f32 %v9487, %v9559
      %v9561 = vpop.f32.mrb[0].mxu0
      %v9562 = vadd.f32 %v9489, %v9561
      %v9563 = vpop.f32.mrb[0].mxu0
      %v9564 = vadd.f32 %v9491, %v9563
      %9565 = vmatprep.mubr.bf16.mxu0 0
      %9566 = vmatmul.mubr.bf16.gmra.mrb[0].mxu0 %v8924
      %v9567 = vpop.f32.mrb[0].mxu0
      %v9568 = vadd.f32 %v9495, %v9567
      %v9569 = vpop.f32.mrb[0].mxu0
      %v9570 = vadd.f32 %v9497, %v9569
      %v9571 = vpop.f32.mrb[0].mxu0
      %v9572 = vadd.f32 %v9499, %v9571
      %v9573 = vpop.f32.mrb[0].mxu0
      %v9574 = vadd.f32 %v9501, %v9573
      %9575 = vmatprep.mubr.bf16.mxu0 0
      %9576 = vmatmul.mubr.bf16.gmra.mrb[0].mxu0 %v8927
      %v9577 = vpop.f32.mrb[0].mxu0
      %v9578 = vadd.f32 %v9505, %v9577
      %v9579 = vpop.f32.mrb[0].mxu0
      %v9580 = vadd.f32 %v9507, %v9579
      %v9581 = vpop.f32.mrb[0].mxu0
      %v9582 = vadd.f32 %v9509, %v9581
      %v9583 = vpop.f32.mrb[0].mxu0
      %v9584 = vadd.f32 %v9511, %v9583
      %9585 = vdwg.mxu0
      %9586 = vmatprep.subr.bf16.mxu0 %v8390
      %9587 = vmatpush1.bf16.msra.mxu0 %v8389
      %9588 = vmatprep.subr.bf16.mxu0 %v8400
      %9589 = vmatpush1.bf16.msra.mxu0 %v8399
      %9590 = vmatprep.subr.bf16.mxu0 %v8410
      %9591 = vmatpush1.bf16.msra.mxu0 %v8409
      %9592 = vmatprep.subr.bf16.mxu0 %v8420
      %9593 = vmatpush1.bf16.msra.mxu0 %v8419
      %9594 = vmatprep.subr.bf16.mxu0 %v8430
      %9595 = vmatpush1.bf16.msra.mxu0 %v8429
      %9596 = vmatprep.subr.bf16.mxu0 %v8440
      %9597 = vmatpush1.bf16.msra.mxu0 %v8439
      %9598 = vmatprep.subr.bf16.mxu0 %v8450
      %9599 = vmatpush1.bf16.msra.mxu0 %v8449
      %9600 = vmatprep.subr.bf16.mxu0 %v8460
      %9601 = vmatpush1.bf16.msra.mxu0 %v8459
      %9602 = vmatprep.subr.bf16.mxu0 %v8470
      %9603 = vmatpush1.bf16.msra.mxu0 %v8469
      %9604 = vmatprep.subr.bf16.mxu0 %v8480
      %9605 = vmatpush1.bf16.msra.mxu0 %v8479
      %9606 = vmatprep.subr.bf16.mxu0 %v8490
      %9607 = vmatpush1.bf16.msra.mxu0 %v8489
      %9608 = vmatprep.subr.bf16.mxu0 %v8500
      %9609 = vmatpush1.bf16.msra.mxu0 %v8499
      %9610 = vmatprep.subr.bf16.mxu0 %v8510
      %9611 = vmatpush1.bf16.msra.mxu0 %v8509
      %9612 = vmatprep.subr.bf16.mxu0 %v8520
      %9613 = vmatpush1.bf16.msra.mxu0 %v8519
      %9614 = vmatprep.subr.bf16.mxu0 %v8530
      %9615 = vmatpush1.bf16.msra.mxu0 %v8529
      %9616 = vmatprep.subr.bf16.mxu0 %v8540
      %9617 = vmatpush1.bf16.msra.mxu0 %v8539
      %9618 = vmatprep.mubr.bf16.mxu0 %v8882
      %9619 = vmatmul.mubr.bf16.gmra.mrb[0].mxu0 %v8881
      %v9620 = vpop.f32.mrb[0].mxu0
      %v9621 = vadd.f32 %v8780, %v9620
      %v9622 = vpop.f32.mrb[0].mxu0
      %v9623 = vadd.f32 %v8780, %v9622
      %v9624 = vpop.f32.mrb[0].mxu0
      %v9625 = vadd.f32 %v8785, %v9624
      %v9626 = vpop.f32.mrb[0].mxu0
      %v9627 = vadd.f32 %v8785, %v9626
      %9628 = vmatprep.mubr.bf16.mxu0 %v8887
      %9629 = vmatmul.mubr.bf16.gmra.mrb[0].mxu0 %v8886
      %v9630 = vpop.f32.mrb[0].mxu0
      %v9631 = vadd.f32 %v8790, %v9630
      %v9632 = vpop.f32.mrb[0].mxu0
      %v9633 = vadd.f32 %v8790, %v9632
      %v9634 = vpop.f32.mrb[0].mxu0
      %v9635 = vadd.f32 %v8795, %v9634
      %v9636 = vpop.f32.mrb[0].mxu0
      %v9637 = vadd.f32 %v8795, %v9636
      %9638 = vmatprep.mubr.bf16.mxu0 %v8892
      %9639 = vmatmul.mubr.bf16.gmra.mrb[0].mxu0 %v8891
      %v9640 = vpop.f32.mrb[0].mxu0
      %v9641 = vadd.f32 %v8800, %v9640
      %v9642 = vpop.f32.mrb[0].mxu0
      %v9643 = vadd.f32 %v8800, %v9642
      %v9644 = vpop.f32.mrb[0].mxu0
      %v9645 = vadd.f32 %v8805, %v9644
      %v9646 = vpop.f32.mrb[0].mxu0
      %v9647 = vadd.f32 %v8805, %v9646
      %9648 = vmatprep.mubr.bf16.mxu0 %v8897
      %9649 = vmatmul.mubr.bf16.gmra.mrb[0].mxu0 %v8896
      %v9650 = vpop.f32.mrb[0].mxu0
      %v9651 = vadd.f32 %v8810, %v9650
      %v9652 = vpop.f32.mrb[0].mxu0
      %v9653 = vadd.f32 %v8810, %v9652
      %v9654 = vpop.f32.mrb[0].mxu0
      %v9655 = vadd.f32 %v8815, %v9654
      %v9656 = vpop.f32.mrb[0].mxu0
      %v9657 = vadd.f32 %v8815, %v9656
      %9658 = vdwg.mxu0
      %9659 = vmatprep.subr.bf16.mxu0 %v8550
      %9660 = vmatpush1.bf16.msra.mxu0 %v8549
      %9661 = vmatprep.subr.bf16.mxu0 %v8560
      %9662 = vmatpush1.bf16.msra.mxu0 %v8559
      %9663 = vmatprep.subr.bf16.mxu0 %v8570
      %9664 = vmatpush1.bf16.msra.mxu0 %v8569
      %9665 = vmatprep.subr.bf16.mxu0 %v8580
      %9666 = vmatpush1.bf16.msra.mxu0 %v8579
      %9667 = vmatprep.subr.bf16.mxu0 %v8590
      %9668 = vmatpush1.bf16.msra.mxu0 %v8589
      %9669 = vmatprep.subr.bf16.mxu0 %v8600
      %9670 = vmatpush1.bf16.msra.mxu0 %v8599
      %9671 = vmatprep.subr.bf16.mxu0 %v8610
      %9672 = vmatpush1.bf16.msra.mxu0 %v8609
      %9673 = vmatprep.subr.bf16.mxu0 %v8620
      %9674 = vmatpush1.bf16.msra.mxu0 %v8619
      %9675 = vmatprep.subr.bf16.mxu0 %v8630
      %9676 = vmatpush1.bf16.msra.mxu0 %v8629
      %9677 = vmatprep.subr.bf16.mxu0 %v8640
      %9678 = vmatpush1.bf16.msra.mxu0 %v8639
      %9679 = vmatprep.subr.bf16.mxu0 %v8650
      %9680 = vmatpush1.bf16.msra.mxu0 %v8649
      %9681 = vmatprep.subr.bf16.mxu0 %v8660
      %9682 = vmatpush1.bf16.msra.mxu0 %v8659
      %9683 = vmatprep.subr.bf16.mxu0 %v8670
      %9684 = vmatpush1.bf16.msra.mxu0 %v8669
      %9685 = vmatprep.subr.bf16.mxu0 %v8680
      %9686 = vmatpush1.bf16.msra.mxu0 %v8679
      %9687 = vmatprep.subr.bf16.mxu0 %v8690
      %9688 = vmatpush1.bf16.msra.mxu0 %v8689
      %9689 = vmatprep.subr.bf16.mxu0 %v8700
      %9690 = vmatpush1.bf16.msra.mxu0 %v8699
      %9691 = vmatprep.mubr.bf16.mxu0 %v8884
      %9692 = vmatmul.mubr.bf16.gmra.mrb[0].mxu0 %v8883
      %v9693 = vpop.f32.mrb[0].mxu0
      %v9694 = vadd.f32 %v9621, %v9693
      %v9695 = vpop.f32.mrb[0].mxu0
      %v9696 = vadd.f32 %v9623, %v9695
      %v9697 = vpop.f32.mrb[0].mxu0
      %v9698 = vadd.f32 %v9625, %v9697
      %v9699 = vpop.f32.mrb[0].mxu0
      %v9700 = vadd.f32 %v9627, %v9699
      %9701 = vmatprep.mubr.bf16.mxu0 %v8889
      %9702 = vmatmul.mubr.bf16.gmra.mrb[0].mxu0 %v8888
      %v9703 = vpop.f32.mrb[0].mxu0
      %v9704 = vadd.f32 %v9631, %v9703
      %v9705 = vpop.f32.mrb[0].mxu0
      %v9706 = vadd.f32 %v9633, %v9705
      %v9707 = vpop.f32.mrb[0].mxu0
      %v9708 = vadd.f32 %v9635, %v9707
      %v9709 = vpop.f32.mrb[0].mxu0
      %v9710 = vadd.f32 %v9637, %v9709
      %9711 = vmatprep.mubr.bf16.mxu0 %v8894
      %9712 = vmatmul.mubr.bf16.gmra.mrb[0].mxu0 %v8893
      %v9713 = vpop.f32.mrb[0].mxu0
      %v9714 = vadd.f32 %v9641, %v9713
      %v9715 = vpop.f32.mrb[0].mxu0
      %v9716 = vadd.f32 %v9643, %v9715
      %v9717 = vpop.f32.mrb[0].mxu0
      %v9718 = vadd.f32 %v9645, %v9717
      %v9719 = vpop.f32.mrb[0].mxu0
      %v9720 = vadd.f32 %v9647, %v9719
      %9721 = vmatprep.mubr.bf16.mxu0 %v8899
      %9722 = vmatmul.mubr.bf16.gmra.mrb[0].mxu0 %v8898
      %v9723 = vpop.f32.mrb[0].mxu0
      %v9724 = vadd.f32 %v9651, %v9723
      %v9725 = vpop.f32.mrb[0].mxu0
      %v9726 = vadd.f32 %v9653, %v9725
      %v9727 = vpop.f32.mrb[0].mxu0
      %v9728 = vadd.f32 %v9655, %v9727
      %v9729 = vpop.f32.mrb[0].mxu0
      %v9730 = vadd.f32 %v9657, %v9729
      %9731 = vdwg.mxu0
      %9732 = vmatprep.subr.bf16.mxu0 %v8710
      %9733 = vmatpush1.bf16.msra.mxu0 %v8709
      %9734 = vmatprep.subr.bf16.mxu0 %v8720
      %9735 = vmatpush1.bf16.msra.mxu0 %v8719
      %9736 = vmatprep.subr.bf16.mxu0 %v8730
      %9737 = vmatpush1.bf16.msra.mxu0 %v8729
      %9738 = vmatprep.subr.bf16.mxu0 %v8740
      %9739 = vmatpush1.bf16.msra.mxu0 %v8739
      %9740 = vmatprep.subr.bf16.mxu0 0
      %9741 = vmatpush1.bf16.msra.mxu0 0
      %9742 = vmatprep.subr.bf16.mxu0 0
      %9743 = vmatpush1.bf16.msra.mxu0 0
      %9744 = vmatprep.subr.bf16.mxu0 0
      %9745 = vmatpush1.bf16.msra.mxu0 0
      %9746 = vmatprep.subr.bf16.mxu0 0
      %9747 = vmatpush1.bf16.msra.mxu0 0
      %9748 = vmatprep.subr.bf16.mxu0 0
      %9749 = vmatpush1.bf16.msra.mxu0 0
      %9750 = vmatprep.subr.bf16.mxu0 0
      %9751 = vmatpush1.bf16.msra.mxu0 0
      %9752 = vmatprep.subr.bf16.mxu0 0
      %9753 = vmatpush1.bf16.msra.mxu0 0
      %9754 = vmatprep.subr.bf16.mxu0 0
      %9755 = vmatpush1.bf16.msra.mxu0 0
      %9756 = vmatprep.subr.bf16.mxu0 0
      %9757 = vmatpush1.bf16.msra.mxu0 0
      %9758 = vmatprep.subr.bf16.mxu0 0
      %9759 = vmatpush1.bf16.msra.mxu0 0
      %9760 = vmatprep.subr.bf16.mxu0 0
      %9761 = vmatpush1.bf16.msra.mxu0 0
      %9762 = vmatprep.subr.bf16.mxu0 0
      %9763 = vmatpush1.bf16.msra.mxu0 0
      %9764 = vmatprep.mubr.bf16.mxu0 0
      %9765 = vmatmul.mubr.bf16.gmra.mrb[0].mxu0 %v8918
      %v9766 = vpop.f32.mrb[0].mxu0
      %v9767 = vadd.f32 %v9694, %v9766
      %v9768 = vpop.f32.mrb[0].mxu0
      %v9769 = vadd.f32 %v9696, %v9768
      %v9770 = vpop.f32.mrb[0].mxu0
      %v9771 = vadd.f32 %v9698, %v9770
      %v9772 = vpop.f32.mrb[0].mxu0
      %v9773 = vadd.f32 %v9700, %v9772
      %9774 = vmatprep.mubr.bf16.mxu0 0
      %9775 = vmatmul.mubr.bf16.gmra.mrb[0].mxu0 %v8921
      %v9776 = vpop.f32.mrb[0].mxu0
      %v9777 = vadd.f32 %v9704, %v9776
      %v9778 = vpop.f32.mrb[0].mxu0
      %v9779 = vadd.f32 %v9706, %v9778
      %v9780 = vpop.f32.mrb[0].mxu0
      %v9781 = vadd.f32 %v9708, %v9780
      %v9782 = vpop.f32.mrb[0].mxu0
      %v9783 = vadd.f32 %v9710, %v9782
      %9784 = vmatprep.mubr.bf16.mxu0 0
      %9785 = vmatmul.mubr.bf16.gmra.mrb[0].mxu0 %v8924
      %v9786 = vpop.f32.mrb[0].mxu0
      %v9787 = vadd.f32 %v9714, %v9786
      %v9788 = vpop.f32.mrb[0].mxu0
      %v9789 = vadd.f32 %v9716, %v9788
      %v9790 = vpop.f32.mrb[0].mxu0
      %v9791 = vadd.f32 %v9718, %v9790
      %v9792 = vpop.f32.mrb[0].mxu0
      %v9793 = vadd.f32 %v9720, %v9792
      %9794 = vmatprep.mubr.bf16.mxu0 0
      %9795 = vmatmul.mubr.bf16.gmra.mrb[0].mxu0 %v8927
      %v9796 = vpop.f32.mrb[0].mxu0
      %v9797 = vadd.f32 %v9724, %v9796
      %v9798 = vpop.f32.mrb[0].mxu0
      %v9799 = vadd.f32 %v9726, %v9798
      %v9800 = vpop.f32.mrb[0].mxu0
      %v9801 = vadd.f32 %v9728, %v9800
      %v9802 = vpop.f32.mrb[0].mxu0
      %v9803 = vadd.f32 %v9730, %v9802
      %9804 = vdwg.mxu0
      %9805 = vmatprep.subr.bf16.mxu0 %v8392
      %9806 = vmatpush1.bf16.msra.mxu0 %v8391
      %9807 = vmatprep.subr.bf16.mxu0 %v8402
      %9808 = vmatpush1.bf16.msra.mxu0 %v8401
      %9809 = vmatprep.subr.bf16.mxu0 %v8412
      %9810 = vmatpush1.bf16.msra.mxu0 %v8411
      %9811 = vmatprep.subr.bf16.mxu0 %v8422
      %9812 = vmatpush1.bf16.msra.mxu0 %v8421
      %9813 = vmatprep.subr.bf16.mxu0 %v8432
      %9814 = vmatpush1.bf16.msra.mxu0 %v8431
      %9815 = vmatprep.subr.bf16.mxu0 %v8442
      %9816 = vmatpush1.bf16.msra.mxu0 %v8441
      %9817 = vmatprep.subr.bf16.mxu0 %v8452
      %9818 = vmatpush1.bf16.msra.mxu0 %v8451
      %9819 = vmatprep.subr.bf16.mxu0 %v8462
      %9820 = vmatpush1.bf16.msra.mxu0 %v8461
      %9821 = vmatprep.subr.bf16.mxu0 %v8472
      %9822 = vmatpush1.bf16.msra.mxu0 %v8471
      %9823 = vmatprep.subr.bf16.mxu0 %v8482
      %9824 = vmatpush1.bf16.msra.mxu0 %v8481
      %9825 = vmatprep.subr.bf16.mxu0 %v8492
      %9826 = vmatpush1.bf16.msra.mxu0 %v8491
      %9827 = vmatprep.subr.bf16.mxu0 %v8502
      %9828 = vmatpush1.bf16.msra.mxu0 %v8501
      %9829 = vmatprep.subr.bf16.mxu0 %v8512
      %9830 = vmatpush1.bf16.msra.mxu0 %v8511
      %9831 = vmatprep.subr.bf16.mxu0 %v8522
      %9832 = vmatpush1.bf16.msra.mxu0 %v8521
      %9833 = vmatprep.subr.bf16.mxu0 %v8532
      %9834 = vmatpush1.bf16.msra.mxu0 %v8531
      %9835 = vmatprep.subr.bf16.mxu0 %v8542
      %9836 = vmatpush1.bf16.msra.mxu0 %v8541
      %9837 = vmatprep.mubr.bf16.mxu0 %v8882
      %9838 = vmatmul.mubr.bf16.gmra.mrb[0].mxu0 %v8881
      %v9839 = vpop.f32.mrb[0].mxu0
      %v9840 = vadd.f32 %v8780, %v9839
      %v9841 = vpop.f32.mrb[0].mxu0
      %v9842 = vadd.f32 %v8780, %v9841
      %v9843 = vpop.f32.mrb[0].mxu0
      %v9844 = vadd.f32 %v8785, %v9843
      %v9845 = vpop.f32.mrb[0].mxu0
      %v9846 = vadd.f32 %v8785, %v9845
      %9847 = vmatprep.mubr.bf16.mxu0 %v8887
      %9848 = vmatmul.mubr.bf16.gmra.mrb[0].mxu0 %v8886
      %v9849 = vpop.f32.mrb[0].mxu0
      %v9850 = vadd.f32 %v8790, %v9849
      %v9851 = vpop.f32.mrb[0].mxu0
      %v9852 = vadd.f32 %v8790, %v9851
      %v9853 = vpop.f32.mrb[0].mxu0
      %v9854 = vadd.f32 %v8795, %v9853
      %v9855 = vpop.f32.mrb[0].mxu0
      %v9856 = vadd.f32 %v8795, %v9855
      %9857 = vmatprep.mubr.bf16.mxu0 %v8892
      %9858 = vmatmul.mubr.bf16.gmra.mrb[0].mxu0 %v8891
      %v9859 = vpop.f32.mrb[0].mxu0
      %v9860 = vadd.f32 %v8800, %v9859
      %v9861 = vpop.f32.mrb[0].mxu0
      %v9862 = vadd.f32 %v8800, %v9861
      %v9863 = vpop.f32.mrb[0].mxu0
      %v9864 = vadd.f32 %v8805, %v9863
      %v9865 = vpop.f32.mrb[0].mxu0
      %v9866 = vadd.f32 %v8805, %v9865
      %9867 = vmatprep.mubr.bf16.mxu0 %v8897
      %9868 = vmatmul.mubr.bf16.gmra.mrb[0].mxu0 %v8896
      %v9869 = vpop.f32.mrb[0].mxu0
      %v9870 = vadd.f32 %v8810, %v9869
      %v9871 = vpop.f32.mrb[0].mxu0
      %v9872 = vadd.f32 %v8810, %v9871
      %v9873 = vpop.f32.mrb[0].mxu0
      %v9874 = vadd.f32 %v8815, %v9873
      %v9875 = vpop.f32.mrb[0].mxu0
      %v9876 = vadd.f32 %v8815, %v9875
      %9877 = vdwg.mxu0
      %9878 = vmatprep.subr.bf16.mxu0 %v8552
      %9879 = vmatpush1.bf16.msra.mxu0 %v8551
      %9880 = vmatprep.subr.bf16.mxu0 %v8562
      %9881 = vmatpush1.bf16.msra.mxu0 %v8561
      %9882 = vmatprep.subr.bf16.mxu0 %v8572
      %9883 = vmatpush1.bf16.msra.mxu0 %v8571
      %9884 = vmatprep.subr.bf16.mxu0 %v8582
      %9885 = vmatpush1.bf16.msra.mxu0 %v8581
      %9886 = vmatprep.subr.bf16.mxu0 %v8592
      %9887 = vmatpush1.bf16.msra.mxu0 %v8591
      %9888 = vmatprep.subr.bf16.mxu0 %v8602
      %9889 = vmatpush1.bf16.msra.mxu0 %v8601
      %9890 = vmatprep.subr.bf16.mxu0 %v8612
      %9891 = vmatpush1.bf16.msra.mxu0 %v8611
      %9892 = vmatprep.subr.bf16.mxu0 %v8622
      %9893 = vmatpush1.bf16.msra.mxu0 %v8621
      %9894 = vmatprep.subr.bf16.mxu0 %v8632
      %9895 = vmatpush1.bf16.msra.mxu0 %v8631
      %9896 = vmatprep.subr.bf16.mxu0 %v8642
      %9897 = vmatpush1.bf16.msra.mxu0 %v8641
      %9898 = vmatprep.subr.bf16.mxu0 %v8652
      %9899 = vmatpush1.bf16.msra.mxu0 %v8651
      %9900 = vmatprep.subr.bf16.mxu0 %v8662
      %9901 = vmatpush1.bf16.msra.mxu0 %v8661
      %9902 = vmatprep.subr.bf16.mxu0 %v8672
      %9903 = vmatpush1.bf16.msra.mxu0 %v8671
      %9904 = vmatprep.subr.bf16.mxu0 %v8682
      %9905 = vmatpush1.bf16.msra.mxu0 %v8681
      %9906 = vmatprep.subr.bf16.mxu0 %v8692
      %9907 = vmatpush1.bf16.msra.mxu0 %v8691
      %9908 = vmatprep.subr.bf16.mxu0 %v8702
      %9909 = vmatpush1.bf16.msra.mxu0 %v8701
      %9910 = vmatprep.mubr.bf16.mxu0 %v8884
      %9911 = vmatmul.mubr.bf16.gmra.mrb[0].mxu0 %v8883
      %v9912 = vpop.f32.mrb[0].mxu0
      %v9913 = vadd.f32 %v9840, %v9912
      %v9914 = vpop.f32.mrb[0].mxu0
      %v9915 = vadd.f32 %v9842, %v9914
      %v9916 = vpop.f32.mrb[0].mxu0
      %v9917 = vadd.f32 %v9844, %v9916
      %v9918 = vpop.f32.mrb[0].mxu0
      %v9919 = vadd.f32 %v9846, %v9918
      %9920 = vmatprep.mubr.bf16.mxu0 %v8889
      %9921 = vmatmul.mubr.bf16.gmra.mrb[0].mxu0 %v8888
      %v9922 = vpop.f32.mrb[0].mxu0
      %v9923 = vadd.f32 %v9850, %v9922
      %v9924 = vpop.f32.mrb[0].mxu0
      %v9925 = vadd.f32 %v9852, %v9924
      %v9926 = vpop.f32.mrb[0].mxu0
      %v9927 = vadd.f32 %v9854, %v9926
      %v9928 = vpop.f32.mrb[0].mxu0
      %v9929 = vadd.f32 %v9856, %v9928
      %9930 = vmatprep.mubr.bf16.mxu0 %v8894
      %9931 = vmatmul.mubr.bf16.gmra.mrb[0].mxu0 %v8893
      %v9932 = vpop.f32.mrb[0].mxu0
      %v9933 = vadd.f32 %v9860, %v9932
      %v9934 = vpop.f32.mrb[0].mxu0
      %v9935 = vadd.f32 %v9862, %v9934
      %v9936 = vpop.f32.mrb[0].mxu0
      %v9937 = vadd.f32 %v9864, %v9936
      %v9938 = vpop.f32.mrb[0].mxu0
      %v9939 = vadd.f32 %v9866, %v9938
      %9940 = vmatprep.mubr.bf16.mxu0 %v8899
      %9941 = vmatmul.mubr.bf16.gmra.mrb[0].mxu0 %v8898
      %v9942 = vpop.f32.mrb[0].mxu0
      %v9943 = vadd.f32 %v9870, %v9942
      %v9944 = vpop.f32.mrb[0].mxu0
      %v9945 = vadd.f32 %v9872, %v9944
      %v9946 = vpop.f32.mrb[0].mxu0
      %v9947 = vadd.f32 %v9874, %v9946
      %v9948 = vpop.f32.mrb[0].mxu0
      %v9949 = vadd.f32 %v9876, %v9948
      %9950 = vdwg.mxu0
      %9951 = vmatprep.subr.bf16.mxu0 %v8712
      %9952 = vmatpush1.bf16.msra.mxu0 %v8711
      %9953 = vmatprep.subr.bf16.mxu0 %v8722
      %9954 = vmatpush1.bf16.msra.mxu0 %v8721
      %9955 = vmatprep.subr.bf16.mxu0 %v8732
      %9956 = vmatpush1.bf16.msra.mxu0 %v8731
      %9957 = vmatprep.subr.bf16.mxu0 %v8742
      %9958 = vmatpush1.bf16.msra.mxu0 %v8741
      %9959 = vmatprep.subr.bf16.mxu0 0
      %9960 = vmatpush1.bf16.msra.mxu0 0
      %9961 = vmatprep.subr.bf16.mxu0 0
      %9962 = vmatpush1.bf16.msra.mxu0 0
      %9963 = vmatprep.subr.bf16.mxu0 0
      %9964 = vmatpush1.bf16.msra.mxu0 0
      %9965 = vmatprep.subr.bf16.mxu0 0
      %9966 = vmatpush1.bf16.msra.mxu0 0
      %9967 = vmatprep.subr.bf16.mxu0 0
      %9968 = vmatpush1.bf16.msra.mxu0 0
      %9969 = vmatprep.subr.bf16.mxu0 0
      %9970 = vmatpush1.bf16.msra.mxu0 0
      %9971 = vmatprep.subr.bf16.mxu0 0
      %9972 = vmatpush1.bf16.msra.mxu0 0
      %9973 = vmatprep.subr.bf16.mxu0 0
      %9974 = vmatpush1.bf16.msra.mxu0 0
      %9975 = vmatprep.subr.bf16.mxu0 0
      %9976 = vmatpush1.bf16.msra.mxu0 0
      %9977 = vmatprep.subr.bf16.mxu0 0
      %9978 = vmatpush1.bf16.msra.mxu0 0
      %9979 = vmatprep.subr.bf16.mxu0 0
      %9980 = vmatpush1.bf16.msra.mxu0 0
      %9981 = vmatprep.subr.bf16.mxu0 0
      %9982 = vmatpush1.bf16.msra.mxu0 0
      %9983 = vmatprep.mubr.bf16.mxu0 0
      %9984 = vmatmul.mubr.bf16.gmra.mrb[0].mxu0 %v8918
      %v9985 = vpop.f32.mrb[0].mxu0
      %v9986 = vadd.f32 %v9913, %v9985
      %v9987 = vpop.f32.mrb[0].mxu0
      %v9988 = vadd.f32 %v9915, %v9987
      %v9989 = vpop.f32.mrb[0].mxu0
      %v9990 = vadd.f32 %v9917, %v9989
      %v9991 = vpop.f32.mrb[0].mxu0
      %v9992 = vadd.f32 %v9919, %v9991
      %9993 = vmatprep.mubr.bf16.mxu0 0
      %9994 = vmatmul.mubr.bf16.gmra.mrb[0].mxu0 %v8921
      %v9995 = vpop.f32.mrb[0].mxu0
      %v9996 = vadd.f32 %v9923, %v9995
      %v9997 = vpop.f32.mrb[0].mxu0
      %v9998 = vadd.f32 %v9925, %v9997
      %v9999 = vpop.f32.mrb[0].mxu0
      %v10000 = vadd.f32 %v9927, %v9999
      %v10001 = vpop.f32.mrb[0].mxu0
      %v10002 = vadd.f32 %v9929, %v10001
      %10003 = vmatprep.mubr.bf16.mxu0 0
      %10004 = vmatmul.mubr.bf16.gmra.mrb[0].mxu0 %v8924
      %v10005 = vpop.f32.mrb[0].mxu0
      %v10006 = vadd.f32 %v9933, %v10005
      %v10007 = vpop.f32.mrb[0].mxu0
      %v10008 = vadd.f32 %v9935, %v10007
      %v10009 = vpop.f32.mrb[0].mxu0
      %v10010 = vadd.f32 %v9937, %v10009
      %v10011 = vpop.f32.mrb[0].mxu0
      %v10012 = vadd.f32 %v9939, %v10011
      %10013 = vmatprep.mubr.bf16.mxu0 0
      %10014 = vmatmul.mubr.bf16.gmra.mrb[0].mxu0 %v8927
      %v10015 = vpop.f32.mrb[0].mxu0
      %v10016 = vadd.f32 %v9943, %v10015
      %v10017 = vpop.f32.mrb[0].mxu0
      %v10018 = vadd.f32 %v9945, %v10017
      %v10019 = vpop.f32.mrb[0].mxu0
      %v10020 = vadd.f32 %v9947, %v10019
      %v10021 = vpop.f32.mrb[0].mxu0
      %v10022 = vadd.f32 %v9949, %v10021
      %10023 = vdwg.mxu0
      %v10024 = vmax.f32 %v9110, 0.0
      %v10025 = vmax.f32 %v9112, 0.0
      %v10026 = vmax.f32 %v9329, 0.0
      %v10027 = vmax.f32 %v9331, 0.0
      %v10028 = vmax.f32 %v9548, 0.0
      %v10029 = vmax.f32 %v9550, 0.0
      %v10030 = vmax.f32 %v9767, 0.0
      %v10031 = vmax.f32 %v9769, 0.0
      %v10032 = vmax.f32 %v9986, 0.0
      %v10033 = vmax.f32 %v9988, 0.0
      %v10034 = vmax.f32 %v9114, 0.0
      %v10035 = vmax.f32 %v9116, 0.0
      %v10036 = vmax.f32 %v9333, 0.0
      %v10037 = vmax.f32 %v9335, 0.0
      %v10038 = vmax.f32 %v9552, 0.0
      %v10039 = vmax.f32 %v9554, 0.0
      %v10040 = vmax.f32 %v9771, 0.0
      %v10041 = vmax.f32 %v9773, 0.0
      %v10042 = vmax.f32 %v9990, 0.0
      %v10043 = vmax.f32 %v9992, 0.0
      %v10044 = vmax.f32 %v9120, 0.0
      %v10045 = vmax.f32 %v9122, 0.0
      %v10046 = vmax.f32 %v9339, 0.0
      %v10047 = vmax.f32 %v9341, 0.0
      %v10048 = vmax.f32 %v9558, 0.0
      %v10049 = vmax.f32 %v9560, 0.0
      %v10050 = vmax.f32 %v9777, 0.0
      %v10051 = vmax.f32 %v9779, 0.0
      %v10052 = vmax.f32 %v9996, 0.0
      %v10053 = vmax.f32 %v9998, 0.0
      %v10054 = vmax.f32 %v9124, 0.0
      %v10055 = vmax.f32 %v9126, 0.0
      %v10056 = vmax.f32 %v9343, 0.0
      %v10057 = vmax.f32 %v9345, 0.0
      %v10058 = vmax.f32 %v9562, 0.0
      %v10059 = vmax.f32 %v9564, 0.0
      %v10060 = vmax.f32 %v9781, 0.0
      %v10061 = vmax.f32 %v9783, 0.0
      %v10062 = vmax.f32 %v10000, 0.0
      %v10063 = vmax.f32 %v10002, 0.0
      %v10064 = vmax.f32 %v9130, 0.0
      %v10065 = vmax.f32 %v9132, 0.0
      %v10066 = vmax.f32 %v9349, 0.0
      %v10067 = vmax.f32 %v9351, 0.0
      %v10068 = vmax.f32 %v9568, 0.0
      %v10069 = vmax.f32 %v9570, 0.0
      %v10070 = vmax.f32 %v9787, 0.0
      %v10071 = vmax.f32 %v9789, 0.0
      %v10072 = vmax.f32 %v10006, 0.0
      %v10073 = vmax.f32 %v10008, 0.0
      %v10074 = vmax.f32 %v9134, 0.0
      %v10075 = vmax.f32 %v9136, 0.0
      %v10076 = vmax.f32 %v9353, 0.0
      %v10077 = vmax.f32 %v9355, 0.0
      %v10078 = vmax.f32 %v9572, 0.0
      %v10079 = vmax.f32 %v9574, 0.0
      %v10080 = vmax.f32 %v9791, 0.0
      %v10081 = vmax.f32 %v9793, 0.0
      %v10082 = vmax.f32 %v10010, 0.0
      %v10083 = vmax.f32 %v10012, 0.0
      %v10084 = vmax.f32 %v9140, 0.0
      %v10085 = vmax.f32 %v9142, 0.0
      %v10086 = vmax.f32 %v9359, 0.0
      %v10087 = vmax.f32 %v9361, 0.0
      %v10088 = vmax.f32 %v9578, 0.0
      %v10089 = vmax.f32 %v9580, 0.0
      %v10090 = vmax.f32 %v9797, 0.0
      %v10091 = vmax.f32 %v9799, 0.0
      %v10092 = vmax.f32 %v10016, 0.0
      %v10093 = vmax.f32 %v10018, 0.0
      %v10094 = vmax.f32 %v9144, 0.0
      %v10095 = vmax.f32 %v9146, 0.0
      %v10096 = vmax.f32 %v9363, 0.0
      %v10097 = vmax.f32 %v9365, 0.0
      %v10098 = vmax.f32 %v9582, 0.0
      %v10099 = vmax.f32 %v9584, 0.0
      %v10100 = vmax.f32 %v9801, 0.0
      %v10101 = vmax.f32 %v9803, 0.0
      %v10102 = vmax.f32 %v10020, 0.0
      %v10103 = vmax.f32 %v10022, 0.0
      %v10104 = vpack.c.bf16 %v10034, %v10024
      %v10105 = vpack.c.bf16 %v10035, %v10025
      %v10106 = vpack.c.bf16 %v10036, %v10026
      %v10107 = vpack.c.bf16 %v10037, %v10027
      %v10108 = vpack.c.bf16 %v10038, %v10028
      %v10109 = vpack.c.bf16 %v10039, %v10029
      %v10110 = vpack.c.bf16 %v10040, %v10030
      %v10111 = vpack.c.bf16 %v10041, %v10031
      %v10112 = vpack.c.bf16 %v10042, %v10032
      %v10113 = vpack.c.bf16 %v10043, %v10033
      %v10114 = vpack.c.bf16 %v10054, %v10044
      %v10115 = vpack.c.bf16 %v10055, %v10045
      %v10116 = vpack.c.bf16 %v10056, %v10046
      %v10117 = vpack.c.bf16 %v10057, %v10047
      %v10118 = vpack.c.bf16 %v10058, %v10048
      %v10119 = vpack.c.bf16 %v10059, %v10049
      %v10120 = vpack.c.bf16 %v10060, %v10050
      %v10121 = vpack.c.bf16 %v10061, %v10051
      %v10122 = vpack.c.bf16 %v10062, %v10052
      %v10123 = vpack.c.bf16 %v10063, %v10053
      %v10124 = vpack.c.bf16 %v10074, %v10064
      %v10125 = vpack.c.bf16 %v10075, %v10065
      %v10126 = vpack.c.bf16 %v10076, %v10066
      %v10127 = vpack.c.bf16 %v10077, %v10067
      %v10128 = vpack.c.bf16 %v10078, %v10068
      %v10129 = vpack.c.bf16 %v10079, %v10069
      %v10130 = vpack.c.bf16 %v10080, %v10070
      %v10131 = vpack.c.bf16 %v10081, %v10071
      %v10132 = vpack.c.bf16 %v10082, %v10072
      %v10133 = vpack.c.bf16 %v10083, %v10073
      %v10134 = vpack.c.bf16 %v10094, %v10084
      %v10135 = vpack.c.bf16 %v10095, %v10085
      %v10136 = vpack.c.bf16 %v10096, %v10086
      %v10137 = vpack.c.bf16 %v10097, %v10087
      %v10138 = vpack.c.bf16 %v10098, %v10088
      %v10139 = vpack.c.bf16 %v10099, %v10089
      %v10140 = vpack.c.bf16 %v10100, %v10090
      %v10141 = vpack.c.bf16 %v10101, %v10091
      %v10142 = vpack.c.bf16 %v10102, %v10092
      %v10143 = vpack.c.bf16 %v10103, %v10093
      %v10184 = vunpack.c.l.b16 %v10104
      %v10185 = vunpack.c.l.b16 %v10105
      %v10186 = vunpack.c.l.b16 %v10106
      %v10187 = vunpack.c.l.b16 %v10107
      %v10188 = vunpack.c.l.b16 %v10108
      %v10189 = vunpack.c.l.b16 %v10109
      %v10190 = vunpack.c.l.b16 %v10110
      %v10191 = vunpack.c.l.b16 %v10111
      %v10192 = vunpack.c.l.b16 %v10112
      %v10193 = vunpack.c.l.b16 %v10113
      %v10194 = vunpack.c.h.b16 %v10104
      %v10195 = vunpack.c.h.b16 %v10105
      %v10196 = vunpack.c.h.b16 %v10106
      %v10197 = vunpack.c.h.b16 %v10107
      %v10198 = vunpack.c.h.b16 %v10108
      %v10199 = vunpack.c.h.b16 %v10109
      %v10200 = vunpack.c.h.b16 %v10110
      %v10201 = vunpack.c.h.b16 %v10111
      %v10202 = vunpack.c.h.b16 %v10112
      %v10203 = vunpack.c.h.b16 %v10113
      %v10204 = vunpack.c.l.b16 %v10114
      %v10205 = vunpack.c.l.b16 %v10115
      %v10206 = vunpack.c.l.b16 %v10116
      %v10207 = vunpack.c.l.b16 %v10117
      %v10208 = vunpack.c.l.b16 %v10118
      %v10209 = vunpack.c.l.b16 %v10119
      %v10210 = vunpack.c.l.b16 %v10120
      %v10211 = vunpack.c.l.b16 %v10121
      %v10212 = vunpack.c.l.b16 %v10122
      %v10213 = vunpack.c.l.b16 %v10123
      %v10214 = vunpack.c.h.b16 %v10114
      %v10215 = vunpack.c.h.b16 %v10115
      %v10216 = vunpack.c.h.b16 %v10116
      %v10217 = vunpack.c.h.b16 %v10117
      %v10218 = vunpack.c.h.b16 %v10118
      %v10219 = vunpack.c.h.b16 %v10119
      %v10220 = vunpack.c.h.b16 %v10120
      %v10221 = vunpack.c.h.b16 %v10121
      %v10222 = vunpack.c.h.b16 %v10122
      %v10223 = vunpack.c.h.b16 %v10123
      %v10224 = vunpack.c.l.b16 %v10124
      %v10225 = vunpack.c.l.b16 %v10125
      %v10226 = vunpack.c.l.b16 %v10126
      %v10227 = vunpack.c.l.b16 %v10127
      %v10228 = vunpack.c.l.b16 %v10128
      %v10229 = vunpack.c.l.b16 %v10129
      %v10230 = vunpack.c.l.b16 %v10130
      %v10231 = vunpack.c.l.b16 %v10131
      %v10232 = vunpack.c.l.b16 %v10132
      %v10233 = vunpack.c.l.b16 %v10133
      %v10234 = vunpack.c.h.b16 %v10124
      %v10235 = vunpack.c.h.b16 %v10125
      %v10236 = vunpack.c.h.b16 %v10126
      %v10237 = vunpack.c.h.b16 %v10127
      %v10238 = vunpack.c.h.b16 %v10128
      %v10239 = vunpack.c.h.b16 %v10129
      %v10240 = vunpack.c.h.b16 %v10130
      %v10241 = vunpack.c.h.b16 %v10131
      %v10242 = vunpack.c.h.b16 %v10132
      %v10243 = vunpack.c.h.b16 %v10133
      %v10244 = vunpack.c.l.b16 %v10134
      %v10245 = vunpack.c.l.b16 %v10135
      %v10246 = vunpack.c.l.b16 %v10136
      %v10247 = vunpack.c.l.b16 %v10137
      %v10248 = vunpack.c.l.b16 %v10138
      %v10249 = vunpack.c.l.b16 %v10139
      %v10250 = vunpack.c.l.b16 %v10140
      %v10251 = vunpack.c.l.b16 %v10141
      %v10252 = vunpack.c.l.b16 %v10142
      %v10253 = vunpack.c.l.b16 %v10143
      %v10254 = vunpack.c.h.b16 %v10134
      %v10255 = vunpack.c.h.b16 %v10135
      %v10256 = vunpack.c.h.b16 %v10136
      %v10257 = vunpack.c.h.b16 %v10137
      %v10258 = vunpack.c.h.b16 %v10138
      %v10259 = vunpack.c.h.b16 %v10139
      %v10260 = vunpack.c.h.b16 %v10140
      %v10261 = vunpack.c.h.b16 %v10141
      %v10262 = vunpack.c.h.b16 %v10142
      %v10263 = vunpack.c.h.b16 %v10143
      %v10264 = vpack.c.b16 %v10185, %v10184
      %v10265 = vpack.c.b16 %v10187, %v10186
      %v10266 = vpack.c.b16 %v10189, %v10188
      %v10267 = vpack.c.b16 %v10191, %v10190
      %v10268 = vpack.c.b16 %v10193, %v10192
      %v10269 = vpack.c.b16 %v10195, %v10194
      %v10270 = vpack.c.b16 %v10197, %v10196
      %v10271 = vpack.c.b16 %v10199, %v10198
      %v10272 = vpack.c.b16 %v10201, %v10200
      %v10273 = vpack.c.b16 %v10203, %v10202
      %v10274 = vpack.c.b16 %v10205, %v10204
      %v10275 = vpack.c.b16 %v10207, %v10206
      %v10276 = vpack.c.b16 %v10209, %v10208
      %v10277 = vpack.c.b16 %v10211, %v10210
      %v10278 = vpack.c.b16 %v10213, %v10212
      %v10279 = vpack.c.b16 %v10215, %v10214
      %v10280 = vpack.c.b16 %v10217, %v10216
      %v10281 = vpack.c.b16 %v10219, %v10218
      %v10282 = vpack.c.b16 %v10221, %v10220
      %v10283 = vpack.c.b16 %v10223, %v10222
      %v10284 = vpack.c.b16 %v10225, %v10224
      %v10285 = vpack.c.b16 %v10227, %v10226
      %v10286 = vpack.c.b16 %v10229, %v10228
      %v10287 = vpack.c.b16 %v10231, %v10230
      %v10288 = vpack.c.b16 %v10233, %v10232
      %v10289 = vpack.c.b16 %v10235, %v10234
      %v10290 = vpack.c.b16 %v10237, %v10236
      %v10291 = vpack.c.b16 %v10239, %v10238
      %v10292 = vpack.c.b16 %v10241, %v10240
      %v10293 = vpack.c.b16 %v10243, %v10242
      %v10294 = vpack.c.b16 %v10245, %v10244
      %v10295 = vpack.c.b16 %v10247, %v10246
      %v10296 = vpack.c.b16 %v10249, %v10248
      %v10297 = vpack.c.b16 %v10251, %v10250
      %v10298 = vpack.c.b16 %v10253, %v10252
      %v10299 = vpack.c.b16 %v10255, %v10254
      %v10300 = vpack.c.b16 %v10257, %v10256
      %v10301 = vpack.c.b16 %v10259, %v10258
      %v10302 = vpack.c.b16 %v10261, %v10260
      %v10303 = vpack.c.b16 %v10263, %v10262
      %10344 = vst [vmem:[%s392] sm:$0xff] %v10264
      %10345 = vst [vmem:[%s392 + $0x8] sm:$0xff] %v10265
      %10346 = vst [vmem:[%s392 + $0x10] sm:$0xff] %v10266
      %10347 = vst [vmem:[%s392 + $0x18] sm:$0xff] %v10267
      %vm10348 = vcmask 1043456
      %vm10349 = vcmask 31748
      %vm10350 = vmor %vm10349, %vm10348
      %10351 = vst.msk [vmem:[%s392 + $0x20] sm:$0xff] %vm10350, %v10268
      %10352 = vst [vmem:[%s392 + $0x28] sm:$0xff] %v10269
      %10353 = vst [vmem:[%s392 + $0x30] sm:$0xff] %v10270
      %10354 = vst [vmem:[%s392 + $0x38] sm:$0xff] %v10271
      %10355 = vst [vmem:[%s392 + $0x40] sm:$0xff] %v10272
      %10356 = vst.msk [vmem:[%s392 + $0x48] sm:$0xff] %vm10350, %v10273
      %10357 = vst [vmem:[%s392 + $0x50] sm:$0xff] %v10274
      %10358 = vst [vmem:[%s392 + $0x58] sm:$0xff] %v10275
      %10359 = vst [vmem:[%s392 + $0x60] sm:$0xff] %v10276
      %10360 = vst [vmem:[%s392 + $0x68] sm:$0xff] %v10277
      %10361 = vst.msk [vmem:[%s392 + $0x70] sm:$0xff] %vm10350, %v10278
      %10362 = vst [vmem:[%s392 + $0x78] sm:$0xff] %v10279
      %10363 = vst [vmem:[%s392 + $0x80] sm:$0xff] %v10280
      %10364 = vst [vmem:[%s392 + $0x88] sm:$0xff] %v10281
      %10365 = vst [vmem:[%s392 + $0x90] sm:$0xff] %v10282
      %10366 = vst.msk [vmem:[%s392 + $0x98] sm:$0xff] %vm10350, %v10283
      %10367 = vst [vmem:[%s392 + $0xa0] sm:$0xff] %v10284
      %10368 = vst [vmem:[%s392 + $0xa8] sm:$0xff] %v10285
      %10369 = vst [vmem:[%s392 + $0xb0] sm:$0xff] %v10286
      %10370 = vst [vmem:[%s392 + $0xb8] sm:$0xff] %v10287
      %10371 = vst.msk [vmem:[%s392 + $0xc0] sm:$0xff] %vm10350, %v10288
      %10372 = vst [vmem:[%s392 + $0xc8] sm:$0xff] %v10289
      %10373 = vst [vmem:[%s392 + $0xd0] sm:$0xff] %v10290
      %10374 = vst [vmem:[%s392 + $0xd8] sm:$0xff] %v10291
      %10375 = vst [vmem:[%s392 + $0xe0] sm:$0xff] %v10292
      %10376 = vst.msk [vmem:[%s392 + $0xe8] sm:$0xff] %vm10350, %v10293
      %10377 = vst [vmem:[%s392 + $0xf0] sm:$0xff] %v10294
      %10378 = vst [vmem:[%s392 + $0xf8] sm:$0xff] %v10295
      %10379 = vst [vmem:[%s392 + $0x100] sm:$0xff] %v10296
      %10380 = vst [vmem:[%s392 + $0x108] sm:$0xff] %v10297
      %10381 = vst.msk [vmem:[%s392 + $0x110] sm:$0xff] %vm10350, %v10298
      %10382 = vst [vmem:[%s392 + $0x118] sm:$0xff] %v10299
      %10383 = vst [vmem:[%s392 + $0x120] sm:$0xff] %v10300
      %10384 = vst [vmem:[%s392 + $0x128] sm:$0xff] %v10301
      %10385 = vst [vmem:[%s392 + $0x130] sm:$0xff] %v10302
      %10386 = vst.msk [vmem:[%s392 + $0x138] sm:$0xff] %vm10350, %v10303
      %p10387 = scmp.lt.s32.totalorder %s20, 1
      %s10388 = scalar_select %p10387, %s20, 1
      %s10389 = smul.addr %s10388, 80
      %s10390 = smul.addr %s10389, 4
      %s10391 = scalar_lea.vmem %s9, %s10390
      // Predicated region
      $region57: #{decoder_forward.1} parent=55 // pred_check
        %p10392 = pneg %p247
      $region58: #{decoder_forward.1} parent=55 // pred_check_branch
        %10394 = sbr.rel (%p10392) target = $region60
      $region59: #{decoder_forward.1} parent=55 // pred_region
        _
      $region60: #{decoder_forward.1} parent=55 // pred_fallthru
        _
    $region56: #{decoder_forward.1} parent=5 // pred_fallthru
      _
    %p10395 = scmp.le.s32.totalorder 2, %s15
    // Predicated region
    $region61: #{decoder_forward.1} parent=5 // pred_check
      %p10396 = pneg %p10395
    $region62: #{decoder_forward.1} parent=5 // pred_check_branch
      %10398 = sbr.rel (%p10396) target = $region64
    $region63: #{decoder_forward.1} parent=5 // pred_region
      %s10399 = ssub.s32 %s15, 2
      // Predicated region
      $region65: #{decoder_forward.1} parent=63 // pred_check
        %p10400 = pneg %p253
      $region66: #{decoder_forward.1} parent=63 // pred_check_branch
        %10402 = sbr.rel (%p10400) target = $region68
      $region67: #{decoder_forward.1} parent=63 // pred_region
        %p10403 = scmp.lt.s32.totalorder %s21, 1
        %s10404 = scalar_select %p10403, %s21, 1
        %s10405 = smul.addr %s10404, 80
        %s10406 = smul.addr %s10405, 4
        %s10407 = scalar_lea.vmem %s9, %s10406
      $region68: #{decoder_forward.1} parent=63 // pred_fallthru
        _
    $region64: #{decoder_forward.1} parent=5 // pred_fallthru
      _
  $region6: #{decoder_forward.1} parent=0 // loop_footer
    %s19 = sadd.s32 1, %s15
  $region7: #{decoder_forward.1} parent=0 // loop_footer_branch
    %14 = sbr.rel target = $region3
  $region8: #{decoder_forward.1} parent=0 // loop_exit
    _

</llo_original>
